<compile_context>
chip_gen: v6e
topology: v6e:2x2x1
jax: 0.10.0
libtpu: 0.0.40
codegen_flags: <defaults>
</compile_context>

<pallas_src>
import jax
import jax.numpy as jnp
from jax.experimental import pallas as pl
from jax.experimental.pallas import tpu as pltpu

EPS = 1e-5


def _resblock_kernel(x_ref, g1_ref, b1_ref, w1_ref, g2_ref, b2_ref, w2_ref, o_ref):
    bt, C, L = x_ref.shape          # (block_b, C, L) NCL slab
    inv_c = 1.0 / C

    # ---- hoisted loop-invariants (broadcasts are NOT CSE'd if left inside the loop) ----
    g1 = jnp.broadcast_to(g1_ref[...], (C, L))   # (C, 1) -> (C, L), f32
    b1 = jnp.broadcast_to(b1_ref[...], (C, L))
    g2 = jnp.broadcast_to(g2_ref[...], (C, L))
    b2 = jnp.broadcast_to(b2_ref[...], (C, L))
    w1 = w1_ref[...]                              # (C, 3C) bf16
    w2 = w2_ref[...]

    lane = jax.lax.broadcasted_iota(jnp.int32, (1, L), 1)
    not_first = jnp.broadcast_to(lane != 0, (C, L))        # column l==0 has no l-1 neighbour
    not_last = jnp.broadcast_to(lane != (L - 1), (C, L))   # column l==L-1 has no l+1 neighbour

    def ln_relu(h, g, b):
        # LayerNorm over channels = sublane-axis reduction (VALU-dominant), stats in f32.
        s1 = jnp.sum(h, axis=0, keepdims=True) * inv_c            # E[x],  (1, L)
        s2 = jnp.sum(h * h, axis=0, keepdims=True) * inv_c        # E[x^2]
        var = jnp.maximum(s2 - s1 * s1, 0.0)                      # clamp: one-pass var can go <0
        y = (h - s1) * jax.lax.rsqrt(var + EPS) * g + b
        return jnp.maximum(y, 0.0).astype(jnp.bfloat16)           # single bf16 cast for staging

    def conv3(h_bf, w):
        # k=3 "same" conv: taps via lane rolls + boundary masking, one fused K=3C matmul.
        h_prev = jnp.where(not_first, jnp.roll(h_bf, 1, axis=1), 0.0)    # pairs with w[:,:,0]
        h_next = jnp.where(not_last, jnp.roll(h_bf, -1, axis=1), 0.0)    # pairs with w[:,:,2]
        h_cat = jnp.concatenate([h_prev, h_bf, h_next], axis=0)          # (3C, L) bf16
        return jnp.dot(w, h_cat, preferred_element_type=jnp.float32)     # (C, L) f32

    # Per-batch-element pipeline entirely in the native NCL layout: no transposes anywhere.
    for i in range(bt):                      # static unroll; bt is small
        x_i = x_ref[i]                       # (C, L) f32
        h = conv3(ln_relu(x_i, g1, b1), w1)
        h = conv3(ln_relu(h, g2, b2), w2)
        o_ref[i] = jnp.maximum(h + x_i, 0.0)    # residual + final ReLU, stored in NCL


def _stack_conv_weight(w):
    # nn.Conv1d weight (C_out, C_in, 3) -> (C_out, 3*C_in); tap blocks ordered [k=0 | k=1 | k=2]
    # to match the [h_prev, h_center, h_next] channel-axis concat in the kernel.
    return jnp.concatenate([w[:, :, 0], w[:, :, 1], w[:, :, 2]], axis=1)


def _choose_block_b(B, C, L, target_rows=1024, slab_budget_bytes=32 << 20):
    # Largest divisor of B with block_b*L <= target_rows and the double-buffered f32 in+out
    # slabs (2 x 2 x block_b*C*L*4 bytes) within budget (conservative for v7x's 64 MiB VMEM).
    best = 1
    for cand in range(1, B + 1):
        if B % cand:
            continue
        if cand * L <= target_rows and 16 * cand * C * L <= slab_budget_bytes:
            best = cand
    return best


def resblock_pallas(x_ncl, params, *, block_b=None):
    """x_ncl: (B, C, L) float32 — same layout as the PyTorch module input."""
    B, C, L = x_ncl.shape
    x_ncl = x_ncl.astype(jnp.float32)

    if block_b is None:
        block_b = _choose_block_b(B, C, L)
    assert B % block_b == 0
    num_blocks = B // block_b

    g1 = params["g1"].reshape(C, 1).astype(jnp.float32)
    b1 = params["b1"].reshape(C, 1).astype(jnp.float32)
    g2 = params["g2"].reshape(C, 1).astype(jnp.float32)
    b2 = params["b2"].reshape(C, 1).astype(jnp.float32)
    w1s = _stack_conv_weight(params["w1"]).astype(jnp.bfloat16)   # (C, 3C) bf16
    w2s = _stack_conv_weight(params["w2"]).astype(jnp.bfloat16)   # (C, 3C) bf16

    x_spec = pl.BlockSpec((block_b, C, L), lambda i: (i, 0, 0))
    vec_spec = pl.BlockSpec((C, 1), lambda i: (0, 0))       # grid-invariant block index
    w_spec = pl.BlockSpec((C, 3 * C), lambda i: (0, 0))     # grid-invariant block index

    cost = pl.CostEstimate(
        flops=12 * B * L * C * C,                            # 2 convs x (2 * (B*L) * 3C * C)
        transcendentals=2 * B * L,                           # one rsqrt per position per LN
        bytes_accessed=2 * B * C * L * 4 + 2 * 3 * C * C * 2 + 4 * C * 4,
    )

    return pl.pallas_call(
        _resblock_kernel,
        out_shape=jax.ShapeDtypeStruct((B, C, L), jnp.float32),
        grid_spec=pltpu.PrefetchScalarGridSpec(
            num_scalar_prefetch=0,
            grid=(num_blocks,),
            in_specs=[x_spec, vec_spec, vec_spec, w_spec,
                      vec_spec, vec_spec, w_spec],
            out_specs=x_spec,
        ),
        compiler_params=pltpu.CompilerParams(
            dimension_semantics=("parallel",),
            vmem_limit_bytes=48 * 1024 * 1024,   # > 16/32 MiB defaults, < v7x 64 MiB physical
        ),
        cost_estimate=cost,
    )(x_ncl, g1, b1, w1s, g2, b2, w2s)


def resblock_ref(x_ncl, params):
    """Pure-JAX f32 reference mirroring the PyTorch forward exactly."""
    x_blc = jnp.transpose(x_ncl, (0, 2, 1))

    def ln_relu(h, g, b):
        mu = jnp.mean(h, axis=-1, keepdims=True)
        var = jnp.mean((h - mu) ** 2, axis=-1, keepdims=True)
        return jnp.maximum((h - mu) / jnp.sqrt(var + EPS) * g + b, 0.0)

    def conv3(h_blc, w):  # h_blc: (B, L, C); w: (C_out, C_in, 3)
        hp = jnp.pad(h_blc, ((0, 0), (1, 1), (0, 0)))
        return (hp[:, :-2] @ w[:, :, 0].T + hp[:, 1:-1] @ w[:, :, 1].T
                + hp[:, 2:] @ w[:, :, 2].T)

    h = conv3(ln_relu(x_blc, params["g1"], params["b1"]), params["w1"])
    h = conv3(ln_relu(h, params["g2"], params["b2"]), params["w2"])
    return jnp.transpose(jnp.maximum(h + x_blc, 0.0), (0, 2, 1))


if __name__ == "__main__":
    B, C, L = 16, 128, 128   # block_b=8 -> 1024 packed rows/step, grid=(2,) (even for megacore)
    key = jax.random.PRNGKey(0)
    kx, k1, k2, k3, k4, k5, k6 = jax.random.split(key, 7)

    x = jax.random.normal(kx, (B, C, L), dtype=jnp.float32)
    params = {
        "g1": 1.0 + 0.05 * jax.random.normal(k1, (C,), dtype=jnp.float32),
        "b1": 0.05 * jax.random.normal(k2, (C,), dtype=jnp.float32),
        "w1": 0.1 * jax.random.normal(k3, (C, C, 3), dtype=jnp.float32),
        "g2": 1.0 + 0.05 * jax.random.normal(k4, (C,), dtype=jnp.float32),
        "b2": 0.05 * jax.random.normal(k5, (C,), dtype=jnp.float32),
        "w2": 0.1 * jax.random.normal(k6, (C, C, 3), dtype=jnp.float32),
    }

    out = jax.block_until_ready(resblock_pallas(x, params))
    ref = jax.block_until_ready(resblock_ref(x, params))

    assert out.shape == (B, C, L)
    max_err = float(jnp.max(jnp.abs(out - ref)))
    mean_err = float(jnp.mean(jnp.abs(out - ref)))
    # bf16 MXU inputs vs f32 reference -> tolerance loosened accordingly.
    assert max_err < 2e-1 and mean_err < 2e-2, f"mismatch: max={max_err} mean={mean_err}"
    print("KERNEL_OK")
</pallas_src>

<mosaic_0001>
module attributes {stable_mosaic.version = 11 : i64} {
  func.func @_resblock_kernel(%arg0: i32, %arg1: memref<8x128x128xf32, #tpu.memory_space<vmem>>, %arg2: memref<128x1xf32, #tpu.memory_space<vmem>>, %arg3: memref<128x1xf32, #tpu.memory_space<vmem>>, %arg4: memref<128x384xbf16, #tpu.memory_space<vmem>>, %arg5: memref<128x1xf32, #tpu.memory_space<vmem>>, %arg6: memref<128x1xf32, #tpu.memory_space<vmem>>, %arg7: memref<128x384xbf16, #tpu.memory_space<vmem>>, %arg8: memref<8x128x128xf32, #tpu.memory_space<vmem>>) attributes {dimension_semantics = [#tpu.dimension_semantics<parallel>], iteration_bounds = array<i64: 2>, scalar_prefetch = 0 : i64, scratch_operands = 0 : i64, tpu.core_type = #tpu.core_type<tc>, window_params = [{transform_indices = @transform_0, window_bounds = array<i64: 8, 128, 128>}, {pipeline_mode = #tpu.pipeline_mode<synchronous>, transform_indices = @transform_1, window_bounds = array<i64: 128, 1>}, {pipeline_mode = #tpu.pipeline_mode<synchronous>, transform_indices = @transform_2, window_bounds = array<i64: 128, 1>}, {pipeline_mode = #tpu.pipeline_mode<synchronous>, transform_indices = @transform_3, window_bounds = array<i64: 128, 384>}, {pipeline_mode = #tpu.pipeline_mode<synchronous>, transform_indices = @transform_4, window_bounds = array<i64: 128, 1>}, {pipeline_mode = #tpu.pipeline_mode<synchronous>, transform_indices = @transform_5, window_bounds = array<i64: 128, 1>}, {pipeline_mode = #tpu.pipeline_mode<synchronous>, transform_indices = @transform_6, window_bounds = array<i64: 128, 384>}, {transform_indices = @transform_7, window_bounds = array<i64: 8, 128, 128>}]} {
    %c0 = arith.constant 0 : index
    %c0_0 = arith.constant 0 : index
    %0 = vector.load %arg2[%c0, %c0_0] : memref<128x1xf32, #tpu.memory_space<vmem>>, vector<128x1xf32>
    %1 = vector.shape_cast %0 : vector<128x1xf32> to vector<128x1xf32>
    %2 = vector.broadcast %1 : vector<128x1xf32> to vector<128x128xf32>
    %c0_1 = arith.constant 0 : index
    %c0_2 = arith.constant 0 : index
    %3 = vector.load %arg3[%c0_1, %c0_2] : memref<128x1xf32, #tpu.memory_space<vmem>>, vector<128x1xf32>
    %4 = vector.shape_cast %3 : vector<128x1xf32> to vector<128x1xf32>
    %5 = vector.broadcast %4 : vector<128x1xf32> to vector<128x128xf32>
    %c0_3 = arith.constant 0 : index
    %c0_4 = arith.constant 0 : index
    %6 = vector.load %arg5[%c0_3, %c0_4] : memref<128x1xf32, #tpu.memory_space<vmem>>, vector<128x1xf32>
    %7 = vector.shape_cast %6 : vector<128x1xf32> to vector<128x1xf32>
    %8 = vector.broadcast %7 : vector<128x1xf32> to vector<128x128xf32>
    %c0_5 = arith.constant 0 : index
    %c0_6 = arith.constant 0 : index
    %9 = vector.load %arg6[%c0_5, %c0_6] : memref<128x1xf32, #tpu.memory_space<vmem>>, vector<128x1xf32>
    %10 = vector.shape_cast %9 : vector<128x1xf32> to vector<128x1xf32>
    %11 = vector.broadcast %10 : vector<128x1xf32> to vector<128x128xf32>
    %c0_7 = arith.constant 0 : index
    %c0_8 = arith.constant 0 : index
    %12 = vector.load %arg4[%c0_7, %c0_8] : memref<128x384xbf16, #tpu.memory_space<vmem>>, vector<128x384xbf16>
    %c0_9 = arith.constant 0 : index
    %c0_10 = arith.constant 0 : index
    %13 = vector.load %arg7[%c0_9, %c0_10] : memref<128x384xbf16, #tpu.memory_space<vmem>>, vector<128x384xbf16>
    %14 = tpu.iota {dimensions = array<i32: 1>} : vector<1x128xi32>
    %c0_i32 = arith.constant 0 : i32
    %15 = vector.broadcast %c0_i32 : i32 to vector<1x128xi32>
    %16 = arith.cmpi ne, %14, %15 : vector<1x128xi32>
    %17 = vector.shape_cast %16 : vector<1x128xi1> to vector<1x128xi1>
    %18 = vector.broadcast %17 : vector<1x128xi1> to vector<128x128xi1>
    %c127_i32 = arith.constant 127 : i32
    %19 = vector.broadcast %c127_i32 : i32 to vector<1x128xi32>
    %20 = arith.cmpi ne, %14, %19 : vector<1x128xi32>
    %21 = vector.shape_cast %20 : vector<1x128xi1> to vector<1x128xi1>
    %22 = vector.broadcast %21 : vector<1x128xi1> to vector<128x128xi1>
    %c0_11 = arith.constant 0 : index
    %c0_12 = arith.constant 0 : index
    %c0_13 = arith.constant 0 : index
    %23 = vector.load %arg1[%c0_11, %c0_12, %c0_13] : memref<8x128x128xf32, #tpu.memory_space<vmem>>, vector<1x128x128xf32>
    %24 = vector.shape_cast %23 : vector<1x128x128xf32> to vector<128x128xf32>
    %cst = arith.constant dense<0.000000e+00> : vector<128xf32>
    %25 = vector.multi_reduction <add>, %24, %cst [0] : vector<128x128xf32> to vector<128xf32>
    %26 = vector.shape_cast %25 : vector<128xf32> to vector<1x128xf32>
    %cst_14 = arith.constant 7.812500e-03 : f32
    %27 = vector.broadcast %cst_14 : f32 to vector<1x128xf32>
    %28 = arith.mulf %26, %27 : vector<1x128xf32>
    %29 = arith.mulf %24, %24 : vector<128x128xf32>
    %cst_15 = arith.constant dense<0.000000e+00> : vector<128xf32>
    %30 = vector.multi_reduction <add>, %29, %cst_15 [0] : vector<128x128xf32> to vector<128xf32>
    %31 = vector.shape_cast %30 : vector<128xf32> to vector<1x128xf32>
    %cst_16 = arith.constant 7.812500e-03 : f32
    %32 = vector.broadcast %cst_16 : f32 to vector<1x128xf32>
    %33 = arith.mulf %31, %32 : vector<1x128xf32>
    %34 = arith.mulf %28, %28 : vector<1x128xf32>
    %35 = arith.subf %33, %34 : vector<1x128xf32>
    %cst_17 = arith.constant 0.000000e+00 : f32
    %36 = vector.broadcast %cst_17 : f32 to vector<1x128xf32>
    %37 = arith.maximumf %35, %36 : vector<1x128xf32>
    %38 = vector.broadcast %28 : vector<1x128xf32> to vector<128x128xf32>
    %39 = arith.subf %24, %38 : vector<128x128xf32>
    %cst_18 = arith.constant 9.99999974E-6 : f32
    %40 = vector.broadcast %cst_18 : f32 to vector<1x128xf32>
    %41 = arith.addf %37, %40 : vector<1x128xf32>
    %42 = math.rsqrt %41 : vector<1x128xf32>
    %43 = vector.broadcast %42 : vector<1x128xf32> to vector<128x128xf32>
    %44 = arith.mulf %39, %43 : vector<128x128xf32>
    %45 = arith.mulf %44, %2 : vector<128x128xf32>
    %46 = arith.addf %45, %5 : vector<128x128xf32>
    %cst_19 = arith.constant 0.000000e+00 : f32
    %47 = vector.broadcast %cst_19 : f32 to vector<128x128xf32>
    %48 = arith.maximumf %46, %47 : vector<128x128xf32>
    %49 = arith.truncf %48 : vector<128x128xf32> to vector<128x128xbf16>
    %50 = vector.extract_strided_slice %49 {offsets = [0, 127], sizes = [128, 1], strides = [1, 1]} : vector<128x128xbf16> to vector<128x1xbf16>
    %51 = vector.extract_strided_slice %49 {offsets = [0, 0], sizes = [128, 127], strides = [1, 1]} : vector<128x128xbf16> to vector<128x127xbf16>
    %52 = tpu.concatenate %50, %51 in 1 : vector<128x1xbf16>, vector<128x127xbf16> -> vector<128x128xbf16>
    %cst_20 = arith.constant 0.000000e+00 : f32
    %53 = arith.truncf %cst_20 : f32 to bf16
    %54 = vector.broadcast %53 : bf16 to vector<128x128xbf16>
    %55 = arith.select %18, %52, %54 : vector<128x128xi1>, vector<128x128xbf16>
    %56 = vector.extract_strided_slice %49 {offsets = [0, 1], sizes = [128, 127], strides = [1, 1]} : vector<128x128xbf16> to vector<128x127xbf16>
    %57 = vector.extract_strided_slice %49 {offsets = [0, 0], sizes = [128, 1], strides = [1, 1]} : vector<128x128xbf16> to vector<128x1xbf16>
    %58 = tpu.concatenate %56, %57 in 1 : vector<128x127xbf16>, vector<128x1xbf16> -> vector<128x128xbf16>
    %cst_21 = arith.constant 0.000000e+00 : f32
    %59 = arith.truncf %cst_21 : f32 to bf16
    %60 = vector.broadcast %59 : bf16 to vector<128x128xbf16>
    %61 = arith.select %22, %58, %60 : vector<128x128xi1>, vector<128x128xbf16>
    %62 = tpu.concatenate %55, %49, %61 in 0 : vector<128x128xbf16>, vector<128x128xbf16>, vector<128x128xbf16> -> vector<384x128xbf16>
    %cst_22 = arith.constant dense<0.000000e+00> : vector<128x128xf32>
    %63 = tpu.matmul %12, %62, %cst_22 {dimension_numbers = #tpu.dot_dimension_numbers<[1], [0], [0], [1], [0, 0, 1, 1], [], []>} : vector<128x384xbf16>, vector<384x128xbf16>, vector<128x128xf32> -> vector<128x128xf32>
    %cst_23 = arith.constant dense<0.000000e+00> : vector<128xf32>
    %64 = vector.multi_reduction <add>, %63, %cst_23 [0] : vector<128x128xf32> to vector<128xf32>
    %65 = vector.shape_cast %64 : vector<128xf32> to vector<1x128xf32>
    %cst_24 = arith.constant 7.812500e-03 : f32
    %66 = vector.broadcast %cst_24 : f32 to vector<1x128xf32>
    %67 = arith.mulf %65, %66 : vector<1x128xf32>
    %68 = arith.mulf %63, %63 : vector<128x128xf32>
    %cst_25 = arith.constant dense<0.000000e+00> : vector<128xf32>
    %69 = vector.multi_reduction <add>, %68, %cst_25 [0] : vector<128x128xf32> to vector<128xf32>
    %70 = vector.shape_cast %69 : vector<128xf32> to vector<1x128xf32>
    %cst_26 = arith.constant 7.812500e-03 : f32
    %71 = vector.broadcast %cst_26 : f32 to vector<1x128xf32>
    %72 = arith.mulf %70, %71 : vector<1x128xf32>
    %73 = arith.mulf %67, %67 : vector<1x128xf32>
    %74 = arith.subf %72, %73 : vector<1x128xf32>
    %cst_27 = arith.constant 0.000000e+00 : f32
    %75 = vector.broadcast %cst_27 : f32 to vector<1x128xf32>
    %76 = arith.maximumf %74, %75 : vector<1x128xf32>
    %77 = vector.broadcast %67 : vector<1x128xf32> to vector<128x128xf32>
    %78 = arith.subf %63, %77 : vector<128x128xf32>
    %cst_28 = arith.constant 9.99999974E-6 : f32
    %79 = vector.broadcast %cst_28 : f32 to vector<1x128xf32>
    %80 = arith.addf %76, %79 : vector<1x128xf32>
    %81 = math.rsqrt %80 : vector<1x128xf32>
    %82 = vector.broadcast %81 : vector<1x128xf32> to vector<128x128xf32>
    %83 = arith.mulf %78, %82 : vector<128x128xf32>
    %84 = arith.mulf %83, %8 : vector<128x128xf32>
    %85 = arith.addf %84, %11 : vector<128x128xf32>
    %cst_29 = arith.constant 0.000000e+00 : f32
    %86 = vector.broadcast %cst_29 : f32 to vector<128x128xf32>
    %87 = arith.maximumf %85, %86 : vector<128x128xf32>
    %88 = arith.truncf %87 : vector<128x128xf32> to vector<128x128xbf16>
    %89 = vector.extract_strided_slice %88 {offsets = [0, 127], sizes = [128, 1], strides = [1, 1]} : vector<128x128xbf16> to vector<128x1xbf16>
    %90 = vector.extract_strided_slice %88 {offsets = [0, 0], sizes = [128, 127], strides = [1, 1]} : vector<128x128xbf16> to vector<128x127xbf16>
    %91 = tpu.concatenate %89, %90 in 1 : vector<128x1xbf16>, vector<128x127xbf16> -> vector<128x128xbf16>
    %cst_30 = arith.constant 0.000000e+00 : f32
    %92 = arith.truncf %cst_30 : f32 to bf16
    %93 = vector.broadcast %92 : bf16 to vector<128x128xbf16>
    %94 = arith.select %18, %91, %93 : vector<128x128xi1>, vector<128x128xbf16>
    %95 = vector.extract_strided_slice %88 {offsets = [0, 1], sizes = [128, 127], strides = [1, 1]} : vector<128x128xbf16> to vector<128x127xbf16>
    %96 = vector.extract_strided_slice %88 {offsets = [0, 0], sizes = [128, 1], strides = [1, 1]} : vector<128x128xbf16> to vector<128x1xbf16>
    %97 = tpu.concatenate %95, %96 in 1 : vector<128x127xbf16>, vector<128x1xbf16> -> vector<128x128xbf16>
    %cst_31 = arith.constant 0.000000e+00 : f32
    %98 = arith.truncf %cst_31 : f32 to bf16
    %99 = vector.broadcast %98 : bf16 to vector<128x128xbf16>
    %100 = arith.select %22, %97, %99 : vector<128x128xi1>, vector<128x128xbf16>
    %101 = tpu.concatenate %94, %88, %100 in 0 : vector<128x128xbf16>, vector<128x128xbf16>, vector<128x128xbf16> -> vector<384x128xbf16>
    %cst_32 = arith.constant dense<0.000000e+00> : vector<128x128xf32>
    %102 = tpu.matmul %13, %101, %cst_32 {dimension_numbers = #tpu.dot_dimension_numbers<[1], [0], [0], [1], [0, 0, 1, 1], [], []>} : vector<128x384xbf16>, vector<384x128xbf16>, vector<128x128xf32> -> vector<128x128xf32>
    %103 = arith.addf %102, %24 : vector<128x128xf32>
    %cst_33 = arith.constant 0.000000e+00 : f32
    %104 = vector.broadcast %cst_33 : f32 to vector<128x128xf32>
    %105 = arith.maximumf %103, %104 : vector<128x128xf32>
    %c0_34 = arith.constant 0 : index
    %c0_35 = arith.constant 0 : index
    %c0_36 = arith.constant 0 : index
    %106 = vector.load %arg8[%c0_34, %c0_35, %c0_36] : memref<8x128x128xf32, #tpu.memory_space<vmem>>, vector<1x128x128xf32>
    %107 = vector.shape_cast %106 : vector<1x128x128xf32> to vector<128x128xf32>
    %108 = vector.shape_cast %105 : vector<128x128xf32> to vector<1x128x128xf32>
    tpu.vector_store %arg8[%c0_34, %c0_35, %c0_36], %108 {strides = array<i32>} : memref<8x128x128xf32, #tpu.memory_space<vmem>>, vector<1x128x128xf32>,
    %c1 = arith.constant 1 : index
    %c0_37 = arith.constant 0 : index
    %c0_38 = arith.constant 0 : index
    %109 = vector.load %arg1[%c1, %c0_37, %c0_38] : memref<8x128x128xf32, #tpu.memory_space<vmem>>, vector<1x128x128xf32>
    %110 = vector.shape_cast %109 : vector<1x128x128xf32> to vector<128x128xf32>
    %cst_39 = arith.constant dense<0.000000e+00> : vector<128xf32>
    %111 = vector.multi_reduction <add>, %110, %cst_39 [0] : vector<128x128xf32> to vector<128xf32>
    %112 = vector.shape_cast %111 : vector<128xf32> to vector<1x128xf32>
    %cst_40 = arith.constant 7.812500e-03 : f32
    %113 = vector.broadcast %cst_40 : f32 to vector<1x128xf32>
    %114 = arith.mulf %112, %113 : vector<1x128xf32>
    %115 = arith.mulf %110, %110 : vector<128x128xf32>
    %cst_41 = arith.constant dense<0.000000e+00> : vector<128xf32>
    %116 = vector.multi_reduction <add>, %115, %cst_41 [0] : vector<128x128xf32> to vector<128xf32>
    %117 = vector.shape_cast %116 : vector<128xf32> to vector<1x128xf32>
    %cst_42 = arith.constant 7.812500e-03 : f32
    %118 = vector.broadcast %cst_42 : f32 to vector<1x128xf32>
    %119 = arith.mulf %117, %118 : vector<1x128xf32>
    %120 = arith.mulf %114, %114 : vector<1x128xf32>
    %121 = arith.subf %119, %120 : vector<1x128xf32>
    %cst_43 = arith.constant 0.000000e+00 : f32
    %122 = vector.broadcast %cst_43 : f32 to vector<1x128xf32>
    %123 = arith.maximumf %121, %122 : vector<1x128xf32>
    %124 = vector.broadcast %114 : vector<1x128xf32> to vector<128x128xf32>
    %125 = arith.subf %110, %124 : vector<128x128xf32>
    %cst_44 = arith.constant 9.99999974E-6 : f32
    %126 = vector.broadcast %cst_44 : f32 to vector<1x128xf32>
    %127 = arith.addf %123, %126 : vector<1x128xf32>
    %128 = math.rsqrt %127 : vector<1x128xf32>
    %129 = vector.broadcast %128 : vector<1x128xf32> to vector<128x128xf32>
    %130 = arith.mulf %125, %129 : vector<128x128xf32>
    %131 = arith.mulf %130, %2 : vector<128x128xf32>
    %132 = arith.addf %131, %5 : vector<128x128xf32>
    %cst_45 = arith.constant 0.000000e+00 : f32
    %133 = vector.broadcast %cst_45 : f32 to vector<128x128xf32>
    %134 = arith.maximumf %132, %133 : vector<128x128xf32>
    %135 = arith.truncf %134 : vector<128x128xf32> to vector<128x128xbf16>
    %136 = vector.extract_strided_slice %135 {offsets = [0, 127], sizes = [128, 1], strides = [1, 1]} : vector<128x128xbf16> to vector<128x1xbf16>
    %137 = vector.extract_strided_slice %135 {offsets = [0, 0], sizes = [128, 127], strides = [1, 1]} : vector<128x128xbf16> to vector<128x127xbf16>
    %138 = tpu.concatenate %136, %137 in 1 : vector<128x1xbf16>, vector<128x127xbf16> -> vector<128x128xbf16>
    %cst_46 = arith.constant 0.000000e+00 : f32
    %139 = arith.truncf %cst_46 : f32 to bf16
    %140 = vector.broadcast %139 : bf16 to vector<128x128xbf16>
    %141 = arith.select %18, %138, %140 : vector<128x128xi1>, vector<128x128xbf16>
    %142 = vector.extract_strided_slice %135 {offsets = [0, 1], sizes = [128, 127], strides = [1, 1]} : vector<128x128xbf16> to vector<128x127xbf16>
    %143 = vector.extract_strided_slice %135 {offsets = [0, 0], sizes = [128, 1], strides = [1, 1]} : vector<128x128xbf16> to vector<128x1xbf16>
    %144 = tpu.concatenate %142, %143 in 1 : vector<128x127xbf16>, vector<128x1xbf16> -> vector<128x128xbf16>
    %cst_47 = arith.constant 0.000000e+00 : f32
    %145 = arith.truncf %cst_47 : f32 to bf16
    %146 = vector.broadcast %145 : bf16 to vector<128x128xbf16>
    %147 = arith.select %22, %144, %146 : vector<128x128xi1>, vector<128x128xbf16>
    %148 = tpu.concatenate %141, %135, %147 in 0 : vector<128x128xbf16>, vector<128x128xbf16>, vector<128x128xbf16> -> vector<384x128xbf16>
    %cst_48 = arith.constant dense<0.000000e+00> : vector<128x128xf32>
    %149 = tpu.matmul %12, %148, %cst_48 {dimension_numbers = #tpu.dot_dimension_numbers<[1], [0], [0], [1], [0, 0, 1, 1], [], []>} : vector<128x384xbf16>, vector<384x128xbf16>, vector<128x128xf32> -> vector<128x128xf32>
    %cst_49 = arith.constant dense<0.000000e+00> : vector<128xf32>
    %150 = vector.multi_reduction <add>, %149, %cst_49 [0] : vector<128x128xf32> to vector<128xf32>
    %151 = vector.shape_cast %150 : vector<128xf32> to vector<1x128xf32>
    %cst_50 = arith.constant 7.812500e-03 : f32
    %152 = vector.broadcast %cst_50 : f32 to vector<1x128xf32>
    %153 = arith.mulf %151, %152 : vector<1x128xf32>
    %154 = arith.mulf %149, %149 : vector<128x128xf32>
    %cst_51 = arith.constant dense<0.000000e+00> : vector<128xf32>
    %155 = vector.multi_reduction <add>, %154, %cst_51 [0] : vector<128x128xf32> to vector<128xf32>
    %156 = vector.shape_cast %155 : vector<128xf32> to vector<1x128xf32>
    %cst_52 = arith.constant 7.812500e-03 : f32
    %157 = vector.broadcast %cst_52 : f32 to vector<1x128xf32>
    %158 = arith.mulf %156, %157 : vector<1x128xf32>
    %159 = arith.mulf %153, %153 : vector<1x128xf32>
    %160 = arith.subf %158, %159 : vector<1x128xf32>
    %cst_53 = arith.constant 0.000000e+00 : f32
    %161 = vector.broadcast %cst_53 : f32 to vector<1x128xf32>
    %162 = arith.maximumf %160, %161 : vector<1x128xf32>
    %163 = vector.broadcast %153 : vector<1x128xf32> to vector<128x128xf32>
    %164 = arith.subf %149, %163 : vector<128x128xf32>
    %cst_54 = arith.constant 9.99999974E-6 : f32
    %165 = vector.broadcast %cst_54 : f32 to vector<1x128xf32>
    %166 = arith.addf %162, %165 : vector<1x128xf32>
    %167 = math.rsqrt %166 : vector<1x128xf32>
    %168 = vector.broadcast %167 : vector<1x128xf32> to vector<128x128xf32>
    %169 = arith.mulf %164, %168 : vector<128x128xf32>
    %170 = arith.mulf %169, %8 : vector<128x128xf32>
    %171 = arith.addf %170, %11 : vector<128x128xf32>
    %cst_55 = arith.constant 0.000000e+00 : f32
    %172 = vector.broadcast %cst_55 : f32 to vector<128x128xf32>
    %173 = arith.maximumf %171, %172 : vector<128x128xf32>
    %174 = arith.truncf %173 : vector<128x128xf32> to vector<128x128xbf16>
    %175 = vector.extract_strided_slice %174 {offsets = [0, 127], sizes = [128, 1], strides = [1, 1]} : vector<128x128xbf16> to vector<128x1xbf16>
    %176 = vector.extract_strided_slice %174 {offsets = [0, 0], sizes = [128, 127], strides = [1, 1]} : vector<128x128xbf16> to vector<128x127xbf16>
    %177 = tpu.concatenate %175, %176 in 1 : vector<128x1xbf16>, vector<128x127xbf16> -> vector<128x128xbf16>
    %cst_56 = arith.constant 0.000000e+00 : f32
    %178 = arith.truncf %cst_56 : f32 to bf16
    %179 = vector.broadcast %178 : bf16 to vector<128x128xbf16>
    %180 = arith.select %18, %177, %179 : vector<128x128xi1>, vector<128x128xbf16>
    %181 = vector.extract_strided_slice %174 {offsets = [0, 1], sizes = [128, 127], strides = [1, 1]} : vector<128x128xbf16> to vector<128x127xbf16>
    %182 = vector.extract_strided_slice %174 {offsets = [0, 0], sizes = [128, 1], strides = [1, 1]} : vector<128x128xbf16> to vector<128x1xbf16>
    %183 = tpu.concatenate %181, %182 in 1 : vector<128x127xbf16>, vector<128x1xbf16> -> vector<128x128xbf16>
    %cst_57 = arith.constant 0.000000e+00 : f32
    %184 = arith.truncf %cst_57 : f32 to bf16
    %185 = vector.broadcast %184 : bf16 to vector<128x128xbf16>
    %186 = arith.select %22, %183, %185 : vector<128x128xi1>, vector<128x128xbf16>
    %187 = tpu.concatenate %180, %174, %186 in 0 : vector<128x128xbf16>, vector<128x128xbf16>, vector<128x128xbf16> -> vector<384x128xbf16>
    %cst_58 = arith.constant dense<0.000000e+00> : vector<128x128xf32>
    %188 = tpu.matmul %13, %187, %cst_58 {dimension_numbers = #tpu.dot_dimension_numbers<[1], [0], [0], [1], [0, 0, 1, 1], [], []>} : vector<128x384xbf16>, vector<384x128xbf16>, vector<128x128xf32> -> vector<128x128xf32>
    %189 = arith.addf %188, %110 : vector<128x128xf32>
    %cst_59 = arith.constant 0.000000e+00 : f32
    %190 = vector.broadcast %cst_59 : f32 to vector<128x128xf32>
    %191 = arith.maximumf %189, %190 : vector<128x128xf32>
    %c1_60 = arith.constant 1 : index
    %c0_61 = arith.constant 0 : index
    %c0_62 = arith.constant 0 : index
    %192 = vector.load %arg8[%c1_60, %c0_61, %c0_62] : memref<8x128x128xf32, #tpu.memory_space<vmem>>, vector<1x128x128xf32>
    %193 = vector.shape_cast %192 : vector<1x128x128xf32> to vector<128x128xf32>
    %194 = vector.shape_cast %191 : vector<128x128xf32> to vector<1x128x128xf32>
    tpu.vector_store %arg8[%c1_60, %c0_61, %c0_62], %194 {strides = array<i32>} : memref<8x128x128xf32, #tpu.memory_space<vmem>>, vector<1x128x128xf32>,
    %c2 = arith.constant 2 : index
    %c0_63 = arith.constant 0 : index
    %c0_64 = arith.constant 0 : index
    %195 = vector.load %arg1[%c2, %c0_63, %c0_64] : memref<8x128x128xf32, #tpu.memory_space<vmem>>, vector<1x128x128xf32>
    %196 = vector.shape_cast %195 : vector<1x128x128xf32> to vector<128x128xf32>
    %cst_65 = arith.constant dense<0.000000e+00> : vector<128xf32>
    %197 = vector.multi_reduction <add>, %196, %cst_65 [0] : vector<128x128xf32> to vector<128xf32>
    %198 = vector.shape_cast %197 : vector<128xf32> to vector<1x128xf32>
    %cst_66 = arith.constant 7.812500e-03 : f32
    %199 = vector.broadcast %cst_66 : f32 to vector<1x128xf32>
    %200 = arith.mulf %198, %199 : vector<1x128xf32>
    %201 = arith.mulf %196, %196 : vector<128x128xf32>
    %cst_67 = arith.constant dense<0.000000e+00> : vector<128xf32>
    %202 = vector.multi_reduction <add>, %201, %cst_67 [0] : vector<128x128xf32> to vector<128xf32>
    %203 = vector.shape_cast %202 : vector<128xf32> to vector<1x128xf32>
    %cst_68 = arith.constant 7.812500e-03 : f32
    %204 = vector.broadcast %cst_68 : f32 to vector<1x128xf32>
    %205 = arith.mulf %203, %204 : vector<1x128xf32>
    %206 = arith.mulf %200, %200 : vector<1x128xf32>
    %207 = arith.subf %205, %206 : vector<1x128xf32>
    %cst_69 = arith.constant 0.000000e+00 : f32
    %208 = vector.broadcast %cst_69 : f32 to vector<1x128xf32>
    %209 = arith.maximumf %207, %208 : vector<1x128xf32>
    %210 = vector.broadcast %200 : vector<1x128xf32> to vector<128x128xf32>
    %211 = arith.subf %196, %210 : vector<128x128xf32>
    %cst_70 = arith.constant 9.99999974E-6 : f32
    %212 = vector.broadcast %cst_70 : f32 to vector<1x128xf32>
    %213 = arith.addf %209, %212 : vector<1x128xf32>
    %214 = math.rsqrt %213 : vector<1x128xf32>
    %215 = vector.broadcast %214 : vector<1x128xf32> to vector<128x128xf32>
    %216 = arith.mulf %211, %215 : vector<128x128xf32>
    %217 = arith.mulf %216, %2 : vector<128x128xf32>
    %218 = arith.addf %217, %5 : vector<128x128xf32>
    %cst_71 = arith.constant 0.000000e+00 : f32
    %219 = vector.broadcast %cst_71 : f32 to vector<128x128xf32>
    %220 = arith.maximumf %218, %219 : vector<128x128xf32>
    %221 = arith.truncf %220 : vector<128x128xf32> to vector<128x128xbf16>
    %222 = vector.extract_strided_slice %221 {offsets = [0, 127], sizes = [128, 1], strides = [1, 1]} : vector<128x128xbf16> to vector<128x1xbf16>
    %223 = vector.extract_strided_slice %221 {offsets = [0, 0], sizes = [128, 127], strides = [1, 1]} : vector<128x128xbf16> to vector<128x127xbf16>
    %224 = tpu.concatenate %222, %223 in 1 : vector<128x1xbf16>, vector<128x127xbf16> -> vector<128x128xbf16>
    %cst_72 = arith.constant 0.000000e+00 : f32
    %225 = arith.truncf %cst_72 : f32 to bf16
    %226 = vector.broadcast %225 : bf16 to vector<128x128xbf16>
    %227 = arith.select %18, %224, %226 : vector<128x128xi1>, vector<128x128xbf16>
    %228 = vector.extract_strided_slice %221 {offsets = [0, 1], sizes = [128, 127], strides = [1, 1]} : vector<128x128xbf16> to vector<128x127xbf16>
    %229 = vector.extract_strided_slice %221 {offsets = [0, 0], sizes = [128, 1], strides = [1, 1]} : vector<128x128xbf16> to vector<128x1xbf16>
    %230 = tpu.concatenate %228, %229 in 1 : vector<128x127xbf16>, vector<128x1xbf16> -> vector<128x128xbf16>
    %cst_73 = arith.constant 0.000000e+00 : f32
    %231 = arith.truncf %cst_73 : f32 to bf16
    %232 = vector.broadcast %231 : bf16 to vector<128x128xbf16>
    %233 = arith.select %22, %230, %232 : vector<128x128xi1>, vector<128x128xbf16>
    %234 = tpu.concatenate %227, %221, %233 in 0 : vector<128x128xbf16>, vector<128x128xbf16>, vector<128x128xbf16> -> vector<384x128xbf16>
    %cst_74 = arith.constant dense<0.000000e+00> : vector<128x128xf32>
    %235 = tpu.matmul %12, %234, %cst_74 {dimension_numbers = #tpu.dot_dimension_numbers<[1], [0], [0], [1], [0, 0, 1, 1], [], []>} : vector<128x384xbf16>, vector<384x128xbf16>, vector<128x128xf32> -> vector<128x128xf32>
    %cst_75 = arith.constant dense<0.000000e+00> : vector<128xf32>
    %236 = vector.multi_reduction <add>, %235, %cst_75 [0] : vector<128x128xf32> to vector<128xf32>
    %237 = vector.shape_cast %236 : vector<128xf32> to vector<1x128xf32>
    %cst_76 = arith.constant 7.812500e-03 : f32
    %238 = vector.broadcast %cst_76 : f32 to vector<1x128xf32>
    %239 = arith.mulf %237, %238 : vector<1x128xf32>
    %240 = arith.mulf %235, %235 : vector<128x128xf32>
    %cst_77 = arith.constant dense<0.000000e+00> : vector<128xf32>
    %241 = vector.multi_reduction <add>, %240, %cst_77 [0] : vector<128x128xf32> to vector<128xf32>
    %242 = vector.shape_cast %241 : vector<128xf32> to vector<1x128xf32>
    %cst_78 = arith.constant 7.812500e-03 : f32
    %243 = vector.broadcast %cst_78 : f32 to vector<1x128xf32>
    %244 = arith.mulf %242, %243 : vector<1x128xf32>
    %245 = arith.mulf %239, %239 : vector<1x128xf32>
    %246 = arith.subf %244, %245 : vector<1x128xf32>
    %cst_79 = arith.constant 0.000000e+00 : f32
    %247 = vector.broadcast %cst_79 : f32 to vector<1x128xf32>
    %248 = arith.maximumf %246, %247 : vector<1x128xf32>
    %249 = vector.broadcast %239 : vector<1x128xf32> to vector<128x128xf32>
    %250 = arith.subf %235, %249 : vector<128x128xf32>
    %cst_80 = arith.constant 9.99999974E-6 : f32
    %251 = vector.broadcast %cst_80 : f32 to vector<1x128xf32>
    %252 = arith.addf %248, %251 : vector<1x128xf32>
    %253 = math.rsqrt %252 : vector<1x128xf32>
    %254 = vector.broadcast %253 : vector<1x128xf32> to vector<128x128xf32>
    %255 = arith.mulf %250, %254 : vector<128x128xf32>
    %256 = arith.mulf %255, %8 : vector<128x128xf32>
    %257 = arith.addf %256, %11 : vector<128x128xf32>
    %cst_81 = arith.constant 0.000000e+00 : f32
    %258 = vector.broadcast %cst_81 : f32 to vector<128x128xf32>
    %259 = arith.maximumf %257, %258 : vector<128x128xf32>
    %260 = arith.truncf %259 : vector<128x128xf32> to vector<128x128xbf16>
    %261 = vector.extract_strided_slice %260 {offsets = [0, 127], sizes = [128, 1], strides = [1, 1]} : vector<128x128xbf16> to vector<128x1xbf16>
    %262 = vector.extract_strided_slice %260 {offsets = [0, 0], sizes = [128, 127], strides = [1, 1]} : vector<128x128xbf16> to vector<128x127xbf16>
    %263 = tpu.concatenate %261, %262 in 1 : vector<128x1xbf16>, vector<128x127xbf16> -> vector<128x128xbf16>
    %cst_82 = arith.constant 0.000000e+00 : f32
    %264 = arith.truncf %cst_82 : f32 to bf16
    %265 = vector.broadcast %264 : bf16 to vector<128x128xbf16>
    %266 = arith.select %18, %263, %265 : vector<128x128xi1>, vector<128x128xbf16>
    %267 = vector.extract_strided_slice %260 {offsets = [0, 1], sizes = [128, 127], strides = [1, 1]} : vector<128x128xbf16> to vector<128x127xbf16>
    %268 = vector.extract_strided_slice %260 {offsets = [0, 0], sizes = [128, 1], strides = [1, 1]} : vector<128x128xbf16> to vector<128x1xbf16>
    %269 = tpu.concatenate %267, %268 in 1 : vector<128x127xbf16>, vector<128x1xbf16> -> vector<128x128xbf16>
    %cst_83 = arith.constant 0.000000e+00 : f32
    %270 = arith.truncf %cst_83 : f32 to bf16
    %271 = vector.broadcast %270 : bf16 to vector<128x128xbf16>
    %272 = arith.select %22, %269, %271 : vector<128x128xi1>, vector<128x128xbf16>
    %273 = tpu.concatenate %266, %260, %272 in 0 : vector<128x128xbf16>, vector<128x128xbf16>, vector<128x128xbf16> -> vector<384x128xbf16>
    %cst_84 = arith.constant dense<0.000000e+00> : vector<128x128xf32>
    %274 = tpu.matmul %13, %273, %cst_84 {dimension_numbers = #tpu.dot_dimension_numbers<[1], [0], [0], [1], [0, 0, 1, 1], [], []>} : vector<128x384xbf16>, vector<384x128xbf16>, vector<128x128xf32> -> vector<128x128xf32>
    %275 = arith.addf %274, %196 : vector<128x128xf32>
    %cst_85 = arith.constant 0.000000e+00 : f32
    %276 = vector.broadcast %cst_85 : f32 to vector<128x128xf32>
    %277 = arith.maximumf %275, %276 : vector<128x128xf32>
    %c2_86 = arith.constant 2 : index
    %c0_87 = arith.constant 0 : index
    %c0_88 = arith.constant 0 : index
    %278 = vector.load %arg8[%c2_86, %c0_87, %c0_88] : memref<8x128x128xf32, #tpu.memory_space<vmem>>, vector<1x128x128xf32>
    %279 = vector.shape_cast %278 : vector<1x128x128xf32> to vector<128x128xf32>
    %280 = vector.shape_cast %277 : vector<128x128xf32> to vector<1x128x128xf32>
    tpu.vector_store %arg8[%c2_86, %c0_87, %c0_88], %280 {strides = array<i32>} : memref<8x128x128xf32, #tpu.memory_space<vmem>>, vector<1x128x128xf32>,
    %c3 = arith.constant 3 : index
    %c0_89 = arith.constant 0 : index
    %c0_90 = arith.constant 0 : index
    %281 = vector.load %arg1[%c3, %c0_89, %c0_90] : memref<8x128x128xf32, #tpu.memory_space<vmem>>, vector<1x128x128xf32>
    %282 = vector.shape_cast %281 : vector<1x128x128xf32> to vector<128x128xf32>
    %cst_91 = arith.constant dense<0.000000e+00> : vector<128xf32>
    %283 = vector.multi_reduction <add>, %282, %cst_91 [0] : vector<128x128xf32> to vector<128xf32>
    %284 = vector.shape_cast %283 : vector<128xf32> to vector<1x128xf32>
    %cst_92 = arith.constant 7.812500e-03 : f32
    %285 = vector.broadcast %cst_92 : f32 to vector<1x128xf32>
    %286 = arith.mulf %284, %285 : vector<1x128xf32>
    %287 = arith.mulf %282, %282 : vector<128x128xf32>
    %cst_93 = arith.constant dense<0.000000e+00> : vector<128xf32>
    %288 = vector.multi_reduction <add>, %287, %cst_93 [0] : vector<128x128xf32> to vector<128xf32>
    %289 = vector.shape_cast %288 : vector<128xf32> to vector<1x128xf32>
    %cst_94 = arith.constant 7.812500e-03 : f32
    %290 = vector.broadcast %cst_94 : f32 to vector<1x128xf32>
    %291 = arith.mulf %289, %290 : vector<1x128xf32>
    %292 = arith.mulf %286, %286 : vector<1x128xf32>
    %293 = arith.subf %291, %292 : vector<1x128xf32>
    %cst_95 = arith.constant 0.000000e+00 : f32
    %294 = vector.broadcast %cst_95 : f32 to vector<1x128xf32>
    %295 = arith.maximumf %293, %294 : vector<1x128xf32>
    %296 = vector.broadcast %286 : vector<1x128xf32> to vector<128x128xf32>
    %297 = arith.subf %282, %296 : vector<128x128xf32>
    %cst_96 = arith.constant 9.99999974E-6 : f32
    %298 = vector.broadcast %cst_96 : f32 to vector<1x128xf32>
    %299 = arith.addf %295, %298 : vector<1x128xf32>
    %300 = math.rsqrt %299 : vector<1x128xf32>
    %301 = vector.broadcast %300 : vector<1x128xf32> to vector<128x128xf32>
    %302 = arith.mulf %297, %301 : vector<128x128xf32>
    %303 = arith.mulf %302, %2 : vector<128x128xf32>
    %304 = arith.addf %303, %5 : vector<128x128xf32>
    %cst_97 = arith.constant 0.000000e+00 : f32
    %305 = vector.broadcast %cst_97 : f32 to vector<128x128xf32>
    %306 = arith.maximumf %304, %305 : vector<128x128xf32>
    %307 = arith.truncf %306 : vector<128x128xf32> to vector<128x128xbf16>
    %308 = vector.extract_strided_slice %307 {offsets = [0, 127], sizes = [128, 1], strides = [1, 1]} : vector<128x128xbf16> to vector<128x1xbf16>
    %309 = vector.extract_strided_slice %307 {offsets = [0, 0], sizes = [128, 127], strides = [1, 1]} : vector<128x128xbf16> to vector<128x127xbf16>
    %310 = tpu.concatenate %308, %309 in 1 : vector<128x1xbf16>, vector<128x127xbf16> -> vector<128x128xbf16>
    %cst_98 = arith.constant 0.000000e+00 : f32
    %311 = arith.truncf %cst_98 : f32 to bf16
    %312 = vector.broadcast %311 : bf16 to vector<128x128xbf16>
    %313 = arith.select %18, %310, %312 : vector<128x128xi1>, vector<128x128xbf16>
    %314 = vector.extract_strided_slice %307 {offsets = [0, 1], sizes = [128, 127], strides = [1, 1]} : vector<128x128xbf16> to vector<128x127xbf16>
    %315 = vector.extract_strided_slice %307 {offsets = [0, 0], sizes = [128, 1], strides = [1, 1]} : vector<128x128xbf16> to vector<128x1xbf16>
    %316 = tpu.concatenate %314, %315 in 1 : vector<128x127xbf16>, vector<128x1xbf16> -> vector<128x128xbf16>
    %cst_99 = arith.constant 0.000000e+00 : f32
    %317 = arith.truncf %cst_99 : f32 to bf16
    %318 = vector.broadcast %317 : bf16 to vector<128x128xbf16>
    %319 = arith.select %22, %316, %318 : vector<128x128xi1>, vector<128x128xbf16>
    %320 = tpu.concatenate %313, %307, %319 in 0 : vector<128x128xbf16>, vector<128x128xbf16>, vector<128x128xbf16> -> vector<384x128xbf16>
    %cst_100 = arith.constant dense<0.000000e+00> : vector<128x128xf32>
    %321 = tpu.matmul %12, %320, %cst_100 {dimension_numbers = #tpu.dot_dimension_numbers<[1], [0], [0], [1], [0, 0, 1, 1], [], []>} : vector<128x384xbf16>, vector<384x128xbf16>, vector<128x128xf32> -> vector<128x128xf32>
    %cst_101 = arith.constant dense<0.000000e+00> : vector<128xf32>
    %322 = vector.multi_reduction <add>, %321, %cst_101 [0] : vector<128x128xf32> to vector<128xf32>
    %323 = vector.shape_cast %322 : vector<128xf32> to vector<1x128xf32>
    %cst_102 = arith.constant 7.812500e-03 : f32
    %324 = vector.broadcast %cst_102 : f32 to vector<1x128xf32>
    %325 = arith.mulf %323, %324 : vector<1x128xf32>
    %326 = arith.mulf %321, %321 : vector<128x128xf32>
    %cst_103 = arith.constant dense<0.000000e+00> : vector<128xf32>
    %327 = vector.multi_reduction <add>, %326, %cst_103 [0] : vector<128x128xf32> to vector<128xf32>
    %328 = vector.shape_cast %327 : vector<128xf32> to vector<1x128xf32>
    %cst_104 = arith.constant 7.812500e-03 : f32
    %329 = vector.broadcast %cst_104 : f32 to vector<1x128xf32>
    %330 = arith.mulf %328, %329 : vector<1x128xf32>
    %331 = arith.mulf %325, %325 : vector<1x128xf32>
    %332 = arith.subf %330, %331 : vector<1x128xf32>
    %cst_105 = arith.constant 0.000000e+00 : f32
    %333 = vector.broadcast %cst_105 : f32 to vector<1x128xf32>
    %334 = arith.maximumf %332, %333 : vector<1x128xf32>
    %335 = vector.broadcast %325 : vector<1x128xf32> to vector<128x128xf32>
    %336 = arith.subf %321, %335 : vector<128x128xf32>
    %cst_106 = arith.constant 9.99999974E-6 : f32
    %337 = vector.broadcast %cst_106 : f32 to vector<1x128xf32>
    %338 = arith.addf %334, %337 : vector<1x128xf32>
    %339 = math.rsqrt %338 : vector<1x128xf32>
    %340 = vector.broadcast %339 : vector<1x128xf32> to vector<128x128xf32>
    %341 = arith.mulf %336, %340 : vector<128x128xf32>
    %342 = arith.mulf %341, %8 : vector<128x128xf32>
    %343 = arith.addf %342, %11 : vector<128x128xf32>
    %cst_107 = arith.constant 0.000000e+00 : f32
    %344 = vector.broadcast %cst_107 : f32 to vector<128x128xf32>
    %345 = arith.maximumf %343, %344 : vector<128x128xf32>
    %346 = arith.truncf %345 : vector<128x128xf32> to vector<128x128xbf16>
    %347 = vector.extract_strided_slice %346 {offsets = [0, 127], sizes = [128, 1], strides = [1, 1]} : vector<128x128xbf16> to vector<128x1xbf16>
    %348 = vector.extract_strided_slice %346 {offsets = [0, 0], sizes = [128, 127], strides = [1, 1]} : vector<128x128xbf16> to vector<128x127xbf16>
    %349 = tpu.concatenate %347, %348 in 1 : vector<128x1xbf16>, vector<128x127xbf16> -> vector<128x128xbf16>
    %cst_108 = arith.constant 0.000000e+00 : f32
    %350 = arith.truncf %cst_108 : f32 to bf16
    %351 = vector.broadcast %350 : bf16 to vector<128x128xbf16>
    %352 = arith.select %18, %349, %351 : vector<128x128xi1>, vector<128x128xbf16>
    %353 = vector.extract_strided_slice %346 {offsets = [0, 1], sizes = [128, 127], strides = [1, 1]} : vector<128x128xbf16> to vector<128x127xbf16>
    %354 = vector.extract_strided_slice %346 {offsets = [0, 0], sizes = [128, 1], strides = [1, 1]} : vector<128x128xbf16> to vector<128x1xbf16>
    %355 = tpu.concatenate %353, %354 in 1 : vector<128x127xbf16>, vector<128x1xbf16> -> vector<128x128xbf16>
    %cst_109 = arith.constant 0.000000e+00 : f32
    %356 = arith.truncf %cst_109 : f32 to bf16
    %357 = vector.broadcast %356 : bf16 to vector<128x128xbf16>
    %358 = arith.select %22, %355, %357 : vector<128x128xi1>, vector<128x128xbf16>
    %359 = tpu.concatenate %352, %346, %358 in 0 : vector<128x128xbf16>, vector<128x128xbf16>, vector<128x128xbf16> -> vector<384x128xbf16>
    %cst_110 = arith.constant dense<0.000000e+00> : vector<128x128xf32>
    %360 = tpu.matmul %13, %359, %cst_110 {dimension_numbers = #tpu.dot_dimension_numbers<[1], [0], [0], [1], [0, 0, 1, 1], [], []>} : vector<128x384xbf16>, vector<384x128xbf16>, vector<128x128xf32> -> vector<128x128xf32>
    %361 = arith.addf %360, %282 : vector<128x128xf32>
    %cst_111 = arith.constant 0.000000e+00 : f32
    %362 = vector.broadcast %cst_111 : f32 to vector<128x128xf32>
    %363 = arith.maximumf %361, %362 : vector<128x128xf32>
    %c3_112 = arith.constant 3 : index
    %c0_113 = arith.constant 0 : index
    %c0_114 = arith.constant 0 : index
    %364 = vector.load %arg8[%c3_112, %c0_113, %c0_114] : memref<8x128x128xf32, #tpu.memory_space<vmem>>, vector<1x128x128xf32>
    %365 = vector.shape_cast %364 : vector<1x128x128xf32> to vector<128x128xf32>
    %366 = vector.shape_cast %363 : vector<128x128xf32> to vector<1x128x128xf32>
    tpu.vector_store %arg8[%c3_112, %c0_113, %c0_114], %366 {strides = array<i32>} : memref<8x128x128xf32, #tpu.memory_space<vmem>>, vector<1x128x128xf32>,
    %c4 = arith.constant 4 : index
    %c0_115 = arith.constant 0 : index
    %c0_116 = arith.constant 0 : index
    %367 = vector.load %arg1[%c4, %c0_115, %c0_116] : memref<8x128x128xf32, #tpu.memory_space<vmem>>, vector<1x128x128xf32>
    %368 = vector.shape_cast %367 : vector<1x128x128xf32> to vector<128x128xf32>
    %cst_117 = arith.constant dense<0.000000e+00> : vector<128xf32>
    %369 = vector.multi_reduction <add>, %368, %cst_117 [0] : vector<128x128xf32> to vector<128xf32>
    %370 = vector.shape_cast %369 : vector<128xf32> to vector<1x128xf32>
    %cst_118 = arith.constant 7.812500e-03 : f32
    %371 = vector.broadcast %cst_118 : f32 to vector<1x128xf32>
    %372 = arith.mulf %370, %371 : vector<1x128xf32>
    %373 = arith.mulf %368, %368 : vector<128x128xf32>
    %cst_119 = arith.constant dense<0.000000e+00> : vector<128xf32>
    %374 = vector.multi_reduction <add>, %373, %cst_119 [0] : vector<128x128xf32> to vector<128xf32>
    %375 = vector.shape_cast %374 : vector<128xf32> to vector<1x128xf32>
    %cst_120 = arith.constant 7.812500e-03 : f32
    %376 = vector.broadcast %cst_120 : f32 to vector<1x128xf32>
    %377 = arith.mulf %375, %376 : vector<1x128xf32>
    %378 = arith.mulf %372, %372 : vector<1x128xf32>
    %379 = arith.subf %377, %378 : vector<1x128xf32>
    %cst_121 = arith.constant 0.000000e+00 : f32
    %380 = vector.broadcast %cst_121 : f32 to vector<1x128xf32>
    %381 = arith.maximumf %379, %380 : vector<1x128xf32>
    %382 = vector.broadcast %372 : vector<1x128xf32> to vector<128x128xf32>
    %383 = arith.subf %368, %382 : vector<128x128xf32>
    %cst_122 = arith.constant 9.99999974E-6 : f32
    %384 = vector.broadcast %cst_122 : f32 to vector<1x128xf32>
    %385 = arith.addf %381, %384 : vector<1x128xf32>
    %386 = math.rsqrt %385 : vector<1x128xf32>
    %387 = vector.broadcast %386 : vector<1x128xf32> to vector<128x128xf32>
    %388 = arith.mulf %383, %387 : vector<128x128xf32>
    %389 = arith.mulf %388, %2 : vector<128x128xf32>
    %390 = arith.addf %389, %5 : vector<128x128xf32>
    %cst_123 = arith.constant 0.000000e+00 : f32
    %391 = vector.broadcast %cst_123 : f32 to vector<128x128xf32>
    %392 = arith.maximumf %390, %391 : vector<128x128xf32>
    %393 = arith.truncf %392 : vector<128x128xf32> to vector<128x128xbf16>
    %394 = vector.extract_strided_slice %393 {offsets = [0, 127], sizes = [128, 1], strides = [1, 1]} : vector<128x128xbf16> to vector<128x1xbf16>
    %395 = vector.extract_strided_slice %393 {offsets = [0, 0], sizes = [128, 127], strides = [1, 1]} : vector<128x128xbf16> to vector<128x127xbf16>
    %396 = tpu.concatenate %394, %395 in 1 : vector<128x1xbf16>, vector<128x127xbf16> -> vector<128x128xbf16>
    %cst_124 = arith.constant 0.000000e+00 : f32
    %397 = arith.truncf %cst_124 : f32 to bf16
    %398 = vector.broadcast %397 : bf16 to vector<128x128xbf16>
    %399 = arith.select %18, %396, %398 : vector<128x128xi1>, vector<128x128xbf16>
    %400 = vector.extract_strided_slice %393 {offsets = [0, 1], sizes = [128, 127], strides = [1, 1]} : vector<128x128xbf16> to vector<128x127xbf16>
    %401 = vector.extract_strided_slice %393 {offsets = [0, 0], sizes = [128, 1], strides = [1, 1]} : vector<128x128xbf16> to vector<128x1xbf16>
    %402 = tpu.concatenate %400, %401 in 1 : vector<128x127xbf16>, vector<128x1xbf16> -> vector<128x128xbf16>
    %cst_125 = arith.constant 0.000000e+00 : f32
    %403 = arith.truncf %cst_125 : f32 to bf16
    %404 = vector.broadcast %403 : bf16 to vector<128x128xbf16>
    %405 = arith.select %22, %402, %404 : vector<128x128xi1>, vector<128x128xbf16>
    %406 = tpu.concatenate %399, %393, %405 in 0 : vector<128x128xbf16>, vector<128x128xbf16>, vector<128x128xbf16> -> vector<384x128xbf16>
    %cst_126 = arith.constant dense<0.000000e+00> : vector<128x128xf32>
    %407 = tpu.matmul %12, %406, %cst_126 {dimension_numbers = #tpu.dot_dimension_numbers<[1], [0], [0], [1], [0, 0, 1, 1], [], []>} : vector<128x384xbf16>, vector<384x128xbf16>, vector<128x128xf32> -> vector<128x128xf32>
    %cst_127 = arith.constant dense<0.000000e+00> : vector<128xf32>
    %408 = vector.multi_reduction <add>, %407, %cst_127 [0] : vector<128x128xf32> to vector<128xf32>
    %409 = vector.shape_cast %408 : vector<128xf32> to vector<1x128xf32>
    %cst_128 = arith.constant 7.812500e-03 : f32
    %410 = vector.broadcast %cst_128 : f32 to vector<1x128xf32>
    %411 = arith.mulf %409, %410 : vector<1x128xf32>
    %412 = arith.mulf %407, %407 : vector<128x128xf32>
    %cst_129 = arith.constant dense<0.000000e+00> : vector<128xf32>
    %413 = vector.multi_reduction <add>, %412, %cst_129 [0] : vector<128x128xf32> to vector<128xf32>
    %414 = vector.shape_cast %413 : vector<128xf32> to vector<1x128xf32>
    %cst_130 = arith.constant 7.812500e-03 : f32
    %415 = vector.broadcast %cst_130 : f32 to vector<1x128xf32>
    %416 = arith.mulf %414, %415 : vector<1x128xf32>
    %417 = arith.mulf %411, %411 : vector<1x128xf32>
    %418 = arith.subf %416, %417 : vector<1x128xf32>
    %cst_131 = arith.constant 0.000000e+00 : f32
    %419 = vector.broadcast %cst_131 : f32 to vector<1x128xf32>
    %420 = arith.maximumf %418, %419 : vector<1x128xf32>
    %421 = vector.broadcast %411 : vector<1x128xf32> to vector<128x128xf32>
    %422 = arith.subf %407, %421 : vector<128x128xf32>
    %cst_132 = arith.constant 9.99999974E-6 : f32
    %423 = vector.broadcast %cst_132 : f32 to vector<1x128xf32>
    %424 = arith.addf %420, %423 : vector<1x128xf32>
    %425 = math.rsqrt %424 : vector<1x128xf32>
    %426 = vector.broadcast %425 : vector<1x128xf32> to vector<128x128xf32>
    %427 = arith.mulf %422, %426 : vector<128x128xf32>
    %428 = arith.mulf %427, %8 : vector<128x128xf32>
    %429 = arith.addf %428, %11 : vector<128x128xf32>
    %cst_133 = arith.constant 0.000000e+00 : f32
    %430 = vector.broadcast %cst_133 : f32 to vector<128x128xf32>
    %431 = arith.maximumf %429, %430 : vector<128x128xf32>
    %432 = arith.truncf %431 : vector<128x128xf32> to vector<128x128xbf16>
    %433 = vector.extract_strided_slice %432 {offsets = [0, 127], sizes = [128, 1], strides = [1, 1]} : vector<128x128xbf16> to vector<128x1xbf16>
    %434 = vector.extract_strided_slice %432 {offsets = [0, 0], sizes = [128, 127], strides = [1, 1]} : vector<128x128xbf16> to vector<128x127xbf16>
    %435 = tpu.concatenate %433, %434 in 1 : vector<128x1xbf16>, vector<128x127xbf16> -> vector<128x128xbf16>
    %cst_134 = arith.constant 0.000000e+00 : f32
    %436 = arith.truncf %cst_134 : f32 to bf16
    %437 = vector.broadcast %436 : bf16 to vector<128x128xbf16>
    %438 = arith.select %18, %435, %437 : vector<128x128xi1>, vector<128x128xbf16>
    %439 = vector.extract_strided_slice %432 {offsets = [0, 1], sizes = [128, 127], strides = [1, 1]} : vector<128x128xbf16> to vector<128x127xbf16>
    %440 = vector.extract_strided_slice %432 {offsets = [0, 0], sizes = [128, 1], strides = [1, 1]} : vector<128x128xbf16> to vector<128x1xbf16>
    %441 = tpu.concatenate %439, %440 in 1 : vector<128x127xbf16>, vector<128x1xbf16> -> vector<128x128xbf16>
    %cst_135 = arith.constant 0.000000e+00 : f32
    %442 = arith.truncf %cst_135 : f32 to bf16
    %443 = vector.broadcast %442 : bf16 to vector<128x128xbf16>
    %444 = arith.select %22, %441, %443 : vector<128x128xi1>, vector<128x128xbf16>
    %445 = tpu.concatenate %438, %432, %444 in 0 : vector<128x128xbf16>, vector<128x128xbf16>, vector<128x128xbf16> -> vector<384x128xbf16>
    %cst_136 = arith.constant dense<0.000000e+00> : vector<128x128xf32>
    %446 = tpu.matmul %13, %445, %cst_136 {dimension_numbers = #tpu.dot_dimension_numbers<[1], [0], [0], [1], [0, 0, 1, 1], [], []>} : vector<128x384xbf16>, vector<384x128xbf16>, vector<128x128xf32> -> vector<128x128xf32>
    %447 = arith.addf %446, %368 : vector<128x128xf32>
    %cst_137 = arith.constant 0.000000e+00 : f32
    %448 = vector.broadcast %cst_137 : f32 to vector<128x128xf32>
    %449 = arith.maximumf %447, %448 : vector<128x128xf32>
    %c4_138 = arith.constant 4 : index
    %c0_139 = arith.constant 0 : index
    %c0_140 = arith.constant 0 : index
    %450 = vector.load %arg8[%c4_138, %c0_139, %c0_140] : memref<8x128x128xf32, #tpu.memory_space<vmem>>, vector<1x128x128xf32>
    %451 = vector.shape_cast %450 : vector<1x128x128xf32> to vector<128x128xf32>
    %452 = vector.shape_cast %449 : vector<128x128xf32> to vector<1x128x128xf32>
    tpu.vector_store %arg8[%c4_138, %c0_139, %c0_140], %452 {strides = array<i32>} : memref<8x128x128xf32, #tpu.memory_space<vmem>>, vector<1x128x128xf32>,
    %c5 = arith.constant 5 : index
    %c0_141 = arith.constant 0 : index
    %c0_142 = arith.constant 0 : index
    %453 = vector.load %arg1[%c5, %c0_141, %c0_142] : memref<8x128x128xf32, #tpu.memory_space<vmem>>, vector<1x128x128xf32>
    %454 = vector.shape_cast %453 : vector<1x128x128xf32> to vector<128x128xf32>
    %cst_143 = arith.constant dense<0.000000e+00> : vector<128xf32>
    %455 = vector.multi_reduction <add>, %454, %cst_143 [0] : vector<128x128xf32> to vector<128xf32>
    %456 = vector.shape_cast %455 : vector<128xf32> to vector<1x128xf32>
    %cst_144 = arith.constant 7.812500e-03 : f32
    %457 = vector.broadcast %cst_144 : f32 to vector<1x128xf32>
    %458 = arith.mulf %456, %457 : vector<1x128xf32>
    %459 = arith.mulf %454, %454 : vector<128x128xf32>
    %cst_145 = arith.constant dense<0.000000e+00> : vector<128xf32>
    %460 = vector.multi_reduction <add>, %459, %cst_145 [0] : vector<128x128xf32> to vector<128xf32>
    %461 = vector.shape_cast %460 : vector<128xf32> to vector<1x128xf32>
    %cst_146 = arith.constant 7.812500e-03 : f32
    %462 = vector.broadcast %cst_146 : f32 to vector<1x128xf32>
    %463 = arith.mulf %461, %462 : vector<1x128xf32>
    %464 = arith.mulf %458, %458 : vector<1x128xf32>
    %465 = arith.subf %463, %464 : vector<1x128xf32>
    %cst_147 = arith.constant 0.000000e+00 : f32
    %466 = vector.broadcast %cst_147 : f32 to vector<1x128xf32>
    %467 = arith.maximumf %465, %466 : vector<1x128xf32>
    %468 = vector.broadcast %458 : vector<1x128xf32> to vector<128x128xf32>
    %469 = arith.subf %454, %468 : vector<128x128xf32>
    %cst_148 = arith.constant 9.99999974E-6 : f32
    %470 = vector.broadcast %cst_148 : f32 to vector<1x128xf32>
    %471 = arith.addf %467, %470 : vector<1x128xf32>
    %472 = math.rsqrt %471 : vector<1x128xf32>
    %473 = vector.broadcast %472 : vector<1x128xf32> to vector<128x128xf32>
    %474 = arith.mulf %469, %473 : vector<128x128xf32>
    %475 = arith.mulf %474, %2 : vector<128x128xf32>
    %476 = arith.addf %475, %5 : vector<128x128xf32>
    %cst_149 = arith.constant 0.000000e+00 : f32
    %477 = vector.broadcast %cst_149 : f32 to vector<128x128xf32>
    %478 = arith.maximumf %476, %477 : vector<128x128xf32>
    %479 = arith.truncf %478 : vector<128x128xf32> to vector<128x128xbf16>
    %480 = vector.extract_strided_slice %479 {offsets = [0, 127], sizes = [128, 1], strides = [1, 1]} : vector<128x128xbf16> to vector<128x1xbf16>
    %481 = vector.extract_strided_slice %479 {offsets = [0, 0], sizes = [128, 127], strides = [1, 1]} : vector<128x128xbf16> to vector<128x127xbf16>
    %482 = tpu.concatenate %480, %481 in 1 : vector<128x1xbf16>, vector<128x127xbf16> -> vector<128x128xbf16>
    %cst_150 = arith.constant 0.000000e+00 : f32
    %483 = arith.truncf %cst_150 : f32 to bf16
    %484 = vector.broadcast %483 : bf16 to vector<128x128xbf16>
    %485 = arith.select %18, %482, %484 : vector<128x128xi1>, vector<128x128xbf16>
    %486 = vector.extract_strided_slice %479 {offsets = [0, 1], sizes = [128, 127], strides = [1, 1]} : vector<128x128xbf16> to vector<128x127xbf16>
    %487 = vector.extract_strided_slice %479 {offsets = [0, 0], sizes = [128, 1], strides = [1, 1]} : vector<128x128xbf16> to vector<128x1xbf16>
    %488 = tpu.concatenate %486, %487 in 1 : vector<128x127xbf16>, vector<128x1xbf16> -> vector<128x128xbf16>
    %cst_151 = arith.constant 0.000000e+00 : f32
    %489 = arith.truncf %cst_151 : f32 to bf16
    %490 = vector.broadcast %489 : bf16 to vector<128x128xbf16>
    %491 = arith.select %22, %488, %490 : vector<128x128xi1>, vector<128x128xbf16>
    %492 = tpu.concatenate %485, %479, %491 in 0 : vector<128x128xbf16>, vector<128x128xbf16>, vector<128x128xbf16> -> vector<384x128xbf16>
    %cst_152 = arith.constant dense<0.000000e+00> : vector<128x128xf32>
    %493 = tpu.matmul %12, %492, %cst_152 {dimension_numbers = #tpu.dot_dimension_numbers<[1], [0], [0], [1], [0, 0, 1, 1], [], []>} : vector<128x384xbf16>, vector<384x128xbf16>, vector<128x128xf32> -> vector<128x128xf32>
    %cst_153 = arith.constant dense<0.000000e+00> : vector<128xf32>
    %494 = vector.multi_reduction <add>, %493, %cst_153 [0] : vector<128x128xf32> to vector<128xf32>
    %495 = vector.shape_cast %494 : vector<128xf32> to vector<1x128xf32>
    %cst_154 = arith.constant 7.812500e-03 : f32
    %496 = vector.broadcast %cst_154 : f32 to vector<1x128xf32>
    %497 = arith.mulf %495, %496 : vector<1x128xf32>
    %498 = arith.mulf %493, %493 : vector<128x128xf32>
    %cst_155 = arith.constant dense<0.000000e+00> : vector<128xf32>
    %499 = vector.multi_reduction <add>, %498, %cst_155 [0] : vector<128x128xf32> to vector<128xf32>
    %500 = vector.shape_cast %499 : vector<128xf32> to vector<1x128xf32>
    %cst_156 = arith.constant 7.812500e-03 : f32
    %501 = vector.broadcast %cst_156 : f32 to vector<1x128xf32>
    %502 = arith.mulf %500, %501 : vector<1x128xf32>
    %503 = arith.mulf %497, %497 : vector<1x128xf32>
    %504 = arith.subf %502, %503 : vector<1x128xf32>
    %cst_157 = arith.constant 0.000000e+00 : f32
    %505 = vector.broadcast %cst_157 : f32 to vector<1x128xf32>
    %506 = arith.maximumf %504, %505 : vector<1x128xf32>
    %507 = vector.broadcast %497 : vector<1x128xf32> to vector<128x128xf32>
    %508 = arith.subf %493, %507 : vector<128x128xf32>
    %cst_158 = arith.constant 9.99999974E-6 : f32
    %509 = vector.broadcast %cst_158 : f32 to vector<1x128xf32>
    %510 = arith.addf %506, %509 : vector<1x128xf32>
    %511 = math.rsqrt %510 : vector<1x128xf32>
    %512 = vector.broadcast %511 : vector<1x128xf32> to vector<128x128xf32>
    %513 = arith.mulf %508, %512 : vector<128x128xf32>
    %514 = arith.mulf %513, %8 : vector<128x128xf32>
    %515 = arith.addf %514, %11 : vector<128x128xf32>
    %cst_159 = arith.constant 0.000000e+00 : f32
    %516 = vector.broadcast %cst_159 : f32 to vector<128x128xf32>
    %517 = arith.maximumf %515, %516 : vector<128x128xf32>
    %518 = arith.truncf %517 : vector<128x128xf32> to vector<128x128xbf16>
    %519 = vector.extract_strided_slice %518 {offsets = [0, 127], sizes = [128, 1], strides = [1, 1]} : vector<128x128xbf16> to vector<128x1xbf16>
    %520 = vector.extract_strided_slice %518 {offsets = [0, 0], sizes = [128, 127], strides = [1, 1]} : vector<128x128xbf16> to vector<128x127xbf16>
    %521 = tpu.concatenate %519, %520 in 1 : vector<128x1xbf16>, vector<128x127xbf16> -> vector<128x128xbf16>
    %cst_160 = arith.constant 0.000000e+00 : f32
    %522 = arith.truncf %cst_160 : f32 to bf16
    %523 = vector.broadcast %522 : bf16 to vector<128x128xbf16>
    %524 = arith.select %18, %521, %523 : vector<128x128xi1>, vector<128x128xbf16>
    %525 = vector.extract_strided_slice %518 {offsets = [0, 1], sizes = [128, 127], strides = [1, 1]} : vector<128x128xbf16> to vector<128x127xbf16>
    %526 = vector.extract_strided_slice %518 {offsets = [0, 0], sizes = [128, 1], strides = [1, 1]} : vector<128x128xbf16> to vector<128x1xbf16>
    %527 = tpu.concatenate %525, %526 in 1 : vector<128x127xbf16>, vector<128x1xbf16> -> vector<128x128xbf16>
    %cst_161 = arith.constant 0.000000e+00 : f32
    %528 = arith.truncf %cst_161 : f32 to bf16
    %529 = vector.broadcast %528 : bf16 to vector<128x128xbf16>
    %530 = arith.select %22, %527, %529 : vector<128x128xi1>, vector<128x128xbf16>
    %531 = tpu.concatenate %524, %518, %530 in 0 : vector<128x128xbf16>, vector<128x128xbf16>, vector<128x128xbf16> -> vector<384x128xbf16>
    %cst_162 = arith.constant dense<0.000000e+00> : vector<128x128xf32>
    %532 = tpu.matmul %13, %531, %cst_162 {dimension_numbers = #tpu.dot_dimension_numbers<[1], [0], [0], [1], [0, 0, 1, 1], [], []>} : vector<128x384xbf16>, vector<384x128xbf16>, vector<128x128xf32> -> vector<128x128xf32>
    %533 = arith.addf %532, %454 : vector<128x128xf32>
    %cst_163 = arith.constant 0.000000e+00 : f32
    %534 = vector.broadcast %cst_163 : f32 to vector<128x128xf32>
    %535 = arith.maximumf %533, %534 : vector<128x128xf32>
    %c5_164 = arith.constant 5 : index
    %c0_165 = arith.constant 0 : index
    %c0_166 = arith.constant 0 : index
    %536 = vector.load %arg8[%c5_164, %c0_165, %c0_166] : memref<8x128x128xf32, #tpu.memory_space<vmem>>, vector<1x128x128xf32>
    %537 = vector.shape_cast %536 : vector<1x128x128xf32> to vector<128x128xf32>
    %538 = vector.shape_cast %535 : vector<128x128xf32> to vector<1x128x128xf32>
    tpu.vector_store %arg8[%c5_164, %c0_165, %c0_166], %538 {strides = array<i32>} : memref<8x128x128xf32, #tpu.memory_space<vmem>>, vector<1x128x128xf32>,
    %c6 = arith.constant 6 : index
    %c0_167 = arith.constant 0 : index
    %c0_168 = arith.constant 0 : index
    %539 = vector.load %arg1[%c6, %c0_167, %c0_168] : memref<8x128x128xf32, #tpu.memory_space<vmem>>, vector<1x128x128xf32>
    %540 = vector.shape_cast %539 : vector<1x128x128xf32> to vector<128x128xf32>
    %cst_169 = arith.constant dense<0.000000e+00> : vector<128xf32>
    %541 = vector.multi_reduction <add>, %540, %cst_169 [0] : vector<128x128xf32> to vector<128xf32>
    %542 = vector.shape_cast %541 : vector<128xf32> to vector<1x128xf32>
    %cst_170 = arith.constant 7.812500e-03 : f32
    %543 = vector.broadcast %cst_170 : f32 to vector<1x128xf32>
    %544 = arith.mulf %542, %543 : vector<1x128xf32>
    %545 = arith.mulf %540, %540 : vector<128x128xf32>
    %cst_171 = arith.constant dense<0.000000e+00> : vector<128xf32>
    %546 = vector.multi_reduction <add>, %545, %cst_171 [0] : vector<128x128xf32> to vector<128xf32>
    %547 = vector.shape_cast %546 : vector<128xf32> to vector<1x128xf32>
    %cst_172 = arith.constant 7.812500e-03 : f32
    %548 = vector.broadcast %cst_172 : f32 to vector<1x128xf32>
    %549 = arith.mulf %547, %548 : vector<1x128xf32>
    %550 = arith.mulf %544, %544 : vector<1x128xf32>
    %551 = arith.subf %549, %550 : vector<1x128xf32>
    %cst_173 = arith.constant 0.000000e+00 : f32
    %552 = vector.broadcast %cst_173 : f32 to vector<1x128xf32>
    %553 = arith.maximumf %551, %552 : vector<1x128xf32>
    %554 = vector.broadcast %544 : vector<1x128xf32> to vector<128x128xf32>
    %555 = arith.subf %540, %554 : vector<128x128xf32>
    %cst_174 = arith.constant 9.99999974E-6 : f32
    %556 = vector.broadcast %cst_174 : f32 to vector<1x128xf32>
    %557 = arith.addf %553, %556 : vector<1x128xf32>
    %558 = math.rsqrt %557 : vector<1x128xf32>
    %559 = vector.broadcast %558 : vector<1x128xf32> to vector<128x128xf32>
    %560 = arith.mulf %555, %559 : vector<128x128xf32>
    %561 = arith.mulf %560, %2 : vector<128x128xf32>
    %562 = arith.addf %561, %5 : vector<128x128xf32>
    %cst_175 = arith.constant 0.000000e+00 : f32
    %563 = vector.broadcast %cst_175 : f32 to vector<128x128xf32>
    %564 = arith.maximumf %562, %563 : vector<128x128xf32>
    %565 = arith.truncf %564 : vector<128x128xf32> to vector<128x128xbf16>
    %566 = vector.extract_strided_slice %565 {offsets = [0, 127], sizes = [128, 1], strides = [1, 1]} : vector<128x128xbf16> to vector<128x1xbf16>
    %567 = vector.extract_strided_slice %565 {offsets = [0, 0], sizes = [128, 127], strides = [1, 1]} : vector<128x128xbf16> to vector<128x127xbf16>
    %568 = tpu.concatenate %566, %567 in 1 : vector<128x1xbf16>, vector<128x127xbf16> -> vector<128x128xbf16>
    %cst_176 = arith.constant 0.000000e+00 : f32
    %569 = arith.truncf %cst_176 : f32 to bf16
    %570 = vector.broadcast %569 : bf16 to vector<128x128xbf16>
    %571 = arith.select %18, %568, %570 : vector<128x128xi1>, vector<128x128xbf16>
    %572 = vector.extract_strided_slice %565 {offsets = [0, 1], sizes = [128, 127], strides = [1, 1]} : vector<128x128xbf16> to vector<128x127xbf16>
    %573 = vector.extract_strided_slice %565 {offsets = [0, 0], sizes = [128, 1], strides = [1, 1]} : vector<128x128xbf16> to vector<128x1xbf16>
    %574 = tpu.concatenate %572, %573 in 1 : vector<128x127xbf16>, vector<128x1xbf16> -> vector<128x128xbf16>
    %cst_177 = arith.constant 0.000000e+00 : f32
    %575 = arith.truncf %cst_177 : f32 to bf16
    %576 = vector.broadcast %575 : bf16 to vector<128x128xbf16>
    %577 = arith.select %22, %574, %576 : vector<128x128xi1>, vector<128x128xbf16>
    %578 = tpu.concatenate %571, %565, %577 in 0 : vector<128x128xbf16>, vector<128x128xbf16>, vector<128x128xbf16> -> vector<384x128xbf16>
    %cst_178 = arith.constant dense<0.000000e+00> : vector<128x128xf32>
    %579 = tpu.matmul %12, %578, %cst_178 {dimension_numbers = #tpu.dot_dimension_numbers<[1], [0], [0], [1], [0, 0, 1, 1], [], []>} : vector<128x384xbf16>, vector<384x128xbf16>, vector<128x128xf32> -> vector<128x128xf32>
    %cst_179 = arith.constant dense<0.000000e+00> : vector<128xf32>
    %580 = vector.multi_reduction <add>, %579, %cst_179 [0] : vector<128x128xf32> to vector<128xf32>
    %581 = vector.shape_cast %580 : vector<128xf32> to vector<1x128xf32>
    %cst_180 = arith.constant 7.812500e-03 : f32
    %582 = vector.broadcast %cst_180 : f32 to vector<1x128xf32>
    %583 = arith.mulf %581, %582 : vector<1x128xf32>
    %584 = arith.mulf %579, %579 : vector<128x128xf32>
    %cst_181 = arith.constant dense<0.000000e+00> : vector<128xf32>
    %585 = vector.multi_reduction <add>, %584, %cst_181 [0] : vector<128x128xf32> to vector<128xf32>
    %586 = vector.shape_cast %585 : vector<128xf32> to vector<1x128xf32>
    %cst_182 = arith.constant 7.812500e-03 : f32
    %587 = vector.broadcast %cst_182 : f32 to vector<1x128xf32>
    %588 = arith.mulf %586, %587 : vector<1x128xf32>
    %589 = arith.mulf %583, %583 : vector<1x128xf32>
    %590 = arith.subf %588, %589 : vector<1x128xf32>
    %cst_183 = arith.constant 0.000000e+00 : f32
    %591 = vector.broadcast %cst_183 : f32 to vector<1x128xf32>
    %592 = arith.maximumf %590, %591 : vector<1x128xf32>
    %593 = vector.broadcast %583 : vector<1x128xf32> to vector<128x128xf32>
    %594 = arith.subf %579, %593 : vector<128x128xf32>
    %cst_184 = arith.constant 9.99999974E-6 : f32
    %595 = vector.broadcast %cst_184 : f32 to vector<1x128xf32>
    %596 = arith.addf %592, %595 : vector<1x128xf32>
    %597 = math.rsqrt %596 : vector<1x128xf32>
    %598 = vector.broadcast %597 : vector<1x128xf32> to vector<128x128xf32>
    %599 = arith.mulf %594, %598 : vector<128x128xf32>
    %600 = arith.mulf %599, %8 : vector<128x128xf32>
    %601 = arith.addf %600, %11 : vector<128x128xf32>
    %cst_185 = arith.constant 0.000000e+00 : f32
    %602 = vector.broadcast %cst_185 : f32 to vector<128x128xf32>
    %603 = arith.maximumf %601, %602 : vector<128x128xf32>
    %604 = arith.truncf %603 : vector<128x128xf32> to vector<128x128xbf16>
    %605 = vector.extract_strided_slice %604 {offsets = [0, 127], sizes = [128, 1], strides = [1, 1]} : vector<128x128xbf16> to vector<128x1xbf16>
    %606 = vector.extract_strided_slice %604 {offsets = [0, 0], sizes = [128, 127], strides = [1, 1]} : vector<128x128xbf16> to vector<128x127xbf16>
    %607 = tpu.concatenate %605, %606 in 1 : vector<128x1xbf16>, vector<128x127xbf16> -> vector<128x128xbf16>
    %cst_186 = arith.constant 0.000000e+00 : f32
    %608 = arith.truncf %cst_186 : f32 to bf16
    %609 = vector.broadcast %608 : bf16 to vector<128x128xbf16>
    %610 = arith.select %18, %607, %609 : vector<128x128xi1>, vector<128x128xbf16>
    %611 = vector.extract_strided_slice %604 {offsets = [0, 1], sizes = [128, 127], strides = [1, 1]} : vector<128x128xbf16> to vector<128x127xbf16>
    %612 = vector.extract_strided_slice %604 {offsets = [0, 0], sizes = [128, 1], strides = [1, 1]} : vector<128x128xbf16> to vector<128x1xbf16>
    %613 = tpu.concatenate %611, %612 in 1 : vector<128x127xbf16>, vector<128x1xbf16> -> vector<128x128xbf16>
    %cst_187 = arith.constant 0.000000e+00 : f32
    %614 = arith.truncf %cst_187 : f32 to bf16
    %615 = vector.broadcast %614 : bf16 to vector<128x128xbf16>
    %616 = arith.select %22, %613, %615 : vector<128x128xi1>, vector<128x128xbf16>
    %617 = tpu.concatenate %610, %604, %616 in 0 : vector<128x128xbf16>, vector<128x128xbf16>, vector<128x128xbf16> -> vector<384x128xbf16>
    %cst_188 = arith.constant dense<0.000000e+00> : vector<128x128xf32>
    %618 = tpu.matmul %13, %617, %cst_188 {dimension_numbers = #tpu.dot_dimension_numbers<[1], [0], [0], [1], [0, 0, 1, 1], [], []>} : vector<128x384xbf16>, vector<384x128xbf16>, vector<128x128xf32> -> vector<128x128xf32>
    %619 = arith.addf %618, %540 : vector<128x128xf32>
    %cst_189 = arith.constant 0.000000e+00 : f32
    %620 = vector.broadcast %cst_189 : f32 to vector<128x128xf32>
    %621 = arith.maximumf %619, %620 : vector<128x128xf32>
    %c6_190 = arith.constant 6 : index
    %c0_191 = arith.constant 0 : index
    %c0_192 = arith.constant 0 : index
    %622 = vector.load %arg8[%c6_190, %c0_191, %c0_192] : memref<8x128x128xf32, #tpu.memory_space<vmem>>, vector<1x128x128xf32>
    %623 = vector.shape_cast %622 : vector<1x128x128xf32> to vector<128x128xf32>
    %624 = vector.shape_cast %621 : vector<128x128xf32> to vector<1x128x128xf32>
    tpu.vector_store %arg8[%c6_190, %c0_191, %c0_192], %624 {strides = array<i32>} : memref<8x128x128xf32, #tpu.memory_space<vmem>>, vector<1x128x128xf32>,
    %c7 = arith.constant 7 : index
    %c0_193 = arith.constant 0 : index
    %c0_194 = arith.constant 0 : index
    %625 = vector.load %arg1[%c7, %c0_193, %c0_194] : memref<8x128x128xf32, #tpu.memory_space<vmem>>, vector<1x128x128xf32>
    %626 = vector.shape_cast %625 : vector<1x128x128xf32> to vector<128x128xf32>
    %cst_195 = arith.constant dense<0.000000e+00> : vector<128xf32>
    %627 = vector.multi_reduction <add>, %626, %cst_195 [0] : vector<128x128xf32> to vector<128xf32>
    %628 = vector.shape_cast %627 : vector<128xf32> to vector<1x128xf32>
    %cst_196 = arith.constant 7.812500e-03 : f32
    %629 = vector.broadcast %cst_196 : f32 to vector<1x128xf32>
    %630 = arith.mulf %628, %629 : vector<1x128xf32>
    %631 = arith.mulf %626, %626 : vector<128x128xf32>
    %cst_197 = arith.constant dense<0.000000e+00> : vector<128xf32>
    %632 = vector.multi_reduction <add>, %631, %cst_197 [0] : vector<128x128xf32> to vector<128xf32>
    %633 = vector.shape_cast %632 : vector<128xf32> to vector<1x128xf32>
    %cst_198 = arith.constant 7.812500e-03 : f32
    %634 = vector.broadcast %cst_198 : f32 to vector<1x128xf32>
    %635 = arith.mulf %633, %634 : vector<1x128xf32>
    %636 = arith.mulf %630, %630 : vector<1x128xf32>
    %637 = arith.subf %635, %636 : vector<1x128xf32>
    %cst_199 = arith.constant 0.000000e+00 : f32
    %638 = vector.broadcast %cst_199 : f32 to vector<1x128xf32>
    %639 = arith.maximumf %637, %638 : vector<1x128xf32>
    %640 = vector.broadcast %630 : vector<1x128xf32> to vector<128x128xf32>
    %641 = arith.subf %626, %640 : vector<128x128xf32>
    %cst_200 = arith.constant 9.99999974E-6 : f32
    %642 = vector.broadcast %cst_200 : f32 to vector<1x128xf32>
    %643 = arith.addf %639, %642 : vector<1x128xf32>
    %644 = math.rsqrt %643 : vector<1x128xf32>
    %645 = vector.broadcast %644 : vector<1x128xf32> to vector<128x128xf32>
    %646 = arith.mulf %641, %645 : vector<128x128xf32>
    %647 = arith.mulf %646, %2 : vector<128x128xf32>
    %648 = arith.addf %647, %5 : vector<128x128xf32>
    %cst_201 = arith.constant 0.000000e+00 : f32
    %649 = vector.broadcast %cst_201 : f32 to vector<128x128xf32>
    %650 = arith.maximumf %648, %649 : vector<128x128xf32>
    %651 = arith.truncf %650 : vector<128x128xf32> to vector<128x128xbf16>
    %652 = vector.extract_strided_slice %651 {offsets = [0, 127], sizes = [128, 1], strides = [1, 1]} : vector<128x128xbf16> to vector<128x1xbf16>
    %653 = vector.extract_strided_slice %651 {offsets = [0, 0], sizes = [128, 127], strides = [1, 1]} : vector<128x128xbf16> to vector<128x127xbf16>
    %654 = tpu.concatenate %652, %653 in 1 : vector<128x1xbf16>, vector<128x127xbf16> -> vector<128x128xbf16>
    %cst_202 = arith.constant 0.000000e+00 : f32
    %655 = arith.truncf %cst_202 : f32 to bf16
    %656 = vector.broadcast %655 : bf16 to vector<128x128xbf16>
    %657 = arith.select %18, %654, %656 : vector<128x128xi1>, vector<128x128xbf16>
    %658 = vector.extract_strided_slice %651 {offsets = [0, 1], sizes = [128, 127], strides = [1, 1]} : vector<128x128xbf16> to vector<128x127xbf16>
    %659 = vector.extract_strided_slice %651 {offsets = [0, 0], sizes = [128, 1], strides = [1, 1]} : vector<128x128xbf16> to vector<128x1xbf16>
    %660 = tpu.concatenate %658, %659 in 1 : vector<128x127xbf16>, vector<128x1xbf16> -> vector<128x128xbf16>
    %cst_203 = arith.constant 0.000000e+00 : f32
    %661 = arith.truncf %cst_203 : f32 to bf16
    %662 = vector.broadcast %661 : bf16 to vector<128x128xbf16>
    %663 = arith.select %22, %660, %662 : vector<128x128xi1>, vector<128x128xbf16>
    %664 = tpu.concatenate %657, %651, %663 in 0 : vector<128x128xbf16>, vector<128x128xbf16>, vector<128x128xbf16> -> vector<384x128xbf16>
    %cst_204 = arith.constant dense<0.000000e+00> : vector<128x128xf32>
    %665 = tpu.matmul %12, %664, %cst_204 {dimension_numbers = #tpu.dot_dimension_numbers<[1], [0], [0], [1], [0, 0, 1, 1], [], []>} : vector<128x384xbf16>, vector<384x128xbf16>, vector<128x128xf32> -> vector<128x128xf32>
    %cst_205 = arith.constant dense<0.000000e+00> : vector<128xf32>
    %666 = vector.multi_reduction <add>, %665, %cst_205 [0] : vector<128x128xf32> to vector<128xf32>
    %667 = vector.shape_cast %666 : vector<128xf32> to vector<1x128xf32>
    %cst_206 = arith.constant 7.812500e-03 : f32
    %668 = vector.broadcast %cst_206 : f32 to vector<1x128xf32>
    %669 = arith.mulf %667, %668 : vector<1x128xf32>
    %670 = arith.mulf %665, %665 : vector<128x128xf32>
    %cst_207 = arith.constant dense<0.000000e+00> : vector<128xf32>
    %671 = vector.multi_reduction <add>, %670, %cst_207 [0] : vector<128x128xf32> to vector<128xf32>
    %672 = vector.shape_cast %671 : vector<128xf32> to vector<1x128xf32>
    %cst_208 = arith.constant 7.812500e-03 : f32
    %673 = vector.broadcast %cst_208 : f32 to vector<1x128xf32>
    %674 = arith.mulf %672, %673 : vector<1x128xf32>
    %675 = arith.mulf %669, %669 : vector<1x128xf32>
    %676 = arith.subf %674, %675 : vector<1x128xf32>
    %cst_209 = arith.constant 0.000000e+00 : f32
    %677 = vector.broadcast %cst_209 : f32 to vector<1x128xf32>
    %678 = arith.maximumf %676, %677 : vector<1x128xf32>
    %679 = vector.broadcast %669 : vector<1x128xf32> to vector<128x128xf32>
    %680 = arith.subf %665, %679 : vector<128x128xf32>
    %cst_210 = arith.constant 9.99999974E-6 : f32
    %681 = vector.broadcast %cst_210 : f32 to vector<1x128xf32>
    %682 = arith.addf %678, %681 : vector<1x128xf32>
    %683 = math.rsqrt %682 : vector<1x128xf32>
    %684 = vector.broadcast %683 : vector<1x128xf32> to vector<128x128xf32>
    %685 = arith.mulf %680, %684 : vector<128x128xf32>
    %686 = arith.mulf %685, %8 : vector<128x128xf32>
    %687 = arith.addf %686, %11 : vector<128x128xf32>
    %cst_211 = arith.constant 0.000000e+00 : f32
    %688 = vector.broadcast %cst_211 : f32 to vector<128x128xf32>
    %689 = arith.maximumf %687, %688 : vector<128x128xf32>
    %690 = arith.truncf %689 : vector<128x128xf32> to vector<128x128xbf16>
    %691 = vector.extract_strided_slice %690 {offsets = [0, 127], sizes = [128, 1], strides = [1, 1]} : vector<128x128xbf16> to vector<128x1xbf16>
    %692 = vector.extract_strided_slice %690 {offsets = [0, 0], sizes = [128, 127], strides = [1, 1]} : vector<128x128xbf16> to vector<128x127xbf16>
    %693 = tpu.concatenate %691, %692 in 1 : vector<128x1xbf16>, vector<128x127xbf16> -> vector<128x128xbf16>
    %cst_212 = arith.constant 0.000000e+00 : f32
    %694 = arith.truncf %cst_212 : f32 to bf16
    %695 = vector.broadcast %694 : bf16 to vector<128x128xbf16>
    %696 = arith.select %18, %693, %695 : vector<128x128xi1>, vector<128x128xbf16>
    %697 = vector.extract_strided_slice %690 {offsets = [0, 1], sizes = [128, 127], strides = [1, 1]} : vector<128x128xbf16> to vector<128x127xbf16>
    %698 = vector.extract_strided_slice %690 {offsets = [0, 0], sizes = [128, 1], strides = [1, 1]} : vector<128x128xbf16> to vector<128x1xbf16>
    %699 = tpu.concatenate %697, %698 in 1 : vector<128x127xbf16>, vector<128x1xbf16> -> vector<128x128xbf16>
    %cst_213 = arith.constant 0.000000e+00 : f32
    %700 = arith.truncf %cst_213 : f32 to bf16
    %701 = vector.broadcast %700 : bf16 to vector<128x128xbf16>
    %702 = arith.select %22, %699, %701 : vector<128x128xi1>, vector<128x128xbf16>
    %703 = tpu.concatenate %696, %690, %702 in 0 : vector<128x128xbf16>, vector<128x128xbf16>, vector<128x128xbf16> -> vector<384x128xbf16>
    %cst_214 = arith.constant dense<0.000000e+00> : vector<128x128xf32>
    %704 = tpu.matmul %13, %703, %cst_214 {dimension_numbers = #tpu.dot_dimension_numbers<[1], [0], [0], [1], [0, 0, 1, 1], [], []>} : vector<128x384xbf16>, vector<384x128xbf16>, vector<128x128xf32> -> vector<128x128xf32>
    %705 = arith.addf %704, %626 : vector<128x128xf32>
    %cst_215 = arith.constant 0.000000e+00 : f32
    %706 = vector.broadcast %cst_215 : f32 to vector<128x128xf32>
    %707 = arith.maximumf %705, %706 : vector<128x128xf32>
    %c7_216 = arith.constant 7 : index
    %c0_217 = arith.constant 0 : index
    %c0_218 = arith.constant 0 : index
    %708 = vector.load %arg8[%c7_216, %c0_217, %c0_218] : memref<8x128x128xf32, #tpu.memory_space<vmem>>, vector<1x128x128xf32>
    %709 = vector.shape_cast %708 : vector<1x128x128xf32> to vector<128x128xf32>
    %710 = vector.shape_cast %707 : vector<128x128xf32> to vector<1x128x128xf32>
    tpu.vector_store %arg8[%c7_216, %c0_217, %c0_218], %710 {strides = array<i32>} : memref<8x128x128xf32, #tpu.memory_space<vmem>>, vector<1x128x128xf32>,
    return
  }
  func.func @transform_0(%arg0: i32) -> (i32, i32, i32) {
    %c0_i32 = arith.constant 0 : i32
    %c0_i32_0 = arith.constant 0 : i32
    %c0_i32_1 = arith.constant 0 : i32
    return %arg0, %c0_i32, %c0_i32_0 : i32, i32, i32
  }
  func.func @transform_1(%arg0: i32) -> (i32, i32) {
    %c0_i32 = arith.constant 0 : i32
    %c0_i32_0 = arith.constant 0 : i32
    %c0_i32_1 = arith.constant 0 : i32
    return %c0_i32, %c0_i32_0 : i32, i32
  }
  func.func @transform_2(%arg0: i32) -> (i32, i32) {
    %c0_i32 = arith.constant 0 : i32
    %c0_i32_0 = arith.constant 0 : i32
    %c0_i32_1 = arith.constant 0 : i32
    return %c0_i32, %c0_i32_0 : i32, i32
  }
  func.func @transform_3(%arg0: i32) -> (i32, i32) {
    %c0_i32 = arith.constant 0 : i32
    %c0_i32_0 = arith.constant 0 : i32
    %c0_i32_1 = arith.constant 0 : i32
    return %c0_i32, %c0_i32_0 : i32, i32
  }
  func.func @transform_4(%arg0: i32) -> (i32, i32) {
    %c0_i32 = arith.constant 0 : i32
    %c0_i32_0 = arith.constant 0 : i32
    %c0_i32_1 = arith.constant 0 : i32
    return %c0_i32, %c0_i32_0 : i32, i32
  }
  func.func @transform_5(%arg0: i32) -> (i32, i32) {
    %c0_i32 = arith.constant 0 : i32
    %c0_i32_0 = arith.constant 0 : i32
    %c0_i32_1 = arith.constant 0 : i32
    return %c0_i32, %c0_i32_0 : i32, i32
  }
  func.func @transform_6(%arg0: i32) -> (i32, i32) {
    %c0_i32 = arith.constant 0 : i32
    %c0_i32_0 = arith.constant 0 : i32
    %c0_i32_1 = arith.constant 0 : i32
    return %c0_i32, %c0_i32_0 : i32, i32
  }
  func.func @transform_7(%arg0: i32) -> (i32, i32, i32) {
    %c0_i32 = arith.constant 0 : i32
    %c0_i32_0 = arith.constant 0 : i32
    %c0_i32_1 = arith.constant 0 : i32
    return %arg0, %c0_i32, %c0_i32_0 : i32, i32, i32
  }
}

</mosaic_0001>

<llo_original>
// kernel: tpu_custom_call.1
$region0: #{tpu_custom_call.1}
  #allocation0 [shape = 'u32[]', space=smem, size = 0x4, offset = 0x4, fixed_abs, tag = 'smem constant byte address 0x4 - core index']
  #allocation1 [shape = 'u32[144,128]{1,0:T(1,128)}', space=vmem, size = 0x12000, scoped, tag = 'internal scratch']
  %s0 = inlined_call_operand.hbm [shape: f32[16,128,128], index: 0, kind: input, shape index: {}]
  %s1 = inlined_call_operand.vmem [shape: f32[128,1], index: 1, kind: input, shape index: {}]
  %s2 = inlined_call_operand.vmem [shape: f32[128,1], index: 2, kind: input, shape index: {}]
  %s3 = inlined_call_operand.vmem [shape: bf16[128,384], index: 3, kind: input, shape index: {}]
  %s4 = inlined_call_operand.vmem [shape: f32[128,1], index: 4, kind: input, shape index: {}]
  %s5 = inlined_call_operand.vmem [shape: f32[128,1], index: 5, kind: input, shape index: {}]
  %s6 = inlined_call_operand.vmem [shape: bf16[128,384], index: 6, kind: input, shape index: {}]
  %s7 = inlined_call_operand.hbm [shape: f32[16,128,128], index: 7, kind: output, shape index: {}]
  %s8 = sld [smem:[#allocation0]]
  $region65: #{tpu_custom_call.1} parent=0
    _
  %s10 = ssub.s32 1, %s8
  %s11 = scalar_select 0, %s10, %s8
  $region1: #{tpu_custom_call.1} parent=0
    #allocation2 [shape = 'u8[1048576]{0}', space=vmem, size = 0x100000, scoped, tag = 'input window, operand 0']
    #allocation3 [shape = 's32[2]{0}', space=sflag, size = 0x8, scoped, tag = 'scoped memory for tpu_custom_call.1']
    #allocation4 [shape = 's32[2]{0}', space=sflag, size = 0x8, scoped, tag = 'scoped memory for tpu_custom_call.1']
    #allocation5 [shape = 'u8[1048576]{0}', space=vmem, size = 0x100000, scoped, tag = 'output window, operand 0']
    %12 = vsyncpa [#allocation3], 0
    %s13 = scalar_lea.sflag [#allocation3], 1
    %14 = vsyncpa %s13, 0
    %15 = vsyncpa [#allocation4], 0
    %s16 = scalar_lea.sflag [#allocation4], 1
    %17 = vsyncpa %s16, 0
    loop: start=0, step=1, limit=4
    $region2: #{tpu_custom_call.1} parent=1 // loop_pre_header
      _
    $region3: #{tpu_custom_call.1} parent=1 // loop_header
      %s19 = sphi 0, %s23
      %p20 = scmp.ge.s32.totalorder %s19, 4
      %s29 = sphi 0, %s31
      %s32 = sphi 0, %s29
      %s33 = sphi 0, %s32
      %s49 = sphi 0, %s33
      %s53 = sphi 0, %s53
      %s55 = sphi 0, %s53
      %s56 = sphi 0, %s55
      %s70 = sphi 0, %s56
      %s74 = sphi 0, %s74
      %s76 = sphi 0, %s74
      %s77 = sphi 0, %s76
      %s91 = sphi 0, %s77
      %s95 = sphi 0, %s95
      %s97 = sphi 0, %s95
      %s98 = sphi 0, %s97
      %s112 = sphi 0, %s98
      %s116 = sphi 0, %s116
      %s118 = sphi 0, %s116
      %s119 = sphi 0, %s118
      %s133 = sphi 0, %s119
      %s137 = sphi 0, %s137
      %s139 = sphi 0, %s137
      %s140 = sphi 0, %s139
      %s154 = sphi 0, %s140
      %s158 = sphi 0, %s158
      %s160 = sphi 0, %s158
      %s161 = sphi 0, %s160
      %s175 = sphi 0, %s161
      %s181 = sphi 0, %s183
      %s184 = sphi 0, %s181
      %s185 = sphi 0, %s184
      %s201 = sphi 0, %s185
    $region4: #{tpu_custom_call.1} parent=1 // loop_header_branch
      %22 = sbr.rel (%p20) target = $region8
    $region5: #{tpu_custom_call.1} parent=1 // loop_body
      %s24 = ssub.s32 %s19, 1
      %s25 = ssub.s32 %s19, 2
      %s26 = sadd.s32 %s19, 1
      %s27 = ssub.s32 %s19, %s26
      %p28 = scmp.eq.s32.totalorder %s27, 0
      %s30 = sadd.s32 %s29, 1
      %s31 = scalar_select %p28, %s29, %s30
      %p34 = pneg %p28
      %p35 = scmp.eq.s32.totalorder %s19, 1
      %p36 = por %p34, %p35
      %p37 = scmp.ne.s32.totalorder %s29, %s32
      %p38 = scmp.eq.s32.totalorder %s19, 0
      %p39 = por %p37, %p38
      %p40 = scmp.ne.s32.totalorder %s29, %s32
      %p41 = scmp.eq.s32.totalorder %s24, 1
      %p42 = por %p40, %p41
      %p43 = scmp.ne.s32.totalorder %s32, %s33
      %p44 = scmp.eq.s32.totalorder %s24, 0
      %p45 = por %p43, %p44
      %p46 = scmp.ne.s32.totalorder %s32, %s33
      %p47 = scmp.eq.s32.totalorder %s25, 1
      %p48 = por %p46, %p47
      %p50 = scmp.ne.s32.totalorder %s33, %s49
      %p51 = scmp.eq.s32.totalorder %s25, 0
      %p52 = por %p50, %p51
      %s54 = sadd.s32 %s53, 1
      %p57 = scmp.eq.s32.totalorder %s19, 1
      %p58 = scmp.ne.s32.totalorder %s53, %s55
      %p59 = scmp.eq.s32.totalorder %s19, 0
      %p60 = por %p58, %p59
      %p61 = scmp.ne.s32.totalorder %s53, %s55
      %p62 = scmp.eq.s32.totalorder %s24, 1
      %p63 = por %p61, %p62
      %p64 = scmp.ne.s32.totalorder %s55, %s56
      %p65 = scmp.eq.s32.totalorder %s24, 0
      %p66 = por %p64, %p65
      %p67 = scmp.ne.s32.totalorder %s55, %s56
      %p68 = scmp.eq.s32.totalorder %s25, 1
      %p69 = por %p67, %p68
      %p71 = scmp.ne.s32.totalorder %s56, %s70
      %p72 = scmp.eq.s32.totalorder %s25, 0
      %p73 = por %p71, %p72
      %s75 = sadd.s32 %s74, 1
      %p78 = scmp.eq.s32.totalorder %s19, 1
      %p79 = scmp.ne.s32.totalorder %s74, %s76
      %p80 = scmp.eq.s32.totalorder %s19, 0
      %p81 = por %p79, %p80
      %p82 = scmp.ne.s32.totalorder %s74, %s76
      %p83 = scmp.eq.s32.totalorder %s24, 1
      %p84 = por %p82, %p83
      %p85 = scmp.ne.s32.totalorder %s76, %s77
      %p86 = scmp.eq.s32.totalorder %s24, 0
      %p87 = por %p85, %p86
      %p88 = scmp.ne.s32.totalorder %s76, %s77
      %p89 = scmp.eq.s32.totalorder %s25, 1
      %p90 = por %p88, %p89
      %p92 = scmp.ne.s32.totalorder %s77, %s91
      %p93 = scmp.eq.s32.totalorder %s25, 0
      %p94 = por %p92, %p93
      %s96 = sadd.s32 %s95, 1
      %p99 = scmp.eq.s32.totalorder %s19, 1
      %p100 = scmp.ne.s32.totalorder %s95, %s97
      %p101 = scmp.eq.s32.totalorder %s19, 0
      %p102 = por %p100, %p101
      %p103 = scmp.ne.s32.totalorder %s95, %s97
      %p104 = scmp.eq.s32.totalorder %s24, 1
      %p105 = por %p103, %p104
      %p106 = scmp.ne.s32.totalorder %s97, %s98
      %p107 = scmp.eq.s32.totalorder %s24, 0
      %p108 = por %p106, %p107
      %p109 = scmp.ne.s32.totalorder %s97, %s98
      %p110 = scmp.eq.s32.totalorder %s25, 1
      %p111 = por %p109, %p110
      %p113 = scmp.ne.s32.totalorder %s98, %s112
      %p114 = scmp.eq.s32.totalorder %s25, 0
      %p115 = por %p113, %p114
      %s117 = sadd.s32 %s116, 1
      %p120 = scmp.eq.s32.totalorder %s19, 1
      %p121 = scmp.ne.s32.totalorder %s116, %s118
      %p122 = scmp.eq.s32.totalorder %s19, 0
      %p123 = por %p121, %p122
      %p124 = scmp.ne.s32.totalorder %s116, %s118
      %p125 = scmp.eq.s32.totalorder %s24, 1
      %p126 = por %p124, %p125
      %p127 = scmp.ne.s32.totalorder %s118, %s119
      %p128 = scmp.eq.s32.totalorder %s24, 0
      %p129 = por %p127, %p128
      %p130 = scmp.ne.s32.totalorder %s118, %s119
      %p131 = scmp.eq.s32.totalorder %s25, 1
      %p132 = por %p130, %p131
      %p134 = scmp.ne.s32.totalorder %s119, %s133
      %p135 = scmp.eq.s32.totalorder %s25, 0
      %p136 = por %p134, %p135
      %s138 = sadd.s32 %s137, 1
      %p141 = scmp.eq.s32.totalorder %s19, 1
      %p142 = scmp.ne.s32.totalorder %s137, %s139
      %p143 = scmp.eq.s32.totalorder %s19, 0
      %p144 = por %p142, %p143
      %p145 = scmp.ne.s32.totalorder %s137, %s139
      %p146 = scmp.eq.s32.totalorder %s24, 1
      %p147 = por %p145, %p146
      %p148 = scmp.ne.s32.totalorder %s139, %s140
      %p149 = scmp.eq.s32.totalorder %s24, 0
      %p150 = por %p148, %p149
      %p151 = scmp.ne.s32.totalorder %s139, %s140
      %p152 = scmp.eq.s32.totalorder %s25, 1
      %p153 = por %p151, %p152
      %p155 = scmp.ne.s32.totalorder %s140, %s154
      %p156 = scmp.eq.s32.totalorder %s25, 0
      %p157 = por %p155, %p156
      %s159 = sadd.s32 %s158, 1
      %p162 = scmp.eq.s32.totalorder %s19, 1
      %p163 = scmp.ne.s32.totalorder %s158, %s160
      %p164 = scmp.eq.s32.totalorder %s19, 0
      %p165 = por %p163, %p164
      %p166 = scmp.ne.s32.totalorder %s158, %s160
      %p167 = scmp.eq.s32.totalorder %s24, 1
      %p168 = por %p166, %p167
      %p169 = scmp.ne.s32.totalorder %s160, %s161
      %p170 = scmp.eq.s32.totalorder %s24, 0
      %p171 = por %p169, %p170
      %p172 = scmp.ne.s32.totalorder %s160, %s161
      %p173 = scmp.eq.s32.totalorder %s25, 1
      %p174 = por %p172, %p173
      %p176 = scmp.ne.s32.totalorder %s161, %s175
      %p177 = scmp.eq.s32.totalorder %s25, 0
      %p178 = por %p176, %p177
      %s179 = ssub.s32 %s19, %s26
      %p180 = scmp.eq.s32.totalorder %s179, 0
      %s182 = sadd.s32 %s181, 1
      %s183 = scalar_select %p180, %s181, %s182
      %p186 = pneg %p180
      %p187 = scmp.eq.s32.totalorder %s19, 1
      %p188 = por %p186, %p187
      %p189 = scmp.ne.s32.totalorder %s181, %s184
      %p190 = scmp.eq.s32.totalorder %s19, 0
      %p191 = por %p189, %p190
      %p192 = scmp.ne.s32.totalorder %s181, %s184
      %p193 = scmp.eq.s32.totalorder %s24, 1
      %p194 = por %p192, %p193
      %p195 = scmp.ne.s32.totalorder %s184, %s185
      %p196 = scmp.eq.s32.totalorder %s24, 0
      %p197 = por %p195, %p196
      %p198 = scmp.ne.s32.totalorder %s184, %s185
      %p199 = scmp.eq.s32.totalorder %s25, 1
      %p200 = por %p198, %p199
      %p202 = scmp.ne.s32.totalorder %s185, %s201
      %p203 = scmp.eq.s32.totalorder %s25, 0
      %p204 = por %p202, %p203
      %p205 = scmp.le.s32.totalorder 1, %s19
      %p206 = scmp.lt.s32.totalorder %s19, 3
      %p207 = pnand %p205, %p206
      %p208 = pneg %p207
      // Predicated region
      $region9: #{tpu_custom_call.1} parent=5 // pred_check
        _
      $region10: #{tpu_custom_call.1} parent=5 // pred_check_branch
        %210 = sbr.rel (%p207) target = $region12
      $region11: #{tpu_custom_call.1} parent=5 // pred_region
        %s211 = ssub.s32 %s19, 1
        // Predicated region
        $region13: #{tpu_custom_call.1} parent=11 // pred_check
          %p212 = pneg %p66
        $region14: #{tpu_custom_call.1} parent=11 // pred_check_branch
          %214 = sbr.rel (%p212) target = $region16
        $region15: #{tpu_custom_call.1} parent=11 // pred_region
          _
        $region16: #{tpu_custom_call.1} parent=11 // pred_fallthru
          _
        // Predicated region
        $region17: #{tpu_custom_call.1} parent=11 // pred_check
          %p215 = pneg %p87
        $region18: #{tpu_custom_call.1} parent=11 // pred_check_branch
          %217 = sbr.rel (%p215) target = $region20
        $region19: #{tpu_custom_call.1} parent=11 // pred_region
          _
        $region20: #{tpu_custom_call.1} parent=11 // pred_fallthru
          _
        // Predicated region
        $region21: #{tpu_custom_call.1} parent=11 // pred_check
          %p218 = pneg %p108
        $region22: #{tpu_custom_call.1} parent=11 // pred_check_branch
          %220 = sbr.rel (%p218) target = $region24
        $region23: #{tpu_custom_call.1} parent=11 // pred_region
          _
        $region24: #{tpu_custom_call.1} parent=11 // pred_fallthru
          _
        // Predicated region
        $region25: #{tpu_custom_call.1} parent=11 // pred_check
          %p221 = pneg %p129
        $region26: #{tpu_custom_call.1} parent=11 // pred_check_branch
          %223 = sbr.rel (%p221) target = $region28
        $region27: #{tpu_custom_call.1} parent=11 // pred_region
          _
        $region28: #{tpu_custom_call.1} parent=11 // pred_fallthru
          _
        // Predicated region
        $region29: #{tpu_custom_call.1} parent=11 // pred_check
          %p224 = pneg %p150
        $region30: #{tpu_custom_call.1} parent=11 // pred_check_branch
          %226 = sbr.rel (%p224) target = $region32
        $region31: #{tpu_custom_call.1} parent=11 // pred_region
          _
        $region32: #{tpu_custom_call.1} parent=11 // pred_fallthru
          _
        // Predicated region
        $region33: #{tpu_custom_call.1} parent=11 // pred_check
          %p227 = pneg %p171
        $region34: #{tpu_custom_call.1} parent=11 // pred_check_branch
          %229 = sbr.rel (%p227) target = $region36
        $region35: #{tpu_custom_call.1} parent=11 // pred_region
          _
        $region36: #{tpu_custom_call.1} parent=11 // pred_fallthru
          _
      $region12: #{tpu_custom_call.1} parent=5 // pred_fallthru
        _
      %p230 = scmp.lt.s32.totalorder %s19, 2
      // Predicated region
      $region37: #{tpu_custom_call.1} parent=5 // pred_check
        %p231 = pneg %p230
      $region38: #{tpu_custom_call.1} parent=5 // pred_check_branch
        %233 = sbr.rel (%p231) target = $region40
      $region39: #{tpu_custom_call.1} parent=5 // pred_region
        // Predicated region
        $region41: #{tpu_custom_call.1} parent=39 // pred_check
          %p234 = pneg %p39
        $region42: #{tpu_custom_call.1} parent=39 // pred_check_branch
          %236 = sbr.rel (%p234) target = $region44
        $region43: #{tpu_custom_call.1} parent=39 // pred_region
          %s237 = sand.u32 %s29, 1
          %s238 = scalar_lea.sflag [#allocation3], %s237
          %s239 = sand.u32 %s29, 1
          %s240 = smul.addr %s239, 1024
          %s241 = scalar_lea.vmem [#allocation2], %s240
          %s242 = smul.u32 8, %s19
          %s244 = ssub.s32 16384, 16384
          %245 = vsyncadd %s238, %s244
          %s246 = smul.addr %s242, 16
          %s247 = smul.addr %s246, 128
          %s248 = scalar_lea.hbm %s0, %s247
          %s249 = sshll.u32 %s241, 4
          %s250 = int_to_ptr.vmem [resolvable:$true] %s249
          %255 = dma.hbm_to_vmem [thread:$0]  %s248, 16384, %s250, %s238, 128, 128, 8
        $region44: #{tpu_custom_call.1} parent=39 // pred_fallthru
          _
      $region40: #{tpu_custom_call.1} parent=5 // pred_fallthru
        _
      %p256 = scmp.le.s32.totalorder 1, %s19
      %p257 = scmp.lt.s32.totalorder %s19, 3
      %p258 = pnand %p256, %p257
      %p259 = pneg %p258
      // Predicated region
      $region45: #{tpu_custom_call.1} parent=5 // pred_check
        _
      $region46: #{tpu_custom_call.1} parent=5 // pred_check_branch
        %261 = sbr.rel (%p258) target = $region48
      $region47: #{tpu_custom_call.1} parent=5 // pred_region
        %s262 = ssub.s32 %s19, 1
        %s263 = sand.u32 %s32, 1
        %s264 = scalar_lea.sflag [#allocation3], %s263
        %s265 = sand.u32 %s32, 1
        %s266 = smul.addr %s265, 1024
        %s267 = scalar_lea.vmem [#allocation2], %s266
        // Predicated region
        $region49: #{tpu_custom_call.1} parent=47 // pred_check
          %p268 = pneg %p45
        $region50: #{tpu_custom_call.1} parent=47 // pred_check_branch
          %270 = sbr.rel (%p268) target = $region52
        $region51: #{tpu_custom_call.1} parent=47 // pred_region
          %271 = dma.done %s264, 16384
        $region52: #{tpu_custom_call.1} parent=47 // pred_fallthru
          _
        %s272 = sand.u32 %s32, 1
        %s273 = scalar_lea.sflag [#allocation3], %s272
        %s274 = sand.u32 %s32, 1
        %s275 = smul.addr %s274, 1024
        %s276 = scalar_lea.vmem [#allocation2], %s275
        %p277 = pneg %p45
        %p278 = pneg %p42
        %p279 = pneg %p66
        %p280 = pneg %p63
        %p281 = pneg %p87
        %p282 = pneg %p84
        %p283 = pneg %p108
        %p284 = pneg %p105
        %p285 = pneg %p129
        %p286 = pneg %p126
        %p287 = pneg %p150
        %p288 = pneg %p147
        %p289 = pneg %p171
        %p290 = pneg %p168
        %p291 = pneg %p197
        %p292 = pneg %p194
        %s293 = sand.u32 %s184, 1
        %s294 = scalar_lea.sflag [#allocation4], %s293
        %s295 = sand.u32 %s184, 1
        %s296 = smul.addr %s295, 1024
        %s297 = scalar_lea.vmem [#allocation5], %s296
        %s298 = smul.u32 8, %s24
        %s299 = smul.u32 8, %s24
        %v303 = vld [vmem:[%s1] sm:$0xff]
        %v304 = vld [vmem:[%s1 + $0x8] sm:$0xff]
        %v305 = vld [vmem:[%s1 + $0x10] sm:$0xff]
        %v306 = vld [vmem:[%s1 + $0x18] sm:$0xff]
        %v307 = vld [vmem:[%s1 + $0x20] sm:$0xff]
        %v308 = vld [vmem:[%s1 + $0x28] sm:$0xff]
        %v309 = vld [vmem:[%s1 + $0x30] sm:$0xff]
        %v310 = vld [vmem:[%s1 + $0x38] sm:$0xff]
        %v311 = vld [vmem:[%s1 + $0x40] sm:$0xff]
        %v312 = vld [vmem:[%s1 + $0x48] sm:$0xff]
        %v313 = vld [vmem:[%s1 + $0x50] sm:$0xff]
        %v314 = vld [vmem:[%s1 + $0x58] sm:$0xff]
        %v315 = vld [vmem:[%s1 + $0x60] sm:$0xff]
        %v316 = vld [vmem:[%s1 + $0x68] sm:$0xff]
        %v317 = vld [vmem:[%s1 + $0x70] sm:$0xff]
        %v318 = vld [vmem:[%s1 + $0x78] sm:$0xff]
        %320 = vset.pattern.permute.xlu0 0
        %321 = vperm.xlu0 %320, %v303
        %v322 = vpop.permute.xlu0 %321
        %325 = vset.pattern.permute.xlu0 0
        %326 = vperm.xlu0 %325, %v304
        %v327 = vpop.permute.xlu0 %326
        %330 = vset.pattern.permute.xlu0 0
        %331 = vperm.xlu0 %330, %v305
        %v332 = vpop.permute.xlu0 %331
        %335 = vset.pattern.permute.xlu0 0
        %336 = vperm.xlu0 %335, %v306
        %v337 = vpop.permute.xlu0 %336
        %340 = vset.pattern.permute.xlu0 0
        %341 = vperm.xlu0 %340, %v307
        %v342 = vpop.permute.xlu0 %341
        %345 = vset.pattern.permute.xlu0 0
        %346 = vperm.xlu0 %345, %v308
        %v347 = vpop.permute.xlu0 %346
        %350 = vset.pattern.permute.xlu0 0
        %351 = vperm.xlu0 %350, %v309
        %v352 = vpop.permute.xlu0 %351
        %355 = vset.pattern.permute.xlu0 0
        %356 = vperm.xlu0 %355, %v310
        %v357 = vpop.permute.xlu0 %356
        %360 = vset.pattern.permute.xlu0 0
        %361 = vperm.xlu0 %360, %v311
        %v362 = vpop.permute.xlu0 %361
        %365 = vset.pattern.permute.xlu0 0
        %366 = vperm.xlu0 %365, %v312
        %v367 = vpop.permute.xlu0 %366
        %370 = vset.pattern.permute.xlu0 0
        %371 = vperm.xlu0 %370, %v313
        %v372 = vpop.permute.xlu0 %371
        %375 = vset.pattern.permute.xlu0 0
        %376 = vperm.xlu0 %375, %v314
        %v377 = vpop.permute.xlu0 %376
        %380 = vset.pattern.permute.xlu0 0
        %381 = vperm.xlu0 %380, %v315
        %v382 = vpop.permute.xlu0 %381
        %385 = vset.pattern.permute.xlu0 0
        %386 = vperm.xlu0 %385, %v316
        %v387 = vpop.permute.xlu0 %386
        %390 = vset.pattern.permute.xlu0 0
        %391 = vperm.xlu0 %390, %v317
        %v392 = vpop.permute.xlu0 %391
        %395 = vset.pattern.permute.xlu0 0
        %396 = vperm.xlu0 %395, %v318
        %v397 = vpop.permute.xlu0 %396
        %v399 = vld [vmem:[%s2] sm:$0xff]
        %v400 = vld [vmem:[%s2 + $0x8] sm:$0xff]
        %v401 = vld [vmem:[%s2 + $0x10] sm:$0xff]
        %v402 = vld [vmem:[%s2 + $0x18] sm:$0xff]
        %v403 = vld [vmem:[%s2 + $0x20] sm:$0xff]
        %v404 = vld [vmem:[%s2 + $0x28] sm:$0xff]
        %v405 = vld [vmem:[%s2 + $0x30] sm:$0xff]
        %v406 = vld [vmem:[%s2 + $0x38] sm:$0xff]
        %v407 = vld [vmem:[%s2 + $0x40] sm:$0xff]
        %v408 = vld [vmem:[%s2 + $0x48] sm:$0xff]
        %v409 = vld [vmem:[%s2 + $0x50] sm:$0xff]
        %v410 = vld [vmem:[%s2 + $0x58] sm:$0xff]
        %v411 = vld [vmem:[%s2 + $0x60] sm:$0xff]
        %v412 = vld [vmem:[%s2 + $0x68] sm:$0xff]
        %v413 = vld [vmem:[%s2 + $0x70] sm:$0xff]
        %v414 = vld [vmem:[%s2 + $0x78] sm:$0xff]
        %416 = vset.pattern.permute.xlu0 0
        %417 = vperm.xlu0 %416, %v399
        %v418 = vpop.permute.xlu0 %417
        %421 = vset.pattern.permute.xlu0 0
        %422 = vperm.xlu0 %421, %v400
        %v423 = vpop.permute.xlu0 %422
        %426 = vset.pattern.permute.xlu0 0
        %427 = vperm.xlu0 %426, %v401
        %v428 = vpop.permute.xlu0 %427
        %431 = vset.pattern.permute.xlu0 0
        %432 = vperm.xlu0 %431, %v402
        %v433 = vpop.permute.xlu0 %432
        %436 = vset.pattern.permute.xlu0 0
        %437 = vperm.xlu0 %436, %v403
        %v438 = vpop.permute.xlu0 %437
        %441 = vset.pattern.permute.xlu0 0
        %442 = vperm.xlu0 %441, %v404
        %v443 = vpop.permute.xlu0 %442
        %446 = vset.pattern.permute.xlu0 0
        %447 = vperm.xlu0 %446, %v405
        %v448 = vpop.permute.xlu0 %447
        %451 = vset.pattern.permute.xlu0 0
        %452 = vperm.xlu0 %451, %v406
        %v453 = vpop.permute.xlu0 %452
        %456 = vset.pattern.permute.xlu0 0
        %457 = vperm.xlu0 %456, %v407
        %v458 = vpop.permute.xlu0 %457
        %461 = vset.pattern.permute.xlu0 0
        %462 = vperm.xlu0 %461, %v408
        %v463 = vpop.permute.xlu0 %462
        %466 = vset.pattern.permute.xlu0 0
        %467 = vperm.xlu0 %466, %v409
        %v468 = vpop.permute.xlu0 %467
        %471 = vset.pattern.permute.xlu0 0
        %472 = vperm.xlu0 %471, %v410
        %v473 = vpop.permute.xlu0 %472
        %476 = vset.pattern.permute.xlu0 0
        %477 = vperm.xlu0 %476, %v411
        %v478 = vpop.permute.xlu0 %477
        %481 = vset.pattern.permute.xlu0 0
        %482 = vperm.xlu0 %481, %v412
        %v483 = vpop.permute.xlu0 %482
        %486 = vset.pattern.permute.xlu0 0
        %487 = vperm.xlu0 %486, %v413
        %v488 = vpop.permute.xlu0 %487
        %491 = vset.pattern.permute.xlu0 0
        %492 = vperm.xlu0 %491, %v414
        %v493 = vpop.permute.xlu0 %492
        %v495 = vld [vmem:[%s4] sm:$0xff]
        %v496 = vld [vmem:[%s4 + $0x8] sm:$0xff]
        %v497 = vld [vmem:[%s4 + $0x10] sm:$0xff]
        %v498 = vld [vmem:[%s4 + $0x18] sm:$0xff]
        %v499 = vld [vmem:[%s4 + $0x20] sm:$0xff]
        %v500 = vld [vmem:[%s4 + $0x28] sm:$0xff]
        %v501 = vld [vmem:[%s4 + $0x30] sm:$0xff]
        %v502 = vld [vmem:[%s4 + $0x38] sm:$0xff]
        %v503 = vld [vmem:[%s4 + $0x40] sm:$0xff]
        %v504 = vld [vmem:[%s4 + $0x48] sm:$0xff]
        %v505 = vld [vmem:[%s4 + $0x50] sm:$0xff]
        %v506 = vld [vmem:[%s4 + $0x58] sm:$0xff]
        %v507 = vld [vmem:[%s4 + $0x60] sm:$0xff]
        %v508 = vld [vmem:[%s4 + $0x68] sm:$0xff]
        %v509 = vld [vmem:[%s4 + $0x70] sm:$0xff]
        %v510 = vld [vmem:[%s4 + $0x78] sm:$0xff]
        %512 = vset.pattern.permute.xlu0 0
        %513 = vperm.xlu0 %512, %v495
        %v514 = vpop.permute.xlu0 %513
        %517 = vset.pattern.permute.xlu0 0
        %518 = vperm.xlu0 %517, %v496
        %v519 = vpop.permute.xlu0 %518
        %522 = vset.pattern.permute.xlu0 0
        %523 = vperm.xlu0 %522, %v497
        %v524 = vpop.permute.xlu0 %523
        %527 = vset.pattern.permute.xlu0 0
        %528 = vperm.xlu0 %527, %v498
        %v529 = vpop.permute.xlu0 %528
        %532 = vset.pattern.permute.xlu0 0
        %533 = vperm.xlu0 %532, %v499
        %v534 = vpop.permute.xlu0 %533
        %537 = vset.pattern.permute.xlu0 0
        %538 = vperm.xlu0 %537, %v500
        %v539 = vpop.permute.xlu0 %538
        %542 = vset.pattern.permute.xlu0 0
        %543 = vperm.xlu0 %542, %v501
        %v544 = vpop.permute.xlu0 %543
        %547 = vset.pattern.permute.xlu0 0
        %548 = vperm.xlu0 %547, %v502
        %v549 = vpop.permute.xlu0 %548
        %552 = vset.pattern.permute.xlu0 0
        %553 = vperm.xlu0 %552, %v503
        %v554 = vpop.permute.xlu0 %553
        %557 = vset.pattern.permute.xlu0 0
        %558 = vperm.xlu0 %557, %v504
        %v559 = vpop.permute.xlu0 %558
        %562 = vset.pattern.permute.xlu0 0
        %563 = vperm.xlu0 %562, %v505
        %v564 = vpop.permute.xlu0 %563
        %567 = vset.pattern.permute.xlu0 0
        %568 = vperm.xlu0 %567, %v506
        %v569 = vpop.permute.xlu0 %568
        %572 = vset.pattern.permute.xlu0 0
        %573 = vperm.xlu0 %572, %v507
        %v574 = vpop.permute.xlu0 %573
        %577 = vset.pattern.permute.xlu0 0
        %578 = vperm.xlu0 %577, %v508
        %v579 = vpop.permute.xlu0 %578
        %582 = vset.pattern.permute.xlu0 0
        %583 = vperm.xlu0 %582, %v509
        %v584 = vpop.permute.xlu0 %583
        %587 = vset.pattern.permute.xlu0 0
        %588 = vperm.xlu0 %587, %v510
        %v589 = vpop.permute.xlu0 %588
        %v591 = vld [vmem:[%s5] sm:$0xff]
        %v592 = vld [vmem:[%s5 + $0x8] sm:$0xff]
        %v593 = vld [vmem:[%s5 + $0x10] sm:$0xff]
        %v594 = vld [vmem:[%s5 + $0x18] sm:$0xff]
        %v595 = vld [vmem:[%s5 + $0x20] sm:$0xff]
        %v596 = vld [vmem:[%s5 + $0x28] sm:$0xff]
        %v597 = vld [vmem:[%s5 + $0x30] sm:$0xff]
        %v598 = vld [vmem:[%s5 + $0x38] sm:$0xff]
        %v599 = vld [vmem:[%s5 + $0x40] sm:$0xff]
        %v600 = vld [vmem:[%s5 + $0x48] sm:$0xff]
        %v601 = vld [vmem:[%s5 + $0x50] sm:$0xff]
        %v602 = vld [vmem:[%s5 + $0x58] sm:$0xff]
        %v603 = vld [vmem:[%s5 + $0x60] sm:$0xff]
        %v604 = vld [vmem:[%s5 + $0x68] sm:$0xff]
        %v605 = vld [vmem:[%s5 + $0x70] sm:$0xff]
        %v606 = vld [vmem:[%s5 + $0x78] sm:$0xff]
        %608 = vset.pattern.permute.xlu0 0
        %609 = vperm.xlu0 %608, %v591
        %v610 = vpop.permute.xlu0 %609
        %613 = vset.pattern.permute.xlu0 0
        %614 = vperm.xlu0 %613, %v592
        %v615 = vpop.permute.xlu0 %614
        %618 = vset.pattern.permute.xlu0 0
        %619 = vperm.xlu0 %618, %v593
        %v620 = vpop.permute.xlu0 %619
        %623 = vset.pattern.permute.xlu0 0
        %624 = vperm.xlu0 %623, %v594
        %v625 = vpop.permute.xlu0 %624
        %628 = vset.pattern.permute.xlu0 0
        %629 = vperm.xlu0 %628, %v595
        %v630 = vpop.permute.xlu0 %629
        %633 = vset.pattern.permute.xlu0 0
        %634 = vperm.xlu0 %633, %v596
        %v635 = vpop.permute.xlu0 %634
        %638 = vset.pattern.permute.xlu0 0
        %639 = vperm.xlu0 %638, %v597
        %v640 = vpop.permute.xlu0 %639
        %643 = vset.pattern.permute.xlu0 0
        %644 = vperm.xlu0 %643, %v598
        %v645 = vpop.permute.xlu0 %644
        %648 = vset.pattern.permute.xlu0 0
        %649 = vperm.xlu0 %648, %v599
        %v650 = vpop.permute.xlu0 %649
        %653 = vset.pattern.permute.xlu0 0
        %654 = vperm.xlu0 %653, %v600
        %v655 = vpop.permute.xlu0 %654
        %658 = vset.pattern.permute.xlu0 0
        %659 = vperm.xlu0 %658, %v601
        %v660 = vpop.permute.xlu0 %659
        %663 = vset.pattern.permute.xlu0 0
        %664 = vperm.xlu0 %663, %v602
        %v665 = vpop.permute.xlu0 %664
        %668 = vset.pattern.permute.xlu0 0
        %669 = vperm.xlu0 %668, %v603
        %v670 = vpop.permute.xlu0 %669
        %673 = vset.pattern.permute.xlu0 0
        %674 = vperm.xlu0 %673, %v604
        %v675 = vpop.permute.xlu0 %674
        %678 = vset.pattern.permute.xlu0 0
        %679 = vperm.xlu0 %678, %v605
        %v680 = vpop.permute.xlu0 %679
        %683 = vset.pattern.permute.xlu0 0
        %684 = vperm.xlu0 %683, %v606
        %v685 = vpop.permute.xlu0 %684
        %v687 = vld [vmem:[%s3] sm:$0xff]
        %v688 = vld [vmem:[%s3 + $0x8] sm:$0xf]
        %v689 = vld [vmem:[%s3 + $0xc] sm:$0xff]
        %v690 = vld [vmem:[%s3 + $0x14] sm:$0xf]
        %v691 = vld [vmem:[%s3 + $0x18] sm:$0xff]
        %v692 = vld [vmem:[%s3 + $0x20] sm:$0xf]
        %v693 = vld [vmem:[%s3 + $0x24] sm:$0xff]
        %v694 = vld [vmem:[%s3 + $0x2c] sm:$0xf]
        %v695 = vld [vmem:[%s3 + $0x30] sm:$0xff]
        %v696 = vld [vmem:[%s3 + $0x38] sm:$0xf]
        %v697 = vld [vmem:[%s3 + $0x3c] sm:$0xff]
        %v698 = vld [vmem:[%s3 + $0x44] sm:$0xf]
        %v699 = vld [vmem:[%s3 + $0x48] sm:$0xff]
        %v700 = vld [vmem:[%s3 + $0x50] sm:$0xf]
        %v701 = vld [vmem:[%s3 + $0x54] sm:$0xff]
        %v702 = vld [vmem:[%s3 + $0x5c] sm:$0xf]
        %v703 = vld [vmem:[%s3 + $0x60] sm:$0xff]
        %v704 = vld [vmem:[%s3 + $0x68] sm:$0xf]
        %v705 = vld [vmem:[%s3 + $0x6c] sm:$0xff]
        %v706 = vld [vmem:[%s3 + $0x74] sm:$0xf]
        %v707 = vld [vmem:[%s3 + $0x78] sm:$0xff]
        %v708 = vld [vmem:[%s3 + $0x80] sm:$0xf]
        %v709 = vld [vmem:[%s3 + $0x84] sm:$0xff]
        %v710 = vld [vmem:[%s3 + $0x8c] sm:$0xf]
        %v711 = vld [vmem:[%s3 + $0x90] sm:$0xff]
        %v712 = vld [vmem:[%s3 + $0x98] sm:$0xf]
        %v713 = vld [vmem:[%s3 + $0x9c] sm:$0xff]
        %v714 = vld [vmem:[%s3 + $0xa4] sm:$0xf]
        %v715 = vld [vmem:[%s3 + $0xa8] sm:$0xff]
        %v716 = vld [vmem:[%s3 + $0xb0] sm:$0xf]
        %v717 = vld [vmem:[%s3 + $0xb4] sm:$0xff]
        %v718 = vld [vmem:[%s3 + $0xbc] sm:$0xf]
        %v719 = vld [vmem:[%s6] sm:$0xff]
        %v720 = vld [vmem:[%s6 + $0x8] sm:$0xf]
        %v721 = vld [vmem:[%s6 + $0xc] sm:$0xff]
        %v722 = vld [vmem:[%s6 + $0x14] sm:$0xf]
        %v723 = vld [vmem:[%s6 + $0x18] sm:$0xff]
        %v724 = vld [vmem:[%s6 + $0x20] sm:$0xf]
        %v725 = vld [vmem:[%s6 + $0x24] sm:$0xff]
        %v726 = vld [vmem:[%s6 + $0x2c] sm:$0xf]
        %v727 = vld [vmem:[%s6 + $0x30] sm:$0xff]
        %v728 = vld [vmem:[%s6 + $0x38] sm:$0xf]
        %v729 = vld [vmem:[%s6 + $0x3c] sm:$0xff]
        %v730 = vld [vmem:[%s6 + $0x44] sm:$0xf]
        %v731 = vld [vmem:[%s6 + $0x48] sm:$0xff]
        %v732 = vld [vmem:[%s6 + $0x50] sm:$0xf]
        %v733 = vld [vmem:[%s6 + $0x54] sm:$0xff]
        %v734 = vld [vmem:[%s6 + $0x5c] sm:$0xf]
        %v735 = vld [vmem:[%s6 + $0x60] sm:$0xff]
        %v736 = vld [vmem:[%s6 + $0x68] sm:$0xf]
        %v737 = vld [vmem:[%s6 + $0x6c] sm:$0xff]
        %v738 = vld [vmem:[%s6 + $0x74] sm:$0xf]
        %v739 = vld [vmem:[%s6 + $0x78] sm:$0xff]
        %v740 = vld [vmem:[%s6 + $0x80] sm:$0xf]
        %v741 = vld [vmem:[%s6 + $0x84] sm:$0xff]
        %v742 = vld [vmem:[%s6 + $0x8c] sm:$0xf]
        %v743 = vld [vmem:[%s6 + $0x90] sm:$0xff]
        %v744 = vld [vmem:[%s6 + $0x98] sm:$0xf]
        %v745 = vld [vmem:[%s6 + $0x9c] sm:$0xff]
        %v746 = vld [vmem:[%s6 + $0xa4] sm:$0xf]
        %v747 = vld [vmem:[%s6 + $0xa8] sm:$0xff]
        %v748 = vld [vmem:[%s6 + $0xb0] sm:$0xf]
        %v749 = vld [vmem:[%s6 + $0xb4] sm:$0xff]
        %v750 = vld [vmem:[%s6 + $0xbc] sm:$0xf]
        %v751 = vlaneseq
        %v752 = vand.u32 %v751, 127
        %vm753 = vcmp.ne.s32.totalorder %v752, 0
        %v754 = vsel %vm753, 1, 0
        %vm755 = vcmp.eq.s32.totalorder %v754, 1
        %vm756 = vcmp.ne.s32.totalorder %v752, 127
        %v757 = vsel %vm756, 1, 0
        %vm758 = vcmp.eq.s32.totalorder %v757, 1
        %v759 = vld [vmem:[%s267] sm:$0xff]
        %v760 = vld [vmem:[%s267 + $0x8] sm:$0xff]
        %v761 = vld [vmem:[%s267 + $0x10] sm:$0xff]
        %v762 = vld [vmem:[%s267 + $0x18] sm:$0xff]
        %v763 = vld [vmem:[%s267 + $0x20] sm:$0xff]
        %v764 = vld [vmem:[%s267 + $0x28] sm:$0xff]
        %v765 = vld [vmem:[%s267 + $0x30] sm:$0xff]
        %v766 = vld [vmem:[%s267 + $0x38] sm:$0xff]
        %v767 = vld [vmem:[%s267 + $0x40] sm:$0xff]
        %v768 = vld [vmem:[%s267 + $0x48] sm:$0xff]
        %v769 = vld [vmem:[%s267 + $0x50] sm:$0xff]
        %v770 = vld [vmem:[%s267 + $0x58] sm:$0xff]
        %v771 = vld [vmem:[%s267 + $0x60] sm:$0xff]
        %v772 = vld [vmem:[%s267 + $0x68] sm:$0xff]
        %v773 = vld [vmem:[%s267 + $0x70] sm:$0xff]
        %v774 = vld [vmem:[%s267 + $0x78] sm:$0xff]
        %v775 = vadd.f32 %v759, %v760
        %v776 = vadd.f32 %v775, %v761
        %v777 = vadd.f32 %v776, %v762
        %v778 = vadd.f32 %v777, %v763
        %v779 = vadd.f32 %v778, %v764
        %v780 = vadd.f32 %v779, %v765
        %v781 = vadd.f32 %v780, %v766
        %v782 = vadd.f32 %v781, %v767
        %v783 = vadd.f32 %v782, %v768
        %v784 = vadd.f32 %v783, %v769
        %v785 = vadd.f32 %v784, %v770
        %v786 = vadd.f32 %v785, %v771
        %v787 = vadd.f32 %v786, %v772
        %v788 = vadd.f32 %v787, %v773
        %v789 = vadd.f32 %v788, %v774
        %v790 = vrot.slane %v789, 4
        %v791 = vadd.f32 %v789, %v790
        %v792 = vrot.slane %v791, 2
        %v793 = vadd.f32 %v791, %v792
        %v794 = vrot.slane %v793, 1
        %v795 = vadd.f32 %v793, %v794
        %v796 = vmul.f32 %v795, 0.0078125
        %v797 = vmul.f32 %v759, %v759
        %v798 = vmul.f32 %v760, %v760
        %v799 = vmul.f32 %v761, %v761
        %v800 = vmul.f32 %v762, %v762
        %v801 = vmul.f32 %v763, %v763
        %v802 = vmul.f32 %v764, %v764
        %v803 = vmul.f32 %v765, %v765
        %v804 = vmul.f32 %v766, %v766
        %v805 = vmul.f32 %v767, %v767
        %v806 = vmul.f32 %v768, %v768
        %v807 = vmul.f32 %v769, %v769
        %v808 = vmul.f32 %v770, %v770
        %v809 = vmul.f32 %v771, %v771
        %v810 = vmul.f32 %v772, %v772
        %v811 = vmul.f32 %v773, %v773
        %v812 = vmul.f32 %v774, %v774
        %v813 = vadd.f32 %v797, %v798
        %v814 = vadd.f32 %v813, %v799
        %v815 = vadd.f32 %v814, %v800
        %v816 = vadd.f32 %v815, %v801
        %v817 = vadd.f32 %v816, %v802
        %v818 = vadd.f32 %v817, %v803
        %v819 = vadd.f32 %v818, %v804
        %v820 = vadd.f32 %v819, %v805
        %v821 = vadd.f32 %v820, %v806
        %v822 = vadd.f32 %v821, %v807
        %v823 = vadd.f32 %v822, %v808
        %v824 = vadd.f32 %v823, %v809
        %v825 = vadd.f32 %v824, %v810
        %v826 = vadd.f32 %v825, %v811
        %v827 = vadd.f32 %v826, %v812
        %v828 = vrot.slane %v827, 4
        %v829 = vadd.f32 %v827, %v828
        %v830 = vrot.slane %v829, 2
        %v831 = vadd.f32 %v829, %v830
        %v832 = vrot.slane %v831, 1
        %v833 = vadd.f32 %v831, %v832
        %v834 = vmul.f32 %v833, 0.0078125
        %v835 = vmul.f32 %v796, %v796
        %v836 = vsub.f32 %v834, %v835
        %v837 = vmax.f32 %v836, 0.0
        %v838 = vsub.f32 %v759, %v796
        %v839 = vsub.f32 %v760, %v796
        %v840 = vsub.f32 %v761, %v796
        %v841 = vsub.f32 %v762, %v796
        %v842 = vsub.f32 %v763, %v796
        %v843 = vsub.f32 %v764, %v796
        %v844 = vsub.f32 %v765, %v796
        %v845 = vsub.f32 %v766, %v796
        %v846 = vsub.f32 %v767, %v796
        %v847 = vsub.f32 %v768, %v796
        %v848 = vsub.f32 %v769, %v796
        %v849 = vsub.f32 %v770, %v796
        %v850 = vsub.f32 %v771, %v796
        %v851 = vsub.f32 %v772, %v796
        %v852 = vsub.f32 %v773, %v796
        %v853 = vsub.f32 %v774, %v796
        %v854 = vadd.f32 %v837, 1e-05
        %v855 = vrsqrt.pop %v854
        %v856 = vmul.f32 %v838, %v855
        %v857 = vmul.f32 %v839, %v855
        %v858 = vmul.f32 %v840, %v855
        %v859 = vmul.f32 %v841, %v855
        %v860 = vmul.f32 %v842, %v855
        %v861 = vmul.f32 %v843, %v855
        %v862 = vmul.f32 %v844, %v855
        %v863 = vmul.f32 %v845, %v855
        %v864 = vmul.f32 %v846, %v855
        %v865 = vmul.f32 %v847, %v855
        %v866 = vmul.f32 %v848, %v855
        %v867 = vmul.f32 %v849, %v855
        %v868 = vmul.f32 %v850, %v855
        %v869 = vmul.f32 %v851, %v855
        %v870 = vmul.f32 %v852, %v855
        %v871 = vmul.f32 %v853, %v855
        %v872 = vmul.f32 %v856, %v322
        %v873 = vmul.f32 %v857, %v327
        %v874 = vmul.f32 %v858, %v332
        %v875 = vmul.f32 %v859, %v337
        %v876 = vmul.f32 %v860, %v342
        %v877 = vmul.f32 %v861, %v347
        %v878 = vmul.f32 %v862, %v352
        %v879 = vmul.f32 %v863, %v357
        %v880 = vmul.f32 %v864, %v362
        %v881 = vmul.f32 %v865, %v367
        %v882 = vmul.f32 %v866, %v372
        %v883 = vmul.f32 %v867, %v377
        %v884 = vmul.f32 %v868, %v382
        %v885 = vmul.f32 %v869, %v387
        %v886 = vmul.f32 %v870, %v392
        %v887 = vmul.f32 %v871, %v397
        %v888 = vadd.f32 %v872, %v418
        %v889 = vadd.f32 %v873, %v423
        %v890 = vadd.f32 %v874, %v428
        %v891 = vadd.f32 %v875, %v433
        %v892 = vadd.f32 %v876, %v438
        %v893 = vadd.f32 %v877, %v443
        %v894 = vadd.f32 %v878, %v448
        %v895 = vadd.f32 %v879, %v453
        %v896 = vadd.f32 %v880, %v458
        %v897 = vadd.f32 %v881, %v463
        %v898 = vadd.f32 %v882, %v468
        %v899 = vadd.f32 %v883, %v473
        %v900 = vadd.f32 %v884, %v478
        %v901 = vadd.f32 %v885, %v483
        %v902 = vadd.f32 %v886, %v488
        %v903 = vadd.f32 %v887, %v493
        %v904 = vmax.f32 %v888, 0.0
        %v905 = vmax.f32 %v889, 0.0
        %v906 = vmax.f32 %v890, 0.0
        %v907 = vmax.f32 %v891, 0.0
        %v908 = vmax.f32 %v892, 0.0
        %v909 = vmax.f32 %v893, 0.0
        %v910 = vmax.f32 %v894, 0.0
        %v911 = vmax.f32 %v895, 0.0
        %v912 = vmax.f32 %v896, 0.0
        %v913 = vmax.f32 %v897, 0.0
        %v914 = vmax.f32 %v898, 0.0
        %v915 = vmax.f32 %v899, 0.0
        %v916 = vmax.f32 %v900, 0.0
        %v917 = vmax.f32 %v901, 0.0
        %v918 = vmax.f32 %v902, 0.0
        %v919 = vmax.f32 %v903, 0.0
        %v920 = vpack.c.bf16 %v905, %v904
        %v921 = vpack.c.bf16 %v907, %v906
        %v922 = vpack.c.bf16 %v909, %v908
        %v923 = vpack.c.bf16 %v911, %v910
        %v924 = vpack.c.bf16 %v913, %v912
        %v925 = vpack.c.bf16 %v915, %v914
        %v926 = vpack.c.bf16 %v917, %v916
        %v927 = vpack.c.bf16 %v919, %v918
        %936 = vrot.lane.b32.xlu0 %v920, 1
        %v937 = vpop.permute.xlu0 %936
        %938 = vrot.lane.b32.xlu0 %v921, 1
        %v939 = vpop.permute.xlu0 %938
        %940 = vrot.lane.b32.xlu0 %v922, 1
        %v941 = vpop.permute.xlu0 %940
        %942 = vrot.lane.b32.xlu0 %v923, 1
        %v943 = vpop.permute.xlu0 %942
        %944 = vrot.lane.b32.xlu0 %v924, 1
        %v945 = vpop.permute.xlu0 %944
        %946 = vrot.lane.b32.xlu0 %v925, 1
        %v947 = vpop.permute.xlu0 %946
        %948 = vrot.lane.b32.xlu0 %v926, 1
        %v949 = vpop.permute.xlu0 %948
        %950 = vrot.lane.b32.xlu0 %v927, 1
        %v951 = vpop.permute.xlu0 %950
        %vm968 = vmpackc.low %vm755, %vm755
        %v969 = vsel %vm968, 65537, 0
        %v970 = vlaneseq
        %v971 = vshrl.u32 %v970, 7
        %v972 = vsub.s32 0, %v971
        %v973 = vrot.slane %v969, %v972
        %vm974 = vcmp.ne.s16.totalorder %v973, 0
        %v975 = vsel %vm974, %v937, 0
        %v976 = vsel %vm974, %v939, 0
        %v977 = vsel %vm974, %v941, 0
        %v978 = vsel %vm974, %v943, 0
        %v979 = vsel %vm974, %v945, 0
        %v980 = vsel %vm974, %v947, 0
        %v981 = vsel %vm974, %v949, 0
        %v982 = vsel %vm974, %v951, 0
        %983 = vrot.lane.b32.xlu0 %v920, 127
        %v984 = vpop.permute.xlu0 %983
        %985 = vrot.lane.b32.xlu0 %v921, 127
        %v986 = vpop.permute.xlu0 %985
        %987 = vrot.lane.b32.xlu0 %v922, 127
        %v988 = vpop.permute.xlu0 %987
        %989 = vrot.lane.b32.xlu0 %v923, 127
        %v990 = vpop.permute.xlu0 %989
        %991 = vrot.lane.b32.xlu0 %v924, 127
        %v992 = vpop.permute.xlu0 %991
        %993 = vrot.lane.b32.xlu0 %v925, 127
        %v994 = vpop.permute.xlu0 %993
        %995 = vrot.lane.b32.xlu0 %v926, 127
        %v996 = vpop.permute.xlu0 %995
        %997 = vrot.lane.b32.xlu0 %v927, 127
        %v998 = vpop.permute.xlu0 %997
        %vm1015 = vmpackc.low %vm758, %vm758
        %v1016 = vsel %vm1015, 65537, 0
        %v1017 = vlaneseq
        %v1018 = vshrl.u32 %v1017, 7
        %v1019 = vsub.s32 0, %v1018
        %v1020 = vrot.slane %v1016, %v1019
        %vm1021 = vcmp.ne.s16.totalorder %v1020, 0
        %v1022 = vsel %vm1021, %v984, 0
        %v1023 = vsel %vm1021, %v986, 0
        %v1024 = vsel %vm1021, %v988, 0
        %v1025 = vsel %vm1021, %v990, 0
        %v1026 = vsel %vm1021, %v992, 0
        %v1027 = vsel %vm1021, %v994, 0
        %v1028 = vsel %vm1021, %v996, 0
        %v1029 = vsel %vm1021, %v998, 0
        %v1062 = vunpack.c.l.b16 %v687
        %v1063 = vunpack.c.h.b16 %v687
        %v1064 = vunpack.c.l.b16 %v688
        %v1065 = vunpack.c.l.b16 %v689
        %v1066 = vunpack.c.h.b16 %v689
        %v1067 = vunpack.c.l.b16 %v690
        %v1068 = vunpack.c.l.b16 %v691
        %v1069 = vunpack.c.h.b16 %v691
        %v1070 = vunpack.c.l.b16 %v692
        %v1071 = vunpack.c.l.b16 %v693
        %v1072 = vunpack.c.h.b16 %v693
        %v1073 = vunpack.c.l.b16 %v694
        %v1074 = vunpack.c.l.b16 %v695
        %v1075 = vunpack.c.h.b16 %v695
        %v1076 = vunpack.c.l.b16 %v696
        %v1077 = vunpack.c.l.b16 %v697
        %v1078 = vunpack.c.h.b16 %v697
        %v1079 = vunpack.c.l.b16 %v698
        %v1080 = vunpack.c.l.b16 %v699
        %v1081 = vunpack.c.h.b16 %v699
        %v1082 = vunpack.c.l.b16 %v700
        %v1083 = vunpack.c.l.b16 %v701
        %v1084 = vunpack.c.h.b16 %v701
        %v1085 = vunpack.c.l.b16 %v702
        %v1086 = vunpack.c.l.b16 %v703
        %v1087 = vunpack.c.h.b16 %v703
        %v1088 = vunpack.c.l.b16 %v704
        %v1089 = vunpack.c.l.b16 %v705
        %v1090 = vunpack.c.h.b16 %v705
        %v1091 = vunpack.c.l.b16 %v706
        %v1092 = vunpack.c.l.b16 %v707
        %v1093 = vunpack.c.h.b16 %v707
        %v1094 = vunpack.c.l.b16 %v708
        %v1095 = vunpack.c.l.b16 %v709
        %v1096 = vunpack.c.h.b16 %v709
        %v1097 = vunpack.c.l.b16 %v710
        %v1098 = vunpack.c.l.b16 %v711
        %v1099 = vunpack.c.h.b16 %v711
        %v1100 = vunpack.c.l.b16 %v712
        %v1101 = vunpack.c.l.b16 %v713
        %v1102 = vunpack.c.h.b16 %v713
        %v1103 = vunpack.c.l.b16 %v714
        %v1104 = vunpack.c.l.b16 %v715
        %v1105 = vunpack.c.h.b16 %v715
        %v1106 = vunpack.c.l.b16 %v716
        %v1107 = vunpack.c.l.b16 %v717
        %v1108 = vunpack.c.h.b16 %v717
        %v1109 = vunpack.c.l.b16 %v718
        %v1110 = vpack.c.b16 %v1065, %v1062
        %v1111 = vpack.c.b16 %v1066, %v1063
        %v1112 = vpack.c.b16 %v1067, %v1064
        %v1113 = vpack.c.b16 %v1071, %v1068
        %v1114 = vpack.c.b16 %v1072, %v1069
        %v1115 = vpack.c.b16 %v1073, %v1070
        %v1116 = vpack.c.b16 %v1077, %v1074
        %v1117 = vpack.c.b16 %v1078, %v1075
        %v1118 = vpack.c.b16 %v1079, %v1076
        %v1119 = vpack.c.b16 %v1083, %v1080
        %v1120 = vpack.c.b16 %v1084, %v1081
        %v1121 = vpack.c.b16 %v1085, %v1082
        %v1122 = vpack.c.b16 %v1089, %v1086
        %v1123 = vpack.c.b16 %v1090, %v1087
        %v1124 = vpack.c.b16 %v1091, %v1088
        %v1125 = vpack.c.b16 %v1095, %v1092
        %v1126 = vpack.c.b16 %v1096, %v1093
        %v1127 = vpack.c.b16 %v1097, %v1094
        %v1128 = vpack.c.b16 %v1101, %v1098
        %v1129 = vpack.c.b16 %v1102, %v1099
        %v1130 = vpack.c.b16 %v1103, %v1100
        %v1131 = vpack.c.b16 %v1107, %v1104
        %v1132 = vpack.c.b16 %v1108, %v1105
        %v1133 = vpack.c.b16 %v1109, %v1106
        %1158 = vmatprep.subr.bf16.mxu0 0
        %1159 = vmatpush1.bf16.msra.mxu0 %v982
        %1160 = vmatprep.subr.bf16.mxu0 0
        %1161 = vmatpush1.bf16.msra.mxu0 %v981
        %1162 = vmatprep.subr.bf16.mxu0 0
        %1163 = vmatpush1.bf16.msra.mxu0 %v980
        %1164 = vmatprep.subr.bf16.mxu0 0
        %1165 = vmatpush1.bf16.msra.mxu0 %v979
        %1166 = vmatprep.subr.bf16.mxu0 0
        %1167 = vmatpush1.bf16.msra.mxu0 %v978
        %1168 = vmatprep.subr.bf16.mxu0 0
        %1169 = vmatpush1.bf16.msra.mxu0 %v977
        %1170 = vmatprep.subr.bf16.mxu0 0
        %1171 = vmatpush1.bf16.msra.mxu0 %v976
        %1172 = vmatprep.subr.bf16.mxu0 0
        %1173 = vmatpush1.bf16.msra.mxu0 %v975
        %1174 = vmatprep.subr.bf16.mxu0 0
        %1175 = vmatpush2.bf16.msra.mxu0 %v927
        %1176 = vmatprep.subr.bf16.mxu0 0
        %1177 = vmatpush2.bf16.msra.mxu0 %v926
        %1178 = vmatprep.subr.bf16.mxu0 0
        %1179 = vmatpush2.bf16.msra.mxu0 %v925
        %1180 = vmatprep.subr.bf16.mxu0 0
        %1181 = vmatpush2.bf16.msra.mxu0 %v924
        %1182 = vmatprep.subr.bf16.mxu0 0
        %1183 = vmatpush2.bf16.msra.mxu0 %v923
        %1184 = vmatprep.subr.bf16.mxu0 0
        %1185 = vmatpush2.bf16.msra.mxu0 %v922
        %1186 = vmatprep.subr.bf16.mxu0 0
        %1187 = vmatpush2.bf16.msra.mxu0 %v921
        %1188 = vmatprep.subr.bf16.mxu0 0
        %1189 = vmatpush2.bf16.msra.mxu0 %v920
        %1190 = vmatprep.mubr.bf16.mxu0 %v1111
        %1191 = vmatmul.mubr.bf16.gmra.mxu0 %v1110
        %v1192 = vpop.f32.mrf.mxu0
        %v1193 = vadd.f32 0.0, %v1192
        %v1194 = vpop.f32.mrf.mxu0
        %v1195 = vpop.f32.mrf.mxu0
        %v1196 = vadd.f32 0.0, %v1195
        %v1197 = vpop.f32.mrf.mxu0
        %1198 = vmatprep.mubr.bf16.mxu0 %v1114
        %1199 = vmatmul.mubr.bf16.gmra.mxu0 %v1113
        %v1200 = vpop.f32.mrf.mxu0
        %v1201 = vadd.f32 0.0, %v1200
        %v1202 = vpop.f32.mrf.mxu0
        %v1203 = vpop.f32.mrf.mxu0
        %v1204 = vadd.f32 0.0, %v1203
        %v1205 = vpop.f32.mrf.mxu0
        %1206 = vmatprep.mubr.bf16.mxu0 %v1117
        %1207 = vmatmul.mubr.bf16.gmra.mxu0 %v1116
        %v1208 = vpop.f32.mrf.mxu0
        %v1209 = vadd.f32 0.0, %v1208
        %v1210 = vpop.f32.mrf.mxu0
        %v1211 = vpop.f32.mrf.mxu0
        %v1212 = vadd.f32 0.0, %v1211
        %v1213 = vpop.f32.mrf.mxu0
        %1214 = vmatprep.mubr.bf16.mxu0 %v1120
        %1215 = vmatmul.mubr.bf16.gmra.mxu0 %v1119
        %v1216 = vpop.f32.mrf.mxu0
        %v1217 = vadd.f32 0.0, %v1216
        %v1218 = vpop.f32.mrf.mxu0
        %v1219 = vpop.f32.mrf.mxu0
        %v1220 = vadd.f32 0.0, %v1219
        %v1221 = vpop.f32.mrf.mxu0
        %1222 = vmatprep.mubr.bf16.mxu0 %v1123
        %1223 = vmatmul.mubr.bf16.gmra.mxu0 %v1122
        %v1224 = vpop.f32.mrf.mxu0
        %v1225 = vadd.f32 0.0, %v1224
        %v1226 = vpop.f32.mrf.mxu0
        %v1227 = vpop.f32.mrf.mxu0
        %v1228 = vadd.f32 0.0, %v1227
        %v1229 = vpop.f32.mrf.mxu0
        %1230 = vmatprep.mubr.bf16.mxu0 %v1126
        %1231 = vmatmul.mubr.bf16.gmra.mxu0 %v1125
        %v1232 = vpop.f32.mrf.mxu0
        %v1233 = vadd.f32 0.0, %v1232
        %v1234 = vpop.f32.mrf.mxu0
        %v1235 = vpop.f32.mrf.mxu0
        %v1236 = vadd.f32 0.0, %v1235
        %v1237 = vpop.f32.mrf.mxu0
        %1238 = vmatprep.mubr.bf16.mxu0 %v1129
        %1239 = vmatmul.mubr.bf16.gmra.mxu0 %v1128
        %v1240 = vpop.f32.mrf.mxu0
        %v1241 = vadd.f32 0.0, %v1240
        %v1242 = vpop.f32.mrf.mxu0
        %v1243 = vpop.f32.mrf.mxu0
        %v1244 = vadd.f32 0.0, %v1243
        %v1245 = vpop.f32.mrf.mxu0
        %1246 = vmatprep.mubr.bf16.mxu0 %v1132
        %1247 = vmatmul.mubr.bf16.gmra.mxu0 %v1131
        %v1248 = vpop.f32.mrf.mxu0
        %v1249 = vadd.f32 0.0, %v1248
        %v1250 = vpop.f32.mrf.mxu0
        %v1251 = vpop.f32.mrf.mxu0
        %v1252 = vadd.f32 0.0, %v1251
        %v1253 = vpop.f32.mrf.mxu0
        %1254 = vdwg.mxu0
        %1255 = vmatprep.subr.bf16.mxu0 0
        %1256 = vmatpush1.bf16.msra.mxu0 %v1029
        %1257 = vmatprep.subr.bf16.mxu0 0
        %1258 = vmatpush1.bf16.msra.mxu0 %v1028
        %1259 = vmatprep.subr.bf16.mxu0 0
        %1260 = vmatpush1.bf16.msra.mxu0 %v1027
        %1261 = vmatprep.subr.bf16.mxu0 0
        %1262 = vmatpush1.bf16.msra.mxu0 %v1026
        %1263 = vmatprep.subr.bf16.mxu0 0
        %1264 = vmatpush1.bf16.msra.mxu0 %v1025
        %1265 = vmatprep.subr.bf16.mxu0 0
        %1266 = vmatpush1.bf16.msra.mxu0 %v1024
        %1267 = vmatprep.subr.bf16.mxu0 0
        %1268 = vmatpush1.bf16.msra.mxu0 %v1023
        %1269 = vmatprep.subr.bf16.mxu0 0
        %1270 = vmatpush1.bf16.msra.mxu0 %v1022
        %1271 = vmatprep.subr.bf16.mxu0 0
        %1272 = vmatpush2.bf16.msra.mxu0 0
        %1273 = vmatprep.subr.bf16.mxu0 0
        %1274 = vmatpush2.bf16.msra.mxu0 0
        %1275 = vmatprep.subr.bf16.mxu0 0
        %1276 = vmatpush2.bf16.msra.mxu0 0
        %1277 = vmatprep.subr.bf16.mxu0 0
        %1278 = vmatpush2.bf16.msra.mxu0 0
        %1279 = vmatprep.subr.bf16.mxu0 0
        %1280 = vmatpush2.bf16.msra.mxu0 0
        %1281 = vmatprep.subr.bf16.mxu0 0
        %1282 = vmatpush2.bf16.msra.mxu0 0
        %1283 = vmatprep.subr.bf16.mxu0 0
        %1284 = vmatpush2.bf16.msra.mxu0 0
        %1285 = vmatprep.subr.bf16.mxu0 0
        %1286 = vmatpush2.bf16.msra.mxu0 0
        %1287 = vmatprep.mubr.bf16.mxu0 0
        %1288 = vmatmul.mubr.bf16.gmra.mxu0 %v1112
        %v1289 = vpop.f32.mrf.mxu0
        %v1290 = vadd.f32 %v1193, %v1289
        %v1291 = vpop.f32.mrf.mxu0
        %v1292 = vpop.f32.mrf.mxu0
        %v1293 = vadd.f32 %v1196, %v1292
        %v1294 = vpop.f32.mrf.mxu0
        %1295 = vmatprep.mubr.bf16.mxu0 0
        %1296 = vmatmul.mubr.bf16.gmra.mxu0 %v1115
        %v1297 = vpop.f32.mrf.mxu0
        %v1298 = vadd.f32 %v1201, %v1297
        %v1299 = vpop.f32.mrf.mxu0
        %v1300 = vpop.f32.mrf.mxu0
        %v1301 = vadd.f32 %v1204, %v1300
        %v1302 = vpop.f32.mrf.mxu0
        %1303 = vmatprep.mubr.bf16.mxu0 0
        %1304 = vmatmul.mubr.bf16.gmra.mxu0 %v1118
        %v1305 = vpop.f32.mrf.mxu0
        %v1306 = vadd.f32 %v1209, %v1305
        %v1307 = vpop.f32.mrf.mxu0
        %v1308 = vpop.f32.mrf.mxu0
        %v1309 = vadd.f32 %v1212, %v1308
        %v1310 = vpop.f32.mrf.mxu0
        %1311 = vmatprep.mubr.bf16.mxu0 0
        %1312 = vmatmul.mubr.bf16.gmra.mxu0 %v1121
        %v1313 = vpop.f32.mrf.mxu0
        %v1314 = vadd.f32 %v1217, %v1313
        %v1315 = vpop.f32.mrf.mxu0
        %v1316 = vpop.f32.mrf.mxu0
        %v1317 = vadd.f32 %v1220, %v1316
        %v1318 = vpop.f32.mrf.mxu0
        %1319 = vmatprep.mubr.bf16.mxu0 0
        %1320 = vmatmul.mubr.bf16.gmra.mxu0 %v1124
        %v1321 = vpop.f32.mrf.mxu0
        %v1322 = vadd.f32 %v1225, %v1321
        %v1323 = vpop.f32.mrf.mxu0
        %v1324 = vpop.f32.mrf.mxu0
        %v1325 = vadd.f32 %v1228, %v1324
        %v1326 = vpop.f32.mrf.mxu0
        %1327 = vmatprep.mubr.bf16.mxu0 0
        %1328 = vmatmul.mubr.bf16.gmra.mxu0 %v1127
        %v1329 = vpop.f32.mrf.mxu0
        %v1330 = vadd.f32 %v1233, %v1329
        %v1331 = vpop.f32.mrf.mxu0
        %v1332 = vpop.f32.mrf.mxu0
        %v1333 = vadd.f32 %v1236, %v1332
        %v1334 = vpop.f32.mrf.mxu0
        %1335 = vmatprep.mubr.bf16.mxu0 0
        %1336 = vmatmul.mubr.bf16.gmra.mxu0 %v1130
        %v1337 = vpop.f32.mrf.mxu0
        %v1338 = vadd.f32 %v1241, %v1337
        %v1339 = vpop.f32.mrf.mxu0
        %v1340 = vpop.f32.mrf.mxu0
        %v1341 = vadd.f32 %v1244, %v1340
        %v1342 = vpop.f32.mrf.mxu0
        %1343 = vmatprep.mubr.bf16.mxu0 0
        %1344 = vmatmul.mubr.bf16.gmra.mxu0 %v1133
        %v1345 = vpop.f32.mrf.mxu0
        %v1346 = vadd.f32 %v1249, %v1345
        %v1347 = vpop.f32.mrf.mxu0
        %v1348 = vpop.f32.mrf.mxu0
        %v1349 = vadd.f32 %v1252, %v1348
        %v1350 = vpop.f32.mrf.mxu0
        %1351 = vdwg.mxu0
        %v1352 = vadd.f32 %v1290, %v1293
        %v1353 = vadd.f32 %v1352, %v1298
        %v1354 = vadd.f32 %v1353, %v1301
        %v1355 = vadd.f32 %v1354, %v1306
        %v1356 = vadd.f32 %v1355, %v1309
        %v1357 = vadd.f32 %v1356, %v1314
        %v1358 = vadd.f32 %v1357, %v1317
        %v1359 = vadd.f32 %v1358, %v1322
        %v1360 = vadd.f32 %v1359, %v1325
        %v1361 = vadd.f32 %v1360, %v1330
        %v1362 = vadd.f32 %v1361, %v1333
        %v1363 = vadd.f32 %v1362, %v1338
        %v1364 = vadd.f32 %v1363, %v1341
        %v1365 = vadd.f32 %v1364, %v1346
        %v1366 = vadd.f32 %v1365, %v1349
        %v1367 = vrot.slane %v1366, 4
        %v1368 = vadd.f32 %v1366, %v1367
        %v1369 = vrot.slane %v1368, 2
        %v1370 = vadd.f32 %v1368, %v1369
        %v1371 = vrot.slane %v1370, 1
        %v1372 = vadd.f32 %v1370, %v1371
        %v1373 = vmul.f32 %v1372, 0.0078125
        %v1374 = vmul.f32 %v1290, %v1290
        %v1375 = vmul.f32 %v1293, %v1293
        %v1376 = vmul.f32 %v1298, %v1298
        %v1377 = vmul.f32 %v1301, %v1301
        %v1378 = vmul.f32 %v1306, %v1306
        %v1379 = vmul.f32 %v1309, %v1309
        %v1380 = vmul.f32 %v1314, %v1314
        %v1381 = vmul.f32 %v1317, %v1317
        %v1382 = vmul.f32 %v1322, %v1322
        %v1383 = vmul.f32 %v1325, %v1325
        %v1384 = vmul.f32 %v1330, %v1330
        %v1385 = vmul.f32 %v1333, %v1333
        %v1386 = vmul.f32 %v1338, %v1338
        %v1387 = vmul.f32 %v1341, %v1341
        %v1388 = vmul.f32 %v1346, %v1346
        %v1389 = vmul.f32 %v1349, %v1349
        %v1390 = vadd.f32 %v1374, %v1375
        %v1391 = vadd.f32 %v1390, %v1376
        %v1392 = vadd.f32 %v1391, %v1377
        %v1393 = vadd.f32 %v1392, %v1378
        %v1394 = vadd.f32 %v1393, %v1379
        %v1395 = vadd.f32 %v1394, %v1380
        %v1396 = vadd.f32 %v1395, %v1381
        %v1397 = vadd.f32 %v1396, %v1382
        %v1398 = vadd.f32 %v1397, %v1383
        %v1399 = vadd.f32 %v1398, %v1384
        %v1400 = vadd.f32 %v1399, %v1385
        %v1401 = vadd.f32 %v1400, %v1386
        %v1402 = vadd.f32 %v1401, %v1387
        %v1403 = vadd.f32 %v1402, %v1388
        %v1404 = vadd.f32 %v1403, %v1389
        %v1405 = vrot.slane %v1404, 4
        %v1406 = vadd.f32 %v1404, %v1405
        %v1407 = vrot.slane %v1406, 2
        %v1408 = vadd.f32 %v1406, %v1407
        %v1409 = vrot.slane %v1408, 1
        %v1410 = vadd.f32 %v1408, %v1409
        %v1411 = vmul.f32 %v1410, 0.0078125
        %v1412 = vmul.f32 %v1373, %v1373
        %v1413 = vsub.f32 %v1411, %v1412
        %v1414 = vmax.f32 %v1413, 0.0
        %v1415 = vsub.f32 %v1290, %v1373
        %v1416 = vsub.f32 %v1293, %v1373
        %v1417 = vsub.f32 %v1298, %v1373
        %v1418 = vsub.f32 %v1301, %v1373
        %v1419 = vsub.f32 %v1306, %v1373
        %v1420 = vsub.f32 %v1309, %v1373
        %v1421 = vsub.f32 %v1314, %v1373
        %v1422 = vsub.f32 %v1317, %v1373
        %v1423 = vsub.f32 %v1322, %v1373
        %v1424 = vsub.f32 %v1325, %v1373
        %v1425 = vsub.f32 %v1330, %v1373
        %v1426 = vsub.f32 %v1333, %v1373
        %v1427 = vsub.f32 %v1338, %v1373
        %v1428 = vsub.f32 %v1341, %v1373
        %v1429 = vsub.f32 %v1346, %v1373
        %v1430 = vsub.f32 %v1349, %v1373
        %v1431 = vadd.f32 %v1414, 1e-05
        %v1432 = vrsqrt.pop %v1431
        %v1433 = vmul.f32 %v1415, %v1432
        %v1434 = vmul.f32 %v1416, %v1432
        %v1435 = vmul.f32 %v1417, %v1432
        %v1436 = vmul.f32 %v1418, %v1432
        %v1437 = vmul.f32 %v1419, %v1432
        %v1438 = vmul.f32 %v1420, %v1432
        %v1439 = vmul.f32 %v1421, %v1432
        %v1440 = vmul.f32 %v1422, %v1432
        %v1441 = vmul.f32 %v1423, %v1432
        %v1442 = vmul.f32 %v1424, %v1432
        %v1443 = vmul.f32 %v1425, %v1432
        %v1444 = vmul.f32 %v1426, %v1432
        %v1445 = vmul.f32 %v1427, %v1432
        %v1446 = vmul.f32 %v1428, %v1432
        %v1447 = vmul.f32 %v1429, %v1432
        %v1448 = vmul.f32 %v1430, %v1432
        %v1449 = vmul.f32 %v1433, %v514
        %v1450 = vmul.f32 %v1434, %v519
        %v1451 = vmul.f32 %v1435, %v524
        %v1452 = vmul.f32 %v1436, %v529
        %v1453 = vmul.f32 %v1437, %v534
        %v1454 = vmul.f32 %v1438, %v539
        %v1455 = vmul.f32 %v1439, %v544
        %v1456 = vmul.f32 %v1440, %v549
        %v1457 = vmul.f32 %v1441, %v554
        %v1458 = vmul.f32 %v1442, %v559
        %v1459 = vmul.f32 %v1443, %v564
        %v1460 = vmul.f32 %v1444, %v569
        %v1461 = vmul.f32 %v1445, %v574
        %v1462 = vmul.f32 %v1446, %v579
        %v1463 = vmul.f32 %v1447, %v584
        %v1464 = vmul.f32 %v1448, %v589
        %v1465 = vadd.f32 %v1449, %v610
        %v1466 = vadd.f32 %v1450, %v615
        %v1467 = vadd.f32 %v1451, %v620
        %v1468 = vadd.f32 %v1452, %v625
        %v1469 = vadd.f32 %v1453, %v630
        %v1470 = vadd.f32 %v1454, %v635
        %v1471 = vadd.f32 %v1455, %v640
        %v1472 = vadd.f32 %v1456, %v645
        %v1473 = vadd.f32 %v1457, %v650
        %v1474 = vadd.f32 %v1458, %v655
        %v1475 = vadd.f32 %v1459, %v660
        %v1476 = vadd.f32 %v1460, %v665
        %v1477 = vadd.f32 %v1461, %v670
        %v1478 = vadd.f32 %v1462, %v675
        %v1479 = vadd.f32 %v1463, %v680
        %v1480 = vadd.f32 %v1464, %v685
        %v1481 = vmax.f32 %v1465, 0.0
        %v1482 = vmax.f32 %v1466, 0.0
        %v1483 = vmax.f32 %v1467, 0.0
        %v1484 = vmax.f32 %v1468, 0.0
        %v1485 = vmax.f32 %v1469, 0.0
        %v1486 = vmax.f32 %v1470, 0.0
        %v1487 = vmax.f32 %v1471, 0.0
        %v1488 = vmax.f32 %v1472, 0.0
        %v1489 = vmax.f32 %v1473, 0.0
        %v1490 = vmax.f32 %v1474, 0.0
        %v1491 = vmax.f32 %v1475, 0.0
        %v1492 = vmax.f32 %v1476, 0.0
        %v1493 = vmax.f32 %v1477, 0.0
        %v1494 = vmax.f32 %v1478, 0.0
        %v1495 = vmax.f32 %v1479, 0.0
        %v1496 = vmax.f32 %v1480, 0.0
        %v1497 = vpack.c.bf16 %v1482, %v1481
        %v1498 = vpack.c.bf16 %v1484, %v1483
        %v1499 = vpack.c.bf16 %v1486, %v1485
        %v1500 = vpack.c.bf16 %v1488, %v1487
        %v1501 = vpack.c.bf16 %v1490, %v1489
        %v1502 = vpack.c.bf16 %v1492, %v1491
        %v1503 = vpack.c.bf16 %v1494, %v1493
        %v1504 = vpack.c.bf16 %v1496, %v1495
        %1513 = vrot.lane.b32.xlu0 %v1497, 1
        %v1514 = vpop.permute.xlu0 %1513
        %1515 = vrot.lane.b32.xlu0 %v1498, 1
        %v1516 = vpop.permute.xlu0 %1515
        %1517 = vrot.lane.b32.xlu0 %v1499, 1
        %v1518 = vpop.permute.xlu0 %1517
        %1519 = vrot.lane.b32.xlu0 %v1500, 1
        %v1520 = vpop.permute.xlu0 %1519
        %1521 = vrot.lane.b32.xlu0 %v1501, 1
        %v1522 = vpop.permute.xlu0 %1521
        %1523 = vrot.lane.b32.xlu0 %v1502, 1
        %v1524 = vpop.permute.xlu0 %1523
        %1525 = vrot.lane.b32.xlu0 %v1503, 1
        %v1526 = vpop.permute.xlu0 %1525
        %1527 = vrot.lane.b32.xlu0 %v1504, 1
        %v1528 = vpop.permute.xlu0 %1527
        %v1545 = vsel %vm974, %v1514, 0
        %v1546 = vsel %vm974, %v1516, 0
        %v1547 = vsel %vm974, %v1518, 0
        %v1548 = vsel %vm974, %v1520, 0
        %v1549 = vsel %vm974, %v1522, 0
        %v1550 = vsel %vm974, %v1524, 0
        %v1551 = vsel %vm974, %v1526, 0
        %v1552 = vsel %vm974, %v1528, 0
        %1553 = vrot.lane.b32.xlu0 %v1497, 127
        %v1554 = vpop.permute.xlu0 %1553
        %1555 = vrot.lane.b32.xlu0 %v1498, 127
        %v1556 = vpop.permute.xlu0 %1555
        %1557 = vrot.lane.b32.xlu0 %v1499, 127
        %v1558 = vpop.permute.xlu0 %1557
        %1559 = vrot.lane.b32.xlu0 %v1500, 127
        %v1560 = vpop.permute.xlu0 %1559
        %1561 = vrot.lane.b32.xlu0 %v1501, 127
        %v1562 = vpop.permute.xlu0 %1561
        %1563 = vrot.lane.b32.xlu0 %v1502, 127
        %v1564 = vpop.permute.xlu0 %1563
        %1565 = vrot.lane.b32.xlu0 %v1503, 127
        %v1566 = vpop.permute.xlu0 %1565
        %1567 = vrot.lane.b32.xlu0 %v1504, 127
        %v1568 = vpop.permute.xlu0 %1567
        %v1585 = vsel %vm1021, %v1554, 0
        %v1586 = vsel %vm1021, %v1556, 0
        %v1587 = vsel %vm1021, %v1558, 0
        %v1588 = vsel %vm1021, %v1560, 0
        %v1589 = vsel %vm1021, %v1562, 0
        %v1590 = vsel %vm1021, %v1564, 0
        %v1591 = vsel %vm1021, %v1566, 0
        %v1592 = vsel %vm1021, %v1568, 0
        %v1625 = vunpack.c.l.b16 %v719
        %v1626 = vunpack.c.h.b16 %v719
        %v1627 = vunpack.c.l.b16 %v720
        %v1628 = vunpack.c.l.b16 %v721
        %v1629 = vunpack.c.h.b16 %v721
        %v1630 = vunpack.c.l.b16 %v722
        %v1631 = vunpack.c.l.b16 %v723
        %v1632 = vunpack.c.h.b16 %v723
        %v1633 = vunpack.c.l.b16 %v724
        %v1634 = vunpack.c.l.b16 %v725
        %v1635 = vunpack.c.h.b16 %v725
        %v1636 = vunpack.c.l.b16 %v726
        %v1637 = vunpack.c.l.b16 %v727
        %v1638 = vunpack.c.h.b16 %v727
        %v1639 = vunpack.c.l.b16 %v728
        %v1640 = vunpack.c.l.b16 %v729
        %v1641 = vunpack.c.h.b16 %v729
        %v1642 = vunpack.c.l.b16 %v730
        %v1643 = vunpack.c.l.b16 %v731
        %v1644 = vunpack.c.h.b16 %v731
        %v1645 = vunpack.c.l.b16 %v732
        %v1646 = vunpack.c.l.b16 %v733
        %v1647 = vunpack.c.h.b16 %v733
        %v1648 = vunpack.c.l.b16 %v734
        %v1649 = vunpack.c.l.b16 %v735
        %v1650 = vunpack.c.h.b16 %v735
        %v1651 = vunpack.c.l.b16 %v736
        %v1652 = vunpack.c.l.b16 %v737
        %v1653 = vunpack.c.h.b16 %v737
        %v1654 = vunpack.c.l.b16 %v738
        %v1655 = vunpack.c.l.b16 %v739
        %v1656 = vunpack.c.h.b16 %v739
        %v1657 = vunpack.c.l.b16 %v740
        %v1658 = vunpack.c.l.b16 %v741
        %v1659 = vunpack.c.h.b16 %v741
        %v1660 = vunpack.c.l.b16 %v742
        %v1661 = vunpack.c.l.b16 %v743
        %v1662 = vunpack.c.h.b16 %v743
        %v1663 = vunpack.c.l.b16 %v744
        %v1664 = vunpack.c.l.b16 %v745
        %v1665 = vunpack.c.h.b16 %v745
        %v1666 = vunpack.c.l.b16 %v746
        %v1667 = vunpack.c.l.b16 %v747
        %v1668 = vunpack.c.h.b16 %v747
        %v1669 = vunpack.c.l.b16 %v748
        %v1670 = vunpack.c.l.b16 %v749
        %v1671 = vunpack.c.h.b16 %v749
        %v1672 = vunpack.c.l.b16 %v750
        %v1673 = vpack.c.b16 %v1628, %v1625
        %v1674 = vpack.c.b16 %v1629, %v1626
        %v1675 = vpack.c.b16 %v1630, %v1627
        %v1676 = vpack.c.b16 %v1634, %v1631
        %v1677 = vpack.c.b16 %v1635, %v1632
        %v1678 = vpack.c.b16 %v1636, %v1633
        %v1679 = vpack.c.b16 %v1640, %v1637
        %v1680 = vpack.c.b16 %v1641, %v1638
        %v1681 = vpack.c.b16 %v1642, %v1639
        %v1682 = vpack.c.b16 %v1646, %v1643
        %v1683 = vpack.c.b16 %v1647, %v1644
        %v1684 = vpack.c.b16 %v1648, %v1645
        %v1685 = vpack.c.b16 %v1652, %v1649
        %v1686 = vpack.c.b16 %v1653, %v1650
        %v1687 = vpack.c.b16 %v1654, %v1651
        %v1688 = vpack.c.b16 %v1658, %v1655
        %v1689 = vpack.c.b16 %v1659, %v1656
        %v1690 = vpack.c.b16 %v1660, %v1657
        %v1691 = vpack.c.b16 %v1664, %v1661
        %v1692 = vpack.c.b16 %v1665, %v1662
        %v1693 = vpack.c.b16 %v1666, %v1663
        %v1694 = vpack.c.b16 %v1670, %v1667
        %v1695 = vpack.c.b16 %v1671, %v1668
        %v1696 = vpack.c.b16 %v1672, %v1669
        %1721 = vmatprep.subr.bf16.mxu0 0
        %1722 = vmatpush1.bf16.msra.mxu0 %v1552
        %1723 = vmatprep.subr.bf16.mxu0 0
        %1724 = vmatpush1.bf16.msra.mxu0 %v1551
        %1725 = vmatprep.subr.bf16.mxu0 0
        %1726 = vmatpush1.bf16.msra.mxu0 %v1550
        %1727 = vmatprep.subr.bf16.mxu0 0
        %1728 = vmatpush1.bf16.msra.mxu0 %v1549
        %1729 = vmatprep.subr.bf16.mxu0 0
        %1730 = vmatpush1.bf16.msra.mxu0 %v1548
        %1731 = vmatprep.subr.bf16.mxu0 0
        %1732 = vmatpush1.bf16.msra.mxu0 %v1547
        %1733 = vmatprep.subr.bf16.mxu0 0
        %1734 = vmatpush1.bf16.msra.mxu0 %v1546
        %1735 = vmatprep.subr.bf16.mxu0 0
        %1736 = vmatpush1.bf16.msra.mxu0 %v1545
        %1737 = vmatprep.subr.bf16.mxu0 0
        %1738 = vmatpush2.bf16.msra.mxu0 %v1504
        %1739 = vmatprep.subr.bf16.mxu0 0
        %1740 = vmatpush2.bf16.msra.mxu0 %v1503
        %1741 = vmatprep.subr.bf16.mxu0 0
        %1742 = vmatpush2.bf16.msra.mxu0 %v1502
        %1743 = vmatprep.subr.bf16.mxu0 0
        %1744 = vmatpush2.bf16.msra.mxu0 %v1501
        %1745 = vmatprep.subr.bf16.mxu0 0
        %1746 = vmatpush2.bf16.msra.mxu0 %v1500
        %1747 = vmatprep.subr.bf16.mxu0 0
        %1748 = vmatpush2.bf16.msra.mxu0 %v1499
        %1749 = vmatprep.subr.bf16.mxu0 0
        %1750 = vmatpush2.bf16.msra.mxu0 %v1498
        %1751 = vmatprep.subr.bf16.mxu0 0
        %1752 = vmatpush2.bf16.msra.mxu0 %v1497
        %1753 = vmatprep.mubr.bf16.mxu0 %v1674
        %1754 = vmatmul.mubr.bf16.gmra.mxu0 %v1673
        %v1755 = vpop.f32.mrf.mxu0
        %v1756 = vadd.f32 %v759, %v1755
        %v1757 = vpop.f32.mrf.mxu0
        %v1758 = vpop.f32.mrf.mxu0
        %v1759 = vadd.f32 %v760, %v1758
        %v1760 = vpop.f32.mrf.mxu0
        %1761 = vmatprep.mubr.bf16.mxu0 %v1677
        %1762 = vmatmul.mubr.bf16.gmra.mxu0 %v1676
        %v1763 = vpop.f32.mrf.mxu0
        %v1764 = vadd.f32 %v761, %v1763
        %v1765 = vpop.f32.mrf.mxu0
        %v1766 = vpop.f32.mrf.mxu0
        %v1767 = vadd.f32 %v762, %v1766
        %v1768 = vpop.f32.mrf.mxu0
        %1769 = vmatprep.mubr.bf16.mxu0 %v1680
        %1770 = vmatmul.mubr.bf16.gmra.mxu0 %v1679
        %v1771 = vpop.f32.mrf.mxu0
        %v1772 = vadd.f32 %v763, %v1771
        %v1773 = vpop.f32.mrf.mxu0
        %v1774 = vpop.f32.mrf.mxu0
        %v1775 = vadd.f32 %v764, %v1774
        %v1776 = vpop.f32.mrf.mxu0
        %1777 = vmatprep.mubr.bf16.mxu0 %v1683
        %1778 = vmatmul.mubr.bf16.gmra.mxu0 %v1682
        %v1779 = vpop.f32.mrf.mxu0
        %v1780 = vadd.f32 %v765, %v1779
        %v1781 = vpop.f32.mrf.mxu0
        %v1782 = vpop.f32.mrf.mxu0
        %v1783 = vadd.f32 %v766, %v1782
        %v1784 = vpop.f32.mrf.mxu0
        %1785 = vmatprep.mubr.bf16.mxu0 %v1686
        %1786 = vmatmul.mubr.bf16.gmra.mxu0 %v1685
        %v1787 = vpop.f32.mrf.mxu0
        %v1788 = vadd.f32 %v767, %v1787
        %v1789 = vpop.f32.mrf.mxu0
        %v1790 = vpop.f32.mrf.mxu0
        %v1791 = vadd.f32 %v768, %v1790
        %v1792 = vpop.f32.mrf.mxu0
        %1793 = vmatprep.mubr.bf16.mxu0 %v1689
        %1794 = vmatmul.mubr.bf16.gmra.mxu0 %v1688
        %v1795 = vpop.f32.mrf.mxu0
        %v1796 = vadd.f32 %v769, %v1795
        %v1797 = vpop.f32.mrf.mxu0
        %v1798 = vpop.f32.mrf.mxu0
        %v1799 = vadd.f32 %v770, %v1798
        %v1800 = vpop.f32.mrf.mxu0
        %1801 = vmatprep.mubr.bf16.mxu0 %v1692
        %1802 = vmatmul.mubr.bf16.gmra.mxu0 %v1691
        %v1803 = vpop.f32.mrf.mxu0
        %v1804 = vadd.f32 %v771, %v1803
        %v1805 = vpop.f32.mrf.mxu0
        %v1806 = vpop.f32.mrf.mxu0
        %v1807 = vadd.f32 %v772, %v1806
        %v1808 = vpop.f32.mrf.mxu0
        %1809 = vmatprep.mubr.bf16.mxu0 %v1695
        %1810 = vmatmul.mubr.bf16.gmra.mxu0 %v1694
        %v1811 = vpop.f32.mrf.mxu0
        %v1812 = vadd.f32 %v773, %v1811
        %v1813 = vpop.f32.mrf.mxu0
        %v1814 = vpop.f32.mrf.mxu0
        %v1815 = vadd.f32 %v774, %v1814
        %v1816 = vpop.f32.mrf.mxu0
        %1817 = vdwg.mxu0
        %1818 = vmatprep.subr.bf16.mxu0 0
        %1819 = vmatpush1.bf16.msra.mxu0 %v1592
        %1820 = vmatprep.subr.bf16.mxu0 0
        %1821 = vmatpush1.bf16.msra.mxu0 %v1591
        %1822 = vmatprep.subr.bf16.mxu0 0
        %1823 = vmatpush1.bf16.msra.mxu0 %v1590
        %1824 = vmatprep.subr.bf16.mxu0 0
        %1825 = vmatpush1.bf16.msra.mxu0 %v1589
        %1826 = vmatprep.subr.bf16.mxu0 0
        %1827 = vmatpush1.bf16.msra.mxu0 %v1588
        %1828 = vmatprep.subr.bf16.mxu0 0
        %1829 = vmatpush1.bf16.msra.mxu0 %v1587
        %1830 = vmatprep.subr.bf16.mxu0 0
        %1831 = vmatpush1.bf16.msra.mxu0 %v1586
        %1832 = vmatprep.subr.bf16.mxu0 0
        %1833 = vmatpush1.bf16.msra.mxu0 %v1585
        %1834 = vmatprep.subr.bf16.mxu0 0
        %1835 = vmatpush2.bf16.msra.mxu0 0
        %1836 = vmatprep.subr.bf16.mxu0 0
        %1837 = vmatpush2.bf16.msra.mxu0 0
        %1838 = vmatprep.subr.bf16.mxu0 0
        %1839 = vmatpush2.bf16.msra.mxu0 0
        %1840 = vmatprep.subr.bf16.mxu0 0
        %1841 = vmatpush2.bf16.msra.mxu0 0
        %1842 = vmatprep.subr.bf16.mxu0 0
        %1843 = vmatpush2.bf16.msra.mxu0 0
        %1844 = vmatprep.subr.bf16.mxu0 0
        %1845 = vmatpush2.bf16.msra.mxu0 0
        %1846 = vmatprep.subr.bf16.mxu0 0
        %1847 = vmatpush2.bf16.msra.mxu0 0
        %1848 = vmatprep.subr.bf16.mxu0 0
        %1849 = vmatpush2.bf16.msra.mxu0 0
        %1850 = vmatprep.mubr.bf16.mxu0 0
        %1851 = vmatmul.mubr.bf16.gmra.mxu0 %v1675
        %v1852 = vpop.f32.mrf.mxu0
        %v1853 = vadd.f32 %v1756, %v1852
        %v1854 = vpop.f32.mrf.mxu0
        %v1855 = vpop.f32.mrf.mxu0
        %v1856 = vadd.f32 %v1759, %v1855
        %v1857 = vpop.f32.mrf.mxu0
        %1858 = vmatprep.mubr.bf16.mxu0 0
        %1859 = vmatmul.mubr.bf16.gmra.mxu0 %v1678
        %v1860 = vpop.f32.mrf.mxu0
        %v1861 = vadd.f32 %v1764, %v1860
        %v1862 = vpop.f32.mrf.mxu0
        %v1863 = vpop.f32.mrf.mxu0
        %v1864 = vadd.f32 %v1767, %v1863
        %v1865 = vpop.f32.mrf.mxu0
        %1866 = vmatprep.mubr.bf16.mxu0 0
        %1867 = vmatmul.mubr.bf16.gmra.mxu0 %v1681
        %v1868 = vpop.f32.mrf.mxu0
        %v1869 = vadd.f32 %v1772, %v1868
        %v1870 = vpop.f32.mrf.mxu0
        %v1871 = vpop.f32.mrf.mxu0
        %v1872 = vadd.f32 %v1775, %v1871
        %v1873 = vpop.f32.mrf.mxu0
        %1874 = vmatprep.mubr.bf16.mxu0 0
        %1875 = vmatmul.mubr.bf16.gmra.mxu0 %v1684
        %v1876 = vpop.f32.mrf.mxu0
        %v1877 = vadd.f32 %v1780, %v1876
        %v1878 = vpop.f32.mrf.mxu0
        %v1879 = vpop.f32.mrf.mxu0
        %v1880 = vadd.f32 %v1783, %v1879
        %v1881 = vpop.f32.mrf.mxu0
        %1882 = vmatprep.mubr.bf16.mxu0 0
        %1883 = vmatmul.mubr.bf16.gmra.mxu0 %v1687
        %v1884 = vpop.f32.mrf.mxu0
        %v1885 = vadd.f32 %v1788, %v1884
        %v1886 = vpop.f32.mrf.mxu0
        %v1887 = vpop.f32.mrf.mxu0
        %v1888 = vadd.f32 %v1791, %v1887
        %v1889 = vpop.f32.mrf.mxu0
        %1890 = vmatprep.mubr.bf16.mxu0 0
        %1891 = vmatmul.mubr.bf16.gmra.mxu0 %v1690
        %v1892 = vpop.f32.mrf.mxu0
        %v1893 = vadd.f32 %v1796, %v1892
        %v1894 = vpop.f32.mrf.mxu0
        %v1895 = vpop.f32.mrf.mxu0
        %v1896 = vadd.f32 %v1799, %v1895
        %v1897 = vpop.f32.mrf.mxu0
        %1898 = vmatprep.mubr.bf16.mxu0 0
        %1899 = vmatmul.mubr.bf16.gmra.mxu0 %v1693
        %v1900 = vpop.f32.mrf.mxu0
        %v1901 = vadd.f32 %v1804, %v1900
        %v1902 = vpop.f32.mrf.mxu0
        %v1903 = vpop.f32.mrf.mxu0
        %v1904 = vadd.f32 %v1807, %v1903
        %v1905 = vpop.f32.mrf.mxu0
        %1906 = vmatprep.mubr.bf16.mxu0 0
        %1907 = vmatmul.mubr.bf16.gmra.mxu0 %v1696
        %v1908 = vpop.f32.mrf.mxu0
        %v1909 = vadd.f32 %v1812, %v1908
        %v1910 = vpop.f32.mrf.mxu0
        %v1911 = vpop.f32.mrf.mxu0
        %v1912 = vadd.f32 %v1815, %v1911
        %v1913 = vpop.f32.mrf.mxu0
        %1914 = vdwg.mxu0
        %v1915 = vmax.f32 %v1853, 0.0
        %v1916 = vmax.f32 %v1856, 0.0
        %v1917 = vmax.f32 %v1861, 0.0
        %v1918 = vmax.f32 %v1864, 0.0
        %v1919 = vmax.f32 %v1869, 0.0
        %v1920 = vmax.f32 %v1872, 0.0
        %v1921 = vmax.f32 %v1877, 0.0
        %v1922 = vmax.f32 %v1880, 0.0
        %v1923 = vmax.f32 %v1885, 0.0
        %v1924 = vmax.f32 %v1888, 0.0
        %v1925 = vmax.f32 %v1893, 0.0
        %v1926 = vmax.f32 %v1896, 0.0
        %v1927 = vmax.f32 %v1901, 0.0
        %v1928 = vmax.f32 %v1904, 0.0
        %v1929 = vmax.f32 %v1909, 0.0
        %v1930 = vmax.f32 %v1912, 0.0
        %1931 = vst [vmem:[%s297] sm:$0xff] %v1915
        %1932 = vst [vmem:[%s297 + $0x8] sm:$0xff] %v1916
        %1933 = vst [vmem:[%s297 + $0x10] sm:$0xff] %v1917
        %1934 = vst [vmem:[%s297 + $0x18] sm:$0xff] %v1918
        %1935 = vst [vmem:[%s297 + $0x20] sm:$0xff] %v1919
        %1936 = vst [vmem:[%s297 + $0x28] sm:$0xff] %v1920
        %1937 = vst [vmem:[%s297 + $0x30] sm:$0xff] %v1921
        %1938 = vst [vmem:[%s297 + $0x38] sm:$0xff] %v1922
        %1939 = vst [vmem:[%s297 + $0x40] sm:$0xff] %v1923
        %1940 = vst [vmem:[%s297 + $0x48] sm:$0xff] %v1924
        %1941 = vst [vmem:[%s297 + $0x50] sm:$0xff] %v1925
        %1942 = vst [vmem:[%s297 + $0x58] sm:$0xff] %v1926
        %1943 = vst [vmem:[%s297 + $0x60] sm:$0xff] %v1927
        %1944 = vst [vmem:[%s297 + $0x68] sm:$0xff] %v1928
        %1945 = vst [vmem:[%s297 + $0x70] sm:$0xff] %v1929
        %1946 = vst [vmem:[%s297 + $0x78] sm:$0xff] %v1930
        %s1947 = scalar_lea.vmem %s267, 128 [#allocation2]
        %v1948 = vld [vmem:[%s1947] sm:$0xff]
        %v1949 = vld [vmem:[%s1947 + $0x8] sm:$0xff]
        %v1950 = vld [vmem:[%s1947 + $0x10] sm:$0xff]
        %v1951 = vld [vmem:[%s1947 + $0x18] sm:$0xff]
        %v1952 = vld [vmem:[%s1947 + $0x20] sm:$0xff]
        %v1953 = vld [vmem:[%s1947 + $0x28] sm:$0xff]
        %v1954 = vld [vmem:[%s1947 + $0x30] sm:$0xff]
        %v1955 = vld [vmem:[%s1947 + $0x38] sm:$0xff]
        %v1956 = vld [vmem:[%s1947 + $0x40] sm:$0xff]
        %v1957 = vld [vmem:[%s1947 + $0x48] sm:$0xff]
        %v1958 = vld [vmem:[%s1947 + $0x50] sm:$0xff]
        %v1959 = vld [vmem:[%s1947 + $0x58] sm:$0xff]
        %v1960 = vld [vmem:[%s1947 + $0x60] sm:$0xff]
        %v1961 = vld [vmem:[%s1947 + $0x68] sm:$0xff]
        %v1962 = vld [vmem:[%s1947 + $0x70] sm:$0xff]
        %v1963 = vld [vmem:[%s1947 + $0x78] sm:$0xff]
        %v1964 = vadd.f32 %v1948, %v1949
        %v1965 = vadd.f32 %v1964, %v1950
        %v1966 = vadd.f32 %v1965, %v1951
        %v1967 = vadd.f32 %v1966, %v1952
        %v1968 = vadd.f32 %v1967, %v1953
        %v1969 = vadd.f32 %v1968, %v1954
        %v1970 = vadd.f32 %v1969, %v1955
        %v1971 = vadd.f32 %v1970, %v1956
        %v1972 = vadd.f32 %v1971, %v1957
        %v1973 = vadd.f32 %v1972, %v1958
        %v1974 = vadd.f32 %v1973, %v1959
        %v1975 = vadd.f32 %v1974, %v1960
        %v1976 = vadd.f32 %v1975, %v1961
        %v1977 = vadd.f32 %v1976, %v1962
        %v1978 = vadd.f32 %v1977, %v1963
        %v1979 = vrot.slane %v1978, 4
        %v1980 = vadd.f32 %v1978, %v1979
        %v1981 = vrot.slane %v1980, 2
        %v1982 = vadd.f32 %v1980, %v1981
        %v1983 = vrot.slane %v1982, 1
        %v1984 = vadd.f32 %v1982, %v1983
        %v1985 = vmul.f32 %v1984, 0.0078125
        %v1986 = vmul.f32 %v1948, %v1948
        %v1987 = vmul.f32 %v1949, %v1949
        %v1988 = vmul.f32 %v1950, %v1950
        %v1989 = vmul.f32 %v1951, %v1951
        %v1990 = vmul.f32 %v1952, %v1952
        %v1991 = vmul.f32 %v1953, %v1953
        %v1992 = vmul.f32 %v1954, %v1954
        %v1993 = vmul.f32 %v1955, %v1955
        %v1994 = vmul.f32 %v1956, %v1956
        %v1995 = vmul.f32 %v1957, %v1957
        %v1996 = vmul.f32 %v1958, %v1958
        %v1997 = vmul.f32 %v1959, %v1959
        %v1998 = vmul.f32 %v1960, %v1960
        %v1999 = vmul.f32 %v1961, %v1961
        %v2000 = vmul.f32 %v1962, %v1962
        %v2001 = vmul.f32 %v1963, %v1963
        %v2002 = vadd.f32 %v1986, %v1987
        %v2003 = vadd.f32 %v2002, %v1988
        %v2004 = vadd.f32 %v2003, %v1989
        %v2005 = vadd.f32 %v2004, %v1990
        %v2006 = vadd.f32 %v2005, %v1991
        %v2007 = vadd.f32 %v2006, %v1992
        %v2008 = vadd.f32 %v2007, %v1993
        %v2009 = vadd.f32 %v2008, %v1994
        %v2010 = vadd.f32 %v2009, %v1995
        %v2011 = vadd.f32 %v2010, %v1996
        %v2012 = vadd.f32 %v2011, %v1997
        %v2013 = vadd.f32 %v2012, %v1998
        %v2014 = vadd.f32 %v2013, %v1999
        %v2015 = vadd.f32 %v2014, %v2000
        %v2016 = vadd.f32 %v2015, %v2001
        %v2017 = vrot.slane %v2016, 4
        %v2018 = vadd.f32 %v2016, %v2017
        %v2019 = vrot.slane %v2018, 2
        %v2020 = vadd.f32 %v2018, %v2019
        %v2021 = vrot.slane %v2020, 1
        %v2022 = vadd.f32 %v2020, %v2021
        %v2023 = vmul.f32 %v2022, 0.0078125
        %v2024 = vmul.f32 %v1985, %v1985
        %v2025 = vsub.f32 %v2023, %v2024
        %v2026 = vmax.f32 %v2025, 0.0
        %v2027 = vsub.f32 %v1948, %v1985
        %v2028 = vsub.f32 %v1949, %v1985
        %v2029 = vsub.f32 %v1950, %v1985
        %v2030 = vsub.f32 %v1951, %v1985
        %v2031 = vsub.f32 %v1952, %v1985
        %v2032 = vsub.f32 %v1953, %v1985
        %v2033 = vsub.f32 %v1954, %v1985
        %v2034 = vsub.f32 %v1955, %v1985
        %v2035 = vsub.f32 %v1956, %v1985
        %v2036 = vsub.f32 %v1957, %v1985
        %v2037 = vsub.f32 %v1958, %v1985
        %v2038 = vsub.f32 %v1959, %v1985
        %v2039 = vsub.f32 %v1960, %v1985
        %v2040 = vsub.f32 %v1961, %v1985
        %v2041 = vsub.f32 %v1962, %v1985
        %v2042 = vsub.f32 %v1963, %v1985
        %v2043 = vadd.f32 %v2026, 1e-05
        %v2044 = vrsqrt.pop %v2043
        %v2045 = vmul.f32 %v2027, %v2044
        %v2046 = vmul.f32 %v2028, %v2044
        %v2047 = vmul.f32 %v2029, %v2044
        %v2048 = vmul.f32 %v2030, %v2044
        %v2049 = vmul.f32 %v2031, %v2044
        %v2050 = vmul.f32 %v2032, %v2044
        %v2051 = vmul.f32 %v2033, %v2044
        %v2052 = vmul.f32 %v2034, %v2044
        %v2053 = vmul.f32 %v2035, %v2044
        %v2054 = vmul.f32 %v2036, %v2044
        %v2055 = vmul.f32 %v2037, %v2044
        %v2056 = vmul.f32 %v2038, %v2044
        %v2057 = vmul.f32 %v2039, %v2044
        %v2058 = vmul.f32 %v2040, %v2044
        %v2059 = vmul.f32 %v2041, %v2044
        %v2060 = vmul.f32 %v2042, %v2044
        %v2061 = vmul.f32 %v2045, %v322
        %v2062 = vmul.f32 %v2046, %v327
        %v2063 = vmul.f32 %v2047, %v332
        %v2064 = vmul.f32 %v2048, %v337
        %v2065 = vmul.f32 %v2049, %v342
        %v2066 = vmul.f32 %v2050, %v347
        %v2067 = vmul.f32 %v2051, %v352
        %v2068 = vmul.f32 %v2052, %v357
        %v2069 = vmul.f32 %v2053, %v362
        %v2070 = vmul.f32 %v2054, %v367
        %v2071 = vmul.f32 %v2055, %v372
        %v2072 = vmul.f32 %v2056, %v377
        %v2073 = vmul.f32 %v2057, %v382
        %v2074 = vmul.f32 %v2058, %v387
        %v2075 = vmul.f32 %v2059, %v392
        %v2076 = vmul.f32 %v2060, %v397
        %v2077 = vadd.f32 %v2061, %v418
        %v2078 = vadd.f32 %v2062, %v423
        %v2079 = vadd.f32 %v2063, %v428
        %v2080 = vadd.f32 %v2064, %v433
        %v2081 = vadd.f32 %v2065, %v438
        %v2082 = vadd.f32 %v2066, %v443
        %v2083 = vadd.f32 %v2067, %v448
        %v2084 = vadd.f32 %v2068, %v453
        %v2085 = vadd.f32 %v2069, %v458
        %v2086 = vadd.f32 %v2070, %v463
        %v2087 = vadd.f32 %v2071, %v468
        %v2088 = vadd.f32 %v2072, %v473
        %v2089 = vadd.f32 %v2073, %v478
        %v2090 = vadd.f32 %v2074, %v483
        %v2091 = vadd.f32 %v2075, %v488
        %v2092 = vadd.f32 %v2076, %v493
        %v2093 = vmax.f32 %v2077, 0.0
        %v2094 = vmax.f32 %v2078, 0.0
        %v2095 = vmax.f32 %v2079, 0.0
        %v2096 = vmax.f32 %v2080, 0.0
        %v2097 = vmax.f32 %v2081, 0.0
        %v2098 = vmax.f32 %v2082, 0.0
        %v2099 = vmax.f32 %v2083, 0.0
        %v2100 = vmax.f32 %v2084, 0.0
        %v2101 = vmax.f32 %v2085, 0.0
        %v2102 = vmax.f32 %v2086, 0.0
        %v2103 = vmax.f32 %v2087, 0.0
        %v2104 = vmax.f32 %v2088, 0.0
        %v2105 = vmax.f32 %v2089, 0.0
        %v2106 = vmax.f32 %v2090, 0.0
        %v2107 = vmax.f32 %v2091, 0.0
        %v2108 = vmax.f32 %v2092, 0.0
        %v2109 = vpack.c.bf16 %v2094, %v2093
        %v2110 = vpack.c.bf16 %v2096, %v2095
        %v2111 = vpack.c.bf16 %v2098, %v2097
        %v2112 = vpack.c.bf16 %v2100, %v2099
        %v2113 = vpack.c.bf16 %v2102, %v2101
        %v2114 = vpack.c.bf16 %v2104, %v2103
        %v2115 = vpack.c.bf16 %v2106, %v2105
        %v2116 = vpack.c.bf16 %v2108, %v2107
        %2125 = vrot.lane.b32.xlu0 %v2109, 1
        %v2126 = vpop.permute.xlu0 %2125
        %2127 = vrot.lane.b32.xlu0 %v2110, 1
        %v2128 = vpop.permute.xlu0 %2127
        %2129 = vrot.lane.b32.xlu0 %v2111, 1
        %v2130 = vpop.permute.xlu0 %2129
        %2131 = vrot.lane.b32.xlu0 %v2112, 1
        %v2132 = vpop.permute.xlu0 %2131
        %2133 = vrot.lane.b32.xlu0 %v2113, 1
        %v2134 = vpop.permute.xlu0 %2133
        %2135 = vrot.lane.b32.xlu0 %v2114, 1
        %v2136 = vpop.permute.xlu0 %2135
        %2137 = vrot.lane.b32.xlu0 %v2115, 1
        %v2138 = vpop.permute.xlu0 %2137
        %2139 = vrot.lane.b32.xlu0 %v2116, 1
        %v2140 = vpop.permute.xlu0 %2139
        %v2157 = vsel %vm974, %v2126, 0
        %v2158 = vsel %vm974, %v2128, 0
        %v2159 = vsel %vm974, %v2130, 0
        %v2160 = vsel %vm974, %v2132, 0
        %v2161 = vsel %vm974, %v2134, 0
        %v2162 = vsel %vm974, %v2136, 0
        %v2163 = vsel %vm974, %v2138, 0
        %v2164 = vsel %vm974, %v2140, 0
        %2165 = vrot.lane.b32.xlu0 %v2109, 127
        %v2166 = vpop.permute.xlu0 %2165
        %2167 = vrot.lane.b32.xlu0 %v2110, 127
        %v2168 = vpop.permute.xlu0 %2167
        %2169 = vrot.lane.b32.xlu0 %v2111, 127
        %v2170 = vpop.permute.xlu0 %2169
        %2171 = vrot.lane.b32.xlu0 %v2112, 127
        %v2172 = vpop.permute.xlu0 %2171
        %2173 = vrot.lane.b32.xlu0 %v2113, 127
        %v2174 = vpop.permute.xlu0 %2173
        %2175 = vrot.lane.b32.xlu0 %v2114, 127
        %v2176 = vpop.permute.xlu0 %2175
        %2177 = vrot.lane.b32.xlu0 %v2115, 127
        %v2178 = vpop.permute.xlu0 %2177
        %2179 = vrot.lane.b32.xlu0 %v2116, 127
        %v2180 = vpop.permute.xlu0 %2179
        %v2197 = vsel %vm1021, %v2166, 0
        %v2198 = vsel %vm1021, %v2168, 0
        %v2199 = vsel %vm1021, %v2170, 0
        %v2200 = vsel %vm1021, %v2172, 0
        %v2201 = vsel %vm1021, %v2174, 0
        %v2202 = vsel %vm1021, %v2176, 0
        %v2203 = vsel %vm1021, %v2178, 0
        %v2204 = vsel %vm1021, %v2180, 0
        %2205 = vmatprep.subr.bf16.mxu0 0
        %2206 = vmatpush1.bf16.msra.mxu0 %v2164
        %2207 = vmatprep.subr.bf16.mxu0 0
        %2208 = vmatpush1.bf16.msra.mxu0 %v2163
        %2209 = vmatprep.subr.bf16.mxu0 0
        %2210 = vmatpush1.bf16.msra.mxu0 %v2162
        %2211 = vmatprep.subr.bf16.mxu0 0
        %2212 = vmatpush1.bf16.msra.mxu0 %v2161
        %2213 = vmatprep.subr.bf16.mxu0 0
        %2214 = vmatpush1.bf16.msra.mxu0 %v2160
        %2215 = vmatprep.subr.bf16.mxu0 0
        %2216 = vmatpush1.bf16.msra.mxu0 %v2159
        %2217 = vmatprep.subr.bf16.mxu0 0
        %2218 = vmatpush1.bf16.msra.mxu0 %v2158
        %2219 = vmatprep.subr.bf16.mxu0 0
        %2220 = vmatpush1.bf16.msra.mxu0 %v2157
        %2221 = vmatprep.subr.bf16.mxu0 0
        %2222 = vmatpush2.bf16.msra.mxu0 %v2116
        %2223 = vmatprep.subr.bf16.mxu0 0
        %2224 = vmatpush2.bf16.msra.mxu0 %v2115
        %2225 = vmatprep.subr.bf16.mxu0 0
        %2226 = vmatpush2.bf16.msra.mxu0 %v2114
        %2227 = vmatprep.subr.bf16.mxu0 0
        %2228 = vmatpush2.bf16.msra.mxu0 %v2113
        %2229 = vmatprep.subr.bf16.mxu0 0
        %2230 = vmatpush2.bf16.msra.mxu0 %v2112
        %2231 = vmatprep.subr.bf16.mxu0 0
        %2232 = vmatpush2.bf16.msra.mxu0 %v2111
        %2233 = vmatprep.subr.bf16.mxu0 0
        %2234 = vmatpush2.bf16.msra.mxu0 %v2110
        %2235 = vmatprep.subr.bf16.mxu0 0
        %2236 = vmatpush2.bf16.msra.mxu0 %v2109
        %2237 = vmatprep.mubr.bf16.mxu0 %v1111
        %2238 = vmatmul.mubr.bf16.gmra.mxu0 %v1110
        %v2239 = vpop.f32.mrf.mxu0
        %v2240 = vadd.f32 0.0, %v2239
        %v2241 = vpop.f32.mrf.mxu0
        %v2242 = vpop.f32.mrf.mxu0
        %v2243 = vadd.f32 0.0, %v2242
        %v2244 = vpop.f32.mrf.mxu0
        %2245 = vmatprep.mubr.bf16.mxu0 %v1114
        %2246 = vmatmul.mubr.bf16.gmra.mxu0 %v1113
        %v2247 = vpop.f32.mrf.mxu0
        %v2248 = vadd.f32 0.0, %v2247
        %v2249 = vpop.f32.mrf.mxu0
        %v2250 = vpop.f32.mrf.mxu0
        %v2251 = vadd.f32 0.0, %v2250
        %v2252 = vpop.f32.mrf.mxu0
        %2253 = vmatprep.mubr.bf16.mxu0 %v1117
        %2254 = vmatmul.mubr.bf16.gmra.mxu0 %v1116
        %v2255 = vpop.f32.mrf.mxu0
        %v2256 = vadd.f32 0.0, %v2255
        %v2257 = vpop.f32.mrf.mxu0
        %v2258 = vpop.f32.mrf.mxu0
        %v2259 = vadd.f32 0.0, %v2258
        %v2260 = vpop.f32.mrf.mxu0
        %2261 = vmatprep.mubr.bf16.mxu0 %v1120
        %2262 = vmatmul.mubr.bf16.gmra.mxu0 %v1119
        %v2263 = vpop.f32.mrf.mxu0
        %v2264 = vadd.f32 0.0, %v2263
        %v2265 = vpop.f32.mrf.mxu0
        %v2266 = vpop.f32.mrf.mxu0
        %v2267 = vadd.f32 0.0, %v2266
        %v2268 = vpop.f32.mrf.mxu0
        %2269 = vmatprep.mubr.bf16.mxu0 %v1123
        %2270 = vmatmul.mubr.bf16.gmra.mxu0 %v1122
        %v2271 = vpop.f32.mrf.mxu0
        %v2272 = vadd.f32 0.0, %v2271
        %v2273 = vpop.f32.mrf.mxu0
        %v2274 = vpop.f32.mrf.mxu0
        %v2275 = vadd.f32 0.0, %v2274
        %v2276 = vpop.f32.mrf.mxu0
        %2277 = vmatprep.mubr.bf16.mxu0 %v1126
        %2278 = vmatmul.mubr.bf16.gmra.mxu0 %v1125
        %v2279 = vpop.f32.mrf.mxu0
        %v2280 = vadd.f32 0.0, %v2279
        %v2281 = vpop.f32.mrf.mxu0
        %v2282 = vpop.f32.mrf.mxu0
        %v2283 = vadd.f32 0.0, %v2282
        %v2284 = vpop.f32.mrf.mxu0
        %2285 = vmatprep.mubr.bf16.mxu0 %v1129
        %2286 = vmatmul.mubr.bf16.gmra.mxu0 %v1128
        %v2287 = vpop.f32.mrf.mxu0
        %v2288 = vadd.f32 0.0, %v2287
        %v2289 = vpop.f32.mrf.mxu0
        %v2290 = vpop.f32.mrf.mxu0
        %v2291 = vadd.f32 0.0, %v2290
        %v2292 = vpop.f32.mrf.mxu0
        %2293 = vmatprep.mubr.bf16.mxu0 %v1132
        %2294 = vmatmul.mubr.bf16.gmra.mxu0 %v1131
        %v2295 = vpop.f32.mrf.mxu0
        %v2296 = vadd.f32 0.0, %v2295
        %v2297 = vpop.f32.mrf.mxu0
        %v2298 = vpop.f32.mrf.mxu0
        %v2299 = vadd.f32 0.0, %v2298
        %v2300 = vpop.f32.mrf.mxu0
        %2301 = vdwg.mxu0
        %2302 = vmatprep.subr.bf16.mxu0 0
        %2303 = vmatpush1.bf16.msra.mxu0 %v2204
        %2304 = vmatprep.subr.bf16.mxu0 0
        %2305 = vmatpush1.bf16.msra.mxu0 %v2203
        %2306 = vmatprep.subr.bf16.mxu0 0
        %2307 = vmatpush1.bf16.msra.mxu0 %v2202
        %2308 = vmatprep.subr.bf16.mxu0 0
        %2309 = vmatpush1.bf16.msra.mxu0 %v2201
        %2310 = vmatprep.subr.bf16.mxu0 0
        %2311 = vmatpush1.bf16.msra.mxu0 %v2200
        %2312 = vmatprep.subr.bf16.mxu0 0
        %2313 = vmatpush1.bf16.msra.mxu0 %v2199
        %2314 = vmatprep.subr.bf16.mxu0 0
        %2315 = vmatpush1.bf16.msra.mxu0 %v2198
        %2316 = vmatprep.subr.bf16.mxu0 0
        %2317 = vmatpush1.bf16.msra.mxu0 %v2197
        %2318 = vmatprep.subr.bf16.mxu0 0
        %2319 = vmatpush2.bf16.msra.mxu0 0
        %2320 = vmatprep.subr.bf16.mxu0 0
        %2321 = vmatpush2.bf16.msra.mxu0 0
        %2322 = vmatprep.subr.bf16.mxu0 0
        %2323 = vmatpush2.bf16.msra.mxu0 0
        %2324 = vmatprep.subr.bf16.mxu0 0
        %2325 = vmatpush2.bf16.msra.mxu0 0
        %2326 = vmatprep.subr.bf16.mxu0 0
        %2327 = vmatpush2.bf16.msra.mxu0 0
        %2328 = vmatprep.subr.bf16.mxu0 0
        %2329 = vmatpush2.bf16.msra.mxu0 0
        %2330 = vmatprep.subr.bf16.mxu0 0
        %2331 = vmatpush2.bf16.msra.mxu0 0
        %2332 = vmatprep.subr.bf16.mxu0 0
        %2333 = vmatpush2.bf16.msra.mxu0 0
        %2334 = vmatprep.mubr.bf16.mxu0 0
        %2335 = vmatmul.mubr.bf16.gmra.mxu0 %v1112
        %v2336 = vpop.f32.mrf.mxu0
        %v2337 = vadd.f32 %v2240, %v2336
        %v2338 = vpop.f32.mrf.mxu0
        %v2339 = vpop.f32.mrf.mxu0
        %v2340 = vadd.f32 %v2243, %v2339
        %v2341 = vpop.f32.mrf.mxu0
        %2342 = vmatprep.mubr.bf16.mxu0 0
        %2343 = vmatmul.mubr.bf16.gmra.mxu0 %v1115
        %v2344 = vpop.f32.mrf.mxu0
        %v2345 = vadd.f32 %v2248, %v2344
        %v2346 = vpop.f32.mrf.mxu0
        %v2347 = vpop.f32.mrf.mxu0
        %v2348 = vadd.f32 %v2251, %v2347
        %v2349 = vpop.f32.mrf.mxu0
        %2350 = vmatprep.mubr.bf16.mxu0 0
        %2351 = vmatmul.mubr.bf16.gmra.mxu0 %v1118
        %v2352 = vpop.f32.mrf.mxu0
        %v2353 = vadd.f32 %v2256, %v2352
        %v2354 = vpop.f32.mrf.mxu0
        %v2355 = vpop.f32.mrf.mxu0
        %v2356 = vadd.f32 %v2259, %v2355
        %v2357 = vpop.f32.mrf.mxu0
        %2358 = vmatprep.mubr.bf16.mxu0 0
        %2359 = vmatmul.mubr.bf16.gmra.mxu0 %v1121
        %v2360 = vpop.f32.mrf.mxu0
        %v2361 = vadd.f32 %v2264, %v2360
        %v2362 = vpop.f32.mrf.mxu0
        %v2363 = vpop.f32.mrf.mxu0
        %v2364 = vadd.f32 %v2267, %v2363
        %v2365 = vpop.f32.mrf.mxu0
        %2366 = vmatprep.mubr.bf16.mxu0 0
        %2367 = vmatmul.mubr.bf16.gmra.mxu0 %v1124
        %v2368 = vpop.f32.mrf.mxu0
        %v2369 = vadd.f32 %v2272, %v2368
        %v2370 = vpop.f32.mrf.mxu0
        %v2371 = vpop.f32.mrf.mxu0
        %v2372 = vadd.f32 %v2275, %v2371
        %v2373 = vpop.f32.mrf.mxu0
        %2374 = vmatprep.mubr.bf16.mxu0 0
        %2375 = vmatmul.mubr.bf16.gmra.mxu0 %v1127
        %v2376 = vpop.f32.mrf.mxu0
        %v2377 = vadd.f32 %v2280, %v2376
        %v2378 = vpop.f32.mrf.mxu0
        %v2379 = vpop.f32.mrf.mxu0
        %v2380 = vadd.f32 %v2283, %v2379
        %v2381 = vpop.f32.mrf.mxu0
        %2382 = vmatprep.mubr.bf16.mxu0 0
        %2383 = vmatmul.mubr.bf16.gmra.mxu0 %v1130
        %v2384 = vpop.f32.mrf.mxu0
        %v2385 = vadd.f32 %v2288, %v2384
        %v2386 = vpop.f32.mrf.mxu0
        %v2387 = vpop.f32.mrf.mxu0
        %v2388 = vadd.f32 %v2291, %v2387
        %v2389 = vpop.f32.mrf.mxu0
        %2390 = vmatprep.mubr.bf16.mxu0 0
        %2391 = vmatmul.mubr.bf16.gmra.mxu0 %v1133
        %v2392 = vpop.f32.mrf.mxu0
        %v2393 = vadd.f32 %v2296, %v2392
        %v2394 = vpop.f32.mrf.mxu0
        %v2395 = vpop.f32.mrf.mxu0
        %v2396 = vadd.f32 %v2299, %v2395
        %v2397 = vpop.f32.mrf.mxu0
        %2398 = vdwg.mxu0
        %v2399 = vadd.f32 %v2337, %v2340
        %v2400 = vadd.f32 %v2399, %v2345
        %v2401 = vadd.f32 %v2400, %v2348
        %v2402 = vadd.f32 %v2401, %v2353
        %v2403 = vadd.f32 %v2402, %v2356
        %v2404 = vadd.f32 %v2403, %v2361
        %v2405 = vadd.f32 %v2404, %v2364
        %v2406 = vadd.f32 %v2405, %v2369
        %v2407 = vadd.f32 %v2406, %v2372
        %v2408 = vadd.f32 %v2407, %v2377
        %v2409 = vadd.f32 %v2408, %v2380
        %v2410 = vadd.f32 %v2409, %v2385
        %v2411 = vadd.f32 %v2410, %v2388
        %v2412 = vadd.f32 %v2411, %v2393
        %v2413 = vadd.f32 %v2412, %v2396
        %v2414 = vrot.slane %v2413, 4
        %v2415 = vadd.f32 %v2413, %v2414
        %v2416 = vrot.slane %v2415, 2
        %v2417 = vadd.f32 %v2415, %v2416
        %v2418 = vrot.slane %v2417, 1
        %v2419 = vadd.f32 %v2417, %v2418
        %v2420 = vmul.f32 %v2419, 0.0078125
        %v2421 = vmul.f32 %v2337, %v2337
        %v2422 = vmul.f32 %v2340, %v2340
        %v2423 = vmul.f32 %v2345, %v2345
        %v2424 = vmul.f32 %v2348, %v2348
        %v2425 = vmul.f32 %v2353, %v2353
        %v2426 = vmul.f32 %v2356, %v2356
        %v2427 = vmul.f32 %v2361, %v2361
        %v2428 = vmul.f32 %v2364, %v2364
        %v2429 = vmul.f32 %v2369, %v2369
        %v2430 = vmul.f32 %v2372, %v2372
        %v2431 = vmul.f32 %v2377, %v2377
        %v2432 = vmul.f32 %v2380, %v2380
        %v2433 = vmul.f32 %v2385, %v2385
        %v2434 = vmul.f32 %v2388, %v2388
        %v2435 = vmul.f32 %v2393, %v2393
        %v2436 = vmul.f32 %v2396, %v2396
        %v2437 = vadd.f32 %v2421, %v2422
        %v2438 = vadd.f32 %v2437, %v2423
        %v2439 = vadd.f32 %v2438, %v2424
        %v2440 = vadd.f32 %v2439, %v2425
        %v2441 = vadd.f32 %v2440, %v2426
        %v2442 = vadd.f32 %v2441, %v2427
        %v2443 = vadd.f32 %v2442, %v2428
        %v2444 = vadd.f32 %v2443, %v2429
        %v2445 = vadd.f32 %v2444, %v2430
        %v2446 = vadd.f32 %v2445, %v2431
        %v2447 = vadd.f32 %v2446, %v2432
        %v2448 = vadd.f32 %v2447, %v2433
        %v2449 = vadd.f32 %v2448, %v2434
        %v2450 = vadd.f32 %v2449, %v2435
        %v2451 = vadd.f32 %v2450, %v2436
        %v2452 = vrot.slane %v2451, 4
        %v2453 = vadd.f32 %v2451, %v2452
        %v2454 = vrot.slane %v2453, 2
        %v2455 = vadd.f32 %v2453, %v2454
        %v2456 = vrot.slane %v2455, 1
        %v2457 = vadd.f32 %v2455, %v2456
        %v2458 = vmul.f32 %v2457, 0.0078125
        %v2459 = vmul.f32 %v2420, %v2420
        %v2460 = vsub.f32 %v2458, %v2459
        %v2461 = vmax.f32 %v2460, 0.0
        %v2462 = vsub.f32 %v2337, %v2420
        %v2463 = vsub.f32 %v2340, %v2420
        %v2464 = vsub.f32 %v2345, %v2420
        %v2465 = vsub.f32 %v2348, %v2420
        %v2466 = vsub.f32 %v2353, %v2420
        %v2467 = vsub.f32 %v2356, %v2420
        %v2468 = vsub.f32 %v2361, %v2420
        %v2469 = vsub.f32 %v2364, %v2420
        %v2470 = vsub.f32 %v2369, %v2420
        %v2471 = vsub.f32 %v2372, %v2420
        %v2472 = vsub.f32 %v2377, %v2420
        %v2473 = vsub.f32 %v2380, %v2420
        %v2474 = vsub.f32 %v2385, %v2420
        %v2475 = vsub.f32 %v2388, %v2420
        %v2476 = vsub.f32 %v2393, %v2420
        %v2477 = vsub.f32 %v2396, %v2420
        %v2478 = vadd.f32 %v2461, 1e-05
        %v2479 = vrsqrt.pop %v2478
        %v2480 = vmul.f32 %v2462, %v2479
        %v2481 = vmul.f32 %v2463, %v2479
        %v2482 = vmul.f32 %v2464, %v2479
        %v2483 = vmul.f32 %v2465, %v2479
        %v2484 = vmul.f32 %v2466, %v2479
        %v2485 = vmul.f32 %v2467, %v2479
        %v2486 = vmul.f32 %v2468, %v2479
        %v2487 = vmul.f32 %v2469, %v2479
        %v2488 = vmul.f32 %v2470, %v2479
        %v2489 = vmul.f32 %v2471, %v2479
        %v2490 = vmul.f32 %v2472, %v2479
        %v2491 = vmul.f32 %v2473, %v2479
        %v2492 = vmul.f32 %v2474, %v2479
        %v2493 = vmul.f32 %v2475, %v2479
        %v2494 = vmul.f32 %v2476, %v2479
        %v2495 = vmul.f32 %v2477, %v2479
        %v2496 = vmul.f32 %v2480, %v514
        %v2497 = vmul.f32 %v2481, %v519
        %v2498 = vmul.f32 %v2482, %v524
        %v2499 = vmul.f32 %v2483, %v529
        %v2500 = vmul.f32 %v2484, %v534
        %v2501 = vmul.f32 %v2485, %v539
        %v2502 = vmul.f32 %v2486, %v544
        %v2503 = vmul.f32 %v2487, %v549
        %v2504 = vmul.f32 %v2488, %v554
        %v2505 = vmul.f32 %v2489, %v559
        %v2506 = vmul.f32 %v2490, %v564
        %v2507 = vmul.f32 %v2491, %v569
        %v2508 = vmul.f32 %v2492, %v574
        %v2509 = vmul.f32 %v2493, %v579
        %v2510 = vmul.f32 %v2494, %v584
        %v2511 = vmul.f32 %v2495, %v589
        %v2512 = vadd.f32 %v2496, %v610
        %v2513 = vadd.f32 %v2497, %v615
        %v2514 = vadd.f32 %v2498, %v620
        %v2515 = vadd.f32 %v2499, %v625
        %v2516 = vadd.f32 %v2500, %v630
        %v2517 = vadd.f32 %v2501, %v635
        %v2518 = vadd.f32 %v2502, %v640
        %v2519 = vadd.f32 %v2503, %v645
        %v2520 = vadd.f32 %v2504, %v650
        %v2521 = vadd.f32 %v2505, %v655
        %v2522 = vadd.f32 %v2506, %v660
        %v2523 = vadd.f32 %v2507, %v665
        %v2524 = vadd.f32 %v2508, %v670
        %v2525 = vadd.f32 %v2509, %v675
        %v2526 = vadd.f32 %v2510, %v680
        %v2527 = vadd.f32 %v2511, %v685
        %v2528 = vmax.f32 %v2512, 0.0
        %v2529 = vmax.f32 %v2513, 0.0
        %v2530 = vmax.f32 %v2514, 0.0
        %v2531 = vmax.f32 %v2515, 0.0
        %v2532 = vmax.f32 %v2516, 0.0
        %v2533 = vmax.f32 %v2517, 0.0
        %v2534 = vmax.f32 %v2518, 0.0
        %v2535 = vmax.f32 %v2519, 0.0
        %v2536 = vmax.f32 %v2520, 0.0
        %v2537 = vmax.f32 %v2521, 0.0
        %v2538 = vmax.f32 %v2522, 0.0
        %v2539 = vmax.f32 %v2523, 0.0
        %v2540 = vmax.f32 %v2524, 0.0
        %v2541 = vmax.f32 %v2525, 0.0
        %v2542 = vmax.f32 %v2526, 0.0
        %v2543 = vmax.f32 %v2527, 0.0
        %v2544 = vpack.c.bf16 %v2529, %v2528
        %v2545 = vpack.c.bf16 %v2531, %v2530
        %v2546 = vpack.c.bf16 %v2533, %v2532
        %v2547 = vpack.c.bf16 %v2535, %v2534
        %v2548 = vpack.c.bf16 %v2537, %v2536
        %v2549 = vpack.c.bf16 %v2539, %v2538
        %v2550 = vpack.c.bf16 %v2541, %v2540
        %v2551 = vpack.c.bf16 %v2543, %v2542
        %2560 = vrot.lane.b32.xlu0 %v2544, 1
        %v2561 = vpop.permute.xlu0 %2560
        %2562 = vrot.lane.b32.xlu0 %v2545, 1
        %v2563 = vpop.permute.xlu0 %2562
        %2564 = vrot.lane.b32.xlu0 %v2546, 1
        %v2565 = vpop.permute.xlu0 %2564
        %2566 = vrot.lane.b32.xlu0 %v2547, 1
        %v2567 = vpop.permute.xlu0 %2566
        %2568 = vrot.lane.b32.xlu0 %v2548, 1
        %v2569 = vpop.permute.xlu0 %2568
        %2570 = vrot.lane.b32.xlu0 %v2549, 1
        %v2571 = vpop.permute.xlu0 %2570
        %2572 = vrot.lane.b32.xlu0 %v2550, 1
        %v2573 = vpop.permute.xlu0 %2572
        %2574 = vrot.lane.b32.xlu0 %v2551, 1
        %v2575 = vpop.permute.xlu0 %2574
        %v2592 = vsel %vm974, %v2561, 0
        %v2593 = vsel %vm974, %v2563, 0
        %v2594 = vsel %vm974, %v2565, 0
        %v2595 = vsel %vm974, %v2567, 0
        %v2596 = vsel %vm974, %v2569, 0
        %v2597 = vsel %vm974, %v2571, 0
        %v2598 = vsel %vm974, %v2573, 0
        %v2599 = vsel %vm974, %v2575, 0
        %2600 = vrot.lane.b32.xlu0 %v2544, 127
        %v2601 = vpop.permute.xlu0 %2600
        %2602 = vrot.lane.b32.xlu0 %v2545, 127
        %v2603 = vpop.permute.xlu0 %2602
        %2604 = vrot.lane.b32.xlu0 %v2546, 127
        %v2605 = vpop.permute.xlu0 %2604
        %2606 = vrot.lane.b32.xlu0 %v2547, 127
        %v2607 = vpop.permute.xlu0 %2606
        %2608 = vrot.lane.b32.xlu0 %v2548, 127
        %v2609 = vpop.permute.xlu0 %2608
        %2610 = vrot.lane.b32.xlu0 %v2549, 127
        %v2611 = vpop.permute.xlu0 %2610
        %2612 = vrot.lane.b32.xlu0 %v2550, 127
        %v2613 = vpop.permute.xlu0 %2612
        %2614 = vrot.lane.b32.xlu0 %v2551, 127
        %v2615 = vpop.permute.xlu0 %2614
        %v2632 = vsel %vm1021, %v2601, 0
        %v2633 = vsel %vm1021, %v2603, 0
        %v2634 = vsel %vm1021, %v2605, 0
        %v2635 = vsel %vm1021, %v2607, 0
        %v2636 = vsel %vm1021, %v2609, 0
        %v2637 = vsel %vm1021, %v2611, 0
        %v2638 = vsel %vm1021, %v2613, 0
        %v2639 = vsel %vm1021, %v2615, 0
        %2640 = vmatprep.subr.bf16.mxu0 0
        %2641 = vmatpush1.bf16.msra.mxu0 %v2599
        %2642 = vmatprep.subr.bf16.mxu0 0
        %2643 = vmatpush1.bf16.msra.mxu0 %v2598
        %2644 = vmatprep.subr.bf16.mxu0 0
        %2645 = vmatpush1.bf16.msra.mxu0 %v2597
        %2646 = vmatprep.subr.bf16.mxu0 0
        %2647 = vmatpush1.bf16.msra.mxu0 %v2596
        %2648 = vmatprep.subr.bf16.mxu0 0
        %2649 = vmatpush1.bf16.msra.mxu0 %v2595
        %2650 = vmatprep.subr.bf16.mxu0 0
        %2651 = vmatpush1.bf16.msra.mxu0 %v2594
        %2652 = vmatprep.subr.bf16.mxu0 0
        %2653 = vmatpush1.bf16.msra.mxu0 %v2593
        %2654 = vmatprep.subr.bf16.mxu0 0
        %2655 = vmatpush1.bf16.msra.mxu0 %v2592
        %2656 = vmatprep.subr.bf16.mxu0 0
        %2657 = vmatpush2.bf16.msra.mxu0 %v2551
        %2658 = vmatprep.subr.bf16.mxu0 0
        %2659 = vmatpush2.bf16.msra.mxu0 %v2550
        %2660 = vmatprep.subr.bf16.mxu0 0
        %2661 = vmatpush2.bf16.msra.mxu0 %v2549
        %2662 = vmatprep.subr.bf16.mxu0 0
        %2663 = vmatpush2.bf16.msra.mxu0 %v2548
        %2664 = vmatprep.subr.bf16.mxu0 0
        %2665 = vmatpush2.bf16.msra.mxu0 %v2547
        %2666 = vmatprep.subr.bf16.mxu0 0
        %2667 = vmatpush2.bf16.msra.mxu0 %v2546
        %2668 = vmatprep.subr.bf16.mxu0 0
        %2669 = vmatpush2.bf16.msra.mxu0 %v2545
        %2670 = vmatprep.subr.bf16.mxu0 0
        %2671 = vmatpush2.bf16.msra.mxu0 %v2544
        %2672 = vmatprep.mubr.bf16.mxu0 %v1674
        %2673 = vmatmul.mubr.bf16.gmra.mxu0 %v1673
        %v2674 = vpop.f32.mrf.mxu0
        %v2675 = vadd.f32 %v1948, %v2674
        %v2676 = vpop.f32.mrf.mxu0
        %v2677 = vpop.f32.mrf.mxu0
        %v2678 = vadd.f32 %v1949, %v2677
        %v2679 = vpop.f32.mrf.mxu0
        %2680 = vmatprep.mubr.bf16.mxu0 %v1677
        %2681 = vmatmul.mubr.bf16.gmra.mxu0 %v1676
        %v2682 = vpop.f32.mrf.mxu0
        %v2683 = vadd.f32 %v1950, %v2682
        %v2684 = vpop.f32.mrf.mxu0
        %v2685 = vpop.f32.mrf.mxu0
        %v2686 = vadd.f32 %v1951, %v2685
        %v2687 = vpop.f32.mrf.mxu0
        %2688 = vmatprep.mubr.bf16.mxu0 %v1680
        %2689 = vmatmul.mubr.bf16.gmra.mxu0 %v1679
        %v2690 = vpop.f32.mrf.mxu0
        %v2691 = vadd.f32 %v1952, %v2690
        %v2692 = vpop.f32.mrf.mxu0
        %v2693 = vpop.f32.mrf.mxu0
        %v2694 = vadd.f32 %v1953, %v2693
        %v2695 = vpop.f32.mrf.mxu0
        %2696 = vmatprep.mubr.bf16.mxu0 %v1683
        %2697 = vmatmul.mubr.bf16.gmra.mxu0 %v1682
        %v2698 = vpop.f32.mrf.mxu0
        %v2699 = vadd.f32 %v1954, %v2698
        %v2700 = vpop.f32.mrf.mxu0
        %v2701 = vpop.f32.mrf.mxu0
        %v2702 = vadd.f32 %v1955, %v2701
        %v2703 = vpop.f32.mrf.mxu0
        %2704 = vmatprep.mubr.bf16.mxu0 %v1686
        %2705 = vmatmul.mubr.bf16.gmra.mxu0 %v1685
        %v2706 = vpop.f32.mrf.mxu0
        %v2707 = vadd.f32 %v1956, %v2706
        %v2708 = vpop.f32.mrf.mxu0
        %v2709 = vpop.f32.mrf.mxu0
        %v2710 = vadd.f32 %v1957, %v2709
        %v2711 = vpop.f32.mrf.mxu0
        %2712 = vmatprep.mubr.bf16.mxu0 %v1689
        %2713 = vmatmul.mubr.bf16.gmra.mxu0 %v1688
        %v2714 = vpop.f32.mrf.mxu0
        %v2715 = vadd.f32 %v1958, %v2714
        %v2716 = vpop.f32.mrf.mxu0
        %v2717 = vpop.f32.mrf.mxu0
        %v2718 = vadd.f32 %v1959, %v2717
        %v2719 = vpop.f32.mrf.mxu0
        %2720 = vmatprep.mubr.bf16.mxu0 %v1692
        %2721 = vmatmul.mubr.bf16.gmra.mxu0 %v1691
        %v2722 = vpop.f32.mrf.mxu0
        %v2723 = vadd.f32 %v1960, %v2722
        %v2724 = vpop.f32.mrf.mxu0
        %v2725 = vpop.f32.mrf.mxu0
        %v2726 = vadd.f32 %v1961, %v2725
        %v2727 = vpop.f32.mrf.mxu0
        %2728 = vmatprep.mubr.bf16.mxu0 %v1695
        %2729 = vmatmul.mubr.bf16.gmra.mxu0 %v1694
        %v2730 = vpop.f32.mrf.mxu0
        %v2731 = vadd.f32 %v1962, %v2730
        %v2732 = vpop.f32.mrf.mxu0
        %v2733 = vpop.f32.mrf.mxu0
        %v2734 = vadd.f32 %v1963, %v2733
        %v2735 = vpop.f32.mrf.mxu0
        %2736 = vdwg.mxu0
        %2737 = vmatprep.subr.bf16.mxu0 0
        %2738 = vmatpush1.bf16.msra.mxu0 %v2639
        %2739 = vmatprep.subr.bf16.mxu0 0
        %2740 = vmatpush1.bf16.msra.mxu0 %v2638
        %2741 = vmatprep.subr.bf16.mxu0 0
        %2742 = vmatpush1.bf16.msra.mxu0 %v2637
        %2743 = vmatprep.subr.bf16.mxu0 0
        %2744 = vmatpush1.bf16.msra.mxu0 %v2636
        %2745 = vmatprep.subr.bf16.mxu0 0
        %2746 = vmatpush1.bf16.msra.mxu0 %v2635
        %2747 = vmatprep.subr.bf16.mxu0 0
        %2748 = vmatpush1.bf16.msra.mxu0 %v2634
        %2749 = vmatprep.subr.bf16.mxu0 0
        %2750 = vmatpush1.bf16.msra.mxu0 %v2633
        %2751 = vmatprep.subr.bf16.mxu0 0
        %2752 = vmatpush1.bf16.msra.mxu0 %v2632
        %2753 = vmatprep.subr.bf16.mxu0 0
        %2754 = vmatpush2.bf16.msra.mxu0 0
        %2755 = vmatprep.subr.bf16.mxu0 0
        %2756 = vmatpush2.bf16.msra.mxu0 0
        %2757 = vmatprep.subr.bf16.mxu0 0
        %2758 = vmatpush2.bf16.msra.mxu0 0
        %2759 = vmatprep.subr.bf16.mxu0 0
        %2760 = vmatpush2.bf16.msra.mxu0 0
        %2761 = vmatprep.subr.bf16.mxu0 0
        %2762 = vmatpush2.bf16.msra.mxu0 0
        %2763 = vmatprep.subr.bf16.mxu0 0
        %2764 = vmatpush2.bf16.msra.mxu0 0
        %2765 = vmatprep.subr.bf16.mxu0 0
        %2766 = vmatpush2.bf16.msra.mxu0 0
        %2767 = vmatprep.subr.bf16.mxu0 0
        %2768 = vmatpush2.bf16.msra.mxu0 0
        %2769 = vmatprep.mubr.bf16.mxu0 0
        %2770 = vmatmul.mubr.bf16.gmra.mxu0 %v1675
        %v2771 = vpop.f32.mrf.mxu0
        %v2772 = vadd.f32 %v2675, %v2771
        %v2773 = vpop.f32.mrf.mxu0
        %v2774 = vpop.f32.mrf.mxu0
        %v2775 = vadd.f32 %v2678, %v2774
        %v2776 = vpop.f32.mrf.mxu0
        %2777 = vmatprep.mubr.bf16.mxu0 0
        %2778 = vmatmul.mubr.bf16.gmra.mxu0 %v1678
        %v2779 = vpop.f32.mrf.mxu0
        %v2780 = vadd.f32 %v2683, %v2779
        %v2781 = vpop.f32.mrf.mxu0
        %v2782 = vpop.f32.mrf.mxu0
        %v2783 = vadd.f32 %v2686, %v2782
        %v2784 = vpop.f32.mrf.mxu0
        %2785 = vmatprep.mubr.bf16.mxu0 0
        %2786 = vmatmul.mubr.bf16.gmra.mxu0 %v1681
        %v2787 = vpop.f32.mrf.mxu0
        %v2788 = vadd.f32 %v2691, %v2787
        %v2789 = vpop.f32.mrf.mxu0
        %v2790 = vpop.f32.mrf.mxu0
        %v2791 = vadd.f32 %v2694, %v2790
        %v2792 = vpop.f32.mrf.mxu0
        %2793 = vmatprep.mubr.bf16.mxu0 0
        %2794 = vmatmul.mubr.bf16.gmra.mxu0 %v1684
        %v2795 = vpop.f32.mrf.mxu0
        %v2796 = vadd.f32 %v2699, %v2795
        %v2797 = vpop.f32.mrf.mxu0
        %v2798 = vpop.f32.mrf.mxu0
        %v2799 = vadd.f32 %v2702, %v2798
        %v2800 = vpop.f32.mrf.mxu0
        %2801 = vmatprep.mubr.bf16.mxu0 0
        %2802 = vmatmul.mubr.bf16.gmra.mxu0 %v1687
        %v2803 = vpop.f32.mrf.mxu0
        %v2804 = vadd.f32 %v2707, %v2803
        %v2805 = vpop.f32.mrf.mxu0
        %v2806 = vpop.f32.mrf.mxu0
        %v2807 = vadd.f32 %v2710, %v2806
        %v2808 = vpop.f32.mrf.mxu0
        %2809 = vmatprep.mubr.bf16.mxu0 0
        %2810 = vmatmul.mubr.bf16.gmra.mxu0 %v1690
        %v2811 = vpop.f32.mrf.mxu0
        %v2812 = vadd.f32 %v2715, %v2811
        %v2813 = vpop.f32.mrf.mxu0
        %v2814 = vpop.f32.mrf.mxu0
        %v2815 = vadd.f32 %v2718, %v2814
        %v2816 = vpop.f32.mrf.mxu0
        %2817 = vmatprep.mubr.bf16.mxu0 0
        %2818 = vmatmul.mubr.bf16.gmra.mxu0 %v1693
        %v2819 = vpop.f32.mrf.mxu0
        %v2820 = vadd.f32 %v2723, %v2819
        %v2821 = vpop.f32.mrf.mxu0
        %v2822 = vpop.f32.mrf.mxu0
        %v2823 = vadd.f32 %v2726, %v2822
        %v2824 = vpop.f32.mrf.mxu0
        %2825 = vmatprep.mubr.bf16.mxu0 0
        %2826 = vmatmul.mubr.bf16.gmra.mxu0 %v1696
        %v2827 = vpop.f32.mrf.mxu0
        %v2828 = vadd.f32 %v2731, %v2827
        %v2829 = vpop.f32.mrf.mxu0
        %v2830 = vpop.f32.mrf.mxu0
        %v2831 = vadd.f32 %v2734, %v2830
        %v2832 = vpop.f32.mrf.mxu0
        %2833 = vdwg.mxu0
        %v2834 = vmax.f32 %v2772, 0.0
        %v2835 = vmax.f32 %v2775, 0.0
        %v2836 = vmax.f32 %v2780, 0.0
        %v2837 = vmax.f32 %v2783, 0.0
        %v2838 = vmax.f32 %v2788, 0.0
        %v2839 = vmax.f32 %v2791, 0.0
        %v2840 = vmax.f32 %v2796, 0.0
        %v2841 = vmax.f32 %v2799, 0.0
        %v2842 = vmax.f32 %v2804, 0.0
        %v2843 = vmax.f32 %v2807, 0.0
        %v2844 = vmax.f32 %v2812, 0.0
        %v2845 = vmax.f32 %v2815, 0.0
        %v2846 = vmax.f32 %v2820, 0.0
        %v2847 = vmax.f32 %v2823, 0.0
        %v2848 = vmax.f32 %v2828, 0.0
        %v2849 = vmax.f32 %v2831, 0.0
        %s2850 = scalar_lea.vmem %s297, 128 [#allocation5]
        %2851 = vst [vmem:[%s2850] sm:$0xff] %v2834
        %2852 = vst [vmem:[%s2850 + $0x8] sm:$0xff] %v2835
        %2853 = vst [vmem:[%s2850 + $0x10] sm:$0xff] %v2836
        %2854 = vst [vmem:[%s2850 + $0x18] sm:$0xff] %v2837
        %2855 = vst [vmem:[%s2850 + $0x20] sm:$0xff] %v2838
        %2856 = vst [vmem:[%s2850 + $0x28] sm:$0xff] %v2839
        %2857 = vst [vmem:[%s2850 + $0x30] sm:$0xff] %v2840
        %2858 = vst [vmem:[%s2850 + $0x38] sm:$0xff] %v2841
        %2859 = vst [vmem:[%s2850 + $0x40] sm:$0xff] %v2842
        %2860 = vst [vmem:[%s2850 + $0x48] sm:$0xff] %v2843
        %2861 = vst [vmem:[%s2850 + $0x50] sm:$0xff] %v2844
        %2862 = vst [vmem:[%s2850 + $0x58] sm:$0xff] %v2845
        %2863 = vst [vmem:[%s2850 + $0x60] sm:$0xff] %v2846
        %2864 = vst [vmem:[%s2850 + $0x68] sm:$0xff] %v2847
        %2865 = vst [vmem:[%s2850 + $0x70] sm:$0xff] %v2848
        %2866 = vst [vmem:[%s2850 + $0x78] sm:$0xff] %v2849
        %s2867 = scalar_lea.vmem %s267, 256 [#allocation2]
        %v2868 = vld [vmem:[%s2867] sm:$0xff]
        %v2869 = vld [vmem:[%s2867 + $0x8] sm:$0xff]
        %v2870 = vld [vmem:[%s2867 + $0x10] sm:$0xff]
        %v2871 = vld [vmem:[%s2867 + $0x18] sm:$0xff]
        %v2872 = vld [vmem:[%s2867 + $0x20] sm:$0xff]
        %v2873 = vld [vmem:[%s2867 + $0x28] sm:$0xff]
        %v2874 = vld [vmem:[%s2867 + $0x30] sm:$0xff]
        %v2875 = vld [vmem:[%s2867 + $0x38] sm:$0xff]
        %v2876 = vld [vmem:[%s2867 + $0x40] sm:$0xff]
        %v2877 = vld [vmem:[%s2867 + $0x48] sm:$0xff]
        %v2878 = vld [vmem:[%s2867 + $0x50] sm:$0xff]
        %v2879 = vld [vmem:[%s2867 + $0x58] sm:$0xff]
        %v2880 = vld [vmem:[%s2867 + $0x60] sm:$0xff]
        %v2881 = vld [vmem:[%s2867 + $0x68] sm:$0xff]
        %v2882 = vld [vmem:[%s2867 + $0x70] sm:$0xff]
        %v2883 = vld [vmem:[%s2867 + $0x78] sm:$0xff]
        %v2884 = vadd.f32 %v2868, %v2869
        %v2885 = vadd.f32 %v2884, %v2870
        %v2886 = vadd.f32 %v2885, %v2871
        %v2887 = vadd.f32 %v2886, %v2872
        %v2888 = vadd.f32 %v2887, %v2873
        %v2889 = vadd.f32 %v2888, %v2874
        %v2890 = vadd.f32 %v2889, %v2875
        %v2891 = vadd.f32 %v2890, %v2876
        %v2892 = vadd.f32 %v2891, %v2877
        %v2893 = vadd.f32 %v2892, %v2878
        %v2894 = vadd.f32 %v2893, %v2879
        %v2895 = vadd.f32 %v2894, %v2880
        %v2896 = vadd.f32 %v2895, %v2881
        %v2897 = vadd.f32 %v2896, %v2882
        %v2898 = vadd.f32 %v2897, %v2883
        %v2899 = vrot.slane %v2898, 4
        %v2900 = vadd.f32 %v2898, %v2899
        %v2901 = vrot.slane %v2900, 2
        %v2902 = vadd.f32 %v2900, %v2901
        %v2903 = vrot.slane %v2902, 1
        %v2904 = vadd.f32 %v2902, %v2903
        %v2905 = vmul.f32 %v2904, 0.0078125
        %v2906 = vmul.f32 %v2868, %v2868
        %v2907 = vmul.f32 %v2869, %v2869
        %v2908 = vmul.f32 %v2870, %v2870
        %v2909 = vmul.f32 %v2871, %v2871
        %v2910 = vmul.f32 %v2872, %v2872
        %v2911 = vmul.f32 %v2873, %v2873
        %v2912 = vmul.f32 %v2874, %v2874
        %v2913 = vmul.f32 %v2875, %v2875
        %v2914 = vmul.f32 %v2876, %v2876
        %v2915 = vmul.f32 %v2877, %v2877
        %v2916 = vmul.f32 %v2878, %v2878
        %v2917 = vmul.f32 %v2879, %v2879
        %v2918 = vmul.f32 %v2880, %v2880
        %v2919 = vmul.f32 %v2881, %v2881
        %v2920 = vmul.f32 %v2882, %v2882
        %v2921 = vmul.f32 %v2883, %v2883
        %v2922 = vadd.f32 %v2906, %v2907
        %v2923 = vadd.f32 %v2922, %v2908
        %v2924 = vadd.f32 %v2923, %v2909
        %v2925 = vadd.f32 %v2924, %v2910
        %v2926 = vadd.f32 %v2925, %v2911
        %v2927 = vadd.f32 %v2926, %v2912
        %v2928 = vadd.f32 %v2927, %v2913
        %v2929 = vadd.f32 %v2928, %v2914
        %v2930 = vadd.f32 %v2929, %v2915
        %v2931 = vadd.f32 %v2930, %v2916
        %v2932 = vadd.f32 %v2931, %v2917
        %v2933 = vadd.f32 %v2932, %v2918
        %v2934 = vadd.f32 %v2933, %v2919
        %v2935 = vadd.f32 %v2934, %v2920
        %v2936 = vadd.f32 %v2935, %v2921
        %v2937 = vrot.slane %v2936, 4
        %v2938 = vadd.f32 %v2936, %v2937
        %v2939 = vrot.slane %v2938, 2
        %v2940 = vadd.f32 %v2938, %v2939
        %v2941 = vrot.slane %v2940, 1
        %v2942 = vadd.f32 %v2940, %v2941
        %v2943 = vmul.f32 %v2942, 0.0078125
        %v2944 = vmul.f32 %v2905, %v2905
        %v2945 = vsub.f32 %v2943, %v2944
        %v2946 = vmax.f32 %v2945, 0.0
        %v2947 = vsub.f32 %v2868, %v2905
        %v2948 = vsub.f32 %v2869, %v2905
        %v2949 = vsub.f32 %v2870, %v2905
        %v2950 = vsub.f32 %v2871, %v2905
        %v2951 = vsub.f32 %v2872, %v2905
        %v2952 = vsub.f32 %v2873, %v2905
        %v2953 = vsub.f32 %v2874, %v2905
        %v2954 = vsub.f32 %v2875, %v2905
        %v2955 = vsub.f32 %v2876, %v2905
        %v2956 = vsub.f32 %v2877, %v2905
        %v2957 = vsub.f32 %v2878, %v2905
        %v2958 = vsub.f32 %v2879, %v2905
        %v2959 = vsub.f32 %v2880, %v2905
        %v2960 = vsub.f32 %v2881, %v2905
        %v2961 = vsub.f32 %v2882, %v2905
        %v2962 = vsub.f32 %v2883, %v2905
        %v2963 = vadd.f32 %v2946, 1e-05
        %v2964 = vrsqrt.pop %v2963
        %v2965 = vmul.f32 %v2947, %v2964
        %v2966 = vmul.f32 %v2948, %v2964
        %v2967 = vmul.f32 %v2949, %v2964
        %v2968 = vmul.f32 %v2950, %v2964
        %v2969 = vmul.f32 %v2951, %v2964
        %v2970 = vmul.f32 %v2952, %v2964
        %v2971 = vmul.f32 %v2953, %v2964
        %v2972 = vmul.f32 %v2954, %v2964
        %v2973 = vmul.f32 %v2955, %v2964
        %v2974 = vmul.f32 %v2956, %v2964
        %v2975 = vmul.f32 %v2957, %v2964
        %v2976 = vmul.f32 %v2958, %v2964
        %v2977 = vmul.f32 %v2959, %v2964
        %v2978 = vmul.f32 %v2960, %v2964
        %v2979 = vmul.f32 %v2961, %v2964
        %v2980 = vmul.f32 %v2962, %v2964
        %v2981 = vmul.f32 %v2965, %v322
        %v2982 = vmul.f32 %v2966, %v327
        %v2983 = vmul.f32 %v2967, %v332
        %v2984 = vmul.f32 %v2968, %v337
        %v2985 = vmul.f32 %v2969, %v342
        %v2986 = vmul.f32 %v2970, %v347
        %v2987 = vmul.f32 %v2971, %v352
        %v2988 = vmul.f32 %v2972, %v357
        %v2989 = vmul.f32 %v2973, %v362
        %v2990 = vmul.f32 %v2974, %v367
        %v2991 = vmul.f32 %v2975, %v372
        %v2992 = vmul.f32 %v2976, %v377
        %v2993 = vmul.f32 %v2977, %v382
        %v2994 = vmul.f32 %v2978, %v387
        %v2995 = vmul.f32 %v2979, %v392
        %v2996 = vmul.f32 %v2980, %v397
        %v2997 = vadd.f32 %v2981, %v418
        %v2998 = vadd.f32 %v2982, %v423
        %v2999 = vadd.f32 %v2983, %v428
        %v3000 = vadd.f32 %v2984, %v433
        %v3001 = vadd.f32 %v2985, %v438
        %v3002 = vadd.f32 %v2986, %v443
        %v3003 = vadd.f32 %v2987, %v448
        %v3004 = vadd.f32 %v2988, %v453
        %v3005 = vadd.f32 %v2989, %v458
        %v3006 = vadd.f32 %v2990, %v463
        %v3007 = vadd.f32 %v2991, %v468
        %v3008 = vadd.f32 %v2992, %v473
        %v3009 = vadd.f32 %v2993, %v478
        %v3010 = vadd.f32 %v2994, %v483
        %v3011 = vadd.f32 %v2995, %v488
        %v3012 = vadd.f32 %v2996, %v493
        %v3013 = vmax.f32 %v2997, 0.0
        %v3014 = vmax.f32 %v2998, 0.0
        %v3015 = vmax.f32 %v2999, 0.0
        %v3016 = vmax.f32 %v3000, 0.0
        %v3017 = vmax.f32 %v3001, 0.0
        %v3018 = vmax.f32 %v3002, 0.0
        %v3019 = vmax.f32 %v3003, 0.0
        %v3020 = vmax.f32 %v3004, 0.0
        %v3021 = vmax.f32 %v3005, 0.0
        %v3022 = vmax.f32 %v3006, 0.0
        %v3023 = vmax.f32 %v3007, 0.0
        %v3024 = vmax.f32 %v3008, 0.0
        %v3025 = vmax.f32 %v3009, 0.0
        %v3026 = vmax.f32 %v3010, 0.0
        %v3027 = vmax.f32 %v3011, 0.0
        %v3028 = vmax.f32 %v3012, 0.0
        %v3029 = vpack.c.bf16 %v3014, %v3013
        %v3030 = vpack.c.bf16 %v3016, %v3015
        %v3031 = vpack.c.bf16 %v3018, %v3017
        %v3032 = vpack.c.bf16 %v3020, %v3019
        %v3033 = vpack.c.bf16 %v3022, %v3021
        %v3034 = vpack.c.bf16 %v3024, %v3023
        %v3035 = vpack.c.bf16 %v3026, %v3025
        %v3036 = vpack.c.bf16 %v3028, %v3027
        %3045 = vrot.lane.b32.xlu0 %v3029, 1
        %v3046 = vpop.permute.xlu0 %3045
        %3047 = vrot.lane.b32.xlu0 %v3030, 1
        %v3048 = vpop.permute.xlu0 %3047
        %3049 = vrot.lane.b32.xlu0 %v3031, 1
        %v3050 = vpop.permute.xlu0 %3049
        %3051 = vrot.lane.b32.xlu0 %v3032, 1
        %v3052 = vpop.permute.xlu0 %3051
        %3053 = vrot.lane.b32.xlu0 %v3033, 1
        %v3054 = vpop.permute.xlu0 %3053
        %3055 = vrot.lane.b32.xlu0 %v3034, 1
        %v3056 = vpop.permute.xlu0 %3055
        %3057 = vrot.lane.b32.xlu0 %v3035, 1
        %v3058 = vpop.permute.xlu0 %3057
        %3059 = vrot.lane.b32.xlu0 %v3036, 1
        %v3060 = vpop.permute.xlu0 %3059
        %v3077 = vsel %vm974, %v3046, 0
        %v3078 = vsel %vm974, %v3048, 0
        %v3079 = vsel %vm974, %v3050, 0
        %v3080 = vsel %vm974, %v3052, 0
        %v3081 = vsel %vm974, %v3054, 0
        %v3082 = vsel %vm974, %v3056, 0
        %v3083 = vsel %vm974, %v3058, 0
        %v3084 = vsel %vm974, %v3060, 0
        %3085 = vrot.lane.b32.xlu0 %v3029, 127
        %v3086 = vpop.permute.xlu0 %3085
        %3087 = vrot.lane.b32.xlu0 %v3030, 127
        %v3088 = vpop.permute.xlu0 %3087
        %3089 = vrot.lane.b32.xlu0 %v3031, 127
        %v3090 = vpop.permute.xlu0 %3089
        %3091 = vrot.lane.b32.xlu0 %v3032, 127
        %v3092 = vpop.permute.xlu0 %3091
        %3093 = vrot.lane.b32.xlu0 %v3033, 127
        %v3094 = vpop.permute.xlu0 %3093
        %3095 = vrot.lane.b32.xlu0 %v3034, 127
        %v3096 = vpop.permute.xlu0 %3095
        %3097 = vrot.lane.b32.xlu0 %v3035, 127
        %v3098 = vpop.permute.xlu0 %3097
        %3099 = vrot.lane.b32.xlu0 %v3036, 127
        %v3100 = vpop.permute.xlu0 %3099
        %v3117 = vsel %vm1021, %v3086, 0
        %v3118 = vsel %vm1021, %v3088, 0
        %v3119 = vsel %vm1021, %v3090, 0
        %v3120 = vsel %vm1021, %v3092, 0
        %v3121 = vsel %vm1021, %v3094, 0
        %v3122 = vsel %vm1021, %v3096, 0
        %v3123 = vsel %vm1021, %v3098, 0
        %v3124 = vsel %vm1021, %v3100, 0
        %3125 = vmatprep.subr.bf16.mxu0 0
        %3126 = vmatpush1.bf16.msra.mxu0 %v3084
        %3127 = vmatprep.subr.bf16.mxu0 0
        %3128 = vmatpush1.bf16.msra.mxu0 %v3083
        %3129 = vmatprep.subr.bf16.mxu0 0
        %3130 = vmatpush1.bf16.msra.mxu0 %v3082
        %3131 = vmatprep.subr.bf16.mxu0 0
        %3132 = vmatpush1.bf16.msra.mxu0 %v3081
        %3133 = vmatprep.subr.bf16.mxu0 0
        %3134 = vmatpush1.bf16.msra.mxu0 %v3080
        %3135 = vmatprep.subr.bf16.mxu0 0
        %3136 = vmatpush1.bf16.msra.mxu0 %v3079
        %3137 = vmatprep.subr.bf16.mxu0 0
        %3138 = vmatpush1.bf16.msra.mxu0 %v3078
        %3139 = vmatprep.subr.bf16.mxu0 0
        %3140 = vmatpush1.bf16.msra.mxu0 %v3077
        %3141 = vmatprep.subr.bf16.mxu0 0
        %3142 = vmatpush2.bf16.msra.mxu0 %v3036
        %3143 = vmatprep.subr.bf16.mxu0 0
        %3144 = vmatpush2.bf16.msra.mxu0 %v3035
        %3145 = vmatprep.subr.bf16.mxu0 0
        %3146 = vmatpush2.bf16.msra.mxu0 %v3034
        %3147 = vmatprep.subr.bf16.mxu0 0
        %3148 = vmatpush2.bf16.msra.mxu0 %v3033
        %3149 = vmatprep.subr.bf16.mxu0 0
        %3150 = vmatpush2.bf16.msra.mxu0 %v3032
        %3151 = vmatprep.subr.bf16.mxu0 0
        %3152 = vmatpush2.bf16.msra.mxu0 %v3031
        %3153 = vmatprep.subr.bf16.mxu0 0
        %3154 = vmatpush2.bf16.msra.mxu0 %v3030
        %3155 = vmatprep.subr.bf16.mxu0 0
        %3156 = vmatpush2.bf16.msra.mxu0 %v3029
        %3157 = vmatprep.mubr.bf16.mxu0 %v1111
        %3158 = vmatmul.mubr.bf16.gmra.mxu0 %v1110
        %v3159 = vpop.f32.mrf.mxu0
        %v3160 = vadd.f32 0.0, %v3159
        %v3161 = vpop.f32.mrf.mxu0
        %v3162 = vpop.f32.mrf.mxu0
        %v3163 = vadd.f32 0.0, %v3162
        %v3164 = vpop.f32.mrf.mxu0
        %3165 = vmatprep.mubr.bf16.mxu0 %v1114
        %3166 = vmatmul.mubr.bf16.gmra.mxu0 %v1113
        %v3167 = vpop.f32.mrf.mxu0
        %v3168 = vadd.f32 0.0, %v3167
        %v3169 = vpop.f32.mrf.mxu0
        %v3170 = vpop.f32.mrf.mxu0
        %v3171 = vadd.f32 0.0, %v3170
        %v3172 = vpop.f32.mrf.mxu0
        %3173 = vmatprep.mubr.bf16.mxu0 %v1117
        %3174 = vmatmul.mubr.bf16.gmra.mxu0 %v1116
        %v3175 = vpop.f32.mrf.mxu0
        %v3176 = vadd.f32 0.0, %v3175
        %v3177 = vpop.f32.mrf.mxu0
        %v3178 = vpop.f32.mrf.mxu0
        %v3179 = vadd.f32 0.0, %v3178
        %v3180 = vpop.f32.mrf.mxu0
        %3181 = vmatprep.mubr.bf16.mxu0 %v1120
        %3182 = vmatmul.mubr.bf16.gmra.mxu0 %v1119
        %v3183 = vpop.f32.mrf.mxu0
        %v3184 = vadd.f32 0.0, %v3183
        %v3185 = vpop.f32.mrf.mxu0
        %v3186 = vpop.f32.mrf.mxu0
        %v3187 = vadd.f32 0.0, %v3186
        %v3188 = vpop.f32.mrf.mxu0
        %3189 = vmatprep.mubr.bf16.mxu0 %v1123
        %3190 = vmatmul.mubr.bf16.gmra.mxu0 %v1122
        %v3191 = vpop.f32.mrf.mxu0
        %v3192 = vadd.f32 0.0, %v3191
        %v3193 = vpop.f32.mrf.mxu0
        %v3194 = vpop.f32.mrf.mxu0
        %v3195 = vadd.f32 0.0, %v3194
        %v3196 = vpop.f32.mrf.mxu0
        %3197 = vmatprep.mubr.bf16.mxu0 %v1126
        %3198 = vmatmul.mubr.bf16.gmra.mxu0 %v1125
        %v3199 = vpop.f32.mrf.mxu0
        %v3200 = vadd.f32 0.0, %v3199
        %v3201 = vpop.f32.mrf.mxu0
        %v3202 = vpop.f32.mrf.mxu0
        %v3203 = vadd.f32 0.0, %v3202
        %v3204 = vpop.f32.mrf.mxu0
        %3205 = vmatprep.mubr.bf16.mxu0 %v1129
        %3206 = vmatmul.mubr.bf16.gmra.mxu0 %v1128
        %v3207 = vpop.f32.mrf.mxu0
        %v3208 = vadd.f32 0.0, %v3207
        %v3209 = vpop.f32.mrf.mxu0
        %v3210 = vpop.f32.mrf.mxu0
        %v3211 = vadd.f32 0.0, %v3210
        %v3212 = vpop.f32.mrf.mxu0
        %3213 = vmatprep.mubr.bf16.mxu0 %v1132
        %3214 = vmatmul.mubr.bf16.gmra.mxu0 %v1131
        %v3215 = vpop.f32.mrf.mxu0
        %v3216 = vadd.f32 0.0, %v3215
        %v3217 = vpop.f32.mrf.mxu0
        %v3218 = vpop.f32.mrf.mxu0
        %v3219 = vadd.f32 0.0, %v3218
        %v3220 = vpop.f32.mrf.mxu0
        %3221 = vdwg.mxu0
        %3222 = vmatprep.subr.bf16.mxu0 0
        %3223 = vmatpush1.bf16.msra.mxu0 %v3124
        %3224 = vmatprep.subr.bf16.mxu0 0
        %3225 = vmatpush1.bf16.msra.mxu0 %v3123
        %3226 = vmatprep.subr.bf16.mxu0 0
        %3227 = vmatpush1.bf16.msra.mxu0 %v3122
        %3228 = vmatprep.subr.bf16.mxu0 0
        %3229 = vmatpush1.bf16.msra.mxu0 %v3121
        %3230 = vmatprep.subr.bf16.mxu0 0
        %3231 = vmatpush1.bf16.msra.mxu0 %v3120
        %3232 = vmatprep.subr.bf16.mxu0 0
        %3233 = vmatpush1.bf16.msra.mxu0 %v3119
        %3234 = vmatprep.subr.bf16.mxu0 0
        %3235 = vmatpush1.bf16.msra.mxu0 %v3118
        %3236 = vmatprep.subr.bf16.mxu0 0
        %3237 = vmatpush1.bf16.msra.mxu0 %v3117
        %3238 = vmatprep.subr.bf16.mxu0 0
        %3239 = vmatpush2.bf16.msra.mxu0 0
        %3240 = vmatprep.subr.bf16.mxu0 0
        %3241 = vmatpush2.bf16.msra.mxu0 0
        %3242 = vmatprep.subr.bf16.mxu0 0
        %3243 = vmatpush2.bf16.msra.mxu0 0
        %3244 = vmatprep.subr.bf16.mxu0 0
        %3245 = vmatpush2.bf16.msra.mxu0 0
        %3246 = vmatprep.subr.bf16.mxu0 0
        %3247 = vmatpush2.bf16.msra.mxu0 0
        %3248 = vmatprep.subr.bf16.mxu0 0
        %3249 = vmatpush2.bf16.msra.mxu0 0
        %3250 = vmatprep.subr.bf16.mxu0 0
        %3251 = vmatpush2.bf16.msra.mxu0 0
        %3252 = vmatprep.subr.bf16.mxu0 0
        %3253 = vmatpush2.bf16.msra.mxu0 0
        %3254 = vmatprep.mubr.bf16.mxu0 0
        %3255 = vmatmul.mubr.bf16.gmra.mxu0 %v1112
        %v3256 = vpop.f32.mrf.mxu0
        %v3257 = vadd.f32 %v3160, %v3256
        %v3258 = vpop.f32.mrf.mxu0
        %v3259 = vpop.f32.mrf.mxu0
        %v3260 = vadd.f32 %v3163, %v3259
        %v3261 = vpop.f32.mrf.mxu0
        %3262 = vmatprep.mubr.bf16.mxu0 0
        %3263 = vmatmul.mubr.bf16.gmra.mxu0 %v1115
        %v3264 = vpop.f32.mrf.mxu0
        %v3265 = vadd.f32 %v3168, %v3264
        %v3266 = vpop.f32.mrf.mxu0
        %v3267 = vpop.f32.mrf.mxu0
        %v3268 = vadd.f32 %v3171, %v3267
        %v3269 = vpop.f32.mrf.mxu0
        %3270 = vmatprep.mubr.bf16.mxu0 0
        %3271 = vmatmul.mubr.bf16.gmra.mxu0 %v1118
        %v3272 = vpop.f32.mrf.mxu0
        %v3273 = vadd.f32 %v3176, %v3272
        %v3274 = vpop.f32.mrf.mxu0
        %v3275 = vpop.f32.mrf.mxu0
        %v3276 = vadd.f32 %v3179, %v3275
        %v3277 = vpop.f32.mrf.mxu0
        %3278 = vmatprep.mubr.bf16.mxu0 0
        %3279 = vmatmul.mubr.bf16.gmra.mxu0 %v1121
        %v3280 = vpop.f32.mrf.mxu0
        %v3281 = vadd.f32 %v3184, %v3280
        %v3282 = vpop.f32.mrf.mxu0
        %v3283 = vpop.f32.mrf.mxu0
        %v3284 = vadd.f32 %v3187, %v3283
        %v3285 = vpop.f32.mrf.mxu0
        %3286 = vmatprep.mubr.bf16.mxu0 0
        %3287 = vmatmul.mubr.bf16.gmra.mxu0 %v1124
        %v3288 = vpop.f32.mrf.mxu0
        %v3289 = vadd.f32 %v3192, %v3288
        %v3290 = vpop.f32.mrf.mxu0
        %v3291 = vpop.f32.mrf.mxu0
        %v3292 = vadd.f32 %v3195, %v3291
        %v3293 = vpop.f32.mrf.mxu0
        %3294 = vmatprep.mubr.bf16.mxu0 0
        %3295 = vmatmul.mubr.bf16.gmra.mxu0 %v1127
        %v3296 = vpop.f32.mrf.mxu0
        %v3297 = vadd.f32 %v3200, %v3296
        %v3298 = vpop.f32.mrf.mxu0
        %v3299 = vpop.f32.mrf.mxu0
        %v3300 = vadd.f32 %v3203, %v3299
        %v3301 = vpop.f32.mrf.mxu0
        %3302 = vmatprep.mubr.bf16.mxu0 0
        %3303 = vmatmul.mubr.bf16.gmra.mxu0 %v1130
        %v3304 = vpop.f32.mrf.mxu0
        %v3305 = vadd.f32 %v3208, %v3304
        %v3306 = vpop.f32.mrf.mxu0
        %v3307 = vpop.f32.mrf.mxu0
        %v3308 = vadd.f32 %v3211, %v3307
        %v3309 = vpop.f32.mrf.mxu0
        %3310 = vmatprep.mubr.bf16.mxu0 0
        %3311 = vmatmul.mubr.bf16.gmra.mxu0 %v1133
        %v3312 = vpop.f32.mrf.mxu0
        %v3313 = vadd.f32 %v3216, %v3312
        %v3314 = vpop.f32.mrf.mxu0
        %v3315 = vpop.f32.mrf.mxu0
        %v3316 = vadd.f32 %v3219, %v3315
        %v3317 = vpop.f32.mrf.mxu0
        %3318 = vdwg.mxu0
        %v3319 = vadd.f32 %v3257, %v3260
        %v3320 = vadd.f32 %v3319, %v3265
        %v3321 = vadd.f32 %v3320, %v3268
        %v3322 = vadd.f32 %v3321, %v3273
        %v3323 = vadd.f32 %v3322, %v3276
        %v3324 = vadd.f32 %v3323, %v3281
        %v3325 = vadd.f32 %v3324, %v3284
        %v3326 = vadd.f32 %v3325, %v3289
        %v3327 = vadd.f32 %v3326, %v3292
        %v3328 = vadd.f32 %v3327, %v3297
        %v3329 = vadd.f32 %v3328, %v3300
        %v3330 = vadd.f32 %v3329, %v3305
        %v3331 = vadd.f32 %v3330, %v3308
        %v3332 = vadd.f32 %v3331, %v3313
        %v3333 = vadd.f32 %v3332, %v3316
        %v3334 = vrot.slane %v3333, 4
        %v3335 = vadd.f32 %v3333, %v3334
        %v3336 = vrot.slane %v3335, 2
        %v3337 = vadd.f32 %v3335, %v3336
        %v3338 = vrot.slane %v3337, 1
        %v3339 = vadd.f32 %v3337, %v3338
        %v3340 = vmul.f32 %v3339, 0.0078125
        %v3341 = vmul.f32 %v3257, %v3257
        %v3342 = vmul.f32 %v3260, %v3260
        %v3343 = vmul.f32 %v3265, %v3265
        %v3344 = vmul.f32 %v3268, %v3268
        %v3345 = vmul.f32 %v3273, %v3273
        %v3346 = vmul.f32 %v3276, %v3276
        %v3347 = vmul.f32 %v3281, %v3281
        %v3348 = vmul.f32 %v3284, %v3284
        %v3349 = vmul.f32 %v3289, %v3289
        %v3350 = vmul.f32 %v3292, %v3292
        %v3351 = vmul.f32 %v3297, %v3297
        %v3352 = vmul.f32 %v3300, %v3300
        %v3353 = vmul.f32 %v3305, %v3305
        %v3354 = vmul.f32 %v3308, %v3308
        %v3355 = vmul.f32 %v3313, %v3313
        %v3356 = vmul.f32 %v3316, %v3316
        %v3357 = vadd.f32 %v3341, %v3342
        %v3358 = vadd.f32 %v3357, %v3343
        %v3359 = vadd.f32 %v3358, %v3344
        %v3360 = vadd.f32 %v3359, %v3345
        %v3361 = vadd.f32 %v3360, %v3346
        %v3362 = vadd.f32 %v3361, %v3347
        %v3363 = vadd.f32 %v3362, %v3348
        %v3364 = vadd.f32 %v3363, %v3349
        %v3365 = vadd.f32 %v3364, %v3350
        %v3366 = vadd.f32 %v3365, %v3351
        %v3367 = vadd.f32 %v3366, %v3352
        %v3368 = vadd.f32 %v3367, %v3353
        %v3369 = vadd.f32 %v3368, %v3354
        %v3370 = vadd.f32 %v3369, %v3355
        %v3371 = vadd.f32 %v3370, %v3356
        %v3372 = vrot.slane %v3371, 4
        %v3373 = vadd.f32 %v3371, %v3372
        %v3374 = vrot.slane %v3373, 2
        %v3375 = vadd.f32 %v3373, %v3374
        %v3376 = vrot.slane %v3375, 1
        %v3377 = vadd.f32 %v3375, %v3376
        %v3378 = vmul.f32 %v3377, 0.0078125
        %v3379 = vmul.f32 %v3340, %v3340
        %v3380 = vsub.f32 %v3378, %v3379
        %v3381 = vmax.f32 %v3380, 0.0
        %v3382 = vsub.f32 %v3257, %v3340
        %v3383 = vsub.f32 %v3260, %v3340
        %v3384 = vsub.f32 %v3265, %v3340
        %v3385 = vsub.f32 %v3268, %v3340
        %v3386 = vsub.f32 %v3273, %v3340
        %v3387 = vsub.f32 %v3276, %v3340
        %v3388 = vsub.f32 %v3281, %v3340
        %v3389 = vsub.f32 %v3284, %v3340
        %v3390 = vsub.f32 %v3289, %v3340
        %v3391 = vsub.f32 %v3292, %v3340
        %v3392 = vsub.f32 %v3297, %v3340
        %v3393 = vsub.f32 %v3300, %v3340
        %v3394 = vsub.f32 %v3305, %v3340
        %v3395 = vsub.f32 %v3308, %v3340
        %v3396 = vsub.f32 %v3313, %v3340
        %v3397 = vsub.f32 %v3316, %v3340
        %v3398 = vadd.f32 %v3381, 1e-05
        %v3399 = vrsqrt.pop %v3398
        %v3400 = vmul.f32 %v3382, %v3399
        %v3401 = vmul.f32 %v3383, %v3399
        %v3402 = vmul.f32 %v3384, %v3399
        %v3403 = vmul.f32 %v3385, %v3399
        %v3404 = vmul.f32 %v3386, %v3399
        %v3405 = vmul.f32 %v3387, %v3399
        %v3406 = vmul.f32 %v3388, %v3399
        %v3407 = vmul.f32 %v3389, %v3399
        %v3408 = vmul.f32 %v3390, %v3399
        %v3409 = vmul.f32 %v3391, %v3399
        %v3410 = vmul.f32 %v3392, %v3399
        %v3411 = vmul.f32 %v3393, %v3399
        %v3412 = vmul.f32 %v3394, %v3399
        %v3413 = vmul.f32 %v3395, %v3399
        %v3414 = vmul.f32 %v3396, %v3399
        %v3415 = vmul.f32 %v3397, %v3399
        %v3416 = vmul.f32 %v3400, %v514
        %v3417 = vmul.f32 %v3401, %v519
        %v3418 = vmul.f32 %v3402, %v524
        %v3419 = vmul.f32 %v3403, %v529
        %v3420 = vmul.f32 %v3404, %v534
        %v3421 = vmul.f32 %v3405, %v539
        %v3422 = vmul.f32 %v3406, %v544
        %v3423 = vmul.f32 %v3407, %v549
        %v3424 = vmul.f32 %v3408, %v554
        %v3425 = vmul.f32 %v3409, %v559
        %v3426 = vmul.f32 %v3410, %v564
        %v3427 = vmul.f32 %v3411, %v569
        %v3428 = vmul.f32 %v3412, %v574
        %v3429 = vmul.f32 %v3413, %v579
        %v3430 = vmul.f32 %v3414, %v584
        %v3431 = vmul.f32 %v3415, %v589
        %v3432 = vadd.f32 %v3416, %v610
        %v3433 = vadd.f32 %v3417, %v615
        %v3434 = vadd.f32 %v3418, %v620
        %v3435 = vadd.f32 %v3419, %v625
        %v3436 = vadd.f32 %v3420, %v630
        %v3437 = vadd.f32 %v3421, %v635
        %v3438 = vadd.f32 %v3422, %v640
        %v3439 = vadd.f32 %v3423, %v645
        %v3440 = vadd.f32 %v3424, %v650
        %v3441 = vadd.f32 %v3425, %v655
        %v3442 = vadd.f32 %v3426, %v660
        %v3443 = vadd.f32 %v3427, %v665
        %v3444 = vadd.f32 %v3428, %v670
        %v3445 = vadd.f32 %v3429, %v675
        %v3446 = vadd.f32 %v3430, %v680
        %v3447 = vadd.f32 %v3431, %v685
        %v3448 = vmax.f32 %v3432, 0.0
        %v3449 = vmax.f32 %v3433, 0.0
        %v3450 = vmax.f32 %v3434, 0.0
        %v3451 = vmax.f32 %v3435, 0.0
        %v3452 = vmax.f32 %v3436, 0.0
        %v3453 = vmax.f32 %v3437, 0.0
        %v3454 = vmax.f32 %v3438, 0.0
        %v3455 = vmax.f32 %v3439, 0.0
        %v3456 = vmax.f32 %v3440, 0.0
        %v3457 = vmax.f32 %v3441, 0.0
        %v3458 = vmax.f32 %v3442, 0.0
        %v3459 = vmax.f32 %v3443, 0.0
        %v3460 = vmax.f32 %v3444, 0.0
        %v3461 = vmax.f32 %v3445, 0.0
        %v3462 = vmax.f32 %v3446, 0.0
        %v3463 = vmax.f32 %v3447, 0.0
        %v3464 = vpack.c.bf16 %v3449, %v3448
        %v3465 = vpack.c.bf16 %v3451, %v3450
        %v3466 = vpack.c.bf16 %v3453, %v3452
        %v3467 = vpack.c.bf16 %v3455, %v3454
        %v3468 = vpack.c.bf16 %v3457, %v3456
        %v3469 = vpack.c.bf16 %v3459, %v3458
        %v3470 = vpack.c.bf16 %v3461, %v3460
        %v3471 = vpack.c.bf16 %v3463, %v3462
        %3480 = vrot.lane.b32.xlu0 %v3464, 1
        %v3481 = vpop.permute.xlu0 %3480
        %3482 = vrot.lane.b32.xlu0 %v3465, 1
        %v3483 = vpop.permute.xlu0 %3482
        %3484 = vrot.lane.b32.xlu0 %v3466, 1
        %v3485 = vpop.permute.xlu0 %3484
        %3486 = vrot.lane.b32.xlu0 %v3467, 1
        %v3487 = vpop.permute.xlu0 %3486
        %3488 = vrot.lane.b32.xlu0 %v3468, 1
        %v3489 = vpop.permute.xlu0 %3488
        %3490 = vrot.lane.b32.xlu0 %v3469, 1
        %v3491 = vpop.permute.xlu0 %3490
        %3492 = vrot.lane.b32.xlu0 %v3470, 1
        %v3493 = vpop.permute.xlu0 %3492
        %3494 = vrot.lane.b32.xlu0 %v3471, 1
        %v3495 = vpop.permute.xlu0 %3494
        %v3512 = vsel %vm974, %v3481, 0
        %v3513 = vsel %vm974, %v3483, 0
        %v3514 = vsel %vm974, %v3485, 0
        %v3515 = vsel %vm974, %v3487, 0
        %v3516 = vsel %vm974, %v3489, 0
        %v3517 = vsel %vm974, %v3491, 0
        %v3518 = vsel %vm974, %v3493, 0
        %v3519 = vsel %vm974, %v3495, 0
        %3520 = vrot.lane.b32.xlu0 %v3464, 127
        %v3521 = vpop.permute.xlu0 %3520
        %3522 = vrot.lane.b32.xlu0 %v3465, 127
        %v3523 = vpop.permute.xlu0 %3522
        %3524 = vrot.lane.b32.xlu0 %v3466, 127
        %v3525 = vpop.permute.xlu0 %3524
        %3526 = vrot.lane.b32.xlu0 %v3467, 127
        %v3527 = vpop.permute.xlu0 %3526
        %3528 = vrot.lane.b32.xlu0 %v3468, 127
        %v3529 = vpop.permute.xlu0 %3528
        %3530 = vrot.lane.b32.xlu0 %v3469, 127
        %v3531 = vpop.permute.xlu0 %3530
        %3532 = vrot.lane.b32.xlu0 %v3470, 127
        %v3533 = vpop.permute.xlu0 %3532
        %3534 = vrot.lane.b32.xlu0 %v3471, 127
        %v3535 = vpop.permute.xlu0 %3534
        %v3552 = vsel %vm1021, %v3521, 0
        %v3553 = vsel %vm1021, %v3523, 0
        %v3554 = vsel %vm1021, %v3525, 0
        %v3555 = vsel %vm1021, %v3527, 0
        %v3556 = vsel %vm1021, %v3529, 0
        %v3557 = vsel %vm1021, %v3531, 0
        %v3558 = vsel %vm1021, %v3533, 0
        %v3559 = vsel %vm1021, %v3535, 0
        %3560 = vmatprep.subr.bf16.mxu0 0
        %3561 = vmatpush1.bf16.msra.mxu0 %v3519
        %3562 = vmatprep.subr.bf16.mxu0 0
        %3563 = vmatpush1.bf16.msra.mxu0 %v3518
        %3564 = vmatprep.subr.bf16.mxu0 0
        %3565 = vmatpush1.bf16.msra.mxu0 %v3517
        %3566 = vmatprep.subr.bf16.mxu0 0
        %3567 = vmatpush1.bf16.msra.mxu0 %v3516
        %3568 = vmatprep.subr.bf16.mxu0 0
        %3569 = vmatpush1.bf16.msra.mxu0 %v3515
        %3570 = vmatprep.subr.bf16.mxu0 0
        %3571 = vmatpush1.bf16.msra.mxu0 %v3514
        %3572 = vmatprep.subr.bf16.mxu0 0
        %3573 = vmatpush1.bf16.msra.mxu0 %v3513
        %3574 = vmatprep.subr.bf16.mxu0 0
        %3575 = vmatpush1.bf16.msra.mxu0 %v3512
        %3576 = vmatprep.subr.bf16.mxu0 0
        %3577 = vmatpush2.bf16.msra.mxu0 %v3471
        %3578 = vmatprep.subr.bf16.mxu0 0
        %3579 = vmatpush2.bf16.msra.mxu0 %v3470
        %3580 = vmatprep.subr.bf16.mxu0 0
        %3581 = vmatpush2.bf16.msra.mxu0 %v3469
        %3582 = vmatprep.subr.bf16.mxu0 0
        %3583 = vmatpush2.bf16.msra.mxu0 %v3468
        %3584 = vmatprep.subr.bf16.mxu0 0
        %3585 = vmatpush2.bf16.msra.mxu0 %v3467
        %3586 = vmatprep.subr.bf16.mxu0 0
        %3587 = vmatpush2.bf16.msra.mxu0 %v3466
        %3588 = vmatprep.subr.bf16.mxu0 0
        %3589 = vmatpush2.bf16.msra.mxu0 %v3465
        %3590 = vmatprep.subr.bf16.mxu0 0
        %3591 = vmatpush2.bf16.msra.mxu0 %v3464
        %3592 = vmatprep.mubr.bf16.mxu0 %v1674
        %3593 = vmatmul.mubr.bf16.gmra.mxu0 %v1673
        %v3594 = vpop.f32.mrf.mxu0
        %v3595 = vadd.f32 %v2868, %v3594
        %v3596 = vpop.f32.mrf.mxu0
        %v3597 = vpop.f32.mrf.mxu0
        %v3598 = vadd.f32 %v2869, %v3597
        %v3599 = vpop.f32.mrf.mxu0
        %3600 = vmatprep.mubr.bf16.mxu0 %v1677
        %3601 = vmatmul.mubr.bf16.gmra.mxu0 %v1676
        %v3602 = vpop.f32.mrf.mxu0
        %v3603 = vadd.f32 %v2870, %v3602
        %v3604 = vpop.f32.mrf.mxu0
        %v3605 = vpop.f32.mrf.mxu0
        %v3606 = vadd.f32 %v2871, %v3605
        %v3607 = vpop.f32.mrf.mxu0
        %3608 = vmatprep.mubr.bf16.mxu0 %v1680
        %3609 = vmatmul.mubr.bf16.gmra.mxu0 %v1679
        %v3610 = vpop.f32.mrf.mxu0
        %v3611 = vadd.f32 %v2872, %v3610
        %v3612 = vpop.f32.mrf.mxu0
        %v3613 = vpop.f32.mrf.mxu0
        %v3614 = vadd.f32 %v2873, %v3613
        %v3615 = vpop.f32.mrf.mxu0
        %3616 = vmatprep.mubr.bf16.mxu0 %v1683
        %3617 = vmatmul.mubr.bf16.gmra.mxu0 %v1682
        %v3618 = vpop.f32.mrf.mxu0
        %v3619 = vadd.f32 %v2874, %v3618
        %v3620 = vpop.f32.mrf.mxu0
        %v3621 = vpop.f32.mrf.mxu0
        %v3622 = vadd.f32 %v2875, %v3621
        %v3623 = vpop.f32.mrf.mxu0
        %3624 = vmatprep.mubr.bf16.mxu0 %v1686
        %3625 = vmatmul.mubr.bf16.gmra.mxu0 %v1685
        %v3626 = vpop.f32.mrf.mxu0
        %v3627 = vadd.f32 %v2876, %v3626
        %v3628 = vpop.f32.mrf.mxu0
        %v3629 = vpop.f32.mrf.mxu0
        %v3630 = vadd.f32 %v2877, %v3629
        %v3631 = vpop.f32.mrf.mxu0
        %3632 = vmatprep.mubr.bf16.mxu0 %v1689
        %3633 = vmatmul.mubr.bf16.gmra.mxu0 %v1688
        %v3634 = vpop.f32.mrf.mxu0
        %v3635 = vadd.f32 %v2878, %v3634
        %v3636 = vpop.f32.mrf.mxu0
        %v3637 = vpop.f32.mrf.mxu0
        %v3638 = vadd.f32 %v2879, %v3637
        %v3639 = vpop.f32.mrf.mxu0
        %3640 = vmatprep.mubr.bf16.mxu0 %v1692
        %3641 = vmatmul.mubr.bf16.gmra.mxu0 %v1691
        %v3642 = vpop.f32.mrf.mxu0
        %v3643 = vadd.f32 %v2880, %v3642
        %v3644 = vpop.f32.mrf.mxu0
        %v3645 = vpop.f32.mrf.mxu0
        %v3646 = vadd.f32 %v2881, %v3645
        %v3647 = vpop.f32.mrf.mxu0
        %3648 = vmatprep.mubr.bf16.mxu0 %v1695
        %3649 = vmatmul.mubr.bf16.gmra.mxu0 %v1694
        %v3650 = vpop.f32.mrf.mxu0
        %v3651 = vadd.f32 %v2882, %v3650
        %v3652 = vpop.f32.mrf.mxu0
        %v3653 = vpop.f32.mrf.mxu0
        %v3654 = vadd.f32 %v2883, %v3653
        %v3655 = vpop.f32.mrf.mxu0
        %3656 = vdwg.mxu0
        %3657 = vmatprep.subr.bf16.mxu0 0
        %3658 = vmatpush1.bf16.msra.mxu0 %v3559
        %3659 = vmatprep.subr.bf16.mxu0 0
        %3660 = vmatpush1.bf16.msra.mxu0 %v3558
        %3661 = vmatprep.subr.bf16.mxu0 0
        %3662 = vmatpush1.bf16.msra.mxu0 %v3557
        %3663 = vmatprep.subr.bf16.mxu0 0
        %3664 = vmatpush1.bf16.msra.mxu0 %v3556
        %3665 = vmatprep.subr.bf16.mxu0 0
        %3666 = vmatpush1.bf16.msra.mxu0 %v3555
        %3667 = vmatprep.subr.bf16.mxu0 0
        %3668 = vmatpush1.bf16.msra.mxu0 %v3554
        %3669 = vmatprep.subr.bf16.mxu0 0
        %3670 = vmatpush1.bf16.msra.mxu0 %v3553
        %3671 = vmatprep.subr.bf16.mxu0 0
        %3672 = vmatpush1.bf16.msra.mxu0 %v3552
        %3673 = vmatprep.subr.bf16.mxu0 0
        %3674 = vmatpush2.bf16.msra.mxu0 0
        %3675 = vmatprep.subr.bf16.mxu0 0
        %3676 = vmatpush2.bf16.msra.mxu0 0
        %3677 = vmatprep.subr.bf16.mxu0 0
        %3678 = vmatpush2.bf16.msra.mxu0 0
        %3679 = vmatprep.subr.bf16.mxu0 0
        %3680 = vmatpush2.bf16.msra.mxu0 0
        %3681 = vmatprep.subr.bf16.mxu0 0
        %3682 = vmatpush2.bf16.msra.mxu0 0
        %3683 = vmatprep.subr.bf16.mxu0 0
        %3684 = vmatpush2.bf16.msra.mxu0 0
        %3685 = vmatprep.subr.bf16.mxu0 0
        %3686 = vmatpush2.bf16.msra.mxu0 0
        %3687 = vmatprep.subr.bf16.mxu0 0
        %3688 = vmatpush2.bf16.msra.mxu0 0
        %3689 = vmatprep.mubr.bf16.mxu0 0
        %3690 = vmatmul.mubr.bf16.gmra.mxu0 %v1675
        %v3691 = vpop.f32.mrf.mxu0
        %v3692 = vadd.f32 %v3595, %v3691
        %v3693 = vpop.f32.mrf.mxu0
        %v3694 = vpop.f32.mrf.mxu0
        %v3695 = vadd.f32 %v3598, %v3694
        %v3696 = vpop.f32.mrf.mxu0
        %3697 = vmatprep.mubr.bf16.mxu0 0
        %3698 = vmatmul.mubr.bf16.gmra.mxu0 %v1678
        %v3699 = vpop.f32.mrf.mxu0
        %v3700 = vadd.f32 %v3603, %v3699
        %v3701 = vpop.f32.mrf.mxu0
        %v3702 = vpop.f32.mrf.mxu0
        %v3703 = vadd.f32 %v3606, %v3702
        %v3704 = vpop.f32.mrf.mxu0
        %3705 = vmatprep.mubr.bf16.mxu0 0
        %3706 = vmatmul.mubr.bf16.gmra.mxu0 %v1681
        %v3707 = vpop.f32.mrf.mxu0
        %v3708 = vadd.f32 %v3611, %v3707
        %v3709 = vpop.f32.mrf.mxu0
        %v3710 = vpop.f32.mrf.mxu0
        %v3711 = vadd.f32 %v3614, %v3710
        %v3712 = vpop.f32.mrf.mxu0
        %3713 = vmatprep.mubr.bf16.mxu0 0
        %3714 = vmatmul.mubr.bf16.gmra.mxu0 %v1684
        %v3715 = vpop.f32.mrf.mxu0
        %v3716 = vadd.f32 %v3619, %v3715
        %v3717 = vpop.f32.mrf.mxu0
        %v3718 = vpop.f32.mrf.mxu0
        %v3719 = vadd.f32 %v3622, %v3718
        %v3720 = vpop.f32.mrf.mxu0
        %3721 = vmatprep.mubr.bf16.mxu0 0
        %3722 = vmatmul.mubr.bf16.gmra.mxu0 %v1687
        %v3723 = vpop.f32.mrf.mxu0
        %v3724 = vadd.f32 %v3627, %v3723
        %v3725 = vpop.f32.mrf.mxu0
        %v3726 = vpop.f32.mrf.mxu0
        %v3727 = vadd.f32 %v3630, %v3726
        %v3728 = vpop.f32.mrf.mxu0
        %3729 = vmatprep.mubr.bf16.mxu0 0
        %3730 = vmatmul.mubr.bf16.gmra.mxu0 %v1690
        %v3731 = vpop.f32.mrf.mxu0
        %v3732 = vadd.f32 %v3635, %v3731
        %v3733 = vpop.f32.mrf.mxu0
        %v3734 = vpop.f32.mrf.mxu0
        %v3735 = vadd.f32 %v3638, %v3734
        %v3736 = vpop.f32.mrf.mxu0
        %3737 = vmatprep.mubr.bf16.mxu0 0
        %3738 = vmatmul.mubr.bf16.gmra.mxu0 %v1693
        %v3739 = vpop.f32.mrf.mxu0
        %v3740 = vadd.f32 %v3643, %v3739
        %v3741 = vpop.f32.mrf.mxu0
        %v3742 = vpop.f32.mrf.mxu0
        %v3743 = vadd.f32 %v3646, %v3742
        %v3744 = vpop.f32.mrf.mxu0
        %3745 = vmatprep.mubr.bf16.mxu0 0
        %3746 = vmatmul.mubr.bf16.gmra.mxu0 %v1696
        %v3747 = vpop.f32.mrf.mxu0
        %v3748 = vadd.f32 %v3651, %v3747
        %v3749 = vpop.f32.mrf.mxu0
        %v3750 = vpop.f32.mrf.mxu0
        %v3751 = vadd.f32 %v3654, %v3750
        %v3752 = vpop.f32.mrf.mxu0
        %3753 = vdwg.mxu0
        %v3754 = vmax.f32 %v3692, 0.0
        %v3755 = vmax.f32 %v3695, 0.0
        %v3756 = vmax.f32 %v3700, 0.0
        %v3757 = vmax.f32 %v3703, 0.0
        %v3758 = vmax.f32 %v3708, 0.0
        %v3759 = vmax.f32 %v3711, 0.0
        %v3760 = vmax.f32 %v3716, 0.0
        %v3761 = vmax.f32 %v3719, 0.0
        %v3762 = vmax.f32 %v3724, 0.0
        %v3763 = vmax.f32 %v3727, 0.0
        %v3764 = vmax.f32 %v3732, 0.0
        %v3765 = vmax.f32 %v3735, 0.0
        %v3766 = vmax.f32 %v3740, 0.0
        %v3767 = vmax.f32 %v3743, 0.0
        %v3768 = vmax.f32 %v3748, 0.0
        %v3769 = vmax.f32 %v3751, 0.0
        %s3770 = scalar_lea.vmem %s297, 256 [#allocation5]
        %3771 = vst [vmem:[%s3770] sm:$0xff] %v3754
        %3772 = vst [vmem:[%s3770 + $0x8] sm:$0xff] %v3755
        %3773 = vst [vmem:[%s3770 + $0x10] sm:$0xff] %v3756
        %3774 = vst [vmem:[%s3770 + $0x18] sm:$0xff] %v3757
        %3775 = vst [vmem:[%s3770 + $0x20] sm:$0xff] %v3758
        %3776 = vst [vmem:[%s3770 + $0x28] sm:$0xff] %v3759
        %3777 = vst [vmem:[%s3770 + $0x30] sm:$0xff] %v3760
        %3778 = vst [vmem:[%s3770 + $0x38] sm:$0xff] %v3761
        %3779 = vst [vmem:[%s3770 + $0x40] sm:$0xff] %v3762
        %3780 = vst [vmem:[%s3770 + $0x48] sm:$0xff] %v3763
        %3781 = vst [vmem:[%s3770 + $0x50] sm:$0xff] %v3764
        %3782 = vst [vmem:[%s3770 + $0x58] sm:$0xff] %v3765
        %3783 = vst [vmem:[%s3770 + $0x60] sm:$0xff] %v3766
        %3784 = vst [vmem:[%s3770 + $0x68] sm:$0xff] %v3767
        %3785 = vst [vmem:[%s3770 + $0x70] sm:$0xff] %v3768
        %3786 = vst [vmem:[%s3770 + $0x78] sm:$0xff] %v3769
        %s3787 = scalar_lea.vmem %s267, 384 [#allocation2]
        %v3788 = vld [vmem:[%s3787] sm:$0xff]
        %v3789 = vld [vmem:[%s3787 + $0x8] sm:$0xff]
        %v3790 = vld [vmem:[%s3787 + $0x10] sm:$0xff]
        %v3791 = vld [vmem:[%s3787 + $0x18] sm:$0xff]
        %v3792 = vld [vmem:[%s3787 + $0x20] sm:$0xff]
        %v3793 = vld [vmem:[%s3787 + $0x28] sm:$0xff]
        %v3794 = vld [vmem:[%s3787 + $0x30] sm:$0xff]
        %v3795 = vld [vmem:[%s3787 + $0x38] sm:$0xff]
        %v3796 = vld [vmem:[%s3787 + $0x40] sm:$0xff]
        %v3797 = vld [vmem:[%s3787 + $0x48] sm:$0xff]
        %v3798 = vld [vmem:[%s3787 + $0x50] sm:$0xff]
        %v3799 = vld [vmem:[%s3787 + $0x58] sm:$0xff]
        %v3800 = vld [vmem:[%s3787 + $0x60] sm:$0xff]
        %v3801 = vld [vmem:[%s3787 + $0x68] sm:$0xff]
        %v3802 = vld [vmem:[%s3787 + $0x70] sm:$0xff]
        %v3803 = vld [vmem:[%s3787 + $0x78] sm:$0xff]
        %v3804 = vadd.f32 %v3788, %v3789
        %v3805 = vadd.f32 %v3804, %v3790
        %v3806 = vadd.f32 %v3805, %v3791
        %v3807 = vadd.f32 %v3806, %v3792
        %v3808 = vadd.f32 %v3807, %v3793
        %v3809 = vadd.f32 %v3808, %v3794
        %v3810 = vadd.f32 %v3809, %v3795
        %v3811 = vadd.f32 %v3810, %v3796
        %v3812 = vadd.f32 %v3811, %v3797
        %v3813 = vadd.f32 %v3812, %v3798
        %v3814 = vadd.f32 %v3813, %v3799
        %v3815 = vadd.f32 %v3814, %v3800
        %v3816 = vadd.f32 %v3815, %v3801
        %v3817 = vadd.f32 %v3816, %v3802
        %v3818 = vadd.f32 %v3817, %v3803
        %v3819 = vrot.slane %v3818, 4
        %v3820 = vadd.f32 %v3818, %v3819
        %v3821 = vrot.slane %v3820, 2
        %v3822 = vadd.f32 %v3820, %v3821
        %v3823 = vrot.slane %v3822, 1
        %v3824 = vadd.f32 %v3822, %v3823
        %v3825 = vmul.f32 %v3824, 0.0078125
        %v3826 = vmul.f32 %v3788, %v3788
        %v3827 = vmul.f32 %v3789, %v3789
        %v3828 = vmul.f32 %v3790, %v3790
        %v3829 = vmul.f32 %v3791, %v3791
        %v3830 = vmul.f32 %v3792, %v3792
        %v3831 = vmul.f32 %v3793, %v3793
        %v3832 = vmul.f32 %v3794, %v3794
        %v3833 = vmul.f32 %v3795, %v3795
        %v3834 = vmul.f32 %v3796, %v3796
        %v3835 = vmul.f32 %v3797, %v3797
        %v3836 = vmul.f32 %v3798, %v3798
        %v3837 = vmul.f32 %v3799, %v3799
        %v3838 = vmul.f32 %v3800, %v3800
        %v3839 = vmul.f32 %v3801, %v3801
        %v3840 = vmul.f32 %v3802, %v3802
        %v3841 = vmul.f32 %v3803, %v3803
        %v3842 = vadd.f32 %v3826, %v3827
        %v3843 = vadd.f32 %v3842, %v3828
        %v3844 = vadd.f32 %v3843, %v3829
        %v3845 = vadd.f32 %v3844, %v3830
        %v3846 = vadd.f32 %v3845, %v3831
        %v3847 = vadd.f32 %v3846, %v3832
        %v3848 = vadd.f32 %v3847, %v3833
        %v3849 = vadd.f32 %v3848, %v3834
        %v3850 = vadd.f32 %v3849, %v3835
        %v3851 = vadd.f32 %v3850, %v3836
        %v3852 = vadd.f32 %v3851, %v3837
        %v3853 = vadd.f32 %v3852, %v3838
        %v3854 = vadd.f32 %v3853, %v3839
        %v3855 = vadd.f32 %v3854, %v3840
        %v3856 = vadd.f32 %v3855, %v3841
        %v3857 = vrot.slane %v3856, 4
        %v3858 = vadd.f32 %v3856, %v3857
        %v3859 = vrot.slane %v3858, 2
        %v3860 = vadd.f32 %v3858, %v3859
        %v3861 = vrot.slane %v3860, 1
        %v3862 = vadd.f32 %v3860, %v3861
        %v3863 = vmul.f32 %v3862, 0.0078125
        %v3864 = vmul.f32 %v3825, %v3825
        %v3865 = vsub.f32 %v3863, %v3864
        %v3866 = vmax.f32 %v3865, 0.0
        %v3867 = vsub.f32 %v3788, %v3825
        %v3868 = vsub.f32 %v3789, %v3825
        %v3869 = vsub.f32 %v3790, %v3825
        %v3870 = vsub.f32 %v3791, %v3825
        %v3871 = vsub.f32 %v3792, %v3825
        %v3872 = vsub.f32 %v3793, %v3825
        %v3873 = vsub.f32 %v3794, %v3825
        %v3874 = vsub.f32 %v3795, %v3825
        %v3875 = vsub.f32 %v3796, %v3825
        %v3876 = vsub.f32 %v3797, %v3825
        %v3877 = vsub.f32 %v3798, %v3825
        %v3878 = vsub.f32 %v3799, %v3825
        %v3879 = vsub.f32 %v3800, %v3825
        %v3880 = vsub.f32 %v3801, %v3825
        %v3881 = vsub.f32 %v3802, %v3825
        %v3882 = vsub.f32 %v3803, %v3825
        %v3883 = vadd.f32 %v3866, 1e-05
        %v3884 = vrsqrt.pop %v3883
        %v3885 = vmul.f32 %v3867, %v3884
        %v3886 = vmul.f32 %v3868, %v3884
        %v3887 = vmul.f32 %v3869, %v3884
        %v3888 = vmul.f32 %v3870, %v3884
        %v3889 = vmul.f32 %v3871, %v3884
        %v3890 = vmul.f32 %v3872, %v3884
        %v3891 = vmul.f32 %v3873, %v3884
        %v3892 = vmul.f32 %v3874, %v3884
        %v3893 = vmul.f32 %v3875, %v3884
        %v3894 = vmul.f32 %v3876, %v3884
        %v3895 = vmul.f32 %v3877, %v3884
        %v3896 = vmul.f32 %v3878, %v3884
        %v3897 = vmul.f32 %v3879, %v3884
        %v3898 = vmul.f32 %v3880, %v3884
        %v3899 = vmul.f32 %v3881, %v3884
        %v3900 = vmul.f32 %v3882, %v3884
        %v3901 = vmul.f32 %v3885, %v322
        %v3902 = vmul.f32 %v3886, %v327
        %v3903 = vmul.f32 %v3887, %v332
        %v3904 = vmul.f32 %v3888, %v337
        %v3905 = vmul.f32 %v3889, %v342
        %v3906 = vmul.f32 %v3890, %v347
        %v3907 = vmul.f32 %v3891, %v352
        %v3908 = vmul.f32 %v3892, %v357
        %v3909 = vmul.f32 %v3893, %v362
        %v3910 = vmul.f32 %v3894, %v367
        %v3911 = vmul.f32 %v3895, %v372
        %v3912 = vmul.f32 %v3896, %v377
        %v3913 = vmul.f32 %v3897, %v382
        %v3914 = vmul.f32 %v3898, %v387
        %v3915 = vmul.f32 %v3899, %v392
        %v3916 = vmul.f32 %v3900, %v397
        %v3917 = vadd.f32 %v3901, %v418
        %v3918 = vadd.f32 %v3902, %v423
        %v3919 = vadd.f32 %v3903, %v428
        %v3920 = vadd.f32 %v3904, %v433
        %v3921 = vadd.f32 %v3905, %v438
        %v3922 = vadd.f32 %v3906, %v443
        %v3923 = vadd.f32 %v3907, %v448
        %v3924 = vadd.f32 %v3908, %v453
        %v3925 = vadd.f32 %v3909, %v458
        %v3926 = vadd.f32 %v3910, %v463
        %v3927 = vadd.f32 %v3911, %v468
        %v3928 = vadd.f32 %v3912, %v473
        %v3929 = vadd.f32 %v3913, %v478
        %v3930 = vadd.f32 %v3914, %v483
        %v3931 = vadd.f32 %v3915, %v488
        %v3932 = vadd.f32 %v3916, %v493
        %v3933 = vmax.f32 %v3917, 0.0
        %v3934 = vmax.f32 %v3918, 0.0
        %v3935 = vmax.f32 %v3919, 0.0
        %v3936 = vmax.f32 %v3920, 0.0
        %v3937 = vmax.f32 %v3921, 0.0
        %v3938 = vmax.f32 %v3922, 0.0
        %v3939 = vmax.f32 %v3923, 0.0
        %v3940 = vmax.f32 %v3924, 0.0
        %v3941 = vmax.f32 %v3925, 0.0
        %v3942 = vmax.f32 %v3926, 0.0
        %v3943 = vmax.f32 %v3927, 0.0
        %v3944 = vmax.f32 %v3928, 0.0
        %v3945 = vmax.f32 %v3929, 0.0
        %v3946 = vmax.f32 %v3930, 0.0
        %v3947 = vmax.f32 %v3931, 0.0
        %v3948 = vmax.f32 %v3932, 0.0
        %v3949 = vpack.c.bf16 %v3934, %v3933
        %v3950 = vpack.c.bf16 %v3936, %v3935
        %v3951 = vpack.c.bf16 %v3938, %v3937
        %v3952 = vpack.c.bf16 %v3940, %v3939
        %v3953 = vpack.c.bf16 %v3942, %v3941
        %v3954 = vpack.c.bf16 %v3944, %v3943
        %v3955 = vpack.c.bf16 %v3946, %v3945
        %v3956 = vpack.c.bf16 %v3948, %v3947
        %3965 = vrot.lane.b32.xlu0 %v3949, 1
        %v3966 = vpop.permute.xlu0 %3965
        %3967 = vrot.lane.b32.xlu0 %v3950, 1
        %v3968 = vpop.permute.xlu0 %3967
        %3969 = vrot.lane.b32.xlu0 %v3951, 1
        %v3970 = vpop.permute.xlu0 %3969
        %3971 = vrot.lane.b32.xlu0 %v3952, 1
        %v3972 = vpop.permute.xlu0 %3971
        %3973 = vrot.lane.b32.xlu0 %v3953, 1
        %v3974 = vpop.permute.xlu0 %3973
        %3975 = vrot.lane.b32.xlu0 %v3954, 1
        %v3976 = vpop.permute.xlu0 %3975
        %3977 = vrot.lane.b32.xlu0 %v3955, 1
        %v3978 = vpop.permute.xlu0 %3977
        %3979 = vrot.lane.b32.xlu0 %v3956, 1
        %v3980 = vpop.permute.xlu0 %3979
        %v3997 = vsel %vm974, %v3966, 0
        %v3998 = vsel %vm974, %v3968, 0
        %v3999 = vsel %vm974, %v3970, 0
        %v4000 = vsel %vm974, %v3972, 0
        %v4001 = vsel %vm974, %v3974, 0
        %v4002 = vsel %vm974, %v3976, 0
        %v4003 = vsel %vm974, %v3978, 0
        %v4004 = vsel %vm974, %v3980, 0
        %4005 = vrot.lane.b32.xlu0 %v3949, 127
        %v4006 = vpop.permute.xlu0 %4005
        %4007 = vrot.lane.b32.xlu0 %v3950, 127
        %v4008 = vpop.permute.xlu0 %4007
        %4009 = vrot.lane.b32.xlu0 %v3951, 127
        %v4010 = vpop.permute.xlu0 %4009
        %4011 = vrot.lane.b32.xlu0 %v3952, 127
        %v4012 = vpop.permute.xlu0 %4011
        %4013 = vrot.lane.b32.xlu0 %v3953, 127
        %v4014 = vpop.permute.xlu0 %4013
        %4015 = vrot.lane.b32.xlu0 %v3954, 127
        %v4016 = vpop.permute.xlu0 %4015
        %4017 = vrot.lane.b32.xlu0 %v3955, 127
        %v4018 = vpop.permute.xlu0 %4017
        %4019 = vrot.lane.b32.xlu0 %v3956, 127
        %v4020 = vpop.permute.xlu0 %4019
        %v4037 = vsel %vm1021, %v4006, 0
        %v4038 = vsel %vm1021, %v4008, 0
        %v4039 = vsel %vm1021, %v4010, 0
        %v4040 = vsel %vm1021, %v4012, 0
        %v4041 = vsel %vm1021, %v4014, 0
        %v4042 = vsel %vm1021, %v4016, 0
        %v4043 = vsel %vm1021, %v4018, 0
        %v4044 = vsel %vm1021, %v4020, 0
        %4045 = vmatprep.subr.bf16.mxu0 0
        %4046 = vmatpush1.bf16.msra.mxu0 %v4004
        %4047 = vmatprep.subr.bf16.mxu0 0
        %4048 = vmatpush1.bf16.msra.mxu0 %v4003
        %4049 = vmatprep.subr.bf16.mxu0 0
        %4050 = vmatpush1.bf16.msra.mxu0 %v4002
        %4051 = vmatprep.subr.bf16.mxu0 0
        %4052 = vmatpush1.bf16.msra.mxu0 %v4001
        %4053 = vmatprep.subr.bf16.mxu0 0
        %4054 = vmatpush1.bf16.msra.mxu0 %v4000
        %4055 = vmatprep.subr.bf16.mxu0 0
        %4056 = vmatpush1.bf16.msra.mxu0 %v3999
        %4057 = vmatprep.subr.bf16.mxu0 0
        %4058 = vmatpush1.bf16.msra.mxu0 %v3998
        %4059 = vmatprep.subr.bf16.mxu0 0
        %4060 = vmatpush1.bf16.msra.mxu0 %v3997
        %4061 = vmatprep.subr.bf16.mxu0 0
        %4062 = vmatpush2.bf16.msra.mxu0 %v3956
        %4063 = vmatprep.subr.bf16.mxu0 0
        %4064 = vmatpush2.bf16.msra.mxu0 %v3955
        %4065 = vmatprep.subr.bf16.mxu0 0
        %4066 = vmatpush2.bf16.msra.mxu0 %v3954
        %4067 = vmatprep.subr.bf16.mxu0 0
        %4068 = vmatpush2.bf16.msra.mxu0 %v3953
        %4069 = vmatprep.subr.bf16.mxu0 0
        %4070 = vmatpush2.bf16.msra.mxu0 %v3952
        %4071 = vmatprep.subr.bf16.mxu0 0
        %4072 = vmatpush2.bf16.msra.mxu0 %v3951
        %4073 = vmatprep.subr.bf16.mxu0 0
        %4074 = vmatpush2.bf16.msra.mxu0 %v3950
        %4075 = vmatprep.subr.bf16.mxu0 0
        %4076 = vmatpush2.bf16.msra.mxu0 %v3949
        %4077 = vmatprep.mubr.bf16.mxu0 %v1111
        %4078 = vmatmul.mubr.bf16.gmra.mxu0 %v1110
        %v4079 = vpop.f32.mrf.mxu0
        %v4080 = vadd.f32 0.0, %v4079
        %v4081 = vpop.f32.mrf.mxu0
        %v4082 = vpop.f32.mrf.mxu0
        %v4083 = vadd.f32 0.0, %v4082
        %v4084 = vpop.f32.mrf.mxu0
        %4085 = vmatprep.mubr.bf16.mxu0 %v1114
        %4086 = vmatmul.mubr.bf16.gmra.mxu0 %v1113
        %v4087 = vpop.f32.mrf.mxu0
        %v4088 = vadd.f32 0.0, %v4087
        %v4089 = vpop.f32.mrf.mxu0
        %v4090 = vpop.f32.mrf.mxu0
        %v4091 = vadd.f32 0.0, %v4090
        %v4092 = vpop.f32.mrf.mxu0
        %4093 = vmatprep.mubr.bf16.mxu0 %v1117
        %4094 = vmatmul.mubr.bf16.gmra.mxu0 %v1116
        %v4095 = vpop.f32.mrf.mxu0
        %v4096 = vadd.f32 0.0, %v4095
        %v4097 = vpop.f32.mrf.mxu0
        %v4098 = vpop.f32.mrf.mxu0
        %v4099 = vadd.f32 0.0, %v4098
        %v4100 = vpop.f32.mrf.mxu0
        %4101 = vmatprep.mubr.bf16.mxu0 %v1120
        %4102 = vmatmul.mubr.bf16.gmra.mxu0 %v1119
        %v4103 = vpop.f32.mrf.mxu0
        %v4104 = vadd.f32 0.0, %v4103
        %v4105 = vpop.f32.mrf.mxu0
        %v4106 = vpop.f32.mrf.mxu0
        %v4107 = vadd.f32 0.0, %v4106
        %v4108 = vpop.f32.mrf.mxu0
        %4109 = vmatprep.mubr.bf16.mxu0 %v1123
        %4110 = vmatmul.mubr.bf16.gmra.mxu0 %v1122
        %v4111 = vpop.f32.mrf.mxu0
        %v4112 = vadd.f32 0.0, %v4111
        %v4113 = vpop.f32.mrf.mxu0
        %v4114 = vpop.f32.mrf.mxu0
        %v4115 = vadd.f32 0.0, %v4114
        %v4116 = vpop.f32.mrf.mxu0
        %4117 = vmatprep.mubr.bf16.mxu0 %v1126
        %4118 = vmatmul.mubr.bf16.gmra.mxu0 %v1125
        %v4119 = vpop.f32.mrf.mxu0
        %v4120 = vadd.f32 0.0, %v4119
        %v4121 = vpop.f32.mrf.mxu0
        %v4122 = vpop.f32.mrf.mxu0
        %v4123 = vadd.f32 0.0, %v4122
        %v4124 = vpop.f32.mrf.mxu0
        %4125 = vmatprep.mubr.bf16.mxu0 %v1129
        %4126 = vmatmul.mubr.bf16.gmra.mxu0 %v1128
        %v4127 = vpop.f32.mrf.mxu0
        %v4128 = vadd.f32 0.0, %v4127
        %v4129 = vpop.f32.mrf.mxu0
        %v4130 = vpop.f32.mrf.mxu0
        %v4131 = vadd.f32 0.0, %v4130
        %v4132 = vpop.f32.mrf.mxu0
        %4133 = vmatprep.mubr.bf16.mxu0 %v1132
        %4134 = vmatmul.mubr.bf16.gmra.mxu0 %v1131
        %v4135 = vpop.f32.mrf.mxu0
        %v4136 = vadd.f32 0.0, %v4135
        %v4137 = vpop.f32.mrf.mxu0
        %v4138 = vpop.f32.mrf.mxu0
        %v4139 = vadd.f32 0.0, %v4138
        %v4140 = vpop.f32.mrf.mxu0
        %4141 = vdwg.mxu0
        %4142 = vmatprep.subr.bf16.mxu0 0
        %4143 = vmatpush1.bf16.msra.mxu0 %v4044
        %4144 = vmatprep.subr.bf16.mxu0 0
        %4145 = vmatpush1.bf16.msra.mxu0 %v4043
        %4146 = vmatprep.subr.bf16.mxu0 0
        %4147 = vmatpush1.bf16.msra.mxu0 %v4042
        %4148 = vmatprep.subr.bf16.mxu0 0
        %4149 = vmatpush1.bf16.msra.mxu0 %v4041
        %4150 = vmatprep.subr.bf16.mxu0 0
        %4151 = vmatpush1.bf16.msra.mxu0 %v4040
        %4152 = vmatprep.subr.bf16.mxu0 0
        %4153 = vmatpush1.bf16.msra.mxu0 %v4039
        %4154 = vmatprep.subr.bf16.mxu0 0
        %4155 = vmatpush1.bf16.msra.mxu0 %v4038
        %4156 = vmatprep.subr.bf16.mxu0 0
        %4157 = vmatpush1.bf16.msra.mxu0 %v4037
        %4158 = vmatprep.subr.bf16.mxu0 0
        %4159 = vmatpush2.bf16.msra.mxu0 0
        %4160 = vmatprep.subr.bf16.mxu0 0
        %4161 = vmatpush2.bf16.msra.mxu0 0
        %4162 = vmatprep.subr.bf16.mxu0 0
        %4163 = vmatpush2.bf16.msra.mxu0 0
        %4164 = vmatprep.subr.bf16.mxu0 0
        %4165 = vmatpush2.bf16.msra.mxu0 0
        %4166 = vmatprep.subr.bf16.mxu0 0
        %4167 = vmatpush2.bf16.msra.mxu0 0
        %4168 = vmatprep.subr.bf16.mxu0 0
        %4169 = vmatpush2.bf16.msra.mxu0 0
        %4170 = vmatprep.subr.bf16.mxu0 0
        %4171 = vmatpush2.bf16.msra.mxu0 0
        %4172 = vmatprep.subr.bf16.mxu0 0
        %4173 = vmatpush2.bf16.msra.mxu0 0
        %4174 = vmatprep.mubr.bf16.mxu0 0
        %4175 = vmatmul.mubr.bf16.gmra.mxu0 %v1112
        %v4176 = vpop.f32.mrf.mxu0
        %v4177 = vadd.f32 %v4080, %v4176
        %v4178 = vpop.f32.mrf.mxu0
        %v4179 = vpop.f32.mrf.mxu0
        %v4180 = vadd.f32 %v4083, %v4179
        %v4181 = vpop.f32.mrf.mxu0
        %4182 = vmatprep.mubr.bf16.mxu0 0
        %4183 = vmatmul.mubr.bf16.gmra.mxu0 %v1115
        %v4184 = vpop.f32.mrf.mxu0
        %v4185 = vadd.f32 %v4088, %v4184
        %v4186 = vpop.f32.mrf.mxu0
        %v4187 = vpop.f32.mrf.mxu0
        %v4188 = vadd.f32 %v4091, %v4187
        %v4189 = vpop.f32.mrf.mxu0
        %4190 = vmatprep.mubr.bf16.mxu0 0
        %4191 = vmatmul.mubr.bf16.gmra.mxu0 %v1118
        %v4192 = vpop.f32.mrf.mxu0
        %v4193 = vadd.f32 %v4096, %v4192
        %v4194 = vpop.f32.mrf.mxu0
        %v4195 = vpop.f32.mrf.mxu0
        %v4196 = vadd.f32 %v4099, %v4195
        %v4197 = vpop.f32.mrf.mxu0
        %4198 = vmatprep.mubr.bf16.mxu0 0
        %4199 = vmatmul.mubr.bf16.gmra.mxu0 %v1121
        %v4200 = vpop.f32.mrf.mxu0
        %v4201 = vadd.f32 %v4104, %v4200
        %v4202 = vpop.f32.mrf.mxu0
        %v4203 = vpop.f32.mrf.mxu0
        %v4204 = vadd.f32 %v4107, %v4203
        %v4205 = vpop.f32.mrf.mxu0
        %4206 = vmatprep.mubr.bf16.mxu0 0
        %4207 = vmatmul.mubr.bf16.gmra.mxu0 %v1124
        %v4208 = vpop.f32.mrf.mxu0
        %v4209 = vadd.f32 %v4112, %v4208
        %v4210 = vpop.f32.mrf.mxu0
        %v4211 = vpop.f32.mrf.mxu0
        %v4212 = vadd.f32 %v4115, %v4211
        %v4213 = vpop.f32.mrf.mxu0
        %4214 = vmatprep.mubr.bf16.mxu0 0
        %4215 = vmatmul.mubr.bf16.gmra.mxu0 %v1127
        %v4216 = vpop.f32.mrf.mxu0
        %v4217 = vadd.f32 %v4120, %v4216
        %v4218 = vpop.f32.mrf.mxu0
        %v4219 = vpop.f32.mrf.mxu0
        %v4220 = vadd.f32 %v4123, %v4219
        %v4221 = vpop.f32.mrf.mxu0
        %4222 = vmatprep.mubr.bf16.mxu0 0
        %4223 = vmatmul.mubr.bf16.gmra.mxu0 %v1130
        %v4224 = vpop.f32.mrf.mxu0
        %v4225 = vadd.f32 %v4128, %v4224
        %v4226 = vpop.f32.mrf.mxu0
        %v4227 = vpop.f32.mrf.mxu0
        %v4228 = vadd.f32 %v4131, %v4227
        %v4229 = vpop.f32.mrf.mxu0
        %4230 = vmatprep.mubr.bf16.mxu0 0
        %4231 = vmatmul.mubr.bf16.gmra.mxu0 %v1133
        %v4232 = vpop.f32.mrf.mxu0
        %v4233 = vadd.f32 %v4136, %v4232
        %v4234 = vpop.f32.mrf.mxu0
        %v4235 = vpop.f32.mrf.mxu0
        %v4236 = vadd.f32 %v4139, %v4235
        %v4237 = vpop.f32.mrf.mxu0
        %4238 = vdwg.mxu0
        %v4239 = vadd.f32 %v4177, %v4180
        %v4240 = vadd.f32 %v4239, %v4185
        %v4241 = vadd.f32 %v4240, %v4188
        %v4242 = vadd.f32 %v4241, %v4193
        %v4243 = vadd.f32 %v4242, %v4196
        %v4244 = vadd.f32 %v4243, %v4201
        %v4245 = vadd.f32 %v4244, %v4204
        %v4246 = vadd.f32 %v4245, %v4209
        %v4247 = vadd.f32 %v4246, %v4212
        %v4248 = vadd.f32 %v4247, %v4217
        %v4249 = vadd.f32 %v4248, %v4220
        %v4250 = vadd.f32 %v4249, %v4225
        %v4251 = vadd.f32 %v4250, %v4228
        %v4252 = vadd.f32 %v4251, %v4233
        %v4253 = vadd.f32 %v4252, %v4236
        %v4254 = vrot.slane %v4253, 4
        %v4255 = vadd.f32 %v4253, %v4254
        %v4256 = vrot.slane %v4255, 2
        %v4257 = vadd.f32 %v4255, %v4256
        %v4258 = vrot.slane %v4257, 1
        %v4259 = vadd.f32 %v4257, %v4258
        %v4260 = vmul.f32 %v4259, 0.0078125
        %v4261 = vmul.f32 %v4177, %v4177
        %v4262 = vmul.f32 %v4180, %v4180
        %v4263 = vmul.f32 %v4185, %v4185
        %v4264 = vmul.f32 %v4188, %v4188
        %v4265 = vmul.f32 %v4193, %v4193
        %v4266 = vmul.f32 %v4196, %v4196
        %v4267 = vmul.f32 %v4201, %v4201
        %v4268 = vmul.f32 %v4204, %v4204
        %v4269 = vmul.f32 %v4209, %v4209
        %v4270 = vmul.f32 %v4212, %v4212
        %v4271 = vmul.f32 %v4217, %v4217
        %v4272 = vmul.f32 %v4220, %v4220
        %v4273 = vmul.f32 %v4225, %v4225
        %v4274 = vmul.f32 %v4228, %v4228
        %v4275 = vmul.f32 %v4233, %v4233
        %v4276 = vmul.f32 %v4236, %v4236
        %v4277 = vadd.f32 %v4261, %v4262
        %v4278 = vadd.f32 %v4277, %v4263
        %v4279 = vadd.f32 %v4278, %v4264
        %v4280 = vadd.f32 %v4279, %v4265
        %v4281 = vadd.f32 %v4280, %v4266
        %v4282 = vadd.f32 %v4281, %v4267
        %v4283 = vadd.f32 %v4282, %v4268
        %v4284 = vadd.f32 %v4283, %v4269
        %v4285 = vadd.f32 %v4284, %v4270
        %v4286 = vadd.f32 %v4285, %v4271
        %v4287 = vadd.f32 %v4286, %v4272
        %v4288 = vadd.f32 %v4287, %v4273
        %v4289 = vadd.f32 %v4288, %v4274
        %v4290 = vadd.f32 %v4289, %v4275
        %v4291 = vadd.f32 %v4290, %v4276
        %v4292 = vrot.slane %v4291, 4
        %v4293 = vadd.f32 %v4291, %v4292
        %v4294 = vrot.slane %v4293, 2
        %v4295 = vadd.f32 %v4293, %v4294
        %v4296 = vrot.slane %v4295, 1
        %v4297 = vadd.f32 %v4295, %v4296
        %v4298 = vmul.f32 %v4297, 0.0078125
        %v4299 = vmul.f32 %v4260, %v4260
        %v4300 = vsub.f32 %v4298, %v4299
        %v4301 = vmax.f32 %v4300, 0.0
        %v4302 = vsub.f32 %v4177, %v4260
        %v4303 = vsub.f32 %v4180, %v4260
        %v4304 = vsub.f32 %v4185, %v4260
        %v4305 = vsub.f32 %v4188, %v4260
        %v4306 = vsub.f32 %v4193, %v4260
        %v4307 = vsub.f32 %v4196, %v4260
        %v4308 = vsub.f32 %v4201, %v4260
        %v4309 = vsub.f32 %v4204, %v4260
        %v4310 = vsub.f32 %v4209, %v4260
        %v4311 = vsub.f32 %v4212, %v4260
        %v4312 = vsub.f32 %v4217, %v4260
        %v4313 = vsub.f32 %v4220, %v4260
        %v4314 = vsub.f32 %v4225, %v4260
        %v4315 = vsub.f32 %v4228, %v4260
        %v4316 = vsub.f32 %v4233, %v4260
        %v4317 = vsub.f32 %v4236, %v4260
        %v4318 = vadd.f32 %v4301, 1e-05
        %v4319 = vrsqrt.pop %v4318
        %v4320 = vmul.f32 %v4302, %v4319
        %v4321 = vmul.f32 %v4303, %v4319
        %v4322 = vmul.f32 %v4304, %v4319
        %v4323 = vmul.f32 %v4305, %v4319
        %v4324 = vmul.f32 %v4306, %v4319
        %v4325 = vmul.f32 %v4307, %v4319
        %v4326 = vmul.f32 %v4308, %v4319
        %v4327 = vmul.f32 %v4309, %v4319
        %v4328 = vmul.f32 %v4310, %v4319
        %v4329 = vmul.f32 %v4311, %v4319
        %v4330 = vmul.f32 %v4312, %v4319
        %v4331 = vmul.f32 %v4313, %v4319
        %v4332 = vmul.f32 %v4314, %v4319
        %v4333 = vmul.f32 %v4315, %v4319
        %v4334 = vmul.f32 %v4316, %v4319
        %v4335 = vmul.f32 %v4317, %v4319
        %v4336 = vmul.f32 %v4320, %v514
        %v4337 = vmul.f32 %v4321, %v519
        %v4338 = vmul.f32 %v4322, %v524
        %v4339 = vmul.f32 %v4323, %v529
        %v4340 = vmul.f32 %v4324, %v534
        %v4341 = vmul.f32 %v4325, %v539
        %v4342 = vmul.f32 %v4326, %v544
        %v4343 = vmul.f32 %v4327, %v549
        %v4344 = vmul.f32 %v4328, %v554
        %v4345 = vmul.f32 %v4329, %v559
        %v4346 = vmul.f32 %v4330, %v564
        %v4347 = vmul.f32 %v4331, %v569
        %v4348 = vmul.f32 %v4332, %v574
        %v4349 = vmul.f32 %v4333, %v579
        %v4350 = vmul.f32 %v4334, %v584
        %v4351 = vmul.f32 %v4335, %v589
        %v4352 = vadd.f32 %v4336, %v610
        %v4353 = vadd.f32 %v4337, %v615
        %v4354 = vadd.f32 %v4338, %v620
        %v4355 = vadd.f32 %v4339, %v625
        %v4356 = vadd.f32 %v4340, %v630
        %v4357 = vadd.f32 %v4341, %v635
        %v4358 = vadd.f32 %v4342, %v640
        %v4359 = vadd.f32 %v4343, %v645
        %v4360 = vadd.f32 %v4344, %v650
        %v4361 = vadd.f32 %v4345, %v655
        %v4362 = vadd.f32 %v4346, %v660
        %v4363 = vadd.f32 %v4347, %v665
        %v4364 = vadd.f32 %v4348, %v670
        %v4365 = vadd.f32 %v4349, %v675
        %v4366 = vadd.f32 %v4350, %v680
        %v4367 = vadd.f32 %v4351, %v685
        %v4368 = vmax.f32 %v4352, 0.0
        %v4369 = vmax.f32 %v4353, 0.0
        %v4370 = vmax.f32 %v4354, 0.0
        %v4371 = vmax.f32 %v4355, 0.0
        %v4372 = vmax.f32 %v4356, 0.0
        %v4373 = vmax.f32 %v4357, 0.0
        %v4374 = vmax.f32 %v4358, 0.0
        %v4375 = vmax.f32 %v4359, 0.0
        %v4376 = vmax.f32 %v4360, 0.0
        %v4377 = vmax.f32 %v4361, 0.0
        %v4378 = vmax.f32 %v4362, 0.0
        %v4379 = vmax.f32 %v4363, 0.0
        %v4380 = vmax.f32 %v4364, 0.0
        %v4381 = vmax.f32 %v4365, 0.0
        %v4382 = vmax.f32 %v4366, 0.0
        %v4383 = vmax.f32 %v4367, 0.0
        %v4384 = vpack.c.bf16 %v4369, %v4368
        %v4385 = vpack.c.bf16 %v4371, %v4370
        %v4386 = vpack.c.bf16 %v4373, %v4372
        %v4387 = vpack.c.bf16 %v4375, %v4374
        %v4388 = vpack.c.bf16 %v4377, %v4376
        %v4389 = vpack.c.bf16 %v4379, %v4378
        %v4390 = vpack.c.bf16 %v4381, %v4380
        %v4391 = vpack.c.bf16 %v4383, %v4382
        %4400 = vrot.lane.b32.xlu0 %v4384, 1
        %v4401 = vpop.permute.xlu0 %4400
        %4402 = vrot.lane.b32.xlu0 %v4385, 1
        %v4403 = vpop.permute.xlu0 %4402
        %4404 = vrot.lane.b32.xlu0 %v4386, 1
        %v4405 = vpop.permute.xlu0 %4404
        %4406 = vrot.lane.b32.xlu0 %v4387, 1
        %v4407 = vpop.permute.xlu0 %4406
        %4408 = vrot.lane.b32.xlu0 %v4388, 1
        %v4409 = vpop.permute.xlu0 %4408
        %4410 = vrot.lane.b32.xlu0 %v4389, 1
        %v4411 = vpop.permute.xlu0 %4410
        %4412 = vrot.lane.b32.xlu0 %v4390, 1
        %v4413 = vpop.permute.xlu0 %4412
        %4414 = vrot.lane.b32.xlu0 %v4391, 1
        %v4415 = vpop.permute.xlu0 %4414
        %v4432 = vsel %vm974, %v4401, 0
        %v4433 = vsel %vm974, %v4403, 0
        %v4434 = vsel %vm974, %v4405, 0
        %v4435 = vsel %vm974, %v4407, 0
        %v4436 = vsel %vm974, %v4409, 0
        %v4437 = vsel %vm974, %v4411, 0
        %v4438 = vsel %vm974, %v4413, 0
        %v4439 = vsel %vm974, %v4415, 0
        %4440 = vrot.lane.b32.xlu0 %v4384, 127
        %v4441 = vpop.permute.xlu0 %4440
        %4442 = vrot.lane.b32.xlu0 %v4385, 127
        %v4443 = vpop.permute.xlu0 %4442
        %4444 = vrot.lane.b32.xlu0 %v4386, 127
        %v4445 = vpop.permute.xlu0 %4444
        %4446 = vrot.lane.b32.xlu0 %v4387, 127
        %v4447 = vpop.permute.xlu0 %4446
        %4448 = vrot.lane.b32.xlu0 %v4388, 127
        %v4449 = vpop.permute.xlu0 %4448
        %4450 = vrot.lane.b32.xlu0 %v4389, 127
        %v4451 = vpop.permute.xlu0 %4450
        %4452 = vrot.lane.b32.xlu0 %v4390, 127
        %v4453 = vpop.permute.xlu0 %4452
        %4454 = vrot.lane.b32.xlu0 %v4391, 127
        %v4455 = vpop.permute.xlu0 %4454
        %v4472 = vsel %vm1021, %v4441, 0
        %v4473 = vsel %vm1021, %v4443, 0
        %v4474 = vsel %vm1021, %v4445, 0
        %v4475 = vsel %vm1021, %v4447, 0
        %v4476 = vsel %vm1021, %v4449, 0
        %v4477 = vsel %vm1021, %v4451, 0
        %v4478 = vsel %vm1021, %v4453, 0
        %v4479 = vsel %vm1021, %v4455, 0
        %4480 = vmatprep.subr.bf16.mxu0 0
        %4481 = vmatpush1.bf16.msra.mxu0 %v4439
        %4482 = vmatprep.subr.bf16.mxu0 0
        %4483 = vmatpush1.bf16.msra.mxu0 %v4438
        %4484 = vmatprep.subr.bf16.mxu0 0
        %4485 = vmatpush1.bf16.msra.mxu0 %v4437
        %4486 = vmatprep.subr.bf16.mxu0 0
        %4487 = vmatpush1.bf16.msra.mxu0 %v4436
        %4488 = vmatprep.subr.bf16.mxu0 0
        %4489 = vmatpush1.bf16.msra.mxu0 %v4435
        %4490 = vmatprep.subr.bf16.mxu0 0
        %4491 = vmatpush1.bf16.msra.mxu0 %v4434
        %4492 = vmatprep.subr.bf16.mxu0 0
        %4493 = vmatpush1.bf16.msra.mxu0 %v4433
        %4494 = vmatprep.subr.bf16.mxu0 0
        %4495 = vmatpush1.bf16.msra.mxu0 %v4432
        %4496 = vmatprep.subr.bf16.mxu0 0
        %4497 = vmatpush2.bf16.msra.mxu0 %v4391
        %4498 = vmatprep.subr.bf16.mxu0 0
        %4499 = vmatpush2.bf16.msra.mxu0 %v4390
        %4500 = vmatprep.subr.bf16.mxu0 0
        %4501 = vmatpush2.bf16.msra.mxu0 %v4389
        %4502 = vmatprep.subr.bf16.mxu0 0
        %4503 = vmatpush2.bf16.msra.mxu0 %v4388
        %4504 = vmatprep.subr.bf16.mxu0 0
        %4505 = vmatpush2.bf16.msra.mxu0 %v4387
        %4506 = vmatprep.subr.bf16.mxu0 0
        %4507 = vmatpush2.bf16.msra.mxu0 %v4386
        %4508 = vmatprep.subr.bf16.mxu0 0
        %4509 = vmatpush2.bf16.msra.mxu0 %v4385
        %4510 = vmatprep.subr.bf16.mxu0 0
        %4511 = vmatpush2.bf16.msra.mxu0 %v4384
        %4512 = vmatprep.mubr.bf16.mxu0 %v1674
        %4513 = vmatmul.mubr.bf16.gmra.mxu0 %v1673
        %v4514 = vpop.f32.mrf.mxu0
        %v4515 = vadd.f32 %v3788, %v4514
        %v4516 = vpop.f32.mrf.mxu0
        %v4517 = vpop.f32.mrf.mxu0
        %v4518 = vadd.f32 %v3789, %v4517
        %v4519 = vpop.f32.mrf.mxu0
        %4520 = vmatprep.mubr.bf16.mxu0 %v1677
        %4521 = vmatmul.mubr.bf16.gmra.mxu0 %v1676
        %v4522 = vpop.f32.mrf.mxu0
        %v4523 = vadd.f32 %v3790, %v4522
        %v4524 = vpop.f32.mrf.mxu0
        %v4525 = vpop.f32.mrf.mxu0
        %v4526 = vadd.f32 %v3791, %v4525
        %v4527 = vpop.f32.mrf.mxu0
        %4528 = vmatprep.mubr.bf16.mxu0 %v1680
        %4529 = vmatmul.mubr.bf16.gmra.mxu0 %v1679
        %v4530 = vpop.f32.mrf.mxu0
        %v4531 = vadd.f32 %v3792, %v4530
        %v4532 = vpop.f32.mrf.mxu0
        %v4533 = vpop.f32.mrf.mxu0
        %v4534 = vadd.f32 %v3793, %v4533
        %v4535 = vpop.f32.mrf.mxu0
        %4536 = vmatprep.mubr.bf16.mxu0 %v1683
        %4537 = vmatmul.mubr.bf16.gmra.mxu0 %v1682
        %v4538 = vpop.f32.mrf.mxu0
        %v4539 = vadd.f32 %v3794, %v4538
        %v4540 = vpop.f32.mrf.mxu0
        %v4541 = vpop.f32.mrf.mxu0
        %v4542 = vadd.f32 %v3795, %v4541
        %v4543 = vpop.f32.mrf.mxu0
        %4544 = vmatprep.mubr.bf16.mxu0 %v1686
        %4545 = vmatmul.mubr.bf16.gmra.mxu0 %v1685
        %v4546 = vpop.f32.mrf.mxu0
        %v4547 = vadd.f32 %v3796, %v4546
        %v4548 = vpop.f32.mrf.mxu0
        %v4549 = vpop.f32.mrf.mxu0
        %v4550 = vadd.f32 %v3797, %v4549
        %v4551 = vpop.f32.mrf.mxu0
        %4552 = vmatprep.mubr.bf16.mxu0 %v1689
        %4553 = vmatmul.mubr.bf16.gmra.mxu0 %v1688
        %v4554 = vpop.f32.mrf.mxu0
        %v4555 = vadd.f32 %v3798, %v4554
        %v4556 = vpop.f32.mrf.mxu0
        %v4557 = vpop.f32.mrf.mxu0
        %v4558 = vadd.f32 %v3799, %v4557
        %v4559 = vpop.f32.mrf.mxu0
        %4560 = vmatprep.mubr.bf16.mxu0 %v1692
        %4561 = vmatmul.mubr.bf16.gmra.mxu0 %v1691
        %v4562 = vpop.f32.mrf.mxu0
        %v4563 = vadd.f32 %v3800, %v4562
        %v4564 = vpop.f32.mrf.mxu0
        %v4565 = vpop.f32.mrf.mxu0
        %v4566 = vadd.f32 %v3801, %v4565
        %v4567 = vpop.f32.mrf.mxu0
        %4568 = vmatprep.mubr.bf16.mxu0 %v1695
        %4569 = vmatmul.mubr.bf16.gmra.mxu0 %v1694
        %v4570 = vpop.f32.mrf.mxu0
        %v4571 = vadd.f32 %v3802, %v4570
        %v4572 = vpop.f32.mrf.mxu0
        %v4573 = vpop.f32.mrf.mxu0
        %v4574 = vadd.f32 %v3803, %v4573
        %v4575 = vpop.f32.mrf.mxu0
        %4576 = vdwg.mxu0
        %4577 = vmatprep.subr.bf16.mxu0 0
        %4578 = vmatpush1.bf16.msra.mxu0 %v4479
        %4579 = vmatprep.subr.bf16.mxu0 0
        %4580 = vmatpush1.bf16.msra.mxu0 %v4478
        %4581 = vmatprep.subr.bf16.mxu0 0
        %4582 = vmatpush1.bf16.msra.mxu0 %v4477
        %4583 = vmatprep.subr.bf16.mxu0 0
        %4584 = vmatpush1.bf16.msra.mxu0 %v4476
        %4585 = vmatprep.subr.bf16.mxu0 0
        %4586 = vmatpush1.bf16.msra.mxu0 %v4475
        %4587 = vmatprep.subr.bf16.mxu0 0
        %4588 = vmatpush1.bf16.msra.mxu0 %v4474
        %4589 = vmatprep.subr.bf16.mxu0 0
        %4590 = vmatpush1.bf16.msra.mxu0 %v4473
        %4591 = vmatprep.subr.bf16.mxu0 0
        %4592 = vmatpush1.bf16.msra.mxu0 %v4472
        %4593 = vmatprep.subr.bf16.mxu0 0
        %4594 = vmatpush2.bf16.msra.mxu0 0
        %4595 = vmatprep.subr.bf16.mxu0 0
        %4596 = vmatpush2.bf16.msra.mxu0 0
        %4597 = vmatprep.subr.bf16.mxu0 0
        %4598 = vmatpush2.bf16.msra.mxu0 0
        %4599 = vmatprep.subr.bf16.mxu0 0
        %4600 = vmatpush2.bf16.msra.mxu0 0
        %4601 = vmatprep.subr.bf16.mxu0 0
        %4602 = vmatpush2.bf16.msra.mxu0 0
        %4603 = vmatprep.subr.bf16.mxu0 0
        %4604 = vmatpush2.bf16.msra.mxu0 0
        %4605 = vmatprep.subr.bf16.mxu0 0
        %4606 = vmatpush2.bf16.msra.mxu0 0
        %4607 = vmatprep.subr.bf16.mxu0 0
        %4608 = vmatpush2.bf16.msra.mxu0 0
        %4609 = vmatprep.mubr.bf16.mxu0 0
        %4610 = vmatmul.mubr.bf16.gmra.mxu0 %v1675
        %v4611 = vpop.f32.mrf.mxu0
        %v4612 = vadd.f32 %v4515, %v4611
        %v4613 = vpop.f32.mrf.mxu0
        %v4614 = vpop.f32.mrf.mxu0
        %v4615 = vadd.f32 %v4518, %v4614
        %v4616 = vpop.f32.mrf.mxu0
        %4617 = vmatprep.mubr.bf16.mxu0 0
        %4618 = vmatmul.mubr.bf16.gmra.mxu0 %v1678
        %v4619 = vpop.f32.mrf.mxu0
        %v4620 = vadd.f32 %v4523, %v4619
        %v4621 = vpop.f32.mrf.mxu0
        %v4622 = vpop.f32.mrf.mxu0
        %v4623 = vadd.f32 %v4526, %v4622
        %v4624 = vpop.f32.mrf.mxu0
        %4625 = vmatprep.mubr.bf16.mxu0 0
        %4626 = vmatmul.mubr.bf16.gmra.mxu0 %v1681
        %v4627 = vpop.f32.mrf.mxu0
        %v4628 = vadd.f32 %v4531, %v4627
        %v4629 = vpop.f32.mrf.mxu0
        %v4630 = vpop.f32.mrf.mxu0
        %v4631 = vadd.f32 %v4534, %v4630
        %v4632 = vpop.f32.mrf.mxu0
        %4633 = vmatprep.mubr.bf16.mxu0 0
        %4634 = vmatmul.mubr.bf16.gmra.mxu0 %v1684
        %v4635 = vpop.f32.mrf.mxu0
        %v4636 = vadd.f32 %v4539, %v4635
        %v4637 = vpop.f32.mrf.mxu0
        %v4638 = vpop.f32.mrf.mxu0
        %v4639 = vadd.f32 %v4542, %v4638
        %v4640 = vpop.f32.mrf.mxu0
        %4641 = vmatprep.mubr.bf16.mxu0 0
        %4642 = vmatmul.mubr.bf16.gmra.mxu0 %v1687
        %v4643 = vpop.f32.mrf.mxu0
        %v4644 = vadd.f32 %v4547, %v4643
        %v4645 = vpop.f32.mrf.mxu0
        %v4646 = vpop.f32.mrf.mxu0
        %v4647 = vadd.f32 %v4550, %v4646
        %v4648 = vpop.f32.mrf.mxu0
        %4649 = vmatprep.mubr.bf16.mxu0 0
        %4650 = vmatmul.mubr.bf16.gmra.mxu0 %v1690
        %v4651 = vpop.f32.mrf.mxu0
        %v4652 = vadd.f32 %v4555, %v4651
        %v4653 = vpop.f32.mrf.mxu0
        %v4654 = vpop.f32.mrf.mxu0
        %v4655 = vadd.f32 %v4558, %v4654
        %v4656 = vpop.f32.mrf.mxu0
        %4657 = vmatprep.mubr.bf16.mxu0 0
        %4658 = vmatmul.mubr.bf16.gmra.mxu0 %v1693
        %v4659 = vpop.f32.mrf.mxu0
        %v4660 = vadd.f32 %v4563, %v4659
        %v4661 = vpop.f32.mrf.mxu0
        %v4662 = vpop.f32.mrf.mxu0
        %v4663 = vadd.f32 %v4566, %v4662
        %v4664 = vpop.f32.mrf.mxu0
        %4665 = vmatprep.mubr.bf16.mxu0 0
        %4666 = vmatmul.mubr.bf16.gmra.mxu0 %v1696
        %v4667 = vpop.f32.mrf.mxu0
        %v4668 = vadd.f32 %v4571, %v4667
        %v4669 = vpop.f32.mrf.mxu0
        %v4670 = vpop.f32.mrf.mxu0
        %v4671 = vadd.f32 %v4574, %v4670
        %v4672 = vpop.f32.mrf.mxu0
        %4673 = vdwg.mxu0
        %v4674 = vmax.f32 %v4612, 0.0
        %v4675 = vmax.f32 %v4615, 0.0
        %v4676 = vmax.f32 %v4620, 0.0
        %v4677 = vmax.f32 %v4623, 0.0
        %v4678 = vmax.f32 %v4628, 0.0
        %v4679 = vmax.f32 %v4631, 0.0
        %v4680 = vmax.f32 %v4636, 0.0
        %v4681 = vmax.f32 %v4639, 0.0
        %v4682 = vmax.f32 %v4644, 0.0
        %v4683 = vmax.f32 %v4647, 0.0
        %v4684 = vmax.f32 %v4652, 0.0
        %v4685 = vmax.f32 %v4655, 0.0
        %v4686 = vmax.f32 %v4660, 0.0
        %v4687 = vmax.f32 %v4663, 0.0
        %v4688 = vmax.f32 %v4668, 0.0
        %v4689 = vmax.f32 %v4671, 0.0
        %s4690 = scalar_lea.vmem %s297, 384 [#allocation5]
        %4691 = vst [vmem:[%s4690] sm:$0xff] %v4674
        %4692 = vst [vmem:[%s4690 + $0x8] sm:$0xff] %v4675
        %4693 = vst [vmem:[%s4690 + $0x10] sm:$0xff] %v4676
        %4694 = vst [vmem:[%s4690 + $0x18] sm:$0xff] %v4677
        %4695 = vst [vmem:[%s4690 + $0x20] sm:$0xff] %v4678
        %4696 = vst [vmem:[%s4690 + $0x28] sm:$0xff] %v4679
        %4697 = vst [vmem:[%s4690 + $0x30] sm:$0xff] %v4680
        %4698 = vst [vmem:[%s4690 + $0x38] sm:$0xff] %v4681
        %4699 = vst [vmem:[%s4690 + $0x40] sm:$0xff] %v4682
        %4700 = vst [vmem:[%s4690 + $0x48] sm:$0xff] %v4683
        %4701 = vst [vmem:[%s4690 + $0x50] sm:$0xff] %v4684
        %4702 = vst [vmem:[%s4690 + $0x58] sm:$0xff] %v4685
        %4703 = vst [vmem:[%s4690 + $0x60] sm:$0xff] %v4686
        %4704 = vst [vmem:[%s4690 + $0x68] sm:$0xff] %v4687
        %4705 = vst [vmem:[%s4690 + $0x70] sm:$0xff] %v4688
        %4706 = vst [vmem:[%s4690 + $0x78] sm:$0xff] %v4689
        %s4707 = scalar_lea.vmem %s267, 512 [#allocation2]
        %v4708 = vld [vmem:[%s4707] sm:$0xff]
        %v4709 = vld [vmem:[%s4707 + $0x8] sm:$0xff]
        %v4710 = vld [vmem:[%s4707 + $0x10] sm:$0xff]
        %v4711 = vld [vmem:[%s4707 + $0x18] sm:$0xff]
        %v4712 = vld [vmem:[%s4707 + $0x20] sm:$0xff]
        %v4713 = vld [vmem:[%s4707 + $0x28] sm:$0xff]
        %v4714 = vld [vmem:[%s4707 + $0x30] sm:$0xff]
        %v4715 = vld [vmem:[%s4707 + $0x38] sm:$0xff]
        %v4716 = vld [vmem:[%s4707 + $0x40] sm:$0xff]
        %v4717 = vld [vmem:[%s4707 + $0x48] sm:$0xff]
        %v4718 = vld [vmem:[%s4707 + $0x50] sm:$0xff]
        %v4719 = vld [vmem:[%s4707 + $0x58] sm:$0xff]
        %v4720 = vld [vmem:[%s4707 + $0x60] sm:$0xff]
        %v4721 = vld [vmem:[%s4707 + $0x68] sm:$0xff]
        %v4722 = vld [vmem:[%s4707 + $0x70] sm:$0xff]
        %v4723 = vld [vmem:[%s4707 + $0x78] sm:$0xff]
        %v4724 = vadd.f32 %v4708, %v4709
        %v4725 = vadd.f32 %v4724, %v4710
        %v4726 = vadd.f32 %v4725, %v4711
        %v4727 = vadd.f32 %v4726, %v4712
        %v4728 = vadd.f32 %v4727, %v4713
        %v4729 = vadd.f32 %v4728, %v4714
        %v4730 = vadd.f32 %v4729, %v4715
        %v4731 = vadd.f32 %v4730, %v4716
        %v4732 = vadd.f32 %v4731, %v4717
        %v4733 = vadd.f32 %v4732, %v4718
        %v4734 = vadd.f32 %v4733, %v4719
        %v4735 = vadd.f32 %v4734, %v4720
        %v4736 = vadd.f32 %v4735, %v4721
        %v4737 = vadd.f32 %v4736, %v4722
        %v4738 = vadd.f32 %v4737, %v4723
        %v4739 = vrot.slane %v4738, 4
        %v4740 = vadd.f32 %v4738, %v4739
        %v4741 = vrot.slane %v4740, 2
        %v4742 = vadd.f32 %v4740, %v4741
        %v4743 = vrot.slane %v4742, 1
        %v4744 = vadd.f32 %v4742, %v4743
        %v4745 = vmul.f32 %v4744, 0.0078125
        %v4746 = vmul.f32 %v4708, %v4708
        %v4747 = vmul.f32 %v4709, %v4709
        %v4748 = vmul.f32 %v4710, %v4710
        %v4749 = vmul.f32 %v4711, %v4711
        %v4750 = vmul.f32 %v4712, %v4712
        %v4751 = vmul.f32 %v4713, %v4713
        %v4752 = vmul.f32 %v4714, %v4714
        %v4753 = vmul.f32 %v4715, %v4715
        %v4754 = vmul.f32 %v4716, %v4716
        %v4755 = vmul.f32 %v4717, %v4717
        %v4756 = vmul.f32 %v4718, %v4718
        %v4757 = vmul.f32 %v4719, %v4719
        %v4758 = vmul.f32 %v4720, %v4720
        %v4759 = vmul.f32 %v4721, %v4721
        %v4760 = vmul.f32 %v4722, %v4722
        %v4761 = vmul.f32 %v4723, %v4723
        %v4762 = vadd.f32 %v4746, %v4747
        %v4763 = vadd.f32 %v4762, %v4748
        %v4764 = vadd.f32 %v4763, %v4749
        %v4765 = vadd.f32 %v4764, %v4750
        %v4766 = vadd.f32 %v4765, %v4751
        %v4767 = vadd.f32 %v4766, %v4752
        %v4768 = vadd.f32 %v4767, %v4753
        %v4769 = vadd.f32 %v4768, %v4754
        %v4770 = vadd.f32 %v4769, %v4755
        %v4771 = vadd.f32 %v4770, %v4756
        %v4772 = vadd.f32 %v4771, %v4757
        %v4773 = vadd.f32 %v4772, %v4758
        %v4774 = vadd.f32 %v4773, %v4759
        %v4775 = vadd.f32 %v4774, %v4760
        %v4776 = vadd.f32 %v4775, %v4761
        %v4777 = vrot.slane %v4776, 4
        %v4778 = vadd.f32 %v4776, %v4777
        %v4779 = vrot.slane %v4778, 2
        %v4780 = vadd.f32 %v4778, %v4779
        %v4781 = vrot.slane %v4780, 1
        %v4782 = vadd.f32 %v4780, %v4781
        %v4783 = vmul.f32 %v4782, 0.0078125
        %v4784 = vmul.f32 %v4745, %v4745
        %v4785 = vsub.f32 %v4783, %v4784
        %v4786 = vmax.f32 %v4785, 0.0
        %v4787 = vsub.f32 %v4708, %v4745
        %v4788 = vsub.f32 %v4709, %v4745
        %v4789 = vsub.f32 %v4710, %v4745
        %v4790 = vsub.f32 %v4711, %v4745
        %v4791 = vsub.f32 %v4712, %v4745
        %v4792 = vsub.f32 %v4713, %v4745
        %v4793 = vsub.f32 %v4714, %v4745
        %v4794 = vsub.f32 %v4715, %v4745
        %v4795 = vsub.f32 %v4716, %v4745
        %v4796 = vsub.f32 %v4717, %v4745
        %v4797 = vsub.f32 %v4718, %v4745
        %v4798 = vsub.f32 %v4719, %v4745
        %v4799 = vsub.f32 %v4720, %v4745
        %v4800 = vsub.f32 %v4721, %v4745
        %v4801 = vsub.f32 %v4722, %v4745
        %v4802 = vsub.f32 %v4723, %v4745
        %v4803 = vadd.f32 %v4786, 1e-05
        %v4804 = vrsqrt.pop %v4803
        %v4805 = vmul.f32 %v4787, %v4804
        %v4806 = vmul.f32 %v4788, %v4804
        %v4807 = vmul.f32 %v4789, %v4804
        %v4808 = vmul.f32 %v4790, %v4804
        %v4809 = vmul.f32 %v4791, %v4804
        %v4810 = vmul.f32 %v4792, %v4804
        %v4811 = vmul.f32 %v4793, %v4804
        %v4812 = vmul.f32 %v4794, %v4804
        %v4813 = vmul.f32 %v4795, %v4804
        %v4814 = vmul.f32 %v4796, %v4804
        %v4815 = vmul.f32 %v4797, %v4804
        %v4816 = vmul.f32 %v4798, %v4804
        %v4817 = vmul.f32 %v4799, %v4804
        %v4818 = vmul.f32 %v4800, %v4804
        %v4819 = vmul.f32 %v4801, %v4804
        %v4820 = vmul.f32 %v4802, %v4804
        %v4821 = vmul.f32 %v4805, %v322
        %v4822 = vmul.f32 %v4806, %v327
        %v4823 = vmul.f32 %v4807, %v332
        %v4824 = vmul.f32 %v4808, %v337
        %v4825 = vmul.f32 %v4809, %v342
        %v4826 = vmul.f32 %v4810, %v347
        %v4827 = vmul.f32 %v4811, %v352
        %v4828 = vmul.f32 %v4812, %v357
        %v4829 = vmul.f32 %v4813, %v362
        %v4830 = vmul.f32 %v4814, %v367
        %v4831 = vmul.f32 %v4815, %v372
        %v4832 = vmul.f32 %v4816, %v377
        %v4833 = vmul.f32 %v4817, %v382
        %v4834 = vmul.f32 %v4818, %v387
        %v4835 = vmul.f32 %v4819, %v392
        %v4836 = vmul.f32 %v4820, %v397
        %v4837 = vadd.f32 %v4821, %v418
        %v4838 = vadd.f32 %v4822, %v423
        %v4839 = vadd.f32 %v4823, %v428
        %v4840 = vadd.f32 %v4824, %v433
        %v4841 = vadd.f32 %v4825, %v438
        %v4842 = vadd.f32 %v4826, %v443
        %v4843 = vadd.f32 %v4827, %v448
        %v4844 = vadd.f32 %v4828, %v453
        %v4845 = vadd.f32 %v4829, %v458
        %v4846 = vadd.f32 %v4830, %v463
        %v4847 = vadd.f32 %v4831, %v468
        %v4848 = vadd.f32 %v4832, %v473
        %v4849 = vadd.f32 %v4833, %v478
        %v4850 = vadd.f32 %v4834, %v483
        %v4851 = vadd.f32 %v4835, %v488
        %v4852 = vadd.f32 %v4836, %v493
        %v4853 = vmax.f32 %v4837, 0.0
        %v4854 = vmax.f32 %v4838, 0.0
        %v4855 = vmax.f32 %v4839, 0.0
        %v4856 = vmax.f32 %v4840, 0.0
        %v4857 = vmax.f32 %v4841, 0.0
        %v4858 = vmax.f32 %v4842, 0.0
        %v4859 = vmax.f32 %v4843, 0.0
        %v4860 = vmax.f32 %v4844, 0.0
        %v4861 = vmax.f32 %v4845, 0.0
        %v4862 = vmax.f32 %v4846, 0.0
        %v4863 = vmax.f32 %v4847, 0.0
        %v4864 = vmax.f32 %v4848, 0.0
        %v4865 = vmax.f32 %v4849, 0.0
        %v4866 = vmax.f32 %v4850, 0.0
        %v4867 = vmax.f32 %v4851, 0.0
        %v4868 = vmax.f32 %v4852, 0.0
        %v4869 = vpack.c.bf16 %v4854, %v4853
        %v4870 = vpack.c.bf16 %v4856, %v4855
        %v4871 = vpack.c.bf16 %v4858, %v4857
        %v4872 = vpack.c.bf16 %v4860, %v4859
        %v4873 = vpack.c.bf16 %v4862, %v4861
        %v4874 = vpack.c.bf16 %v4864, %v4863
        %v4875 = vpack.c.bf16 %v4866, %v4865
        %v4876 = vpack.c.bf16 %v4868, %v4867
        %4885 = vrot.lane.b32.xlu0 %v4869, 1
        %v4886 = vpop.permute.xlu0 %4885
        %4887 = vrot.lane.b32.xlu0 %v4870, 1
        %v4888 = vpop.permute.xlu0 %4887
        %4889 = vrot.lane.b32.xlu0 %v4871, 1
        %v4890 = vpop.permute.xlu0 %4889
        %4891 = vrot.lane.b32.xlu0 %v4872, 1
        %v4892 = vpop.permute.xlu0 %4891
        %4893 = vrot.lane.b32.xlu0 %v4873, 1
        %v4894 = vpop.permute.xlu0 %4893
        %4895 = vrot.lane.b32.xlu0 %v4874, 1
        %v4896 = vpop.permute.xlu0 %4895
        %4897 = vrot.lane.b32.xlu0 %v4875, 1
        %v4898 = vpop.permute.xlu0 %4897
        %4899 = vrot.lane.b32.xlu0 %v4876, 1
        %v4900 = vpop.permute.xlu0 %4899
        %v4917 = vsel %vm974, %v4886, 0
        %v4918 = vsel %vm974, %v4888, 0
        %v4919 = vsel %vm974, %v4890, 0
        %v4920 = vsel %vm974, %v4892, 0
        %v4921 = vsel %vm974, %v4894, 0
        %v4922 = vsel %vm974, %v4896, 0
        %v4923 = vsel %vm974, %v4898, 0
        %v4924 = vsel %vm974, %v4900, 0
        %4925 = vrot.lane.b32.xlu0 %v4869, 127
        %v4926 = vpop.permute.xlu0 %4925
        %4927 = vrot.lane.b32.xlu0 %v4870, 127
        %v4928 = vpop.permute.xlu0 %4927
        %4929 = vrot.lane.b32.xlu0 %v4871, 127
        %v4930 = vpop.permute.xlu0 %4929
        %4931 = vrot.lane.b32.xlu0 %v4872, 127
        %v4932 = vpop.permute.xlu0 %4931
        %4933 = vrot.lane.b32.xlu0 %v4873, 127
        %v4934 = vpop.permute.xlu0 %4933
        %4935 = vrot.lane.b32.xlu0 %v4874, 127
        %v4936 = vpop.permute.xlu0 %4935
        %4937 = vrot.lane.b32.xlu0 %v4875, 127
        %v4938 = vpop.permute.xlu0 %4937
        %4939 = vrot.lane.b32.xlu0 %v4876, 127
        %v4940 = vpop.permute.xlu0 %4939
        %v4957 = vsel %vm1021, %v4926, 0
        %v4958 = vsel %vm1021, %v4928, 0
        %v4959 = vsel %vm1021, %v4930, 0
        %v4960 = vsel %vm1021, %v4932, 0
        %v4961 = vsel %vm1021, %v4934, 0
        %v4962 = vsel %vm1021, %v4936, 0
        %v4963 = vsel %vm1021, %v4938, 0
        %v4964 = vsel %vm1021, %v4940, 0
        %4965 = vmatprep.subr.bf16.mxu0 0
        %4966 = vmatpush1.bf16.msra.mxu0 %v4924
        %4967 = vmatprep.subr.bf16.mxu0 0
        %4968 = vmatpush1.bf16.msra.mxu0 %v4923
        %4969 = vmatprep.subr.bf16.mxu0 0
        %4970 = vmatpush1.bf16.msra.mxu0 %v4922
        %4971 = vmatprep.subr.bf16.mxu0 0
        %4972 = vmatpush1.bf16.msra.mxu0 %v4921
        %4973 = vmatprep.subr.bf16.mxu0 0
        %4974 = vmatpush1.bf16.msra.mxu0 %v4920
        %4975 = vmatprep.subr.bf16.mxu0 0
        %4976 = vmatpush1.bf16.msra.mxu0 %v4919
        %4977 = vmatprep.subr.bf16.mxu0 0
        %4978 = vmatpush1.bf16.msra.mxu0 %v4918
        %4979 = vmatprep.subr.bf16.mxu0 0
        %4980 = vmatpush1.bf16.msra.mxu0 %v4917
        %4981 = vmatprep.subr.bf16.mxu0 0
        %4982 = vmatpush2.bf16.msra.mxu0 %v4876
        %4983 = vmatprep.subr.bf16.mxu0 0
        %4984 = vmatpush2.bf16.msra.mxu0 %v4875
        %4985 = vmatprep.subr.bf16.mxu0 0
        %4986 = vmatpush2.bf16.msra.mxu0 %v4874
        %4987 = vmatprep.subr.bf16.mxu0 0
        %4988 = vmatpush2.bf16.msra.mxu0 %v4873
        %4989 = vmatprep.subr.bf16.mxu0 0
        %4990 = vmatpush2.bf16.msra.mxu0 %v4872
        %4991 = vmatprep.subr.bf16.mxu0 0
        %4992 = vmatpush2.bf16.msra.mxu0 %v4871
        %4993 = vmatprep.subr.bf16.mxu0 0
        %4994 = vmatpush2.bf16.msra.mxu0 %v4870
        %4995 = vmatprep.subr.bf16.mxu0 0
        %4996 = vmatpush2.bf16.msra.mxu0 %v4869
        %4997 = vmatprep.mubr.bf16.mxu0 %v1111
        %4998 = vmatmul.mubr.bf16.gmra.mxu0 %v1110
        %v4999 = vpop.f32.mrf.mxu0
        %v5000 = vadd.f32 0.0, %v4999
        %v5001 = vpop.f32.mrf.mxu0
        %v5002 = vpop.f32.mrf.mxu0
        %v5003 = vadd.f32 0.0, %v5002
        %v5004 = vpop.f32.mrf.mxu0
        %5005 = vmatprep.mubr.bf16.mxu0 %v1114
        %5006 = vmatmul.mubr.bf16.gmra.mxu0 %v1113
        %v5007 = vpop.f32.mrf.mxu0
        %v5008 = vadd.f32 0.0, %v5007
        %v5009 = vpop.f32.mrf.mxu0
        %v5010 = vpop.f32.mrf.mxu0
        %v5011 = vadd.f32 0.0, %v5010
        %v5012 = vpop.f32.mrf.mxu0
        %5013 = vmatprep.mubr.bf16.mxu0 %v1117
        %5014 = vmatmul.mubr.bf16.gmra.mxu0 %v1116
        %v5015 = vpop.f32.mrf.mxu0
        %v5016 = vadd.f32 0.0, %v5015
        %v5017 = vpop.f32.mrf.mxu0
        %v5018 = vpop.f32.mrf.mxu0
        %v5019 = vadd.f32 0.0, %v5018
        %v5020 = vpop.f32.mrf.mxu0
        %5021 = vmatprep.mubr.bf16.mxu0 %v1120
        %5022 = vmatmul.mubr.bf16.gmra.mxu0 %v1119
        %v5023 = vpop.f32.mrf.mxu0
        %v5024 = vadd.f32 0.0, %v5023
        %v5025 = vpop.f32.mrf.mxu0
        %v5026 = vpop.f32.mrf.mxu0
        %v5027 = vadd.f32 0.0, %v5026
        %v5028 = vpop.f32.mrf.mxu0
        %5029 = vmatprep.mubr.bf16.mxu0 %v1123
        %5030 = vmatmul.mubr.bf16.gmra.mxu0 %v1122
        %v5031 = vpop.f32.mrf.mxu0
        %v5032 = vadd.f32 0.0, %v5031
        %v5033 = vpop.f32.mrf.mxu0
        %v5034 = vpop.f32.mrf.mxu0
        %v5035 = vadd.f32 0.0, %v5034
        %v5036 = vpop.f32.mrf.mxu0
        %5037 = vmatprep.mubr.bf16.mxu0 %v1126
        %5038 = vmatmul.mubr.bf16.gmra.mxu0 %v1125
        %v5039 = vpop.f32.mrf.mxu0
        %v5040 = vadd.f32 0.0, %v5039
        %v5041 = vpop.f32.mrf.mxu0
        %v5042 = vpop.f32.mrf.mxu0
        %v5043 = vadd.f32 0.0, %v5042
        %v5044 = vpop.f32.mrf.mxu0
        %5045 = vmatprep.mubr.bf16.mxu0 %v1129
        %5046 = vmatmul.mubr.bf16.gmra.mxu0 %v1128
        %v5047 = vpop.f32.mrf.mxu0
        %v5048 = vadd.f32 0.0, %v5047
        %v5049 = vpop.f32.mrf.mxu0
        %v5050 = vpop.f32.mrf.mxu0
        %v5051 = vadd.f32 0.0, %v5050
        %v5052 = vpop.f32.mrf.mxu0
        %5053 = vmatprep.mubr.bf16.mxu0 %v1132
        %5054 = vmatmul.mubr.bf16.gmra.mxu0 %v1131
        %v5055 = vpop.f32.mrf.mxu0
        %v5056 = vadd.f32 0.0, %v5055
        %v5057 = vpop.f32.mrf.mxu0
        %v5058 = vpop.f32.mrf.mxu0
        %v5059 = vadd.f32 0.0, %v5058
        %v5060 = vpop.f32.mrf.mxu0
        %5061 = vdwg.mxu0
        %5062 = vmatprep.subr.bf16.mxu0 0
        %5063 = vmatpush1.bf16.msra.mxu0 %v4964
        %5064 = vmatprep.subr.bf16.mxu0 0
        %5065 = vmatpush1.bf16.msra.mxu0 %v4963
        %5066 = vmatprep.subr.bf16.mxu0 0
        %5067 = vmatpush1.bf16.msra.mxu0 %v4962
        %5068 = vmatprep.subr.bf16.mxu0 0
        %5069 = vmatpush1.bf16.msra.mxu0 %v4961
        %5070 = vmatprep.subr.bf16.mxu0 0
        %5071 = vmatpush1.bf16.msra.mxu0 %v4960
        %5072 = vmatprep.subr.bf16.mxu0 0
        %5073 = vmatpush1.bf16.msra.mxu0 %v4959
        %5074 = vmatprep.subr.bf16.mxu0 0
        %5075 = vmatpush1.bf16.msra.mxu0 %v4958
        %5076 = vmatprep.subr.bf16.mxu0 0
        %5077 = vmatpush1.bf16.msra.mxu0 %v4957
        %5078 = vmatprep.subr.bf16.mxu0 0
        %5079 = vmatpush2.bf16.msra.mxu0 0
        %5080 = vmatprep.subr.bf16.mxu0 0
        %5081 = vmatpush2.bf16.msra.mxu0 0
        %5082 = vmatprep.subr.bf16.mxu0 0
        %5083 = vmatpush2.bf16.msra.mxu0 0
        %5084 = vmatprep.subr.bf16.mxu0 0
        %5085 = vmatpush2.bf16.msra.mxu0 0
        %5086 = vmatprep.subr.bf16.mxu0 0
        %5087 = vmatpush2.bf16.msra.mxu0 0
        %5088 = vmatprep.subr.bf16.mxu0 0
        %5089 = vmatpush2.bf16.msra.mxu0 0
        %5090 = vmatprep.subr.bf16.mxu0 0
        %5091 = vmatpush2.bf16.msra.mxu0 0
        %5092 = vmatprep.subr.bf16.mxu0 0
        %5093 = vmatpush2.bf16.msra.mxu0 0
        %5094 = vmatprep.mubr.bf16.mxu0 0
        %5095 = vmatmul.mubr.bf16.gmra.mxu0 %v1112
        %v5096 = vpop.f32.mrf.mxu0
        %v5097 = vadd.f32 %v5000, %v5096
        %v5098 = vpop.f32.mrf.mxu0
        %v5099 = vpop.f32.mrf.mxu0
        %v5100 = vadd.f32 %v5003, %v5099
        %v5101 = vpop.f32.mrf.mxu0
        %5102 = vmatprep.mubr.bf16.mxu0 0
        %5103 = vmatmul.mubr.bf16.gmra.mxu0 %v1115
        %v5104 = vpop.f32.mrf.mxu0
        %v5105 = vadd.f32 %v5008, %v5104
        %v5106 = vpop.f32.mrf.mxu0
        %v5107 = vpop.f32.mrf.mxu0
        %v5108 = vadd.f32 %v5011, %v5107
        %v5109 = vpop.f32.mrf.mxu0
        %5110 = vmatprep.mubr.bf16.mxu0 0
        %5111 = vmatmul.mubr.bf16.gmra.mxu0 %v1118
        %v5112 = vpop.f32.mrf.mxu0
        %v5113 = vadd.f32 %v5016, %v5112
        %v5114 = vpop.f32.mrf.mxu0
        %v5115 = vpop.f32.mrf.mxu0
        %v5116 = vadd.f32 %v5019, %v5115
        %v5117 = vpop.f32.mrf.mxu0
        %5118 = vmatprep.mubr.bf16.mxu0 0
        %5119 = vmatmul.mubr.bf16.gmra.mxu0 %v1121
        %v5120 = vpop.f32.mrf.mxu0
        %v5121 = vadd.f32 %v5024, %v5120
        %v5122 = vpop.f32.mrf.mxu0
        %v5123 = vpop.f32.mrf.mxu0
        %v5124 = vadd.f32 %v5027, %v5123
        %v5125 = vpop.f32.mrf.mxu0
        %5126 = vmatprep.mubr.bf16.mxu0 0
        %5127 = vmatmul.mubr.bf16.gmra.mxu0 %v1124
        %v5128 = vpop.f32.mrf.mxu0
        %v5129 = vadd.f32 %v5032, %v5128
        %v5130 = vpop.f32.mrf.mxu0
        %v5131 = vpop.f32.mrf.mxu0
        %v5132 = vadd.f32 %v5035, %v5131
        %v5133 = vpop.f32.mrf.mxu0
        %5134 = vmatprep.mubr.bf16.mxu0 0
        %5135 = vmatmul.mubr.bf16.gmra.mxu0 %v1127
        %v5136 = vpop.f32.mrf.mxu0
        %v5137 = vadd.f32 %v5040, %v5136
        %v5138 = vpop.f32.mrf.mxu0
        %v5139 = vpop.f32.mrf.mxu0
        %v5140 = vadd.f32 %v5043, %v5139
        %v5141 = vpop.f32.mrf.mxu0
        %5142 = vmatprep.mubr.bf16.mxu0 0
        %5143 = vmatmul.mubr.bf16.gmra.mxu0 %v1130
        %v5144 = vpop.f32.mrf.mxu0
        %v5145 = vadd.f32 %v5048, %v5144
        %v5146 = vpop.f32.mrf.mxu0
        %v5147 = vpop.f32.mrf.mxu0
        %v5148 = vadd.f32 %v5051, %v5147
        %v5149 = vpop.f32.mrf.mxu0
        %5150 = vmatprep.mubr.bf16.mxu0 0
        %5151 = vmatmul.mubr.bf16.gmra.mxu0 %v1133
        %v5152 = vpop.f32.mrf.mxu0
        %v5153 = vadd.f32 %v5056, %v5152
        %v5154 = vpop.f32.mrf.mxu0
        %v5155 = vpop.f32.mrf.mxu0
        %v5156 = vadd.f32 %v5059, %v5155
        %v5157 = vpop.f32.mrf.mxu0
        %5158 = vdwg.mxu0
        %v5159 = vadd.f32 %v5097, %v5100
        %v5160 = vadd.f32 %v5159, %v5105
        %v5161 = vadd.f32 %v5160, %v5108
        %v5162 = vadd.f32 %v5161, %v5113
        %v5163 = vadd.f32 %v5162, %v5116
        %v5164 = vadd.f32 %v5163, %v5121
        %v5165 = vadd.f32 %v5164, %v5124
        %v5166 = vadd.f32 %v5165, %v5129
        %v5167 = vadd.f32 %v5166, %v5132
        %v5168 = vadd.f32 %v5167, %v5137
        %v5169 = vadd.f32 %v5168, %v5140
        %v5170 = vadd.f32 %v5169, %v5145
        %v5171 = vadd.f32 %v5170, %v5148
        %v5172 = vadd.f32 %v5171, %v5153
        %v5173 = vadd.f32 %v5172, %v5156
        %v5174 = vrot.slane %v5173, 4
        %v5175 = vadd.f32 %v5173, %v5174
        %v5176 = vrot.slane %v5175, 2
        %v5177 = vadd.f32 %v5175, %v5176
        %v5178 = vrot.slane %v5177, 1
        %v5179 = vadd.f32 %v5177, %v5178
        %v5180 = vmul.f32 %v5179, 0.0078125
        %v5181 = vmul.f32 %v5097, %v5097
        %v5182 = vmul.f32 %v5100, %v5100
        %v5183 = vmul.f32 %v5105, %v5105
        %v5184 = vmul.f32 %v5108, %v5108
        %v5185 = vmul.f32 %v5113, %v5113
        %v5186 = vmul.f32 %v5116, %v5116
        %v5187 = vmul.f32 %v5121, %v5121
        %v5188 = vmul.f32 %v5124, %v5124
        %v5189 = vmul.f32 %v5129, %v5129
        %v5190 = vmul.f32 %v5132, %v5132
        %v5191 = vmul.f32 %v5137, %v5137
        %v5192 = vmul.f32 %v5140, %v5140
        %v5193 = vmul.f32 %v5145, %v5145
        %v5194 = vmul.f32 %v5148, %v5148
        %v5195 = vmul.f32 %v5153, %v5153
        %v5196 = vmul.f32 %v5156, %v5156
        %v5197 = vadd.f32 %v5181, %v5182
        %v5198 = vadd.f32 %v5197, %v5183
        %v5199 = vadd.f32 %v5198, %v5184
        %v5200 = vadd.f32 %v5199, %v5185
        %v5201 = vadd.f32 %v5200, %v5186
        %v5202 = vadd.f32 %v5201, %v5187
        %v5203 = vadd.f32 %v5202, %v5188
        %v5204 = vadd.f32 %v5203, %v5189
        %v5205 = vadd.f32 %v5204, %v5190
        %v5206 = vadd.f32 %v5205, %v5191
        %v5207 = vadd.f32 %v5206, %v5192
        %v5208 = vadd.f32 %v5207, %v5193
        %v5209 = vadd.f32 %v5208, %v5194
        %v5210 = vadd.f32 %v5209, %v5195
        %v5211 = vadd.f32 %v5210, %v5196
        %v5212 = vrot.slane %v5211, 4
        %v5213 = vadd.f32 %v5211, %v5212
        %v5214 = vrot.slane %v5213, 2
        %v5215 = vadd.f32 %v5213, %v5214
        %v5216 = vrot.slane %v5215, 1
        %v5217 = vadd.f32 %v5215, %v5216
        %v5218 = vmul.f32 %v5217, 0.0078125
        %v5219 = vmul.f32 %v5180, %v5180
        %v5220 = vsub.f32 %v5218, %v5219
        %v5221 = vmax.f32 %v5220, 0.0
        %v5222 = vsub.f32 %v5097, %v5180
        %v5223 = vsub.f32 %v5100, %v5180
        %v5224 = vsub.f32 %v5105, %v5180
        %v5225 = vsub.f32 %v5108, %v5180
        %v5226 = vsub.f32 %v5113, %v5180
        %v5227 = vsub.f32 %v5116, %v5180
        %v5228 = vsub.f32 %v5121, %v5180
        %v5229 = vsub.f32 %v5124, %v5180
        %v5230 = vsub.f32 %v5129, %v5180
        %v5231 = vsub.f32 %v5132, %v5180
        %v5232 = vsub.f32 %v5137, %v5180
        %v5233 = vsub.f32 %v5140, %v5180
        %v5234 = vsub.f32 %v5145, %v5180
        %v5235 = vsub.f32 %v5148, %v5180
        %v5236 = vsub.f32 %v5153, %v5180
        %v5237 = vsub.f32 %v5156, %v5180
        %v5238 = vadd.f32 %v5221, 1e-05
        %v5239 = vrsqrt.pop %v5238
        %v5240 = vmul.f32 %v5222, %v5239
        %v5241 = vmul.f32 %v5223, %v5239
        %v5242 = vmul.f32 %v5224, %v5239
        %v5243 = vmul.f32 %v5225, %v5239
        %v5244 = vmul.f32 %v5226, %v5239
        %v5245 = vmul.f32 %v5227, %v5239
        %v5246 = vmul.f32 %v5228, %v5239
        %v5247 = vmul.f32 %v5229, %v5239
        %v5248 = vmul.f32 %v5230, %v5239
        %v5249 = vmul.f32 %v5231, %v5239
        %v5250 = vmul.f32 %v5232, %v5239
        %v5251 = vmul.f32 %v5233, %v5239
        %v5252 = vmul.f32 %v5234, %v5239
        %v5253 = vmul.f32 %v5235, %v5239
        %v5254 = vmul.f32 %v5236, %v5239
        %v5255 = vmul.f32 %v5237, %v5239
        %v5256 = vmul.f32 %v5240, %v514
        %v5257 = vmul.f32 %v5241, %v519
        %v5258 = vmul.f32 %v5242, %v524
        %v5259 = vmul.f32 %v5243, %v529
        %v5260 = vmul.f32 %v5244, %v534
        %v5261 = vmul.f32 %v5245, %v539
        %v5262 = vmul.f32 %v5246, %v544
        %v5263 = vmul.f32 %v5247, %v549
        %v5264 = vmul.f32 %v5248, %v554
        %v5265 = vmul.f32 %v5249, %v559
        %v5266 = vmul.f32 %v5250, %v564
        %v5267 = vmul.f32 %v5251, %v569
        %v5268 = vmul.f32 %v5252, %v574
        %v5269 = vmul.f32 %v5253, %v579
        %v5270 = vmul.f32 %v5254, %v584
        %v5271 = vmul.f32 %v5255, %v589
        %v5272 = vadd.f32 %v5256, %v610
        %v5273 = vadd.f32 %v5257, %v615
        %v5274 = vadd.f32 %v5258, %v620
        %v5275 = vadd.f32 %v5259, %v625
        %v5276 = vadd.f32 %v5260, %v630
        %v5277 = vadd.f32 %v5261, %v635
        %v5278 = vadd.f32 %v5262, %v640
        %v5279 = vadd.f32 %v5263, %v645
        %v5280 = vadd.f32 %v5264, %v650
        %v5281 = vadd.f32 %v5265, %v655
        %v5282 = vadd.f32 %v5266, %v660
        %v5283 = vadd.f32 %v5267, %v665
        %v5284 = vadd.f32 %v5268, %v670
        %v5285 = vadd.f32 %v5269, %v675
        %v5286 = vadd.f32 %v5270, %v680
        %v5287 = vadd.f32 %v5271, %v685
        %v5288 = vmax.f32 %v5272, 0.0
        %v5289 = vmax.f32 %v5273, 0.0
        %v5290 = vmax.f32 %v5274, 0.0
        %v5291 = vmax.f32 %v5275, 0.0
        %v5292 = vmax.f32 %v5276, 0.0
        %v5293 = vmax.f32 %v5277, 0.0
        %v5294 = vmax.f32 %v5278, 0.0
        %v5295 = vmax.f32 %v5279, 0.0
        %v5296 = vmax.f32 %v5280, 0.0
        %v5297 = vmax.f32 %v5281, 0.0
        %v5298 = vmax.f32 %v5282, 0.0
        %v5299 = vmax.f32 %v5283, 0.0
        %v5300 = vmax.f32 %v5284, 0.0
        %v5301 = vmax.f32 %v5285, 0.0
        %v5302 = vmax.f32 %v5286, 0.0
        %v5303 = vmax.f32 %v5287, 0.0
        %v5304 = vpack.c.bf16 %v5289, %v5288
        %v5305 = vpack.c.bf16 %v5291, %v5290
        %v5306 = vpack.c.bf16 %v5293, %v5292
        %v5307 = vpack.c.bf16 %v5295, %v5294
        %v5308 = vpack.c.bf16 %v5297, %v5296
        %v5309 = vpack.c.bf16 %v5299, %v5298
        %v5310 = vpack.c.bf16 %v5301, %v5300
        %v5311 = vpack.c.bf16 %v5303, %v5302
        %5320 = vrot.lane.b32.xlu0 %v5304, 1
        %v5321 = vpop.permute.xlu0 %5320
        %5322 = vrot.lane.b32.xlu0 %v5305, 1
        %v5323 = vpop.permute.xlu0 %5322
        %5324 = vrot.lane.b32.xlu0 %v5306, 1
        %v5325 = vpop.permute.xlu0 %5324
        %5326 = vrot.lane.b32.xlu0 %v5307, 1
        %v5327 = vpop.permute.xlu0 %5326
        %5328 = vrot.lane.b32.xlu0 %v5308, 1
        %v5329 = vpop.permute.xlu0 %5328
        %5330 = vrot.lane.b32.xlu0 %v5309, 1
        %v5331 = vpop.permute.xlu0 %5330
        %5332 = vrot.lane.b32.xlu0 %v5310, 1
        %v5333 = vpop.permute.xlu0 %5332
        %5334 = vrot.lane.b32.xlu0 %v5311, 1
        %v5335 = vpop.permute.xlu0 %5334
        %v5352 = vsel %vm974, %v5321, 0
        %v5353 = vsel %vm974, %v5323, 0
        %v5354 = vsel %vm974, %v5325, 0
        %v5355 = vsel %vm974, %v5327, 0
        %v5356 = vsel %vm974, %v5329, 0
        %v5357 = vsel %vm974, %v5331, 0
        %v5358 = vsel %vm974, %v5333, 0
        %v5359 = vsel %vm974, %v5335, 0
        %5360 = vrot.lane.b32.xlu0 %v5304, 127
        %v5361 = vpop.permute.xlu0 %5360
        %5362 = vrot.lane.b32.xlu0 %v5305, 127
        %v5363 = vpop.permute.xlu0 %5362
        %5364 = vrot.lane.b32.xlu0 %v5306, 127
        %v5365 = vpop.permute.xlu0 %5364
        %5366 = vrot.lane.b32.xlu0 %v5307, 127
        %v5367 = vpop.permute.xlu0 %5366
        %5368 = vrot.lane.b32.xlu0 %v5308, 127
        %v5369 = vpop.permute.xlu0 %5368
        %5370 = vrot.lane.b32.xlu0 %v5309, 127
        %v5371 = vpop.permute.xlu0 %5370
        %5372 = vrot.lane.b32.xlu0 %v5310, 127
        %v5373 = vpop.permute.xlu0 %5372
        %5374 = vrot.lane.b32.xlu0 %v5311, 127
        %v5375 = vpop.permute.xlu0 %5374
        %v5392 = vsel %vm1021, %v5361, 0
        %v5393 = vsel %vm1021, %v5363, 0
        %v5394 = vsel %vm1021, %v5365, 0
        %v5395 = vsel %vm1021, %v5367, 0
        %v5396 = vsel %vm1021, %v5369, 0
        %v5397 = vsel %vm1021, %v5371, 0
        %v5398 = vsel %vm1021, %v5373, 0
        %v5399 = vsel %vm1021, %v5375, 0
        %5400 = vmatprep.subr.bf16.mxu0 0
        %5401 = vmatpush1.bf16.msra.mxu0 %v5359
        %5402 = vmatprep.subr.bf16.mxu0 0
        %5403 = vmatpush1.bf16.msra.mxu0 %v5358
        %5404 = vmatprep.subr.bf16.mxu0 0
        %5405 = vmatpush1.bf16.msra.mxu0 %v5357
        %5406 = vmatprep.subr.bf16.mxu0 0
        %5407 = vmatpush1.bf16.msra.mxu0 %v5356
        %5408 = vmatprep.subr.bf16.mxu0 0
        %5409 = vmatpush1.bf16.msra.mxu0 %v5355
        %5410 = vmatprep.subr.bf16.mxu0 0
        %5411 = vmatpush1.bf16.msra.mxu0 %v5354
        %5412 = vmatprep.subr.bf16.mxu0 0
        %5413 = vmatpush1.bf16.msra.mxu0 %v5353
        %5414 = vmatprep.subr.bf16.mxu0 0
        %5415 = vmatpush1.bf16.msra.mxu0 %v5352
        %5416 = vmatprep.subr.bf16.mxu0 0
        %5417 = vmatpush2.bf16.msra.mxu0 %v5311
        %5418 = vmatprep.subr.bf16.mxu0 0
        %5419 = vmatpush2.bf16.msra.mxu0 %v5310
        %5420 = vmatprep.subr.bf16.mxu0 0
        %5421 = vmatpush2.bf16.msra.mxu0 %v5309
        %5422 = vmatprep.subr.bf16.mxu0 0
        %5423 = vmatpush2.bf16.msra.mxu0 %v5308
        %5424 = vmatprep.subr.bf16.mxu0 0
        %5425 = vmatpush2.bf16.msra.mxu0 %v5307
        %5426 = vmatprep.subr.bf16.mxu0 0
        %5427 = vmatpush2.bf16.msra.mxu0 %v5306
        %5428 = vmatprep.subr.bf16.mxu0 0
        %5429 = vmatpush2.bf16.msra.mxu0 %v5305
        %5430 = vmatprep.subr.bf16.mxu0 0
        %5431 = vmatpush2.bf16.msra.mxu0 %v5304
        %5432 = vmatprep.mubr.bf16.mxu0 %v1674
        %5433 = vmatmul.mubr.bf16.gmra.mxu0 %v1673
        %v5434 = vpop.f32.mrf.mxu0
        %v5435 = vadd.f32 %v4708, %v5434
        %v5436 = vpop.f32.mrf.mxu0
        %v5437 = vpop.f32.mrf.mxu0
        %v5438 = vadd.f32 %v4709, %v5437
        %v5439 = vpop.f32.mrf.mxu0
        %5440 = vmatprep.mubr.bf16.mxu0 %v1677
        %5441 = vmatmul.mubr.bf16.gmra.mxu0 %v1676
        %v5442 = vpop.f32.mrf.mxu0
        %v5443 = vadd.f32 %v4710, %v5442
        %v5444 = vpop.f32.mrf.mxu0
        %v5445 = vpop.f32.mrf.mxu0
        %v5446 = vadd.f32 %v4711, %v5445
        %v5447 = vpop.f32.mrf.mxu0
        %5448 = vmatprep.mubr.bf16.mxu0 %v1680
        %5449 = vmatmul.mubr.bf16.gmra.mxu0 %v1679
        %v5450 = vpop.f32.mrf.mxu0
        %v5451 = vadd.f32 %v4712, %v5450
        %v5452 = vpop.f32.mrf.mxu0
        %v5453 = vpop.f32.mrf.mxu0
        %v5454 = vadd.f32 %v4713, %v5453
        %v5455 = vpop.f32.mrf.mxu0
        %5456 = vmatprep.mubr.bf16.mxu0 %v1683
        %5457 = vmatmul.mubr.bf16.gmra.mxu0 %v1682
        %v5458 = vpop.f32.mrf.mxu0
        %v5459 = vadd.f32 %v4714, %v5458
        %v5460 = vpop.f32.mrf.mxu0
        %v5461 = vpop.f32.mrf.mxu0
        %v5462 = vadd.f32 %v4715, %v5461
        %v5463 = vpop.f32.mrf.mxu0
        %5464 = vmatprep.mubr.bf16.mxu0 %v1686
        %5465 = vmatmul.mubr.bf16.gmra.mxu0 %v1685
        %v5466 = vpop.f32.mrf.mxu0
        %v5467 = vadd.f32 %v4716, %v5466
        %v5468 = vpop.f32.mrf.mxu0
        %v5469 = vpop.f32.mrf.mxu0
        %v5470 = vadd.f32 %v4717, %v5469
        %v5471 = vpop.f32.mrf.mxu0
        %5472 = vmatprep.mubr.bf16.mxu0 %v1689
        %5473 = vmatmul.mubr.bf16.gmra.mxu0 %v1688
        %v5474 = vpop.f32.mrf.mxu0
        %v5475 = vadd.f32 %v4718, %v5474
        %v5476 = vpop.f32.mrf.mxu0
        %v5477 = vpop.f32.mrf.mxu0
        %v5478 = vadd.f32 %v4719, %v5477
        %v5479 = vpop.f32.mrf.mxu0
        %5480 = vmatprep.mubr.bf16.mxu0 %v1692
        %5481 = vmatmul.mubr.bf16.gmra.mxu0 %v1691
        %v5482 = vpop.f32.mrf.mxu0
        %v5483 = vadd.f32 %v4720, %v5482
        %v5484 = vpop.f32.mrf.mxu0
        %v5485 = vpop.f32.mrf.mxu0
        %v5486 = vadd.f32 %v4721, %v5485
        %v5487 = vpop.f32.mrf.mxu0
        %5488 = vmatprep.mubr.bf16.mxu0 %v1695
        %5489 = vmatmul.mubr.bf16.gmra.mxu0 %v1694
        %v5490 = vpop.f32.mrf.mxu0
        %v5491 = vadd.f32 %v4722, %v5490
        %v5492 = vpop.f32.mrf.mxu0
        %v5493 = vpop.f32.mrf.mxu0
        %v5494 = vadd.f32 %v4723, %v5493
        %v5495 = vpop.f32.mrf.mxu0
        %5496 = vdwg.mxu0
        %5497 = vmatprep.subr.bf16.mxu0 0
        %5498 = vmatpush1.bf16.msra.mxu0 %v5399
        %5499 = vmatprep.subr.bf16.mxu0 0
        %5500 = vmatpush1.bf16.msra.mxu0 %v5398
        %5501 = vmatprep.subr.bf16.mxu0 0
        %5502 = vmatpush1.bf16.msra.mxu0 %v5397
        %5503 = vmatprep.subr.bf16.mxu0 0
        %5504 = vmatpush1.bf16.msra.mxu0 %v5396
        %5505 = vmatprep.subr.bf16.mxu0 0
        %5506 = vmatpush1.bf16.msra.mxu0 %v5395
        %5507 = vmatprep.subr.bf16.mxu0 0
        %5508 = vmatpush1.bf16.msra.mxu0 %v5394
        %5509 = vmatprep.subr.bf16.mxu0 0
        %5510 = vmatpush1.bf16.msra.mxu0 %v5393
        %5511 = vmatprep.subr.bf16.mxu0 0
        %5512 = vmatpush1.bf16.msra.mxu0 %v5392
        %5513 = vmatprep.subr.bf16.mxu0 0
        %5514 = vmatpush2.bf16.msra.mxu0 0
        %5515 = vmatprep.subr.bf16.mxu0 0
        %5516 = vmatpush2.bf16.msra.mxu0 0
        %5517 = vmatprep.subr.bf16.mxu0 0
        %5518 = vmatpush2.bf16.msra.mxu0 0
        %5519 = vmatprep.subr.bf16.mxu0 0
        %5520 = vmatpush2.bf16.msra.mxu0 0
        %5521 = vmatprep.subr.bf16.mxu0 0
        %5522 = vmatpush2.bf16.msra.mxu0 0
        %5523 = vmatprep.subr.bf16.mxu0 0
        %5524 = vmatpush2.bf16.msra.mxu0 0
        %5525 = vmatprep.subr.bf16.mxu0 0
        %5526 = vmatpush2.bf16.msra.mxu0 0
        %5527 = vmatprep.subr.bf16.mxu0 0
        %5528 = vmatpush2.bf16.msra.mxu0 0
        %5529 = vmatprep.mubr.bf16.mxu0 0
        %5530 = vmatmul.mubr.bf16.gmra.mxu0 %v1675
        %v5531 = vpop.f32.mrf.mxu0
        %v5532 = vadd.f32 %v5435, %v5531
        %v5533 = vpop.f32.mrf.mxu0
        %v5534 = vpop.f32.mrf.mxu0
        %v5535 = vadd.f32 %v5438, %v5534
        %v5536 = vpop.f32.mrf.mxu0
        %5537 = vmatprep.mubr.bf16.mxu0 0
        %5538 = vmatmul.mubr.bf16.gmra.mxu0 %v1678
        %v5539 = vpop.f32.mrf.mxu0
        %v5540 = vadd.f32 %v5443, %v5539
        %v5541 = vpop.f32.mrf.mxu0
        %v5542 = vpop.f32.mrf.mxu0
        %v5543 = vadd.f32 %v5446, %v5542
        %v5544 = vpop.f32.mrf.mxu0
        %5545 = vmatprep.mubr.bf16.mxu0 0
        %5546 = vmatmul.mubr.bf16.gmra.mxu0 %v1681
        %v5547 = vpop.f32.mrf.mxu0
        %v5548 = vadd.f32 %v5451, %v5547
        %v5549 = vpop.f32.mrf.mxu0
        %v5550 = vpop.f32.mrf.mxu0
        %v5551 = vadd.f32 %v5454, %v5550
        %v5552 = vpop.f32.mrf.mxu0
        %5553 = vmatprep.mubr.bf16.mxu0 0
        %5554 = vmatmul.mubr.bf16.gmra.mxu0 %v1684
        %v5555 = vpop.f32.mrf.mxu0
        %v5556 = vadd.f32 %v5459, %v5555
        %v5557 = vpop.f32.mrf.mxu0
        %v5558 = vpop.f32.mrf.mxu0
        %v5559 = vadd.f32 %v5462, %v5558
        %v5560 = vpop.f32.mrf.mxu0
        %5561 = vmatprep.mubr.bf16.mxu0 0
        %5562 = vmatmul.mubr.bf16.gmra.mxu0 %v1687
        %v5563 = vpop.f32.mrf.mxu0
        %v5564 = vadd.f32 %v5467, %v5563
        %v5565 = vpop.f32.mrf.mxu0
        %v5566 = vpop.f32.mrf.mxu0
        %v5567 = vadd.f32 %v5470, %v5566
        %v5568 = vpop.f32.mrf.mxu0
        %5569 = vmatprep.mubr.bf16.mxu0 0
        %5570 = vmatmul.mubr.bf16.gmra.mxu0 %v1690
        %v5571 = vpop.f32.mrf.mxu0
        %v5572 = vadd.f32 %v5475, %v5571
        %v5573 = vpop.f32.mrf.mxu0
        %v5574 = vpop.f32.mrf.mxu0
        %v5575 = vadd.f32 %v5478, %v5574
        %v5576 = vpop.f32.mrf.mxu0
        %5577 = vmatprep.mubr.bf16.mxu0 0
        %5578 = vmatmul.mubr.bf16.gmra.mxu0 %v1693
        %v5579 = vpop.f32.mrf.mxu0
        %v5580 = vadd.f32 %v5483, %v5579
        %v5581 = vpop.f32.mrf.mxu0
        %v5582 = vpop.f32.mrf.mxu0
        %v5583 = vadd.f32 %v5486, %v5582
        %v5584 = vpop.f32.mrf.mxu0
        %5585 = vmatprep.mubr.bf16.mxu0 0
        %5586 = vmatmul.mubr.bf16.gmra.mxu0 %v1696
        %v5587 = vpop.f32.mrf.mxu0
        %v5588 = vadd.f32 %v5491, %v5587
        %v5589 = vpop.f32.mrf.mxu0
        %v5590 = vpop.f32.mrf.mxu0
        %v5591 = vadd.f32 %v5494, %v5590
        %v5592 = vpop.f32.mrf.mxu0
        %5593 = vdwg.mxu0
        %v5594 = vmax.f32 %v5532, 0.0
        %v5595 = vmax.f32 %v5535, 0.0
        %v5596 = vmax.f32 %v5540, 0.0
        %v5597 = vmax.f32 %v5543, 0.0
        %v5598 = vmax.f32 %v5548, 0.0
        %v5599 = vmax.f32 %v5551, 0.0
        %v5600 = vmax.f32 %v5556, 0.0
        %v5601 = vmax.f32 %v5559, 0.0
        %v5602 = vmax.f32 %v5564, 0.0
        %v5603 = vmax.f32 %v5567, 0.0
        %v5604 = vmax.f32 %v5572, 0.0
        %v5605 = vmax.f32 %v5575, 0.0
        %v5606 = vmax.f32 %v5580, 0.0
        %v5607 = vmax.f32 %v5583, 0.0
        %v5608 = vmax.f32 %v5588, 0.0
        %v5609 = vmax.f32 %v5591, 0.0
        %s5610 = scalar_lea.vmem %s297, 512 [#allocation5]
        %5611 = vst [vmem:[%s5610] sm:$0xff] %v5594
        %5612 = vst [vmem:[%s5610 + $0x8] sm:$0xff] %v5595
        %5613 = vst [vmem:[%s5610 + $0x10] sm:$0xff] %v5596
        %5614 = vst [vmem:[%s5610 + $0x18] sm:$0xff] %v5597
        %5615 = vst [vmem:[%s5610 + $0x20] sm:$0xff] %v5598
        %5616 = vst [vmem:[%s5610 + $0x28] sm:$0xff] %v5599
        %5617 = vst [vmem:[%s5610 + $0x30] sm:$0xff] %v5600
        %5618 = vst [vmem:[%s5610 + $0x38] sm:$0xff] %v5601
        %5619 = vst [vmem:[%s5610 + $0x40] sm:$0xff] %v5602
        %5620 = vst [vmem:[%s5610 + $0x48] sm:$0xff] %v5603
        %5621 = vst [vmem:[%s5610 + $0x50] sm:$0xff] %v5604
        %5622 = vst [vmem:[%s5610 + $0x58] sm:$0xff] %v5605
        %5623 = vst [vmem:[%s5610 + $0x60] sm:$0xff] %v5606
        %5624 = vst [vmem:[%s5610 + $0x68] sm:$0xff] %v5607
        %5625 = vst [vmem:[%s5610 + $0x70] sm:$0xff] %v5608
        %5626 = vst [vmem:[%s5610 + $0x78] sm:$0xff] %v5609
        %s5627 = scalar_lea.vmem %s267, 640 [#allocation2]
        %v5628 = vld [vmem:[%s5627] sm:$0xff]
        %v5629 = vld [vmem:[%s5627 + $0x8] sm:$0xff]
        %v5630 = vld [vmem:[%s5627 + $0x10] sm:$0xff]
        %v5631 = vld [vmem:[%s5627 + $0x18] sm:$0xff]
        %v5632 = vld [vmem:[%s5627 + $0x20] sm:$0xff]
        %v5633 = vld [vmem:[%s5627 + $0x28] sm:$0xff]
        %v5634 = vld [vmem:[%s5627 + $0x30] sm:$0xff]
        %v5635 = vld [vmem:[%s5627 + $0x38] sm:$0xff]
        %v5636 = vld [vmem:[%s5627 + $0x40] sm:$0xff]
        %v5637 = vld [vmem:[%s5627 + $0x48] sm:$0xff]
        %v5638 = vld [vmem:[%s5627 + $0x50] sm:$0xff]
        %v5639 = vld [vmem:[%s5627 + $0x58] sm:$0xff]
        %v5640 = vld [vmem:[%s5627 + $0x60] sm:$0xff]
        %v5641 = vld [vmem:[%s5627 + $0x68] sm:$0xff]
        %v5642 = vld [vmem:[%s5627 + $0x70] sm:$0xff]
        %v5643 = vld [vmem:[%s5627 + $0x78] sm:$0xff]
        %v5644 = vadd.f32 %v5628, %v5629
        %v5645 = vadd.f32 %v5644, %v5630
        %v5646 = vadd.f32 %v5645, %v5631
        %v5647 = vadd.f32 %v5646, %v5632
        %v5648 = vadd.f32 %v5647, %v5633
        %v5649 = vadd.f32 %v5648, %v5634
        %v5650 = vadd.f32 %v5649, %v5635
        %v5651 = vadd.f32 %v5650, %v5636
        %v5652 = vadd.f32 %v5651, %v5637
        %v5653 = vadd.f32 %v5652, %v5638
        %v5654 = vadd.f32 %v5653, %v5639
        %v5655 = vadd.f32 %v5654, %v5640
        %v5656 = vadd.f32 %v5655, %v5641
        %v5657 = vadd.f32 %v5656, %v5642
        %v5658 = vadd.f32 %v5657, %v5643
        %v5659 = vrot.slane %v5658, 4
        %v5660 = vadd.f32 %v5658, %v5659
        %v5661 = vrot.slane %v5660, 2
        %v5662 = vadd.f32 %v5660, %v5661
        %v5663 = vrot.slane %v5662, 1
        %v5664 = vadd.f32 %v5662, %v5663
        %v5665 = vmul.f32 %v5664, 0.0078125
        %v5666 = vmul.f32 %v5628, %v5628
        %v5667 = vmul.f32 %v5629, %v5629
        %v5668 = vmul.f32 %v5630, %v5630
        %v5669 = vmul.f32 %v5631, %v5631
        %v5670 = vmul.f32 %v5632, %v5632
        %v5671 = vmul.f32 %v5633, %v5633
        %v5672 = vmul.f32 %v5634, %v5634
        %v5673 = vmul.f32 %v5635, %v5635
        %v5674 = vmul.f32 %v5636, %v5636
        %v5675 = vmul.f32 %v5637, %v5637
        %v5676 = vmul.f32 %v5638, %v5638
        %v5677 = vmul.f32 %v5639, %v5639
        %v5678 = vmul.f32 %v5640, %v5640
        %v5679 = vmul.f32 %v5641, %v5641
        %v5680 = vmul.f32 %v5642, %v5642
        %v5681 = vmul.f32 %v5643, %v5643
        %v5682 = vadd.f32 %v5666, %v5667
        %v5683 = vadd.f32 %v5682, %v5668
        %v5684 = vadd.f32 %v5683, %v5669
        %v5685 = vadd.f32 %v5684, %v5670
        %v5686 = vadd.f32 %v5685, %v5671
        %v5687 = vadd.f32 %v5686, %v5672
        %v5688 = vadd.f32 %v5687, %v5673
        %v5689 = vadd.f32 %v5688, %v5674
        %v5690 = vadd.f32 %v5689, %v5675
        %v5691 = vadd.f32 %v5690, %v5676
        %v5692 = vadd.f32 %v5691, %v5677
        %v5693 = vadd.f32 %v5692, %v5678
        %v5694 = vadd.f32 %v5693, %v5679
        %v5695 = vadd.f32 %v5694, %v5680
        %v5696 = vadd.f32 %v5695, %v5681
        %v5697 = vrot.slane %v5696, 4
        %v5698 = vadd.f32 %v5696, %v5697
        %v5699 = vrot.slane %v5698, 2
        %v5700 = vadd.f32 %v5698, %v5699
        %v5701 = vrot.slane %v5700, 1
        %v5702 = vadd.f32 %v5700, %v5701
        %v5703 = vmul.f32 %v5702, 0.0078125
        %v5704 = vmul.f32 %v5665, %v5665
        %v5705 = vsub.f32 %v5703, %v5704
        %v5706 = vmax.f32 %v5705, 0.0
        %v5707 = vsub.f32 %v5628, %v5665
        %v5708 = vsub.f32 %v5629, %v5665
        %v5709 = vsub.f32 %v5630, %v5665
        %v5710 = vsub.f32 %v5631, %v5665
        %v5711 = vsub.f32 %v5632, %v5665
        %v5712 = vsub.f32 %v5633, %v5665
        %v5713 = vsub.f32 %v5634, %v5665
        %v5714 = vsub.f32 %v5635, %v5665
        %v5715 = vsub.f32 %v5636, %v5665
        %v5716 = vsub.f32 %v5637, %v5665
        %v5717 = vsub.f32 %v5638, %v5665
        %v5718 = vsub.f32 %v5639, %v5665
        %v5719 = vsub.f32 %v5640, %v5665
        %v5720 = vsub.f32 %v5641, %v5665
        %v5721 = vsub.f32 %v5642, %v5665
        %v5722 = vsub.f32 %v5643, %v5665
        %v5723 = vadd.f32 %v5706, 1e-05
        %v5724 = vrsqrt.pop %v5723
        %v5725 = vmul.f32 %v5707, %v5724
        %v5726 = vmul.f32 %v5708, %v5724
        %v5727 = vmul.f32 %v5709, %v5724
        %v5728 = vmul.f32 %v5710, %v5724
        %v5729 = vmul.f32 %v5711, %v5724
        %v5730 = vmul.f32 %v5712, %v5724
        %v5731 = vmul.f32 %v5713, %v5724
        %v5732 = vmul.f32 %v5714, %v5724
        %v5733 = vmul.f32 %v5715, %v5724
        %v5734 = vmul.f32 %v5716, %v5724
        %v5735 = vmul.f32 %v5717, %v5724
        %v5736 = vmul.f32 %v5718, %v5724
        %v5737 = vmul.f32 %v5719, %v5724
        %v5738 = vmul.f32 %v5720, %v5724
        %v5739 = vmul.f32 %v5721, %v5724
        %v5740 = vmul.f32 %v5722, %v5724
        %v5741 = vmul.f32 %v5725, %v322
        %v5742 = vmul.f32 %v5726, %v327
        %v5743 = vmul.f32 %v5727, %v332
        %v5744 = vmul.f32 %v5728, %v337
        %v5745 = vmul.f32 %v5729, %v342
        %v5746 = vmul.f32 %v5730, %v347
        %v5747 = vmul.f32 %v5731, %v352
        %v5748 = vmul.f32 %v5732, %v357
        %v5749 = vmul.f32 %v5733, %v362
        %v5750 = vmul.f32 %v5734, %v367
        %v5751 = vmul.f32 %v5735, %v372
        %v5752 = vmul.f32 %v5736, %v377
        %v5753 = vmul.f32 %v5737, %v382
        %v5754 = vmul.f32 %v5738, %v387
        %v5755 = vmul.f32 %v5739, %v392
        %v5756 = vmul.f32 %v5740, %v397
        %v5757 = vadd.f32 %v5741, %v418
        %v5758 = vadd.f32 %v5742, %v423
        %v5759 = vadd.f32 %v5743, %v428
        %v5760 = vadd.f32 %v5744, %v433
        %v5761 = vadd.f32 %v5745, %v438
        %v5762 = vadd.f32 %v5746, %v443
        %v5763 = vadd.f32 %v5747, %v448
        %v5764 = vadd.f32 %v5748, %v453
        %v5765 = vadd.f32 %v5749, %v458
        %v5766 = vadd.f32 %v5750, %v463
        %v5767 = vadd.f32 %v5751, %v468
        %v5768 = vadd.f32 %v5752, %v473
        %v5769 = vadd.f32 %v5753, %v478
        %v5770 = vadd.f32 %v5754, %v483
        %v5771 = vadd.f32 %v5755, %v488
        %v5772 = vadd.f32 %v5756, %v493
        %v5773 = vmax.f32 %v5757, 0.0
        %v5774 = vmax.f32 %v5758, 0.0
        %v5775 = vmax.f32 %v5759, 0.0
        %v5776 = vmax.f32 %v5760, 0.0
        %v5777 = vmax.f32 %v5761, 0.0
        %v5778 = vmax.f32 %v5762, 0.0
        %v5779 = vmax.f32 %v5763, 0.0
        %v5780 = vmax.f32 %v5764, 0.0
        %v5781 = vmax.f32 %v5765, 0.0
        %v5782 = vmax.f32 %v5766, 0.0
        %v5783 = vmax.f32 %v5767, 0.0
        %v5784 = vmax.f32 %v5768, 0.0
        %v5785 = vmax.f32 %v5769, 0.0
        %v5786 = vmax.f32 %v5770, 0.0
        %v5787 = vmax.f32 %v5771, 0.0
        %v5788 = vmax.f32 %v5772, 0.0
        %v5789 = vpack.c.bf16 %v5774, %v5773
        %v5790 = vpack.c.bf16 %v5776, %v5775
        %v5791 = vpack.c.bf16 %v5778, %v5777
        %v5792 = vpack.c.bf16 %v5780, %v5779
        %v5793 = vpack.c.bf16 %v5782, %v5781
        %v5794 = vpack.c.bf16 %v5784, %v5783
        %v5795 = vpack.c.bf16 %v5786, %v5785
        %v5796 = vpack.c.bf16 %v5788, %v5787
        %5805 = vrot.lane.b32.xlu0 %v5789, 1
        %v5806 = vpop.permute.xlu0 %5805
        %5807 = vrot.lane.b32.xlu0 %v5790, 1
        %v5808 = vpop.permute.xlu0 %5807
        %5809 = vrot.lane.b32.xlu0 %v5791, 1
        %v5810 = vpop.permute.xlu0 %5809
        %5811 = vrot.lane.b32.xlu0 %v5792, 1
        %v5812 = vpop.permute.xlu0 %5811
        %5813 = vrot.lane.b32.xlu0 %v5793, 1
        %v5814 = vpop.permute.xlu0 %5813
        %5815 = vrot.lane.b32.xlu0 %v5794, 1
        %v5816 = vpop.permute.xlu0 %5815
        %5817 = vrot.lane.b32.xlu0 %v5795, 1
        %v5818 = vpop.permute.xlu0 %5817
        %5819 = vrot.lane.b32.xlu0 %v5796, 1
        %v5820 = vpop.permute.xlu0 %5819
        %v5837 = vsel %vm974, %v5806, 0
        %v5838 = vsel %vm974, %v5808, 0
        %v5839 = vsel %vm974, %v5810, 0
        %v5840 = vsel %vm974, %v5812, 0
        %v5841 = vsel %vm974, %v5814, 0
        %v5842 = vsel %vm974, %v5816, 0
        %v5843 = vsel %vm974, %v5818, 0
        %v5844 = vsel %vm974, %v5820, 0
        %5845 = vrot.lane.b32.xlu0 %v5789, 127
        %v5846 = vpop.permute.xlu0 %5845
        %5847 = vrot.lane.b32.xlu0 %v5790, 127
        %v5848 = vpop.permute.xlu0 %5847
        %5849 = vrot.lane.b32.xlu0 %v5791, 127
        %v5850 = vpop.permute.xlu0 %5849
        %5851 = vrot.lane.b32.xlu0 %v5792, 127
        %v5852 = vpop.permute.xlu0 %5851
        %5853 = vrot.lane.b32.xlu0 %v5793, 127
        %v5854 = vpop.permute.xlu0 %5853
        %5855 = vrot.lane.b32.xlu0 %v5794, 127
        %v5856 = vpop.permute.xlu0 %5855
        %5857 = vrot.lane.b32.xlu0 %v5795, 127
        %v5858 = vpop.permute.xlu0 %5857
        %5859 = vrot.lane.b32.xlu0 %v5796, 127
        %v5860 = vpop.permute.xlu0 %5859
        %v5877 = vsel %vm1021, %v5846, 0
        %v5878 = vsel %vm1021, %v5848, 0
        %v5879 = vsel %vm1021, %v5850, 0
        %v5880 = vsel %vm1021, %v5852, 0
        %v5881 = vsel %vm1021, %v5854, 0
        %v5882 = vsel %vm1021, %v5856, 0
        %v5883 = vsel %vm1021, %v5858, 0
        %v5884 = vsel %vm1021, %v5860, 0
        %5885 = vmatprep.subr.bf16.mxu0 0
        %5886 = vmatpush1.bf16.msra.mxu0 %v5844
        %5887 = vmatprep.subr.bf16.mxu0 0
        %5888 = vmatpush1.bf16.msra.mxu0 %v5843
        %5889 = vmatprep.subr.bf16.mxu0 0
        %5890 = vmatpush1.bf16.msra.mxu0 %v5842
        %5891 = vmatprep.subr.bf16.mxu0 0
        %5892 = vmatpush1.bf16.msra.mxu0 %v5841
        %5893 = vmatprep.subr.bf16.mxu0 0
        %5894 = vmatpush1.bf16.msra.mxu0 %v5840
        %5895 = vmatprep.subr.bf16.mxu0 0
        %5896 = vmatpush1.bf16.msra.mxu0 %v5839
        %5897 = vmatprep.subr.bf16.mxu0 0
        %5898 = vmatpush1.bf16.msra.mxu0 %v5838
        %5899 = vmatprep.subr.bf16.mxu0 0
        %5900 = vmatpush1.bf16.msra.mxu0 %v5837
        %5901 = vmatprep.subr.bf16.mxu0 0
        %5902 = vmatpush2.bf16.msra.mxu0 %v5796
        %5903 = vmatprep.subr.bf16.mxu0 0
        %5904 = vmatpush2.bf16.msra.mxu0 %v5795
        %5905 = vmatprep.subr.bf16.mxu0 0
        %5906 = vmatpush2.bf16.msra.mxu0 %v5794
        %5907 = vmatprep.subr.bf16.mxu0 0
        %5908 = vmatpush2.bf16.msra.mxu0 %v5793
        %5909 = vmatprep.subr.bf16.mxu0 0
        %5910 = vmatpush2.bf16.msra.mxu0 %v5792
        %5911 = vmatprep.subr.bf16.mxu0 0
        %5912 = vmatpush2.bf16.msra.mxu0 %v5791
        %5913 = vmatprep.subr.bf16.mxu0 0
        %5914 = vmatpush2.bf16.msra.mxu0 %v5790
        %5915 = vmatprep.subr.bf16.mxu0 0
        %5916 = vmatpush2.bf16.msra.mxu0 %v5789
        %5917 = vmatprep.mubr.bf16.mxu0 %v1111
        %5918 = vmatmul.mubr.bf16.gmra.mxu0 %v1110
        %v5919 = vpop.f32.mrf.mxu0
        %v5920 = vadd.f32 0.0, %v5919
        %v5921 = vpop.f32.mrf.mxu0
        %v5922 = vpop.f32.mrf.mxu0
        %v5923 = vadd.f32 0.0, %v5922
        %v5924 = vpop.f32.mrf.mxu0
        %5925 = vmatprep.mubr.bf16.mxu0 %v1114
        %5926 = vmatmul.mubr.bf16.gmra.mxu0 %v1113
        %v5927 = vpop.f32.mrf.mxu0
        %v5928 = vadd.f32 0.0, %v5927
        %v5929 = vpop.f32.mrf.mxu0
        %v5930 = vpop.f32.mrf.mxu0
        %v5931 = vadd.f32 0.0, %v5930
        %v5932 = vpop.f32.mrf.mxu0
        %5933 = vmatprep.mubr.bf16.mxu0 %v1117
        %5934 = vmatmul.mubr.bf16.gmra.mxu0 %v1116
        %v5935 = vpop.f32.mrf.mxu0
        %v5936 = vadd.f32 0.0, %v5935
        %v5937 = vpop.f32.mrf.mxu0
        %v5938 = vpop.f32.mrf.mxu0
        %v5939 = vadd.f32 0.0, %v5938
        %v5940 = vpop.f32.mrf.mxu0
        %5941 = vmatprep.mubr.bf16.mxu0 %v1120
        %5942 = vmatmul.mubr.bf16.gmra.mxu0 %v1119
        %v5943 = vpop.f32.mrf.mxu0
        %v5944 = vadd.f32 0.0, %v5943
        %v5945 = vpop.f32.mrf.mxu0
        %v5946 = vpop.f32.mrf.mxu0
        %v5947 = vadd.f32 0.0, %v5946
        %v5948 = vpop.f32.mrf.mxu0
        %5949 = vmatprep.mubr.bf16.mxu0 %v1123
        %5950 = vmatmul.mubr.bf16.gmra.mxu0 %v1122
        %v5951 = vpop.f32.mrf.mxu0
        %v5952 = vadd.f32 0.0, %v5951
        %v5953 = vpop.f32.mrf.mxu0
        %v5954 = vpop.f32.mrf.mxu0
        %v5955 = vadd.f32 0.0, %v5954
        %v5956 = vpop.f32.mrf.mxu0
        %5957 = vmatprep.mubr.bf16.mxu0 %v1126
        %5958 = vmatmul.mubr.bf16.gmra.mxu0 %v1125
        %v5959 = vpop.f32.mrf.mxu0
        %v5960 = vadd.f32 0.0, %v5959
        %v5961 = vpop.f32.mrf.mxu0
        %v5962 = vpop.f32.mrf.mxu0
        %v5963 = vadd.f32 0.0, %v5962
        %v5964 = vpop.f32.mrf.mxu0
        %5965 = vmatprep.mubr.bf16.mxu0 %v1129
        %5966 = vmatmul.mubr.bf16.gmra.mxu0 %v1128
        %v5967 = vpop.f32.mrf.mxu0
        %v5968 = vadd.f32 0.0, %v5967
        %v5969 = vpop.f32.mrf.mxu0
        %v5970 = vpop.f32.mrf.mxu0
        %v5971 = vadd.f32 0.0, %v5970
        %v5972 = vpop.f32.mrf.mxu0
        %5973 = vmatprep.mubr.bf16.mxu0 %v1132
        %5974 = vmatmul.mubr.bf16.gmra.mxu0 %v1131
        %v5975 = vpop.f32.mrf.mxu0
        %v5976 = vadd.f32 0.0, %v5975
        %v5977 = vpop.f32.mrf.mxu0
        %v5978 = vpop.f32.mrf.mxu0
        %v5979 = vadd.f32 0.0, %v5978
        %v5980 = vpop.f32.mrf.mxu0
        %5981 = vdwg.mxu0
        %5982 = vmatprep.subr.bf16.mxu0 0
        %5983 = vmatpush1.bf16.msra.mxu0 %v5884
        %5984 = vmatprep.subr.bf16.mxu0 0
        %5985 = vmatpush1.bf16.msra.mxu0 %v5883
        %5986 = vmatprep.subr.bf16.mxu0 0
        %5987 = vmatpush1.bf16.msra.mxu0 %v5882
        %5988 = vmatprep.subr.bf16.mxu0 0
        %5989 = vmatpush1.bf16.msra.mxu0 %v5881
        %5990 = vmatprep.subr.bf16.mxu0 0
        %5991 = vmatpush1.bf16.msra.mxu0 %v5880
        %5992 = vmatprep.subr.bf16.mxu0 0
        %5993 = vmatpush1.bf16.msra.mxu0 %v5879
        %5994 = vmatprep.subr.bf16.mxu0 0
        %5995 = vmatpush1.bf16.msra.mxu0 %v5878
        %5996 = vmatprep.subr.bf16.mxu0 0
        %5997 = vmatpush1.bf16.msra.mxu0 %v5877
        %5998 = vmatprep.subr.bf16.mxu0 0
        %5999 = vmatpush2.bf16.msra.mxu0 0
        %6000 = vmatprep.subr.bf16.mxu0 0
        %6001 = vmatpush2.bf16.msra.mxu0 0
        %6002 = vmatprep.subr.bf16.mxu0 0
        %6003 = vmatpush2.bf16.msra.mxu0 0
        %6004 = vmatprep.subr.bf16.mxu0 0
        %6005 = vmatpush2.bf16.msra.mxu0 0
        %6006 = vmatprep.subr.bf16.mxu0 0
        %6007 = vmatpush2.bf16.msra.mxu0 0
        %6008 = vmatprep.subr.bf16.mxu0 0
        %6009 = vmatpush2.bf16.msra.mxu0 0
        %6010 = vmatprep.subr.bf16.mxu0 0
        %6011 = vmatpush2.bf16.msra.mxu0 0
        %6012 = vmatprep.subr.bf16.mxu0 0
        %6013 = vmatpush2.bf16.msra.mxu0 0
        %6014 = vmatprep.mubr.bf16.mxu0 0
        %6015 = vmatmul.mubr.bf16.gmra.mxu0 %v1112
        %v6016 = vpop.f32.mrf.mxu0
        %v6017 = vadd.f32 %v5920, %v6016
        %v6018 = vpop.f32.mrf.mxu0
        %v6019 = vpop.f32.mrf.mxu0
        %v6020 = vadd.f32 %v5923, %v6019
        %v6021 = vpop.f32.mrf.mxu0
        %6022 = vmatprep.mubr.bf16.mxu0 0
        %6023 = vmatmul.mubr.bf16.gmra.mxu0 %v1115
        %v6024 = vpop.f32.mrf.mxu0
        %v6025 = vadd.f32 %v5928, %v6024
        %v6026 = vpop.f32.mrf.mxu0
        %v6027 = vpop.f32.mrf.mxu0
        %v6028 = vadd.f32 %v5931, %v6027
        %v6029 = vpop.f32.mrf.mxu0
        %6030 = vmatprep.mubr.bf16.mxu0 0
        %6031 = vmatmul.mubr.bf16.gmra.mxu0 %v1118
        %v6032 = vpop.f32.mrf.mxu0
        %v6033 = vadd.f32 %v5936, %v6032
        %v6034 = vpop.f32.mrf.mxu0
        %v6035 = vpop.f32.mrf.mxu0
        %v6036 = vadd.f32 %v5939, %v6035
        %v6037 = vpop.f32.mrf.mxu0
        %6038 = vmatprep.mubr.bf16.mxu0 0
        %6039 = vmatmul.mubr.bf16.gmra.mxu0 %v1121
        %v6040 = vpop.f32.mrf.mxu0
        %v6041 = vadd.f32 %v5944, %v6040
        %v6042 = vpop.f32.mrf.mxu0
        %v6043 = vpop.f32.mrf.mxu0
        %v6044 = vadd.f32 %v5947, %v6043
        %v6045 = vpop.f32.mrf.mxu0
        %6046 = vmatprep.mubr.bf16.mxu0 0
        %6047 = vmatmul.mubr.bf16.gmra.mxu0 %v1124
        %v6048 = vpop.f32.mrf.mxu0
        %v6049 = vadd.f32 %v5952, %v6048
        %v6050 = vpop.f32.mrf.mxu0
        %v6051 = vpop.f32.mrf.mxu0
        %v6052 = vadd.f32 %v5955, %v6051
        %v6053 = vpop.f32.mrf.mxu0
        %6054 = vmatprep.mubr.bf16.mxu0 0
        %6055 = vmatmul.mubr.bf16.gmra.mxu0 %v1127
        %v6056 = vpop.f32.mrf.mxu0
        %v6057 = vadd.f32 %v5960, %v6056
        %v6058 = vpop.f32.mrf.mxu0
        %v6059 = vpop.f32.mrf.mxu0
        %v6060 = vadd.f32 %v5963, %v6059
        %v6061 = vpop.f32.mrf.mxu0
        %6062 = vmatprep.mubr.bf16.mxu0 0
        %6063 = vmatmul.mubr.bf16.gmra.mxu0 %v1130
        %v6064 = vpop.f32.mrf.mxu0
        %v6065 = vadd.f32 %v5968, %v6064
        %v6066 = vpop.f32.mrf.mxu0
        %v6067 = vpop.f32.mrf.mxu0
        %v6068 = vadd.f32 %v5971, %v6067
        %v6069 = vpop.f32.mrf.mxu0
        %6070 = vmatprep.mubr.bf16.mxu0 0
        %6071 = vmatmul.mubr.bf16.gmra.mxu0 %v1133
        %v6072 = vpop.f32.mrf.mxu0
        %v6073 = vadd.f32 %v5976, %v6072
        %v6074 = vpop.f32.mrf.mxu0
        %v6075 = vpop.f32.mrf.mxu0
        %v6076 = vadd.f32 %v5979, %v6075
        %v6077 = vpop.f32.mrf.mxu0
        %6078 = vdwg.mxu0
        %v6079 = vadd.f32 %v6017, %v6020
        %v6080 = vadd.f32 %v6079, %v6025
        %v6081 = vadd.f32 %v6080, %v6028
        %v6082 = vadd.f32 %v6081, %v6033
        %v6083 = vadd.f32 %v6082, %v6036
        %v6084 = vadd.f32 %v6083, %v6041
        %v6085 = vadd.f32 %v6084, %v6044
        %v6086 = vadd.f32 %v6085, %v6049
        %v6087 = vadd.f32 %v6086, %v6052
        %v6088 = vadd.f32 %v6087, %v6057
        %v6089 = vadd.f32 %v6088, %v6060
        %v6090 = vadd.f32 %v6089, %v6065
        %v6091 = vadd.f32 %v6090, %v6068
        %v6092 = vadd.f32 %v6091, %v6073
        %v6093 = vadd.f32 %v6092, %v6076
        %v6094 = vrot.slane %v6093, 4
        %v6095 = vadd.f32 %v6093, %v6094
        %v6096 = vrot.slane %v6095, 2
        %v6097 = vadd.f32 %v6095, %v6096
        %v6098 = vrot.slane %v6097, 1
        %v6099 = vadd.f32 %v6097, %v6098
        %v6100 = vmul.f32 %v6099, 0.0078125
        %v6101 = vmul.f32 %v6017, %v6017
        %v6102 = vmul.f32 %v6020, %v6020
        %v6103 = vmul.f32 %v6025, %v6025
        %v6104 = vmul.f32 %v6028, %v6028
        %v6105 = vmul.f32 %v6033, %v6033
        %v6106 = vmul.f32 %v6036, %v6036
        %v6107 = vmul.f32 %v6041, %v6041
        %v6108 = vmul.f32 %v6044, %v6044
        %v6109 = vmul.f32 %v6049, %v6049
        %v6110 = vmul.f32 %v6052, %v6052
        %v6111 = vmul.f32 %v6057, %v6057
        %v6112 = vmul.f32 %v6060, %v6060
        %v6113 = vmul.f32 %v6065, %v6065
        %v6114 = vmul.f32 %v6068, %v6068
        %v6115 = vmul.f32 %v6073, %v6073
        %v6116 = vmul.f32 %v6076, %v6076
        %v6117 = vadd.f32 %v6101, %v6102
        %v6118 = vadd.f32 %v6117, %v6103
        %v6119 = vadd.f32 %v6118, %v6104
        %v6120 = vadd.f32 %v6119, %v6105
        %v6121 = vadd.f32 %v6120, %v6106
        %v6122 = vadd.f32 %v6121, %v6107
        %v6123 = vadd.f32 %v6122, %v6108
        %v6124 = vadd.f32 %v6123, %v6109
        %v6125 = vadd.f32 %v6124, %v6110
        %v6126 = vadd.f32 %v6125, %v6111
        %v6127 = vadd.f32 %v6126, %v6112
        %v6128 = vadd.f32 %v6127, %v6113
        %v6129 = vadd.f32 %v6128, %v6114
        %v6130 = vadd.f32 %v6129, %v6115
        %v6131 = vadd.f32 %v6130, %v6116
        %v6132 = vrot.slane %v6131, 4
        %v6133 = vadd.f32 %v6131, %v6132
        %v6134 = vrot.slane %v6133, 2
        %v6135 = vadd.f32 %v6133, %v6134
        %v6136 = vrot.slane %v6135, 1
        %v6137 = vadd.f32 %v6135, %v6136
        %v6138 = vmul.f32 %v6137, 0.0078125
        %v6139 = vmul.f32 %v6100, %v6100
        %v6140 = vsub.f32 %v6138, %v6139
        %v6141 = vmax.f32 %v6140, 0.0
        %v6142 = vsub.f32 %v6017, %v6100
        %v6143 = vsub.f32 %v6020, %v6100
        %v6144 = vsub.f32 %v6025, %v6100
        %v6145 = vsub.f32 %v6028, %v6100
        %v6146 = vsub.f32 %v6033, %v6100
        %v6147 = vsub.f32 %v6036, %v6100
        %v6148 = vsub.f32 %v6041, %v6100
        %v6149 = vsub.f32 %v6044, %v6100
        %v6150 = vsub.f32 %v6049, %v6100
        %v6151 = vsub.f32 %v6052, %v6100
        %v6152 = vsub.f32 %v6057, %v6100
        %v6153 = vsub.f32 %v6060, %v6100
        %v6154 = vsub.f32 %v6065, %v6100
        %v6155 = vsub.f32 %v6068, %v6100
        %v6156 = vsub.f32 %v6073, %v6100
        %v6157 = vsub.f32 %v6076, %v6100
        %v6158 = vadd.f32 %v6141, 1e-05
        %v6159 = vrsqrt.pop %v6158
        %v6160 = vmul.f32 %v6142, %v6159
        %v6161 = vmul.f32 %v6143, %v6159
        %v6162 = vmul.f32 %v6144, %v6159
        %v6163 = vmul.f32 %v6145, %v6159
        %v6164 = vmul.f32 %v6146, %v6159
        %v6165 = vmul.f32 %v6147, %v6159
        %v6166 = vmul.f32 %v6148, %v6159
        %v6167 = vmul.f32 %v6149, %v6159
        %v6168 = vmul.f32 %v6150, %v6159
        %v6169 = vmul.f32 %v6151, %v6159
        %v6170 = vmul.f32 %v6152, %v6159
        %v6171 = vmul.f32 %v6153, %v6159
        %v6172 = vmul.f32 %v6154, %v6159
        %v6173 = vmul.f32 %v6155, %v6159
        %v6174 = vmul.f32 %v6156, %v6159
        %v6175 = vmul.f32 %v6157, %v6159
        %v6176 = vmul.f32 %v6160, %v514
        %v6177 = vmul.f32 %v6161, %v519
        %v6178 = vmul.f32 %v6162, %v524
        %v6179 = vmul.f32 %v6163, %v529
        %v6180 = vmul.f32 %v6164, %v534
        %v6181 = vmul.f32 %v6165, %v539
        %v6182 = vmul.f32 %v6166, %v544
        %v6183 = vmul.f32 %v6167, %v549
        %v6184 = vmul.f32 %v6168, %v554
        %v6185 = vmul.f32 %v6169, %v559
        %v6186 = vmul.f32 %v6170, %v564
        %v6187 = vmul.f32 %v6171, %v569
        %v6188 = vmul.f32 %v6172, %v574
        %v6189 = vmul.f32 %v6173, %v579
        %v6190 = vmul.f32 %v6174, %v584
        %v6191 = vmul.f32 %v6175, %v589
        %v6192 = vadd.f32 %v6176, %v610
        %v6193 = vadd.f32 %v6177, %v615
        %v6194 = vadd.f32 %v6178, %v620
        %v6195 = vadd.f32 %v6179, %v625
        %v6196 = vadd.f32 %v6180, %v630
        %v6197 = vadd.f32 %v6181, %v635
        %v6198 = vadd.f32 %v6182, %v640
        %v6199 = vadd.f32 %v6183, %v645
        %v6200 = vadd.f32 %v6184, %v650
        %v6201 = vadd.f32 %v6185, %v655
        %v6202 = vadd.f32 %v6186, %v660
        %v6203 = vadd.f32 %v6187, %v665
        %v6204 = vadd.f32 %v6188, %v670
        %v6205 = vadd.f32 %v6189, %v675
        %v6206 = vadd.f32 %v6190, %v680
        %v6207 = vadd.f32 %v6191, %v685
        %v6208 = vmax.f32 %v6192, 0.0
        %v6209 = vmax.f32 %v6193, 0.0
        %v6210 = vmax.f32 %v6194, 0.0
        %v6211 = vmax.f32 %v6195, 0.0
        %v6212 = vmax.f32 %v6196, 0.0
        %v6213 = vmax.f32 %v6197, 0.0
        %v6214 = vmax.f32 %v6198, 0.0
        %v6215 = vmax.f32 %v6199, 0.0
        %v6216 = vmax.f32 %v6200, 0.0
        %v6217 = vmax.f32 %v6201, 0.0
        %v6218 = vmax.f32 %v6202, 0.0
        %v6219 = vmax.f32 %v6203, 0.0
        %v6220 = vmax.f32 %v6204, 0.0
        %v6221 = vmax.f32 %v6205, 0.0
        %v6222 = vmax.f32 %v6206, 0.0
        %v6223 = vmax.f32 %v6207, 0.0
        %v6224 = vpack.c.bf16 %v6209, %v6208
        %v6225 = vpack.c.bf16 %v6211, %v6210
        %v6226 = vpack.c.bf16 %v6213, %v6212
        %v6227 = vpack.c.bf16 %v6215, %v6214
        %v6228 = vpack.c.bf16 %v6217, %v6216
        %v6229 = vpack.c.bf16 %v6219, %v6218
        %v6230 = vpack.c.bf16 %v6221, %v6220
        %v6231 = vpack.c.bf16 %v6223, %v6222
        %6240 = vrot.lane.b32.xlu0 %v6224, 1
        %v6241 = vpop.permute.xlu0 %6240
        %6242 = vrot.lane.b32.xlu0 %v6225, 1
        %v6243 = vpop.permute.xlu0 %6242
        %6244 = vrot.lane.b32.xlu0 %v6226, 1
        %v6245 = vpop.permute.xlu0 %6244
        %6246 = vrot.lane.b32.xlu0 %v6227, 1
        %v6247 = vpop.permute.xlu0 %6246
        %6248 = vrot.lane.b32.xlu0 %v6228, 1
        %v6249 = vpop.permute.xlu0 %6248
        %6250 = vrot.lane.b32.xlu0 %v6229, 1
        %v6251 = vpop.permute.xlu0 %6250
        %6252 = vrot.lane.b32.xlu0 %v6230, 1
        %v6253 = vpop.permute.xlu0 %6252
        %6254 = vrot.lane.b32.xlu0 %v6231, 1
        %v6255 = vpop.permute.xlu0 %6254
        %v6272 = vsel %vm974, %v6241, 0
        %v6273 = vsel %vm974, %v6243, 0
        %v6274 = vsel %vm974, %v6245, 0
        %v6275 = vsel %vm974, %v6247, 0
        %v6276 = vsel %vm974, %v6249, 0
        %v6277 = vsel %vm974, %v6251, 0
        %v6278 = vsel %vm974, %v6253, 0
        %v6279 = vsel %vm974, %v6255, 0
        %6280 = vrot.lane.b32.xlu0 %v6224, 127
        %v6281 = vpop.permute.xlu0 %6280
        %6282 = vrot.lane.b32.xlu0 %v6225, 127
        %v6283 = vpop.permute.xlu0 %6282
        %6284 = vrot.lane.b32.xlu0 %v6226, 127
        %v6285 = vpop.permute.xlu0 %6284
        %6286 = vrot.lane.b32.xlu0 %v6227, 127
        %v6287 = vpop.permute.xlu0 %6286
        %6288 = vrot.lane.b32.xlu0 %v6228, 127
        %v6289 = vpop.permute.xlu0 %6288
        %6290 = vrot.lane.b32.xlu0 %v6229, 127
        %v6291 = vpop.permute.xlu0 %6290
        %6292 = vrot.lane.b32.xlu0 %v6230, 127
        %v6293 = vpop.permute.xlu0 %6292
        %6294 = vrot.lane.b32.xlu0 %v6231, 127
        %v6295 = vpop.permute.xlu0 %6294
        %v6312 = vsel %vm1021, %v6281, 0
        %v6313 = vsel %vm1021, %v6283, 0
        %v6314 = vsel %vm1021, %v6285, 0
        %v6315 = vsel %vm1021, %v6287, 0
        %v6316 = vsel %vm1021, %v6289, 0
        %v6317 = vsel %vm1021, %v6291, 0
        %v6318 = vsel %vm1021, %v6293, 0
        %v6319 = vsel %vm1021, %v6295, 0
        %6320 = vmatprep.subr.bf16.mxu0 0
        %6321 = vmatpush1.bf16.msra.mxu0 %v6279
        %6322 = vmatprep.subr.bf16.mxu0 0
        %6323 = vmatpush1.bf16.msra.mxu0 %v6278
        %6324 = vmatprep.subr.bf16.mxu0 0
        %6325 = vmatpush1.bf16.msra.mxu0 %v6277
        %6326 = vmatprep.subr.bf16.mxu0 0
        %6327 = vmatpush1.bf16.msra.mxu0 %v6276
        %6328 = vmatprep.subr.bf16.mxu0 0
        %6329 = vmatpush1.bf16.msra.mxu0 %v6275
        %6330 = vmatprep.subr.bf16.mxu0 0
        %6331 = vmatpush1.bf16.msra.mxu0 %v6274
        %6332 = vmatprep.subr.bf16.mxu0 0
        %6333 = vmatpush1.bf16.msra.mxu0 %v6273
        %6334 = vmatprep.subr.bf16.mxu0 0
        %6335 = vmatpush1.bf16.msra.mxu0 %v6272
        %6336 = vmatprep.subr.bf16.mxu0 0
        %6337 = vmatpush2.bf16.msra.mxu0 %v6231
        %6338 = vmatprep.subr.bf16.mxu0 0
        %6339 = vmatpush2.bf16.msra.mxu0 %v6230
        %6340 = vmatprep.subr.bf16.mxu0 0
        %6341 = vmatpush2.bf16.msra.mxu0 %v6229
        %6342 = vmatprep.subr.bf16.mxu0 0
        %6343 = vmatpush2.bf16.msra.mxu0 %v6228
        %6344 = vmatprep.subr.bf16.mxu0 0
        %6345 = vmatpush2.bf16.msra.mxu0 %v6227
        %6346 = vmatprep.subr.bf16.mxu0 0
        %6347 = vmatpush2.bf16.msra.mxu0 %v6226
        %6348 = vmatprep.subr.bf16.mxu0 0
        %6349 = vmatpush2.bf16.msra.mxu0 %v6225
        %6350 = vmatprep.subr.bf16.mxu0 0
        %6351 = vmatpush2.bf16.msra.mxu0 %v6224
        %6352 = vmatprep.mubr.bf16.mxu0 %v1674
        %6353 = vmatmul.mubr.bf16.gmra.mxu0 %v1673
        %v6354 = vpop.f32.mrf.mxu0
        %v6355 = vadd.f32 %v5628, %v6354
        %v6356 = vpop.f32.mrf.mxu0
        %v6357 = vpop.f32.mrf.mxu0
        %v6358 = vadd.f32 %v5629, %v6357
        %v6359 = vpop.f32.mrf.mxu0
        %6360 = vmatprep.mubr.bf16.mxu0 %v1677
        %6361 = vmatmul.mubr.bf16.gmra.mxu0 %v1676
        %v6362 = vpop.f32.mrf.mxu0
        %v6363 = vadd.f32 %v5630, %v6362
        %v6364 = vpop.f32.mrf.mxu0
        %v6365 = vpop.f32.mrf.mxu0
        %v6366 = vadd.f32 %v5631, %v6365
        %v6367 = vpop.f32.mrf.mxu0
        %6368 = vmatprep.mubr.bf16.mxu0 %v1680
        %6369 = vmatmul.mubr.bf16.gmra.mxu0 %v1679
        %v6370 = vpop.f32.mrf.mxu0
        %v6371 = vadd.f32 %v5632, %v6370
        %v6372 = vpop.f32.mrf.mxu0
        %v6373 = vpop.f32.mrf.mxu0
        %v6374 = vadd.f32 %v5633, %v6373
        %v6375 = vpop.f32.mrf.mxu0
        %6376 = vmatprep.mubr.bf16.mxu0 %v1683
        %6377 = vmatmul.mubr.bf16.gmra.mxu0 %v1682
        %v6378 = vpop.f32.mrf.mxu0
        %v6379 = vadd.f32 %v5634, %v6378
        %v6380 = vpop.f32.mrf.mxu0
        %v6381 = vpop.f32.mrf.mxu0
        %v6382 = vadd.f32 %v5635, %v6381
        %v6383 = vpop.f32.mrf.mxu0
        %6384 = vmatprep.mubr.bf16.mxu0 %v1686
        %6385 = vmatmul.mubr.bf16.gmra.mxu0 %v1685
        %v6386 = vpop.f32.mrf.mxu0
        %v6387 = vadd.f32 %v5636, %v6386
        %v6388 = vpop.f32.mrf.mxu0
        %v6389 = vpop.f32.mrf.mxu0
        %v6390 = vadd.f32 %v5637, %v6389
        %v6391 = vpop.f32.mrf.mxu0
        %6392 = vmatprep.mubr.bf16.mxu0 %v1689
        %6393 = vmatmul.mubr.bf16.gmra.mxu0 %v1688
        %v6394 = vpop.f32.mrf.mxu0
        %v6395 = vadd.f32 %v5638, %v6394
        %v6396 = vpop.f32.mrf.mxu0
        %v6397 = vpop.f32.mrf.mxu0
        %v6398 = vadd.f32 %v5639, %v6397
        %v6399 = vpop.f32.mrf.mxu0
        %6400 = vmatprep.mubr.bf16.mxu0 %v1692
        %6401 = vmatmul.mubr.bf16.gmra.mxu0 %v1691
        %v6402 = vpop.f32.mrf.mxu0
        %v6403 = vadd.f32 %v5640, %v6402
        %v6404 = vpop.f32.mrf.mxu0
        %v6405 = vpop.f32.mrf.mxu0
        %v6406 = vadd.f32 %v5641, %v6405
        %v6407 = vpop.f32.mrf.mxu0
        %6408 = vmatprep.mubr.bf16.mxu0 %v1695
        %6409 = vmatmul.mubr.bf16.gmra.mxu0 %v1694
        %v6410 = vpop.f32.mrf.mxu0
        %v6411 = vadd.f32 %v5642, %v6410
        %v6412 = vpop.f32.mrf.mxu0
        %v6413 = vpop.f32.mrf.mxu0
        %v6414 = vadd.f32 %v5643, %v6413
        %v6415 = vpop.f32.mrf.mxu0
        %6416 = vdwg.mxu0
        %6417 = vmatprep.subr.bf16.mxu0 0
        %6418 = vmatpush1.bf16.msra.mxu0 %v6319
        %6419 = vmatprep.subr.bf16.mxu0 0
        %6420 = vmatpush1.bf16.msra.mxu0 %v6318
        %6421 = vmatprep.subr.bf16.mxu0 0
        %6422 = vmatpush1.bf16.msra.mxu0 %v6317
        %6423 = vmatprep.subr.bf16.mxu0 0
        %6424 = vmatpush1.bf16.msra.mxu0 %v6316
        %6425 = vmatprep.subr.bf16.mxu0 0
        %6426 = vmatpush1.bf16.msra.mxu0 %v6315
        %6427 = vmatprep.subr.bf16.mxu0 0
        %6428 = vmatpush1.bf16.msra.mxu0 %v6314
        %6429 = vmatprep.subr.bf16.mxu0 0
        %6430 = vmatpush1.bf16.msra.mxu0 %v6313
        %6431 = vmatprep.subr.bf16.mxu0 0
        %6432 = vmatpush1.bf16.msra.mxu0 %v6312
        %6433 = vmatprep.subr.bf16.mxu0 0
        %6434 = vmatpush2.bf16.msra.mxu0 0
        %6435 = vmatprep.subr.bf16.mxu0 0
        %6436 = vmatpush2.bf16.msra.mxu0 0
        %6437 = vmatprep.subr.bf16.mxu0 0
        %6438 = vmatpush2.bf16.msra.mxu0 0
        %6439 = vmatprep.subr.bf16.mxu0 0
        %6440 = vmatpush2.bf16.msra.mxu0 0
        %6441 = vmatprep.subr.bf16.mxu0 0
        %6442 = vmatpush2.bf16.msra.mxu0 0
        %6443 = vmatprep.subr.bf16.mxu0 0
        %6444 = vmatpush2.bf16.msra.mxu0 0
        %6445 = vmatprep.subr.bf16.mxu0 0
        %6446 = vmatpush2.bf16.msra.mxu0 0
        %6447 = vmatprep.subr.bf16.mxu0 0
        %6448 = vmatpush2.bf16.msra.mxu0 0
        %6449 = vmatprep.mubr.bf16.mxu0 0
        %6450 = vmatmul.mubr.bf16.gmra.mxu0 %v1675
        %v6451 = vpop.f32.mrf.mxu0
        %v6452 = vadd.f32 %v6355, %v6451
        %v6453 = vpop.f32.mrf.mxu0
        %v6454 = vpop.f32.mrf.mxu0
        %v6455 = vadd.f32 %v6358, %v6454
        %v6456 = vpop.f32.mrf.mxu0
        %6457 = vmatprep.mubr.bf16.mxu0 0
        %6458 = vmatmul.mubr.bf16.gmra.mxu0 %v1678
        %v6459 = vpop.f32.mrf.mxu0
        %v6460 = vadd.f32 %v6363, %v6459
        %v6461 = vpop.f32.mrf.mxu0
        %v6462 = vpop.f32.mrf.mxu0
        %v6463 = vadd.f32 %v6366, %v6462
        %v6464 = vpop.f32.mrf.mxu0
        %6465 = vmatprep.mubr.bf16.mxu0 0
        %6466 = vmatmul.mubr.bf16.gmra.mxu0 %v1681
        %v6467 = vpop.f32.mrf.mxu0
        %v6468 = vadd.f32 %v6371, %v6467
        %v6469 = vpop.f32.mrf.mxu0
        %v6470 = vpop.f32.mrf.mxu0
        %v6471 = vadd.f32 %v6374, %v6470
        %v6472 = vpop.f32.mrf.mxu0
        %6473 = vmatprep.mubr.bf16.mxu0 0
        %6474 = vmatmul.mubr.bf16.gmra.mxu0 %v1684
        %v6475 = vpop.f32.mrf.mxu0
        %v6476 = vadd.f32 %v6379, %v6475
        %v6477 = vpop.f32.mrf.mxu0
        %v6478 = vpop.f32.mrf.mxu0
        %v6479 = vadd.f32 %v6382, %v6478
        %v6480 = vpop.f32.mrf.mxu0
        %6481 = vmatprep.mubr.bf16.mxu0 0
        %6482 = vmatmul.mubr.bf16.gmra.mxu0 %v1687
        %v6483 = vpop.f32.mrf.mxu0
        %v6484 = vadd.f32 %v6387, %v6483
        %v6485 = vpop.f32.mrf.mxu0
        %v6486 = vpop.f32.mrf.mxu0
        %v6487 = vadd.f32 %v6390, %v6486
        %v6488 = vpop.f32.mrf.mxu0
        %6489 = vmatprep.mubr.bf16.mxu0 0
        %6490 = vmatmul.mubr.bf16.gmra.mxu0 %v1690
        %v6491 = vpop.f32.mrf.mxu0
        %v6492 = vadd.f32 %v6395, %v6491
        %v6493 = vpop.f32.mrf.mxu0
        %v6494 = vpop.f32.mrf.mxu0
        %v6495 = vadd.f32 %v6398, %v6494
        %v6496 = vpop.f32.mrf.mxu0
        %6497 = vmatprep.mubr.bf16.mxu0 0
        %6498 = vmatmul.mubr.bf16.gmra.mxu0 %v1693
        %v6499 = vpop.f32.mrf.mxu0
        %v6500 = vadd.f32 %v6403, %v6499
        %v6501 = vpop.f32.mrf.mxu0
        %v6502 = vpop.f32.mrf.mxu0
        %v6503 = vadd.f32 %v6406, %v6502
        %v6504 = vpop.f32.mrf.mxu0
        %6505 = vmatprep.mubr.bf16.mxu0 0
        %6506 = vmatmul.mubr.bf16.gmra.mxu0 %v1696
        %v6507 = vpop.f32.mrf.mxu0
        %v6508 = vadd.f32 %v6411, %v6507
        %v6509 = vpop.f32.mrf.mxu0
        %v6510 = vpop.f32.mrf.mxu0
        %v6511 = vadd.f32 %v6414, %v6510
        %v6512 = vpop.f32.mrf.mxu0
        %6513 = vdwg.mxu0
        %v6514 = vmax.f32 %v6452, 0.0
        %v6515 = vmax.f32 %v6455, 0.0
        %v6516 = vmax.f32 %v6460, 0.0
        %v6517 = vmax.f32 %v6463, 0.0
        %v6518 = vmax.f32 %v6468, 0.0
        %v6519 = vmax.f32 %v6471, 0.0
        %v6520 = vmax.f32 %v6476, 0.0
        %v6521 = vmax.f32 %v6479, 0.0
        %v6522 = vmax.f32 %v6484, 0.0
        %v6523 = vmax.f32 %v6487, 0.0
        %v6524 = vmax.f32 %v6492, 0.0
        %v6525 = vmax.f32 %v6495, 0.0
        %v6526 = vmax.f32 %v6500, 0.0
        %v6527 = vmax.f32 %v6503, 0.0
        %v6528 = vmax.f32 %v6508, 0.0
        %v6529 = vmax.f32 %v6511, 0.0
        %s6530 = scalar_lea.vmem %s297, 640 [#allocation5]
        %6531 = vst [vmem:[%s6530] sm:$0xff] %v6514
        %6532 = vst [vmem:[%s6530 + $0x8] sm:$0xff] %v6515
        %6533 = vst [vmem:[%s6530 + $0x10] sm:$0xff] %v6516
        %6534 = vst [vmem:[%s6530 + $0x18] sm:$0xff] %v6517
        %6535 = vst [vmem:[%s6530 + $0x20] sm:$0xff] %v6518
        %6536 = vst [vmem:[%s6530 + $0x28] sm:$0xff] %v6519
        %6537 = vst [vmem:[%s6530 + $0x30] sm:$0xff] %v6520
        %6538 = vst [vmem:[%s6530 + $0x38] sm:$0xff] %v6521
        %6539 = vst [vmem:[%s6530 + $0x40] sm:$0xff] %v6522
        %6540 = vst [vmem:[%s6530 + $0x48] sm:$0xff] %v6523
        %6541 = vst [vmem:[%s6530 + $0x50] sm:$0xff] %v6524
        %6542 = vst [vmem:[%s6530 + $0x58] sm:$0xff] %v6525
        %6543 = vst [vmem:[%s6530 + $0x60] sm:$0xff] %v6526
        %6544 = vst [vmem:[%s6530 + $0x68] sm:$0xff] %v6527
        %6545 = vst [vmem:[%s6530 + $0x70] sm:$0xff] %v6528
        %6546 = vst [vmem:[%s6530 + $0x78] sm:$0xff] %v6529
        %s6547 = scalar_lea.vmem %s267, 768 [#allocation2]
        %v6548 = vld [vmem:[%s6547] sm:$0xff]
        %v6549 = vld [vmem:[%s6547 + $0x8] sm:$0xff]
        %v6550 = vld [vmem:[%s6547 + $0x10] sm:$0xff]
        %v6551 = vld [vmem:[%s6547 + $0x18] sm:$0xff]
        %v6552 = vld [vmem:[%s6547 + $0x20] sm:$0xff]
        %v6553 = vld [vmem:[%s6547 + $0x28] sm:$0xff]
        %v6554 = vld [vmem:[%s6547 + $0x30] sm:$0xff]
        %v6555 = vld [vmem:[%s6547 + $0x38] sm:$0xff]
        %v6556 = vld [vmem:[%s6547 + $0x40] sm:$0xff]
        %v6557 = vld [vmem:[%s6547 + $0x48] sm:$0xff]
        %v6558 = vld [vmem:[%s6547 + $0x50] sm:$0xff]
        %v6559 = vld [vmem:[%s6547 + $0x58] sm:$0xff]
        %v6560 = vld [vmem:[%s6547 + $0x60] sm:$0xff]
        %v6561 = vld [vmem:[%s6547 + $0x68] sm:$0xff]
        %v6562 = vld [vmem:[%s6547 + $0x70] sm:$0xff]
        %v6563 = vld [vmem:[%s6547 + $0x78] sm:$0xff]
        %v6564 = vadd.f32 %v6548, %v6549
        %v6565 = vadd.f32 %v6564, %v6550
        %v6566 = vadd.f32 %v6565, %v6551
        %v6567 = vadd.f32 %v6566, %v6552
        %v6568 = vadd.f32 %v6567, %v6553
        %v6569 = vadd.f32 %v6568, %v6554
        %v6570 = vadd.f32 %v6569, %v6555
        %v6571 = vadd.f32 %v6570, %v6556
        %v6572 = vadd.f32 %v6571, %v6557
        %v6573 = vadd.f32 %v6572, %v6558
        %v6574 = vadd.f32 %v6573, %v6559
        %v6575 = vadd.f32 %v6574, %v6560
        %v6576 = vadd.f32 %v6575, %v6561
        %v6577 = vadd.f32 %v6576, %v6562
        %v6578 = vadd.f32 %v6577, %v6563
        %v6579 = vrot.slane %v6578, 4
        %v6580 = vadd.f32 %v6578, %v6579
        %v6581 = vrot.slane %v6580, 2
        %v6582 = vadd.f32 %v6580, %v6581
        %v6583 = vrot.slane %v6582, 1
        %v6584 = vadd.f32 %v6582, %v6583
        %v6585 = vmul.f32 %v6584, 0.0078125
        %v6586 = vmul.f32 %v6548, %v6548
        %v6587 = vmul.f32 %v6549, %v6549
        %v6588 = vmul.f32 %v6550, %v6550
        %v6589 = vmul.f32 %v6551, %v6551
        %v6590 = vmul.f32 %v6552, %v6552
        %v6591 = vmul.f32 %v6553, %v6553
        %v6592 = vmul.f32 %v6554, %v6554
        %v6593 = vmul.f32 %v6555, %v6555
        %v6594 = vmul.f32 %v6556, %v6556
        %v6595 = vmul.f32 %v6557, %v6557
        %v6596 = vmul.f32 %v6558, %v6558
        %v6597 = vmul.f32 %v6559, %v6559
        %v6598 = vmul.f32 %v6560, %v6560
        %v6599 = vmul.f32 %v6561, %v6561
        %v6600 = vmul.f32 %v6562, %v6562
        %v6601 = vmul.f32 %v6563, %v6563
        %v6602 = vadd.f32 %v6586, %v6587
        %v6603 = vadd.f32 %v6602, %v6588
        %v6604 = vadd.f32 %v6603, %v6589
        %v6605 = vadd.f32 %v6604, %v6590
        %v6606 = vadd.f32 %v6605, %v6591
        %v6607 = vadd.f32 %v6606, %v6592
        %v6608 = vadd.f32 %v6607, %v6593
        %v6609 = vadd.f32 %v6608, %v6594
        %v6610 = vadd.f32 %v6609, %v6595
        %v6611 = vadd.f32 %v6610, %v6596
        %v6612 = vadd.f32 %v6611, %v6597
        %v6613 = vadd.f32 %v6612, %v6598
        %v6614 = vadd.f32 %v6613, %v6599
        %v6615 = vadd.f32 %v6614, %v6600
        %v6616 = vadd.f32 %v6615, %v6601
        %v6617 = vrot.slane %v6616, 4
        %v6618 = vadd.f32 %v6616, %v6617
        %v6619 = vrot.slane %v6618, 2
        %v6620 = vadd.f32 %v6618, %v6619
        %v6621 = vrot.slane %v6620, 1
        %v6622 = vadd.f32 %v6620, %v6621
        %v6623 = vmul.f32 %v6622, 0.0078125
        %v6624 = vmul.f32 %v6585, %v6585
        %v6625 = vsub.f32 %v6623, %v6624
        %v6626 = vmax.f32 %v6625, 0.0
        %v6627 = vsub.f32 %v6548, %v6585
        %v6628 = vsub.f32 %v6549, %v6585
        %v6629 = vsub.f32 %v6550, %v6585
        %v6630 = vsub.f32 %v6551, %v6585
        %v6631 = vsub.f32 %v6552, %v6585
        %v6632 = vsub.f32 %v6553, %v6585
        %v6633 = vsub.f32 %v6554, %v6585
        %v6634 = vsub.f32 %v6555, %v6585
        %v6635 = vsub.f32 %v6556, %v6585
        %v6636 = vsub.f32 %v6557, %v6585
        %v6637 = vsub.f32 %v6558, %v6585
        %v6638 = vsub.f32 %v6559, %v6585
        %v6639 = vsub.f32 %v6560, %v6585
        %v6640 = vsub.f32 %v6561, %v6585
        %v6641 = vsub.f32 %v6562, %v6585
        %v6642 = vsub.f32 %v6563, %v6585
        %v6643 = vadd.f32 %v6626, 1e-05
        %v6644 = vrsqrt.pop %v6643
        %v6645 = vmul.f32 %v6627, %v6644
        %v6646 = vmul.f32 %v6628, %v6644
        %v6647 = vmul.f32 %v6629, %v6644
        %v6648 = vmul.f32 %v6630, %v6644
        %v6649 = vmul.f32 %v6631, %v6644
        %v6650 = vmul.f32 %v6632, %v6644
        %v6651 = vmul.f32 %v6633, %v6644
        %v6652 = vmul.f32 %v6634, %v6644
        %v6653 = vmul.f32 %v6635, %v6644
        %v6654 = vmul.f32 %v6636, %v6644
        %v6655 = vmul.f32 %v6637, %v6644
        %v6656 = vmul.f32 %v6638, %v6644
        %v6657 = vmul.f32 %v6639, %v6644
        %v6658 = vmul.f32 %v6640, %v6644
        %v6659 = vmul.f32 %v6641, %v6644
        %v6660 = vmul.f32 %v6642, %v6644
        %v6661 = vmul.f32 %v6645, %v322
        %v6662 = vmul.f32 %v6646, %v327
        %v6663 = vmul.f32 %v6647, %v332
        %v6664 = vmul.f32 %v6648, %v337
        %v6665 = vmul.f32 %v6649, %v342
        %v6666 = vmul.f32 %v6650, %v347
        %v6667 = vmul.f32 %v6651, %v352
        %v6668 = vmul.f32 %v6652, %v357
        %v6669 = vmul.f32 %v6653, %v362
        %v6670 = vmul.f32 %v6654, %v367
        %v6671 = vmul.f32 %v6655, %v372
        %v6672 = vmul.f32 %v6656, %v377
        %v6673 = vmul.f32 %v6657, %v382
        %v6674 = vmul.f32 %v6658, %v387
        %v6675 = vmul.f32 %v6659, %v392
        %v6676 = vmul.f32 %v6660, %v397
        %v6677 = vadd.f32 %v6661, %v418
        %v6678 = vadd.f32 %v6662, %v423
        %v6679 = vadd.f32 %v6663, %v428
        %v6680 = vadd.f32 %v6664, %v433
        %v6681 = vadd.f32 %v6665, %v438
        %v6682 = vadd.f32 %v6666, %v443
        %v6683 = vadd.f32 %v6667, %v448
        %v6684 = vadd.f32 %v6668, %v453
        %v6685 = vadd.f32 %v6669, %v458
        %v6686 = vadd.f32 %v6670, %v463
        %v6687 = vadd.f32 %v6671, %v468
        %v6688 = vadd.f32 %v6672, %v473
        %v6689 = vadd.f32 %v6673, %v478
        %v6690 = vadd.f32 %v6674, %v483
        %v6691 = vadd.f32 %v6675, %v488
        %v6692 = vadd.f32 %v6676, %v493
        %v6693 = vmax.f32 %v6677, 0.0
        %v6694 = vmax.f32 %v6678, 0.0
        %v6695 = vmax.f32 %v6679, 0.0
        %v6696 = vmax.f32 %v6680, 0.0
        %v6697 = vmax.f32 %v6681, 0.0
        %v6698 = vmax.f32 %v6682, 0.0
        %v6699 = vmax.f32 %v6683, 0.0
        %v6700 = vmax.f32 %v6684, 0.0
        %v6701 = vmax.f32 %v6685, 0.0
        %v6702 = vmax.f32 %v6686, 0.0
        %v6703 = vmax.f32 %v6687, 0.0
        %v6704 = vmax.f32 %v6688, 0.0
        %v6705 = vmax.f32 %v6689, 0.0
        %v6706 = vmax.f32 %v6690, 0.0
        %v6707 = vmax.f32 %v6691, 0.0
        %v6708 = vmax.f32 %v6692, 0.0
        %v6709 = vpack.c.bf16 %v6694, %v6693
        %v6710 = vpack.c.bf16 %v6696, %v6695
        %v6711 = vpack.c.bf16 %v6698, %v6697
        %v6712 = vpack.c.bf16 %v6700, %v6699
        %v6713 = vpack.c.bf16 %v6702, %v6701
        %v6714 = vpack.c.bf16 %v6704, %v6703
        %v6715 = vpack.c.bf16 %v6706, %v6705
        %v6716 = vpack.c.bf16 %v6708, %v6707
        %6725 = vrot.lane.b32.xlu0 %v6709, 1
        %v6726 = vpop.permute.xlu0 %6725
        %6727 = vrot.lane.b32.xlu0 %v6710, 1
        %v6728 = vpop.permute.xlu0 %6727
        %6729 = vrot.lane.b32.xlu0 %v6711, 1
        %v6730 = vpop.permute.xlu0 %6729
        %6731 = vrot.lane.b32.xlu0 %v6712, 1
        %v6732 = vpop.permute.xlu0 %6731
        %6733 = vrot.lane.b32.xlu0 %v6713, 1
        %v6734 = vpop.permute.xlu0 %6733
        %6735 = vrot.lane.b32.xlu0 %v6714, 1
        %v6736 = vpop.permute.xlu0 %6735
        %6737 = vrot.lane.b32.xlu0 %v6715, 1
        %v6738 = vpop.permute.xlu0 %6737
        %6739 = vrot.lane.b32.xlu0 %v6716, 1
        %v6740 = vpop.permute.xlu0 %6739
        %v6757 = vsel %vm974, %v6726, 0
        %v6758 = vsel %vm974, %v6728, 0
        %v6759 = vsel %vm974, %v6730, 0
        %v6760 = vsel %vm974, %v6732, 0
        %v6761 = vsel %vm974, %v6734, 0
        %v6762 = vsel %vm974, %v6736, 0
        %v6763 = vsel %vm974, %v6738, 0
        %v6764 = vsel %vm974, %v6740, 0
        %6765 = vrot.lane.b32.xlu0 %v6709, 127
        %v6766 = vpop.permute.xlu0 %6765
        %6767 = vrot.lane.b32.xlu0 %v6710, 127
        %v6768 = vpop.permute.xlu0 %6767
        %6769 = vrot.lane.b32.xlu0 %v6711, 127
        %v6770 = vpop.permute.xlu0 %6769
        %6771 = vrot.lane.b32.xlu0 %v6712, 127
        %v6772 = vpop.permute.xlu0 %6771
        %6773 = vrot.lane.b32.xlu0 %v6713, 127
        %v6774 = vpop.permute.xlu0 %6773
        %6775 = vrot.lane.b32.xlu0 %v6714, 127
        %v6776 = vpop.permute.xlu0 %6775
        %6777 = vrot.lane.b32.xlu0 %v6715, 127
        %v6778 = vpop.permute.xlu0 %6777
        %6779 = vrot.lane.b32.xlu0 %v6716, 127
        %v6780 = vpop.permute.xlu0 %6779
        %v6797 = vsel %vm1021, %v6766, 0
        %v6798 = vsel %vm1021, %v6768, 0
        %v6799 = vsel %vm1021, %v6770, 0
        %v6800 = vsel %vm1021, %v6772, 0
        %v6801 = vsel %vm1021, %v6774, 0
        %v6802 = vsel %vm1021, %v6776, 0
        %v6803 = vsel %vm1021, %v6778, 0
        %v6804 = vsel %vm1021, %v6780, 0
        %6805 = vmatprep.subr.bf16.mxu0 0
        %6806 = vmatpush1.bf16.msra.mxu0 %v6764
        %6807 = vmatprep.subr.bf16.mxu0 0
        %6808 = vmatpush1.bf16.msra.mxu0 %v6763
        %6809 = vmatprep.subr.bf16.mxu0 0
        %6810 = vmatpush1.bf16.msra.mxu0 %v6762
        %6811 = vmatprep.subr.bf16.mxu0 0
        %6812 = vmatpush1.bf16.msra.mxu0 %v6761
        %6813 = vmatprep.subr.bf16.mxu0 0
        %6814 = vmatpush1.bf16.msra.mxu0 %v6760
        %6815 = vmatprep.subr.bf16.mxu0 0
        %6816 = vmatpush1.bf16.msra.mxu0 %v6759
        %6817 = vmatprep.subr.bf16.mxu0 0
        %6818 = vmatpush1.bf16.msra.mxu0 %v6758
        %6819 = vmatprep.subr.bf16.mxu0 0
        %6820 = vmatpush1.bf16.msra.mxu0 %v6757
        %6821 = vmatprep.subr.bf16.mxu0 0
        %6822 = vmatpush2.bf16.msra.mxu0 %v6716
        %6823 = vmatprep.subr.bf16.mxu0 0
        %6824 = vmatpush2.bf16.msra.mxu0 %v6715
        %6825 = vmatprep.subr.bf16.mxu0 0
        %6826 = vmatpush2.bf16.msra.mxu0 %v6714
        %6827 = vmatprep.subr.bf16.mxu0 0
        %6828 = vmatpush2.bf16.msra.mxu0 %v6713
        %6829 = vmatprep.subr.bf16.mxu0 0
        %6830 = vmatpush2.bf16.msra.mxu0 %v6712
        %6831 = vmatprep.subr.bf16.mxu0 0
        %6832 = vmatpush2.bf16.msra.mxu0 %v6711
        %6833 = vmatprep.subr.bf16.mxu0 0
        %6834 = vmatpush2.bf16.msra.mxu0 %v6710
        %6835 = vmatprep.subr.bf16.mxu0 0
        %6836 = vmatpush2.bf16.msra.mxu0 %v6709
        %6837 = vmatprep.mubr.bf16.mxu0 %v1111
        %6838 = vmatmul.mubr.bf16.gmra.mxu0 %v1110
        %v6839 = vpop.f32.mrf.mxu0
        %v6840 = vadd.f32 0.0, %v6839
        %v6841 = vpop.f32.mrf.mxu0
        %v6842 = vpop.f32.mrf.mxu0
        %v6843 = vadd.f32 0.0, %v6842
        %v6844 = vpop.f32.mrf.mxu0
        %6845 = vmatprep.mubr.bf16.mxu0 %v1114
        %6846 = vmatmul.mubr.bf16.gmra.mxu0 %v1113
        %v6847 = vpop.f32.mrf.mxu0
        %v6848 = vadd.f32 0.0, %v6847
        %v6849 = vpop.f32.mrf.mxu0
        %v6850 = vpop.f32.mrf.mxu0
        %v6851 = vadd.f32 0.0, %v6850
        %v6852 = vpop.f32.mrf.mxu0
        %6853 = vmatprep.mubr.bf16.mxu0 %v1117
        %6854 = vmatmul.mubr.bf16.gmra.mxu0 %v1116
        %v6855 = vpop.f32.mrf.mxu0
        %v6856 = vadd.f32 0.0, %v6855
        %v6857 = vpop.f32.mrf.mxu0
        %v6858 = vpop.f32.mrf.mxu0
        %v6859 = vadd.f32 0.0, %v6858
        %v6860 = vpop.f32.mrf.mxu0
        %6861 = vmatprep.mubr.bf16.mxu0 %v1120
        %6862 = vmatmul.mubr.bf16.gmra.mxu0 %v1119
        %v6863 = vpop.f32.mrf.mxu0
        %v6864 = vadd.f32 0.0, %v6863
        %v6865 = vpop.f32.mrf.mxu0
        %v6866 = vpop.f32.mrf.mxu0
        %v6867 = vadd.f32 0.0, %v6866
        %v6868 = vpop.f32.mrf.mxu0
        %6869 = vmatprep.mubr.bf16.mxu0 %v1123
        %6870 = vmatmul.mubr.bf16.gmra.mxu0 %v1122
        %v6871 = vpop.f32.mrf.mxu0
        %v6872 = vadd.f32 0.0, %v6871
        %v6873 = vpop.f32.mrf.mxu0
        %v6874 = vpop.f32.mrf.mxu0
        %v6875 = vadd.f32 0.0, %v6874
        %v6876 = vpop.f32.mrf.mxu0
        %6877 = vmatprep.mubr.bf16.mxu0 %v1126
        %6878 = vmatmul.mubr.bf16.gmra.mxu0 %v1125
        %v6879 = vpop.f32.mrf.mxu0
        %v6880 = vadd.f32 0.0, %v6879
        %v6881 = vpop.f32.mrf.mxu0
        %v6882 = vpop.f32.mrf.mxu0
        %v6883 = vadd.f32 0.0, %v6882
        %v6884 = vpop.f32.mrf.mxu0
        %6885 = vmatprep.mubr.bf16.mxu0 %v1129
        %6886 = vmatmul.mubr.bf16.gmra.mxu0 %v1128
        %v6887 = vpop.f32.mrf.mxu0
        %v6888 = vadd.f32 0.0, %v6887
        %v6889 = vpop.f32.mrf.mxu0
        %v6890 = vpop.f32.mrf.mxu0
        %v6891 = vadd.f32 0.0, %v6890
        %v6892 = vpop.f32.mrf.mxu0
        %6893 = vmatprep.mubr.bf16.mxu0 %v1132
        %6894 = vmatmul.mubr.bf16.gmra.mxu0 %v1131
        %v6895 = vpop.f32.mrf.mxu0
        %v6896 = vadd.f32 0.0, %v6895
        %v6897 = vpop.f32.mrf.mxu0
        %v6898 = vpop.f32.mrf.mxu0
        %v6899 = vadd.f32 0.0, %v6898
        %v6900 = vpop.f32.mrf.mxu0
        %6901 = vdwg.mxu0
        %6902 = vmatprep.subr.bf16.mxu0 0
        %6903 = vmatpush1.bf16.msra.mxu0 %v6804
        %6904 = vmatprep.subr.bf16.mxu0 0
        %6905 = vmatpush1.bf16.msra.mxu0 %v6803
        %6906 = vmatprep.subr.bf16.mxu0 0
        %6907 = vmatpush1.bf16.msra.mxu0 %v6802
        %6908 = vmatprep.subr.bf16.mxu0 0
        %6909 = vmatpush1.bf16.msra.mxu0 %v6801
        %6910 = vmatprep.subr.bf16.mxu0 0
        %6911 = vmatpush1.bf16.msra.mxu0 %v6800
        %6912 = vmatprep.subr.bf16.mxu0 0
        %6913 = vmatpush1.bf16.msra.mxu0 %v6799
        %6914 = vmatprep.subr.bf16.mxu0 0
        %6915 = vmatpush1.bf16.msra.mxu0 %v6798
        %6916 = vmatprep.subr.bf16.mxu0 0
        %6917 = vmatpush1.bf16.msra.mxu0 %v6797
        %6918 = vmatprep.subr.bf16.mxu0 0
        %6919 = vmatpush2.bf16.msra.mxu0 0
        %6920 = vmatprep.subr.bf16.mxu0 0
        %6921 = vmatpush2.bf16.msra.mxu0 0
        %6922 = vmatprep.subr.bf16.mxu0 0
        %6923 = vmatpush2.bf16.msra.mxu0 0
        %6924 = vmatprep.subr.bf16.mxu0 0
        %6925 = vmatpush2.bf16.msra.mxu0 0
        %6926 = vmatprep.subr.bf16.mxu0 0
        %6927 = vmatpush2.bf16.msra.mxu0 0
        %6928 = vmatprep.subr.bf16.mxu0 0
        %6929 = vmatpush2.bf16.msra.mxu0 0
        %6930 = vmatprep.subr.bf16.mxu0 0
        %6931 = vmatpush2.bf16.msra.mxu0 0
        %6932 = vmatprep.subr.bf16.mxu0 0
        %6933 = vmatpush2.bf16.msra.mxu0 0
        %6934 = vmatprep.mubr.bf16.mxu0 0
        %6935 = vmatmul.mubr.bf16.gmra.mxu0 %v1112
        %v6936 = vpop.f32.mrf.mxu0
        %v6937 = vadd.f32 %v6840, %v6936
        %v6938 = vpop.f32.mrf.mxu0
        %v6939 = vpop.f32.mrf.mxu0
        %v6940 = vadd.f32 %v6843, %v6939
        %v6941 = vpop.f32.mrf.mxu0
        %6942 = vmatprep.mubr.bf16.mxu0 0
        %6943 = vmatmul.mubr.bf16.gmra.mxu0 %v1115
        %v6944 = vpop.f32.mrf.mxu0
        %v6945 = vadd.f32 %v6848, %v6944
        %v6946 = vpop.f32.mrf.mxu0
        %v6947 = vpop.f32.mrf.mxu0
        %v6948 = vadd.f32 %v6851, %v6947
        %v6949 = vpop.f32.mrf.mxu0
        %6950 = vmatprep.mubr.bf16.mxu0 0
        %6951 = vmatmul.mubr.bf16.gmra.mxu0 %v1118
        %v6952 = vpop.f32.mrf.mxu0
        %v6953 = vadd.f32 %v6856, %v6952
        %v6954 = vpop.f32.mrf.mxu0
        %v6955 = vpop.f32.mrf.mxu0
        %v6956 = vadd.f32 %v6859, %v6955
        %v6957 = vpop.f32.mrf.mxu0
        %6958 = vmatprep.mubr.bf16.mxu0 0
        %6959 = vmatmul.mubr.bf16.gmra.mxu0 %v1121
        %v6960 = vpop.f32.mrf.mxu0
        %v6961 = vadd.f32 %v6864, %v6960
        %v6962 = vpop.f32.mrf.mxu0
        %v6963 = vpop.f32.mrf.mxu0
        %v6964 = vadd.f32 %v6867, %v6963
        %v6965 = vpop.f32.mrf.mxu0
        %6966 = vmatprep.mubr.bf16.mxu0 0
        %6967 = vmatmul.mubr.bf16.gmra.mxu0 %v1124
        %v6968 = vpop.f32.mrf.mxu0
        %v6969 = vadd.f32 %v6872, %v6968
        %v6970 = vpop.f32.mrf.mxu0
        %v6971 = vpop.f32.mrf.mxu0
        %v6972 = vadd.f32 %v6875, %v6971
        %v6973 = vpop.f32.mrf.mxu0
        %6974 = vmatprep.mubr.bf16.mxu0 0
        %6975 = vmatmul.mubr.bf16.gmra.mxu0 %v1127
        %v6976 = vpop.f32.mrf.mxu0
        %v6977 = vadd.f32 %v6880, %v6976
        %v6978 = vpop.f32.mrf.mxu0
        %v6979 = vpop.f32.mrf.mxu0
        %v6980 = vadd.f32 %v6883, %v6979
        %v6981 = vpop.f32.mrf.mxu0
        %6982 = vmatprep.mubr.bf16.mxu0 0
        %6983 = vmatmul.mubr.bf16.gmra.mxu0 %v1130
        %v6984 = vpop.f32.mrf.mxu0
        %v6985 = vadd.f32 %v6888, %v6984
        %v6986 = vpop.f32.mrf.mxu0
        %v6987 = vpop.f32.mrf.mxu0
        %v6988 = vadd.f32 %v6891, %v6987
        %v6989 = vpop.f32.mrf.mxu0
        %6990 = vmatprep.mubr.bf16.mxu0 0
        %6991 = vmatmul.mubr.bf16.gmra.mxu0 %v1133
        %v6992 = vpop.f32.mrf.mxu0
        %v6993 = vadd.f32 %v6896, %v6992
        %v6994 = vpop.f32.mrf.mxu0
        %v6995 = vpop.f32.mrf.mxu0
        %v6996 = vadd.f32 %v6899, %v6995
        %v6997 = vpop.f32.mrf.mxu0
        %6998 = vdwg.mxu0
        %v6999 = vadd.f32 %v6937, %v6940
        %v7000 = vadd.f32 %v6999, %v6945
        %v7001 = vadd.f32 %v7000, %v6948
        %v7002 = vadd.f32 %v7001, %v6953
        %v7003 = vadd.f32 %v7002, %v6956
        %v7004 = vadd.f32 %v7003, %v6961
        %v7005 = vadd.f32 %v7004, %v6964
        %v7006 = vadd.f32 %v7005, %v6969
        %v7007 = vadd.f32 %v7006, %v6972
        %v7008 = vadd.f32 %v7007, %v6977
        %v7009 = vadd.f32 %v7008, %v6980
        %v7010 = vadd.f32 %v7009, %v6985
        %v7011 = vadd.f32 %v7010, %v6988
        %v7012 = vadd.f32 %v7011, %v6993
        %v7013 = vadd.f32 %v7012, %v6996
        %v7014 = vrot.slane %v7013, 4
        %v7015 = vadd.f32 %v7013, %v7014
        %v7016 = vrot.slane %v7015, 2
        %v7017 = vadd.f32 %v7015, %v7016
        %v7018 = vrot.slane %v7017, 1
        %v7019 = vadd.f32 %v7017, %v7018
        %v7020 = vmul.f32 %v7019, 0.0078125
        %v7021 = vmul.f32 %v6937, %v6937
        %v7022 = vmul.f32 %v6940, %v6940
        %v7023 = vmul.f32 %v6945, %v6945
        %v7024 = vmul.f32 %v6948, %v6948
        %v7025 = vmul.f32 %v6953, %v6953
        %v7026 = vmul.f32 %v6956, %v6956
        %v7027 = vmul.f32 %v6961, %v6961
        %v7028 = vmul.f32 %v6964, %v6964
        %v7029 = vmul.f32 %v6969, %v6969
        %v7030 = vmul.f32 %v6972, %v6972
        %v7031 = vmul.f32 %v6977, %v6977
        %v7032 = vmul.f32 %v6980, %v6980
        %v7033 = vmul.f32 %v6985, %v6985
        %v7034 = vmul.f32 %v6988, %v6988
        %v7035 = vmul.f32 %v6993, %v6993
        %v7036 = vmul.f32 %v6996, %v6996
        %v7037 = vadd.f32 %v7021, %v7022
        %v7038 = vadd.f32 %v7037, %v7023
        %v7039 = vadd.f32 %v7038, %v7024
        %v7040 = vadd.f32 %v7039, %v7025
        %v7041 = vadd.f32 %v7040, %v7026
        %v7042 = vadd.f32 %v7041, %v7027
        %v7043 = vadd.f32 %v7042, %v7028
        %v7044 = vadd.f32 %v7043, %v7029
        %v7045 = vadd.f32 %v7044, %v7030
        %v7046 = vadd.f32 %v7045, %v7031
        %v7047 = vadd.f32 %v7046, %v7032
        %v7048 = vadd.f32 %v7047, %v7033
        %v7049 = vadd.f32 %v7048, %v7034
        %v7050 = vadd.f32 %v7049, %v7035
        %v7051 = vadd.f32 %v7050, %v7036
        %v7052 = vrot.slane %v7051, 4
        %v7053 = vadd.f32 %v7051, %v7052
        %v7054 = vrot.slane %v7053, 2
        %v7055 = vadd.f32 %v7053, %v7054
        %v7056 = vrot.slane %v7055, 1
        %v7057 = vadd.f32 %v7055, %v7056
        %v7058 = vmul.f32 %v7057, 0.0078125
        %v7059 = vmul.f32 %v7020, %v7020
        %v7060 = vsub.f32 %v7058, %v7059
        %v7061 = vmax.f32 %v7060, 0.0
        %v7062 = vsub.f32 %v6937, %v7020
        %v7063 = vsub.f32 %v6940, %v7020
        %v7064 = vsub.f32 %v6945, %v7020
        %v7065 = vsub.f32 %v6948, %v7020
        %v7066 = vsub.f32 %v6953, %v7020
        %v7067 = vsub.f32 %v6956, %v7020
        %v7068 = vsub.f32 %v6961, %v7020
        %v7069 = vsub.f32 %v6964, %v7020
        %v7070 = vsub.f32 %v6969, %v7020
        %v7071 = vsub.f32 %v6972, %v7020
        %v7072 = vsub.f32 %v6977, %v7020
        %v7073 = vsub.f32 %v6980, %v7020
        %v7074 = vsub.f32 %v6985, %v7020
        %v7075 = vsub.f32 %v6988, %v7020
        %v7076 = vsub.f32 %v6993, %v7020
        %v7077 = vsub.f32 %v6996, %v7020
        %v7078 = vadd.f32 %v7061, 1e-05
        %v7079 = vrsqrt.pop %v7078
        %v7080 = vmul.f32 %v7062, %v7079
        %v7081 = vmul.f32 %v7063, %v7079
        %v7082 = vmul.f32 %v7064, %v7079
        %v7083 = vmul.f32 %v7065, %v7079
        %v7084 = vmul.f32 %v7066, %v7079
        %v7085 = vmul.f32 %v7067, %v7079
        %v7086 = vmul.f32 %v7068, %v7079
        %v7087 = vmul.f32 %v7069, %v7079
        %v7088 = vmul.f32 %v7070, %v7079
        %v7089 = vmul.f32 %v7071, %v7079
        %v7090 = vmul.f32 %v7072, %v7079
        %v7091 = vmul.f32 %v7073, %v7079
        %v7092 = vmul.f32 %v7074, %v7079
        %v7093 = vmul.f32 %v7075, %v7079
        %v7094 = vmul.f32 %v7076, %v7079
        %v7095 = vmul.f32 %v7077, %v7079
        %v7096 = vmul.f32 %v7080, %v514
        %v7097 = vmul.f32 %v7081, %v519
        %v7098 = vmul.f32 %v7082, %v524
        %v7099 = vmul.f32 %v7083, %v529
        %v7100 = vmul.f32 %v7084, %v534
        %v7101 = vmul.f32 %v7085, %v539
        %v7102 = vmul.f32 %v7086, %v544
        %v7103 = vmul.f32 %v7087, %v549
        %v7104 = vmul.f32 %v7088, %v554
        %v7105 = vmul.f32 %v7089, %v559
        %v7106 = vmul.f32 %v7090, %v564
        %v7107 = vmul.f32 %v7091, %v569
        %v7108 = vmul.f32 %v7092, %v574
        %v7109 = vmul.f32 %v7093, %v579
        %v7110 = vmul.f32 %v7094, %v584
        %v7111 = vmul.f32 %v7095, %v589
        %v7112 = vadd.f32 %v7096, %v610
        %v7113 = vadd.f32 %v7097, %v615
        %v7114 = vadd.f32 %v7098, %v620
        %v7115 = vadd.f32 %v7099, %v625
        %v7116 = vadd.f32 %v7100, %v630
        %v7117 = vadd.f32 %v7101, %v635
        %v7118 = vadd.f32 %v7102, %v640
        %v7119 = vadd.f32 %v7103, %v645
        %v7120 = vadd.f32 %v7104, %v650
        %v7121 = vadd.f32 %v7105, %v655
        %v7122 = vadd.f32 %v7106, %v660
        %v7123 = vadd.f32 %v7107, %v665
        %v7124 = vadd.f32 %v7108, %v670
        %v7125 = vadd.f32 %v7109, %v675
        %v7126 = vadd.f32 %v7110, %v680
        %v7127 = vadd.f32 %v7111, %v685
        %v7128 = vmax.f32 %v7112, 0.0
        %v7129 = vmax.f32 %v7113, 0.0
        %v7130 = vmax.f32 %v7114, 0.0
        %v7131 = vmax.f32 %v7115, 0.0
        %v7132 = vmax.f32 %v7116, 0.0
        %v7133 = vmax.f32 %v7117, 0.0
        %v7134 = vmax.f32 %v7118, 0.0
        %v7135 = vmax.f32 %v7119, 0.0
        %v7136 = vmax.f32 %v7120, 0.0
        %v7137 = vmax.f32 %v7121, 0.0
        %v7138 = vmax.f32 %v7122, 0.0
        %v7139 = vmax.f32 %v7123, 0.0
        %v7140 = vmax.f32 %v7124, 0.0
        %v7141 = vmax.f32 %v7125, 0.0
        %v7142 = vmax.f32 %v7126, 0.0
        %v7143 = vmax.f32 %v7127, 0.0
        %v7144 = vpack.c.bf16 %v7129, %v7128
        %v7145 = vpack.c.bf16 %v7131, %v7130
        %v7146 = vpack.c.bf16 %v7133, %v7132
        %v7147 = vpack.c.bf16 %v7135, %v7134
        %v7148 = vpack.c.bf16 %v7137, %v7136
        %v7149 = vpack.c.bf16 %v7139, %v7138
        %v7150 = vpack.c.bf16 %v7141, %v7140
        %v7151 = vpack.c.bf16 %v7143, %v7142
        %7160 = vrot.lane.b32.xlu0 %v7144, 1
        %v7161 = vpop.permute.xlu0 %7160
        %7162 = vrot.lane.b32.xlu0 %v7145, 1
        %v7163 = vpop.permute.xlu0 %7162
        %7164 = vrot.lane.b32.xlu0 %v7146, 1
        %v7165 = vpop.permute.xlu0 %7164
        %7166 = vrot.lane.b32.xlu0 %v7147, 1
        %v7167 = vpop.permute.xlu0 %7166
        %7168 = vrot.lane.b32.xlu0 %v7148, 1
        %v7169 = vpop.permute.xlu0 %7168
        %7170 = vrot.lane.b32.xlu0 %v7149, 1
        %v7171 = vpop.permute.xlu0 %7170
        %7172 = vrot.lane.b32.xlu0 %v7150, 1
        %v7173 = vpop.permute.xlu0 %7172
        %7174 = vrot.lane.b32.xlu0 %v7151, 1
        %v7175 = vpop.permute.xlu0 %7174
        %v7192 = vsel %vm974, %v7161, 0
        %v7193 = vsel %vm974, %v7163, 0
        %v7194 = vsel %vm974, %v7165, 0
        %v7195 = vsel %vm974, %v7167, 0
        %v7196 = vsel %vm974, %v7169, 0
        %v7197 = vsel %vm974, %v7171, 0
        %v7198 = vsel %vm974, %v7173, 0
        %v7199 = vsel %vm974, %v7175, 0
        %7200 = vrot.lane.b32.xlu0 %v7144, 127
        %v7201 = vpop.permute.xlu0 %7200
        %7202 = vrot.lane.b32.xlu0 %v7145, 127
        %v7203 = vpop.permute.xlu0 %7202
        %7204 = vrot.lane.b32.xlu0 %v7146, 127
        %v7205 = vpop.permute.xlu0 %7204
        %7206 = vrot.lane.b32.xlu0 %v7147, 127
        %v7207 = vpop.permute.xlu0 %7206
        %7208 = vrot.lane.b32.xlu0 %v7148, 127
        %v7209 = vpop.permute.xlu0 %7208
        %7210 = vrot.lane.b32.xlu0 %v7149, 127
        %v7211 = vpop.permute.xlu0 %7210
        %7212 = vrot.lane.b32.xlu0 %v7150, 127
        %v7213 = vpop.permute.xlu0 %7212
        %7214 = vrot.lane.b32.xlu0 %v7151, 127
        %v7215 = vpop.permute.xlu0 %7214
        %v7232 = vsel %vm1021, %v7201, 0
        %v7233 = vsel %vm1021, %v7203, 0
        %v7234 = vsel %vm1021, %v7205, 0
        %v7235 = vsel %vm1021, %v7207, 0
        %v7236 = vsel %vm1021, %v7209, 0
        %v7237 = vsel %vm1021, %v7211, 0
        %v7238 = vsel %vm1021, %v7213, 0
        %v7239 = vsel %vm1021, %v7215, 0
        %7240 = vmatprep.subr.bf16.mxu0 0
        %7241 = vmatpush1.bf16.msra.mxu0 %v7199
        %7242 = vmatprep.subr.bf16.mxu0 0
        %7243 = vmatpush1.bf16.msra.mxu0 %v7198
        %7244 = vmatprep.subr.bf16.mxu0 0
        %7245 = vmatpush1.bf16.msra.mxu0 %v7197
        %7246 = vmatprep.subr.bf16.mxu0 0
        %7247 = vmatpush1.bf16.msra.mxu0 %v7196
        %7248 = vmatprep.subr.bf16.mxu0 0
        %7249 = vmatpush1.bf16.msra.mxu0 %v7195
        %7250 = vmatprep.subr.bf16.mxu0 0
        %7251 = vmatpush1.bf16.msra.mxu0 %v7194
        %7252 = vmatprep.subr.bf16.mxu0 0
        %7253 = vmatpush1.bf16.msra.mxu0 %v7193
        %7254 = vmatprep.subr.bf16.mxu0 0
        %7255 = vmatpush1.bf16.msra.mxu0 %v7192
        %7256 = vmatprep.subr.bf16.mxu0 0
        %7257 = vmatpush2.bf16.msra.mxu0 %v7151
        %7258 = vmatprep.subr.bf16.mxu0 0
        %7259 = vmatpush2.bf16.msra.mxu0 %v7150
        %7260 = vmatprep.subr.bf16.mxu0 0
        %7261 = vmatpush2.bf16.msra.mxu0 %v7149
        %7262 = vmatprep.subr.bf16.mxu0 0
        %7263 = vmatpush2.bf16.msra.mxu0 %v7148
        %7264 = vmatprep.subr.bf16.mxu0 0
        %7265 = vmatpush2.bf16.msra.mxu0 %v7147
        %7266 = vmatprep.subr.bf16.mxu0 0
        %7267 = vmatpush2.bf16.msra.mxu0 %v7146
        %7268 = vmatprep.subr.bf16.mxu0 0
        %7269 = vmatpush2.bf16.msra.mxu0 %v7145
        %7270 = vmatprep.subr.bf16.mxu0 0
        %7271 = vmatpush2.bf16.msra.mxu0 %v7144
        %7272 = vmatprep.mubr.bf16.mxu0 %v1674
        %7273 = vmatmul.mubr.bf16.gmra.mxu0 %v1673
        %v7274 = vpop.f32.mrf.mxu0
        %v7275 = vadd.f32 %v6548, %v7274
        %v7276 = vpop.f32.mrf.mxu0
        %v7277 = vpop.f32.mrf.mxu0
        %v7278 = vadd.f32 %v6549, %v7277
        %v7279 = vpop.f32.mrf.mxu0
        %7280 = vmatprep.mubr.bf16.mxu0 %v1677
        %7281 = vmatmul.mubr.bf16.gmra.mxu0 %v1676
        %v7282 = vpop.f32.mrf.mxu0
        %v7283 = vadd.f32 %v6550, %v7282
        %v7284 = vpop.f32.mrf.mxu0
        %v7285 = vpop.f32.mrf.mxu0
        %v7286 = vadd.f32 %v6551, %v7285
        %v7287 = vpop.f32.mrf.mxu0
        %7288 = vmatprep.mubr.bf16.mxu0 %v1680
        %7289 = vmatmul.mubr.bf16.gmra.mxu0 %v1679
        %v7290 = vpop.f32.mrf.mxu0
        %v7291 = vadd.f32 %v6552, %v7290
        %v7292 = vpop.f32.mrf.mxu0
        %v7293 = vpop.f32.mrf.mxu0
        %v7294 = vadd.f32 %v6553, %v7293
        %v7295 = vpop.f32.mrf.mxu0
        %7296 = vmatprep.mubr.bf16.mxu0 %v1683
        %7297 = vmatmul.mubr.bf16.gmra.mxu0 %v1682
        %v7298 = vpop.f32.mrf.mxu0
        %v7299 = vadd.f32 %v6554, %v7298
        %v7300 = vpop.f32.mrf.mxu0
        %v7301 = vpop.f32.mrf.mxu0
        %v7302 = vadd.f32 %v6555, %v7301
        %v7303 = vpop.f32.mrf.mxu0
        %7304 = vmatprep.mubr.bf16.mxu0 %v1686
        %7305 = vmatmul.mubr.bf16.gmra.mxu0 %v1685
        %v7306 = vpop.f32.mrf.mxu0
        %v7307 = vadd.f32 %v6556, %v7306
        %v7308 = vpop.f32.mrf.mxu0
        %v7309 = vpop.f32.mrf.mxu0
        %v7310 = vadd.f32 %v6557, %v7309
        %v7311 = vpop.f32.mrf.mxu0
        %7312 = vmatprep.mubr.bf16.mxu0 %v1689
        %7313 = vmatmul.mubr.bf16.gmra.mxu0 %v1688
        %v7314 = vpop.f32.mrf.mxu0
        %v7315 = vadd.f32 %v6558, %v7314
        %v7316 = vpop.f32.mrf.mxu0
        %v7317 = vpop.f32.mrf.mxu0
        %v7318 = vadd.f32 %v6559, %v7317
        %v7319 = vpop.f32.mrf.mxu0
        %7320 = vmatprep.mubr.bf16.mxu0 %v1692
        %7321 = vmatmul.mubr.bf16.gmra.mxu0 %v1691
        %v7322 = vpop.f32.mrf.mxu0
        %v7323 = vadd.f32 %v6560, %v7322
        %v7324 = vpop.f32.mrf.mxu0
        %v7325 = vpop.f32.mrf.mxu0
        %v7326 = vadd.f32 %v6561, %v7325
        %v7327 = vpop.f32.mrf.mxu0
        %7328 = vmatprep.mubr.bf16.mxu0 %v1695
        %7329 = vmatmul.mubr.bf16.gmra.mxu0 %v1694
        %v7330 = vpop.f32.mrf.mxu0
        %v7331 = vadd.f32 %v6562, %v7330
        %v7332 = vpop.f32.mrf.mxu0
        %v7333 = vpop.f32.mrf.mxu0
        %v7334 = vadd.f32 %v6563, %v7333
        %v7335 = vpop.f32.mrf.mxu0
        %7336 = vdwg.mxu0
        %7337 = vmatprep.subr.bf16.mxu0 0
        %7338 = vmatpush1.bf16.msra.mxu0 %v7239
        %7339 = vmatprep.subr.bf16.mxu0 0
        %7340 = vmatpush1.bf16.msra.mxu0 %v7238
        %7341 = vmatprep.subr.bf16.mxu0 0
        %7342 = vmatpush1.bf16.msra.mxu0 %v7237
        %7343 = vmatprep.subr.bf16.mxu0 0
        %7344 = vmatpush1.bf16.msra.mxu0 %v7236
        %7345 = vmatprep.subr.bf16.mxu0 0
        %7346 = vmatpush1.bf16.msra.mxu0 %v7235
        %7347 = vmatprep.subr.bf16.mxu0 0
        %7348 = vmatpush1.bf16.msra.mxu0 %v7234
        %7349 = vmatprep.subr.bf16.mxu0 0
        %7350 = vmatpush1.bf16.msra.mxu0 %v7233
        %7351 = vmatprep.subr.bf16.mxu0 0
        %7352 = vmatpush1.bf16.msra.mxu0 %v7232
        %7353 = vmatprep.subr.bf16.mxu0 0
        %7354 = vmatpush2.bf16.msra.mxu0 0
        %7355 = vmatprep.subr.bf16.mxu0 0
        %7356 = vmatpush2.bf16.msra.mxu0 0
        %7357 = vmatprep.subr.bf16.mxu0 0
        %7358 = vmatpush2.bf16.msra.mxu0 0
        %7359 = vmatprep.subr.bf16.mxu0 0
        %7360 = vmatpush2.bf16.msra.mxu0 0
        %7361 = vmatprep.subr.bf16.mxu0 0
        %7362 = vmatpush2.bf16.msra.mxu0 0
        %7363 = vmatprep.subr.bf16.mxu0 0
        %7364 = vmatpush2.bf16.msra.mxu0 0
        %7365 = vmatprep.subr.bf16.mxu0 0
        %7366 = vmatpush2.bf16.msra.mxu0 0
        %7367 = vmatprep.subr.bf16.mxu0 0
        %7368 = vmatpush2.bf16.msra.mxu0 0
        %7369 = vmatprep.mubr.bf16.mxu0 0
        %7370 = vmatmul.mubr.bf16.gmra.mxu0 %v1675
        %v7371 = vpop.f32.mrf.mxu0
        %v7372 = vadd.f32 %v7275, %v7371
        %v7373 = vpop.f32.mrf.mxu0
        %v7374 = vpop.f32.mrf.mxu0
        %v7375 = vadd.f32 %v7278, %v7374
        %v7376 = vpop.f32.mrf.mxu0
        %7377 = vmatprep.mubr.bf16.mxu0 0
        %7378 = vmatmul.mubr.bf16.gmra.mxu0 %v1678
        %v7379 = vpop.f32.mrf.mxu0
        %v7380 = vadd.f32 %v7283, %v7379
        %v7381 = vpop.f32.mrf.mxu0
        %v7382 = vpop.f32.mrf.mxu0
        %v7383 = vadd.f32 %v7286, %v7382
        %v7384 = vpop.f32.mrf.mxu0
        %7385 = vmatprep.mubr.bf16.mxu0 0
        %7386 = vmatmul.mubr.bf16.gmra.mxu0 %v1681
        %v7387 = vpop.f32.mrf.mxu0
        %v7388 = vadd.f32 %v7291, %v7387
        %v7389 = vpop.f32.mrf.mxu0
        %v7390 = vpop.f32.mrf.mxu0
        %v7391 = vadd.f32 %v7294, %v7390
        %v7392 = vpop.f32.mrf.mxu0
        %7393 = vmatprep.mubr.bf16.mxu0 0
        %7394 = vmatmul.mubr.bf16.gmra.mxu0 %v1684
        %v7395 = vpop.f32.mrf.mxu0
        %v7396 = vadd.f32 %v7299, %v7395
        %v7397 = vpop.f32.mrf.mxu0
        %v7398 = vpop.f32.mrf.mxu0
        %v7399 = vadd.f32 %v7302, %v7398
        %v7400 = vpop.f32.mrf.mxu0
        %7401 = vmatprep.mubr.bf16.mxu0 0
        %7402 = vmatmul.mubr.bf16.gmra.mxu0 %v1687
        %v7403 = vpop.f32.mrf.mxu0
        %v7404 = vadd.f32 %v7307, %v7403
        %v7405 = vpop.f32.mrf.mxu0
        %v7406 = vpop.f32.mrf.mxu0
        %v7407 = vadd.f32 %v7310, %v7406
        %v7408 = vpop.f32.mrf.mxu0
        %7409 = vmatprep.mubr.bf16.mxu0 0
        %7410 = vmatmul.mubr.bf16.gmra.mxu0 %v1690
        %v7411 = vpop.f32.mrf.mxu0
        %v7412 = vadd.f32 %v7315, %v7411
        %v7413 = vpop.f32.mrf.mxu0
        %v7414 = vpop.f32.mrf.mxu0
        %v7415 = vadd.f32 %v7318, %v7414
        %v7416 = vpop.f32.mrf.mxu0
        %7417 = vmatprep.mubr.bf16.mxu0 0
        %7418 = vmatmul.mubr.bf16.gmra.mxu0 %v1693
        %v7419 = vpop.f32.mrf.mxu0
        %v7420 = vadd.f32 %v7323, %v7419
        %v7421 = vpop.f32.mrf.mxu0
        %v7422 = vpop.f32.mrf.mxu0
        %v7423 = vadd.f32 %v7326, %v7422
        %v7424 = vpop.f32.mrf.mxu0
        %7425 = vmatprep.mubr.bf16.mxu0 0
        %7426 = vmatmul.mubr.bf16.gmra.mxu0 %v1696
        %v7427 = vpop.f32.mrf.mxu0
        %v7428 = vadd.f32 %v7331, %v7427
        %v7429 = vpop.f32.mrf.mxu0
        %v7430 = vpop.f32.mrf.mxu0
        %v7431 = vadd.f32 %v7334, %v7430
        %v7432 = vpop.f32.mrf.mxu0
        %7433 = vdwg.mxu0
        %v7434 = vmax.f32 %v7372, 0.0
        %v7435 = vmax.f32 %v7375, 0.0
        %v7436 = vmax.f32 %v7380, 0.0
        %v7437 = vmax.f32 %v7383, 0.0
        %v7438 = vmax.f32 %v7388, 0.0
        %v7439 = vmax.f32 %v7391, 0.0
        %v7440 = vmax.f32 %v7396, 0.0
        %v7441 = vmax.f32 %v7399, 0.0
        %v7442 = vmax.f32 %v7404, 0.0
        %v7443 = vmax.f32 %v7407, 0.0
        %v7444 = vmax.f32 %v7412, 0.0
        %v7445 = vmax.f32 %v7415, 0.0
        %v7446 = vmax.f32 %v7420, 0.0
        %v7447 = vmax.f32 %v7423, 0.0
        %v7448 = vmax.f32 %v7428, 0.0
        %v7449 = vmax.f32 %v7431, 0.0
        %s7450 = scalar_lea.vmem %s297, 768 [#allocation5]
        %7451 = vst [vmem:[%s7450] sm:$0xff] %v7434
        %7452 = vst [vmem:[%s7450 + $0x8] sm:$0xff] %v7435
        %7453 = vst [vmem:[%s7450 + $0x10] sm:$0xff] %v7436
        %7454 = vst [vmem:[%s7450 + $0x18] sm:$0xff] %v7437
        %7455 = vst [vmem:[%s7450 + $0x20] sm:$0xff] %v7438
        %7456 = vst [vmem:[%s7450 + $0x28] sm:$0xff] %v7439
        %7457 = vst [vmem:[%s7450 + $0x30] sm:$0xff] %v7440
        %7458 = vst [vmem:[%s7450 + $0x38] sm:$0xff] %v7441
        %7459 = vst [vmem:[%s7450 + $0x40] sm:$0xff] %v7442
        %7460 = vst [vmem:[%s7450 + $0x48] sm:$0xff] %v7443
        %7461 = vst [vmem:[%s7450 + $0x50] sm:$0xff] %v7444
        %7462 = vst [vmem:[%s7450 + $0x58] sm:$0xff] %v7445
        %7463 = vst [vmem:[%s7450 + $0x60] sm:$0xff] %v7446
        %7464 = vst [vmem:[%s7450 + $0x68] sm:$0xff] %v7447
        %7465 = vst [vmem:[%s7450 + $0x70] sm:$0xff] %v7448
        %7466 = vst [vmem:[%s7450 + $0x78] sm:$0xff] %v7449
        %s7467 = scalar_lea.vmem %s267, 896 [#allocation2]
        %v7468 = vld [vmem:[%s7467] sm:$0xff]
        %v7469 = vld [vmem:[%s7467 + $0x8] sm:$0xff]
        %v7470 = vld [vmem:[%s7467 + $0x10] sm:$0xff]
        %v7471 = vld [vmem:[%s7467 + $0x18] sm:$0xff]
        %v7472 = vld [vmem:[%s7467 + $0x20] sm:$0xff]
        %v7473 = vld [vmem:[%s7467 + $0x28] sm:$0xff]
        %v7474 = vld [vmem:[%s7467 + $0x30] sm:$0xff]
        %v7475 = vld [vmem:[%s7467 + $0x38] sm:$0xff]
        %v7476 = vld [vmem:[%s7467 + $0x40] sm:$0xff]
        %v7477 = vld [vmem:[%s7467 + $0x48] sm:$0xff]
        %v7478 = vld [vmem:[%s7467 + $0x50] sm:$0xff]
        %v7479 = vld [vmem:[%s7467 + $0x58] sm:$0xff]
        %v7480 = vld [vmem:[%s7467 + $0x60] sm:$0xff]
        %v7481 = vld [vmem:[%s7467 + $0x68] sm:$0xff]
        %v7482 = vld [vmem:[%s7467 + $0x70] sm:$0xff]
        %v7483 = vld [vmem:[%s7467 + $0x78] sm:$0xff]
        %v7484 = vadd.f32 %v7468, %v7469
        %v7485 = vadd.f32 %v7484, %v7470
        %v7486 = vadd.f32 %v7485, %v7471
        %v7487 = vadd.f32 %v7486, %v7472
        %v7488 = vadd.f32 %v7487, %v7473
        %v7489 = vadd.f32 %v7488, %v7474
        %v7490 = vadd.f32 %v7489, %v7475
        %v7491 = vadd.f32 %v7490, %v7476
        %v7492 = vadd.f32 %v7491, %v7477
        %v7493 = vadd.f32 %v7492, %v7478
        %v7494 = vadd.f32 %v7493, %v7479
        %v7495 = vadd.f32 %v7494, %v7480
        %v7496 = vadd.f32 %v7495, %v7481
        %v7497 = vadd.f32 %v7496, %v7482
        %v7498 = vadd.f32 %v7497, %v7483
        %v7499 = vrot.slane %v7498, 4
        %v7500 = vadd.f32 %v7498, %v7499
        %v7501 = vrot.slane %v7500, 2
        %v7502 = vadd.f32 %v7500, %v7501
        %v7503 = vrot.slane %v7502, 1
        %v7504 = vadd.f32 %v7502, %v7503
        %v7505 = vmul.f32 %v7504, 0.0078125
        %v7506 = vmul.f32 %v7468, %v7468
        %v7507 = vmul.f32 %v7469, %v7469
        %v7508 = vmul.f32 %v7470, %v7470
        %v7509 = vmul.f32 %v7471, %v7471
        %v7510 = vmul.f32 %v7472, %v7472
        %v7511 = vmul.f32 %v7473, %v7473
        %v7512 = vmul.f32 %v7474, %v7474
        %v7513 = vmul.f32 %v7475, %v7475
        %v7514 = vmul.f32 %v7476, %v7476
        %v7515 = vmul.f32 %v7477, %v7477
        %v7516 = vmul.f32 %v7478, %v7478
        %v7517 = vmul.f32 %v7479, %v7479
        %v7518 = vmul.f32 %v7480, %v7480
        %v7519 = vmul.f32 %v7481, %v7481
        %v7520 = vmul.f32 %v7482, %v7482
        %v7521 = vmul.f32 %v7483, %v7483
        %v7522 = vadd.f32 %v7506, %v7507
        %v7523 = vadd.f32 %v7522, %v7508
        %v7524 = vadd.f32 %v7523, %v7509
        %v7525 = vadd.f32 %v7524, %v7510
        %v7526 = vadd.f32 %v7525, %v7511
        %v7527 = vadd.f32 %v7526, %v7512
        %v7528 = vadd.f32 %v7527, %v7513
        %v7529 = vadd.f32 %v7528, %v7514
        %v7530 = vadd.f32 %v7529, %v7515
        %v7531 = vadd.f32 %v7530, %v7516
        %v7532 = vadd.f32 %v7531, %v7517
        %v7533 = vadd.f32 %v7532, %v7518
        %v7534 = vadd.f32 %v7533, %v7519
        %v7535 = vadd.f32 %v7534, %v7520
        %v7536 = vadd.f32 %v7535, %v7521
        %v7537 = vrot.slane %v7536, 4
        %v7538 = vadd.f32 %v7536, %v7537
        %v7539 = vrot.slane %v7538, 2
        %v7540 = vadd.f32 %v7538, %v7539
        %v7541 = vrot.slane %v7540, 1
        %v7542 = vadd.f32 %v7540, %v7541
        %v7543 = vmul.f32 %v7542, 0.0078125
        %v7544 = vmul.f32 %v7505, %v7505
        %v7545 = vsub.f32 %v7543, %v7544
        %v7546 = vmax.f32 %v7545, 0.0
        %v7547 = vsub.f32 %v7468, %v7505
        %v7548 = vsub.f32 %v7469, %v7505
        %v7549 = vsub.f32 %v7470, %v7505
        %v7550 = vsub.f32 %v7471, %v7505
        %v7551 = vsub.f32 %v7472, %v7505
        %v7552 = vsub.f32 %v7473, %v7505
        %v7553 = vsub.f32 %v7474, %v7505
        %v7554 = vsub.f32 %v7475, %v7505
        %v7555 = vsub.f32 %v7476, %v7505
        %v7556 = vsub.f32 %v7477, %v7505
        %v7557 = vsub.f32 %v7478, %v7505
        %v7558 = vsub.f32 %v7479, %v7505
        %v7559 = vsub.f32 %v7480, %v7505
        %v7560 = vsub.f32 %v7481, %v7505
        %v7561 = vsub.f32 %v7482, %v7505
        %v7562 = vsub.f32 %v7483, %v7505
        %v7563 = vadd.f32 %v7546, 1e-05
        %v7564 = vrsqrt.pop %v7563
        %v7565 = vmul.f32 %v7547, %v7564
        %v7566 = vmul.f32 %v7548, %v7564
        %v7567 = vmul.f32 %v7549, %v7564
        %v7568 = vmul.f32 %v7550, %v7564
        %v7569 = vmul.f32 %v7551, %v7564
        %v7570 = vmul.f32 %v7552, %v7564
        %v7571 = vmul.f32 %v7553, %v7564
        %v7572 = vmul.f32 %v7554, %v7564
        %v7573 = vmul.f32 %v7555, %v7564
        %v7574 = vmul.f32 %v7556, %v7564
        %v7575 = vmul.f32 %v7557, %v7564
        %v7576 = vmul.f32 %v7558, %v7564
        %v7577 = vmul.f32 %v7559, %v7564
        %v7578 = vmul.f32 %v7560, %v7564
        %v7579 = vmul.f32 %v7561, %v7564
        %v7580 = vmul.f32 %v7562, %v7564
        %v7581 = vmul.f32 %v7565, %v322
        %v7582 = vmul.f32 %v7566, %v327
        %v7583 = vmul.f32 %v7567, %v332
        %v7584 = vmul.f32 %v7568, %v337
        %v7585 = vmul.f32 %v7569, %v342
        %v7586 = vmul.f32 %v7570, %v347
        %v7587 = vmul.f32 %v7571, %v352
        %v7588 = vmul.f32 %v7572, %v357
        %v7589 = vmul.f32 %v7573, %v362
        %v7590 = vmul.f32 %v7574, %v367
        %v7591 = vmul.f32 %v7575, %v372
        %v7592 = vmul.f32 %v7576, %v377
        %v7593 = vmul.f32 %v7577, %v382
        %v7594 = vmul.f32 %v7578, %v387
        %v7595 = vmul.f32 %v7579, %v392
        %v7596 = vmul.f32 %v7580, %v397
        %v7597 = vadd.f32 %v7581, %v418
        %v7598 = vadd.f32 %v7582, %v423
        %v7599 = vadd.f32 %v7583, %v428
        %v7600 = vadd.f32 %v7584, %v433
        %v7601 = vadd.f32 %v7585, %v438
        %v7602 = vadd.f32 %v7586, %v443
        %v7603 = vadd.f32 %v7587, %v448
        %v7604 = vadd.f32 %v7588, %v453
        %v7605 = vadd.f32 %v7589, %v458
        %v7606 = vadd.f32 %v7590, %v463
        %v7607 = vadd.f32 %v7591, %v468
        %v7608 = vadd.f32 %v7592, %v473
        %v7609 = vadd.f32 %v7593, %v478
        %v7610 = vadd.f32 %v7594, %v483
        %v7611 = vadd.f32 %v7595, %v488
        %v7612 = vadd.f32 %v7596, %v493
        %v7613 = vmax.f32 %v7597, 0.0
        %v7614 = vmax.f32 %v7598, 0.0
        %v7615 = vmax.f32 %v7599, 0.0
        %v7616 = vmax.f32 %v7600, 0.0
        %v7617 = vmax.f32 %v7601, 0.0
        %v7618 = vmax.f32 %v7602, 0.0
        %v7619 = vmax.f32 %v7603, 0.0
        %v7620 = vmax.f32 %v7604, 0.0
        %v7621 = vmax.f32 %v7605, 0.0
        %v7622 = vmax.f32 %v7606, 0.0
        %v7623 = vmax.f32 %v7607, 0.0
        %v7624 = vmax.f32 %v7608, 0.0
        %v7625 = vmax.f32 %v7609, 0.0
        %v7626 = vmax.f32 %v7610, 0.0
        %v7627 = vmax.f32 %v7611, 0.0
        %v7628 = vmax.f32 %v7612, 0.0
        %v7629 = vpack.c.bf16 %v7614, %v7613
        %v7630 = vpack.c.bf16 %v7616, %v7615
        %v7631 = vpack.c.bf16 %v7618, %v7617
        %v7632 = vpack.c.bf16 %v7620, %v7619
        %v7633 = vpack.c.bf16 %v7622, %v7621
        %v7634 = vpack.c.bf16 %v7624, %v7623
        %v7635 = vpack.c.bf16 %v7626, %v7625
        %v7636 = vpack.c.bf16 %v7628, %v7627
        %7645 = vrot.lane.b32.xlu0 %v7629, 1
        %v7646 = vpop.permute.xlu0 %7645
        %7647 = vrot.lane.b32.xlu0 %v7630, 1
        %v7648 = vpop.permute.xlu0 %7647
        %7649 = vrot.lane.b32.xlu0 %v7631, 1
        %v7650 = vpop.permute.xlu0 %7649
        %7651 = vrot.lane.b32.xlu0 %v7632, 1
        %v7652 = vpop.permute.xlu0 %7651
        %7653 = vrot.lane.b32.xlu0 %v7633, 1
        %v7654 = vpop.permute.xlu0 %7653
        %7655 = vrot.lane.b32.xlu0 %v7634, 1
        %v7656 = vpop.permute.xlu0 %7655
        %7657 = vrot.lane.b32.xlu0 %v7635, 1
        %v7658 = vpop.permute.xlu0 %7657
        %7659 = vrot.lane.b32.xlu0 %v7636, 1
        %v7660 = vpop.permute.xlu0 %7659
        %v7677 = vsel %vm974, %v7646, 0
        %v7678 = vsel %vm974, %v7648, 0
        %v7679 = vsel %vm974, %v7650, 0
        %v7680 = vsel %vm974, %v7652, 0
        %v7681 = vsel %vm974, %v7654, 0
        %v7682 = vsel %vm974, %v7656, 0
        %v7683 = vsel %vm974, %v7658, 0
        %v7684 = vsel %vm974, %v7660, 0
        %7685 = vrot.lane.b32.xlu0 %v7629, 127
        %v7686 = vpop.permute.xlu0 %7685
        %7687 = vrot.lane.b32.xlu0 %v7630, 127
        %v7688 = vpop.permute.xlu0 %7687
        %7689 = vrot.lane.b32.xlu0 %v7631, 127
        %v7690 = vpop.permute.xlu0 %7689
        %7691 = vrot.lane.b32.xlu0 %v7632, 127
        %v7692 = vpop.permute.xlu0 %7691
        %7693 = vrot.lane.b32.xlu0 %v7633, 127
        %v7694 = vpop.permute.xlu0 %7693
        %7695 = vrot.lane.b32.xlu0 %v7634, 127
        %v7696 = vpop.permute.xlu0 %7695
        %7697 = vrot.lane.b32.xlu0 %v7635, 127
        %v7698 = vpop.permute.xlu0 %7697
        %7699 = vrot.lane.b32.xlu0 %v7636, 127
        %v7700 = vpop.permute.xlu0 %7699
        %v7717 = vsel %vm1021, %v7686, 0
        %v7718 = vsel %vm1021, %v7688, 0
        %v7719 = vsel %vm1021, %v7690, 0
        %v7720 = vsel %vm1021, %v7692, 0
        %v7721 = vsel %vm1021, %v7694, 0
        %v7722 = vsel %vm1021, %v7696, 0
        %v7723 = vsel %vm1021, %v7698, 0
        %v7724 = vsel %vm1021, %v7700, 0
        %7725 = vmatprep.subr.bf16.mxu0 0
        %7726 = vmatpush1.bf16.msra.mxu0 %v7684
        %7727 = vmatprep.subr.bf16.mxu0 0
        %7728 = vmatpush1.bf16.msra.mxu0 %v7683
        %7729 = vmatprep.subr.bf16.mxu0 0
        %7730 = vmatpush1.bf16.msra.mxu0 %v7682
        %7731 = vmatprep.subr.bf16.mxu0 0
        %7732 = vmatpush1.bf16.msra.mxu0 %v7681
        %7733 = vmatprep.subr.bf16.mxu0 0
        %7734 = vmatpush1.bf16.msra.mxu0 %v7680
        %7735 = vmatprep.subr.bf16.mxu0 0
        %7736 = vmatpush1.bf16.msra.mxu0 %v7679
        %7737 = vmatprep.subr.bf16.mxu0 0
        %7738 = vmatpush1.bf16.msra.mxu0 %v7678
        %7739 = vmatprep.subr.bf16.mxu0 0
        %7740 = vmatpush1.bf16.msra.mxu0 %v7677
        %7741 = vmatprep.subr.bf16.mxu0 0
        %7742 = vmatpush2.bf16.msra.mxu0 %v7636
        %7743 = vmatprep.subr.bf16.mxu0 0
        %7744 = vmatpush2.bf16.msra.mxu0 %v7635
        %7745 = vmatprep.subr.bf16.mxu0 0
        %7746 = vmatpush2.bf16.msra.mxu0 %v7634
        %7747 = vmatprep.subr.bf16.mxu0 0
        %7748 = vmatpush2.bf16.msra.mxu0 %v7633
        %7749 = vmatprep.subr.bf16.mxu0 0
        %7750 = vmatpush2.bf16.msra.mxu0 %v7632
        %7751 = vmatprep.subr.bf16.mxu0 0
        %7752 = vmatpush2.bf16.msra.mxu0 %v7631
        %7753 = vmatprep.subr.bf16.mxu0 0
        %7754 = vmatpush2.bf16.msra.mxu0 %v7630
        %7755 = vmatprep.subr.bf16.mxu0 0
        %7756 = vmatpush2.bf16.msra.mxu0 %v7629
        %7757 = vmatprep.mubr.bf16.mxu0 %v1111
        %7758 = vmatmul.mubr.bf16.gmra.mxu0 %v1110
        %v7759 = vpop.f32.mrf.mxu0
        %v7760 = vadd.f32 0.0, %v7759
        %v7761 = vpop.f32.mrf.mxu0
        %v7762 = vpop.f32.mrf.mxu0
        %v7763 = vadd.f32 0.0, %v7762
        %v7764 = vpop.f32.mrf.mxu0
        %7765 = vmatprep.mubr.bf16.mxu0 %v1114
        %7766 = vmatmul.mubr.bf16.gmra.mxu0 %v1113
        %v7767 = vpop.f32.mrf.mxu0
        %v7768 = vadd.f32 0.0, %v7767
        %v7769 = vpop.f32.mrf.mxu0
        %v7770 = vpop.f32.mrf.mxu0
        %v7771 = vadd.f32 0.0, %v7770
        %v7772 = vpop.f32.mrf.mxu0
        %7773 = vmatprep.mubr.bf16.mxu0 %v1117
        %7774 = vmatmul.mubr.bf16.gmra.mxu0 %v1116
        %v7775 = vpop.f32.mrf.mxu0
        %v7776 = vadd.f32 0.0, %v7775
        %v7777 = vpop.f32.mrf.mxu0
        %v7778 = vpop.f32.mrf.mxu0
        %v7779 = vadd.f32 0.0, %v7778
        %v7780 = vpop.f32.mrf.mxu0
        %7781 = vmatprep.mubr.bf16.mxu0 %v1120
        %7782 = vmatmul.mubr.bf16.gmra.mxu0 %v1119
        %v7783 = vpop.f32.mrf.mxu0
        %v7784 = vadd.f32 0.0, %v7783
        %v7785 = vpop.f32.mrf.mxu0
        %v7786 = vpop.f32.mrf.mxu0
        %v7787 = vadd.f32 0.0, %v7786
        %v7788 = vpop.f32.mrf.mxu0
        %7789 = vmatprep.mubr.bf16.mxu0 %v1123
        %7790 = vmatmul.mubr.bf16.gmra.mxu0 %v1122
        %v7791 = vpop.f32.mrf.mxu0
        %v7792 = vadd.f32 0.0, %v7791
        %v7793 = vpop.f32.mrf.mxu0
        %v7794 = vpop.f32.mrf.mxu0
        %v7795 = vadd.f32 0.0, %v7794
        %v7796 = vpop.f32.mrf.mxu0
        %7797 = vmatprep.mubr.bf16.mxu0 %v1126
        %7798 = vmatmul.mubr.bf16.gmra.mxu0 %v1125
        %v7799 = vpop.f32.mrf.mxu0
        %v7800 = vadd.f32 0.0, %v7799
        %v7801 = vpop.f32.mrf.mxu0
        %v7802 = vpop.f32.mrf.mxu0
        %v7803 = vadd.f32 0.0, %v7802
        %v7804 = vpop.f32.mrf.mxu0
        %7805 = vmatprep.mubr.bf16.mxu0 %v1129
        %7806 = vmatmul.mubr.bf16.gmra.mxu0 %v1128
        %v7807 = vpop.f32.mrf.mxu0
        %v7808 = vadd.f32 0.0, %v7807
        %v7809 = vpop.f32.mrf.mxu0
        %v7810 = vpop.f32.mrf.mxu0
        %v7811 = vadd.f32 0.0, %v7810
        %v7812 = vpop.f32.mrf.mxu0
        %7813 = vmatprep.mubr.bf16.mxu0 %v1132
        %7814 = vmatmul.mubr.bf16.gmra.mxu0 %v1131
        %v7815 = vpop.f32.mrf.mxu0
        %v7816 = vadd.f32 0.0, %v7815
        %v7817 = vpop.f32.mrf.mxu0
        %v7818 = vpop.f32.mrf.mxu0
        %v7819 = vadd.f32 0.0, %v7818
        %v7820 = vpop.f32.mrf.mxu0
        %7821 = vdwg.mxu0
        %7822 = vmatprep.subr.bf16.mxu0 0
        %7823 = vmatpush1.bf16.msra.mxu0 %v7724
        %7824 = vmatprep.subr.bf16.mxu0 0
        %7825 = vmatpush1.bf16.msra.mxu0 %v7723
        %7826 = vmatprep.subr.bf16.mxu0 0
        %7827 = vmatpush1.bf16.msra.mxu0 %v7722
        %7828 = vmatprep.subr.bf16.mxu0 0
        %7829 = vmatpush1.bf16.msra.mxu0 %v7721
        %7830 = vmatprep.subr.bf16.mxu0 0
        %7831 = vmatpush1.bf16.msra.mxu0 %v7720
        %7832 = vmatprep.subr.bf16.mxu0 0
        %7833 = vmatpush1.bf16.msra.mxu0 %v7719
        %7834 = vmatprep.subr.bf16.mxu0 0
        %7835 = vmatpush1.bf16.msra.mxu0 %v7718
        %7836 = vmatprep.subr.bf16.mxu0 0
        %7837 = vmatpush1.bf16.msra.mxu0 %v7717
        %7838 = vmatprep.subr.bf16.mxu0 0
        %7839 = vmatpush2.bf16.msra.mxu0 0
        %7840 = vmatprep.subr.bf16.mxu0 0
        %7841 = vmatpush2.bf16.msra.mxu0 0
        %7842 = vmatprep.subr.bf16.mxu0 0
        %7843 = vmatpush2.bf16.msra.mxu0 0
        %7844 = vmatprep.subr.bf16.mxu0 0
        %7845 = vmatpush2.bf16.msra.mxu0 0
        %7846 = vmatprep.subr.bf16.mxu0 0
        %7847 = vmatpush2.bf16.msra.mxu0 0
        %7848 = vmatprep.subr.bf16.mxu0 0
        %7849 = vmatpush2.bf16.msra.mxu0 0
        %7850 = vmatprep.subr.bf16.mxu0 0
        %7851 = vmatpush2.bf16.msra.mxu0 0
        %7852 = vmatprep.subr.bf16.mxu0 0
        %7853 = vmatpush2.bf16.msra.mxu0 0
        %7854 = vmatprep.mubr.bf16.mxu0 0
        %7855 = vmatmul.mubr.bf16.gmra.mxu0 %v1112
        %v7856 = vpop.f32.mrf.mxu0
        %v7857 = vadd.f32 %v7760, %v7856
        %v7858 = vpop.f32.mrf.mxu0
        %v7859 = vpop.f32.mrf.mxu0
        %v7860 = vadd.f32 %v7763, %v7859
        %v7861 = vpop.f32.mrf.mxu0
        %7862 = vmatprep.mubr.bf16.mxu0 0
        %7863 = vmatmul.mubr.bf16.gmra.mxu0 %v1115
        %v7864 = vpop.f32.mrf.mxu0
        %v7865 = vadd.f32 %v7768, %v7864
        %v7866 = vpop.f32.mrf.mxu0
        %v7867 = vpop.f32.mrf.mxu0
        %v7868 = vadd.f32 %v7771, %v7867
        %v7869 = vpop.f32.mrf.mxu0
        %7870 = vmatprep.mubr.bf16.mxu0 0
        %7871 = vmatmul.mubr.bf16.gmra.mxu0 %v1118
        %v7872 = vpop.f32.mrf.mxu0
        %v7873 = vadd.f32 %v7776, %v7872
        %v7874 = vpop.f32.mrf.mxu0
        %v7875 = vpop.f32.mrf.mxu0
        %v7876 = vadd.f32 %v7779, %v7875
        %v7877 = vpop.f32.mrf.mxu0
        %7878 = vmatprep.mubr.bf16.mxu0 0
        %7879 = vmatmul.mubr.bf16.gmra.mxu0 %v1121
        %v7880 = vpop.f32.mrf.mxu0
        %v7881 = vadd.f32 %v7784, %v7880
        %v7882 = vpop.f32.mrf.mxu0
        %v7883 = vpop.f32.mrf.mxu0
        %v7884 = vadd.f32 %v7787, %v7883
        %v7885 = vpop.f32.mrf.mxu0
        %7886 = vmatprep.mubr.bf16.mxu0 0
        %7887 = vmatmul.mubr.bf16.gmra.mxu0 %v1124
        %v7888 = vpop.f32.mrf.mxu0
        %v7889 = vadd.f32 %v7792, %v7888
        %v7890 = vpop.f32.mrf.mxu0
        %v7891 = vpop.f32.mrf.mxu0
        %v7892 = vadd.f32 %v7795, %v7891
        %v7893 = vpop.f32.mrf.mxu0
        %7894 = vmatprep.mubr.bf16.mxu0 0
        %7895 = vmatmul.mubr.bf16.gmra.mxu0 %v1127
        %v7896 = vpop.f32.mrf.mxu0
        %v7897 = vadd.f32 %v7800, %v7896
        %v7898 = vpop.f32.mrf.mxu0
        %v7899 = vpop.f32.mrf.mxu0
        %v7900 = vadd.f32 %v7803, %v7899
        %v7901 = vpop.f32.mrf.mxu0
        %7902 = vmatprep.mubr.bf16.mxu0 0
        %7903 = vmatmul.mubr.bf16.gmra.mxu0 %v1130
        %v7904 = vpop.f32.mrf.mxu0
        %v7905 = vadd.f32 %v7808, %v7904
        %v7906 = vpop.f32.mrf.mxu0
        %v7907 = vpop.f32.mrf.mxu0
        %v7908 = vadd.f32 %v7811, %v7907
        %v7909 = vpop.f32.mrf.mxu0
        %7910 = vmatprep.mubr.bf16.mxu0 0
        %7911 = vmatmul.mubr.bf16.gmra.mxu0 %v1133
        %v7912 = vpop.f32.mrf.mxu0
        %v7913 = vadd.f32 %v7816, %v7912
        %v7914 = vpop.f32.mrf.mxu0
        %v7915 = vpop.f32.mrf.mxu0
        %v7916 = vadd.f32 %v7819, %v7915
        %v7917 = vpop.f32.mrf.mxu0
        %7918 = vdwg.mxu0
        %v7919 = vadd.f32 %v7857, %v7860
        %v7920 = vadd.f32 %v7919, %v7865
        %v7921 = vadd.f32 %v7920, %v7868
        %v7922 = vadd.f32 %v7921, %v7873
        %v7923 = vadd.f32 %v7922, %v7876
        %v7924 = vadd.f32 %v7923, %v7881
        %v7925 = vadd.f32 %v7924, %v7884
        %v7926 = vadd.f32 %v7925, %v7889
        %v7927 = vadd.f32 %v7926, %v7892
        %v7928 = vadd.f32 %v7927, %v7897
        %v7929 = vadd.f32 %v7928, %v7900
        %v7930 = vadd.f32 %v7929, %v7905
        %v7931 = vadd.f32 %v7930, %v7908
        %v7932 = vadd.f32 %v7931, %v7913
        %v7933 = vadd.f32 %v7932, %v7916
        %v7934 = vrot.slane %v7933, 4
        %v7935 = vadd.f32 %v7933, %v7934
        %v7936 = vrot.slane %v7935, 2
        %v7937 = vadd.f32 %v7935, %v7936
        %v7938 = vrot.slane %v7937, 1
        %v7939 = vadd.f32 %v7937, %v7938
        %v7940 = vmul.f32 %v7939, 0.0078125
        %v7941 = vmul.f32 %v7857, %v7857
        %v7942 = vmul.f32 %v7860, %v7860
        %v7943 = vmul.f32 %v7865, %v7865
        %v7944 = vmul.f32 %v7868, %v7868
        %v7945 = vmul.f32 %v7873, %v7873
        %v7946 = vmul.f32 %v7876, %v7876
        %v7947 = vmul.f32 %v7881, %v7881
        %v7948 = vmul.f32 %v7884, %v7884
        %v7949 = vmul.f32 %v7889, %v7889
        %v7950 = vmul.f32 %v7892, %v7892
        %v7951 = vmul.f32 %v7897, %v7897
        %v7952 = vmul.f32 %v7900, %v7900
        %v7953 = vmul.f32 %v7905, %v7905
        %v7954 = vmul.f32 %v7908, %v7908
        %v7955 = vmul.f32 %v7913, %v7913
        %v7956 = vmul.f32 %v7916, %v7916
        %v7957 = vadd.f32 %v7941, %v7942
        %v7958 = vadd.f32 %v7957, %v7943
        %v7959 = vadd.f32 %v7958, %v7944
        %v7960 = vadd.f32 %v7959, %v7945
        %v7961 = vadd.f32 %v7960, %v7946
        %v7962 = vadd.f32 %v7961, %v7947
        %v7963 = vadd.f32 %v7962, %v7948
        %v7964 = vadd.f32 %v7963, %v7949
        %v7965 = vadd.f32 %v7964, %v7950
        %v7966 = vadd.f32 %v7965, %v7951
        %v7967 = vadd.f32 %v7966, %v7952
        %v7968 = vadd.f32 %v7967, %v7953
        %v7969 = vadd.f32 %v7968, %v7954
        %v7970 = vadd.f32 %v7969, %v7955
        %v7971 = vadd.f32 %v7970, %v7956
        %v7972 = vrot.slane %v7971, 4
        %v7973 = vadd.f32 %v7971, %v7972
        %v7974 = vrot.slane %v7973, 2
        %v7975 = vadd.f32 %v7973, %v7974
        %v7976 = vrot.slane %v7975, 1
        %v7977 = vadd.f32 %v7975, %v7976
        %v7978 = vmul.f32 %v7977, 0.0078125
        %v7979 = vmul.f32 %v7940, %v7940
        %v7980 = vsub.f32 %v7978, %v7979
        %v7981 = vmax.f32 %v7980, 0.0
        %v7982 = vsub.f32 %v7857, %v7940
        %v7983 = vsub.f32 %v7860, %v7940
        %v7984 = vsub.f32 %v7865, %v7940
        %v7985 = vsub.f32 %v7868, %v7940
        %v7986 = vsub.f32 %v7873, %v7940
        %v7987 = vsub.f32 %v7876, %v7940
        %v7988 = vsub.f32 %v7881, %v7940
        %v7989 = vsub.f32 %v7884, %v7940
        %v7990 = vsub.f32 %v7889, %v7940
        %v7991 = vsub.f32 %v7892, %v7940
        %v7992 = vsub.f32 %v7897, %v7940
        %v7993 = vsub.f32 %v7900, %v7940
        %v7994 = vsub.f32 %v7905, %v7940
        %v7995 = vsub.f32 %v7908, %v7940
        %v7996 = vsub.f32 %v7913, %v7940
        %v7997 = vsub.f32 %v7916, %v7940
        %v7998 = vadd.f32 %v7981, 1e-05
        %v7999 = vrsqrt.pop %v7998
        %v8000 = vmul.f32 %v7982, %v7999
        %v8001 = vmul.f32 %v7983, %v7999
        %v8002 = vmul.f32 %v7984, %v7999
        %v8003 = vmul.f32 %v7985, %v7999
        %v8004 = vmul.f32 %v7986, %v7999
        %v8005 = vmul.f32 %v7987, %v7999
        %v8006 = vmul.f32 %v7988, %v7999
        %v8007 = vmul.f32 %v7989, %v7999
        %v8008 = vmul.f32 %v7990, %v7999
        %v8009 = vmul.f32 %v7991, %v7999
        %v8010 = vmul.f32 %v7992, %v7999
        %v8011 = vmul.f32 %v7993, %v7999
        %v8012 = vmul.f32 %v7994, %v7999
        %v8013 = vmul.f32 %v7995, %v7999
        %v8014 = vmul.f32 %v7996, %v7999
        %v8015 = vmul.f32 %v7997, %v7999
        %v8016 = vmul.f32 %v8000, %v514
        %v8017 = vmul.f32 %v8001, %v519
        %v8018 = vmul.f32 %v8002, %v524
        %v8019 = vmul.f32 %v8003, %v529
        %v8020 = vmul.f32 %v8004, %v534
        %v8021 = vmul.f32 %v8005, %v539
        %v8022 = vmul.f32 %v8006, %v544
        %v8023 = vmul.f32 %v8007, %v549
        %v8024 = vmul.f32 %v8008, %v554
        %v8025 = vmul.f32 %v8009, %v559
        %v8026 = vmul.f32 %v8010, %v564
        %v8027 = vmul.f32 %v8011, %v569
        %v8028 = vmul.f32 %v8012, %v574
        %v8029 = vmul.f32 %v8013, %v579
        %v8030 = vmul.f32 %v8014, %v584
        %v8031 = vmul.f32 %v8015, %v589
        %v8032 = vadd.f32 %v8016, %v610
        %v8033 = vadd.f32 %v8017, %v615
        %v8034 = vadd.f32 %v8018, %v620
        %v8035 = vadd.f32 %v8019, %v625
        %v8036 = vadd.f32 %v8020, %v630
        %v8037 = vadd.f32 %v8021, %v635
        %v8038 = vadd.f32 %v8022, %v640
        %v8039 = vadd.f32 %v8023, %v645
        %v8040 = vadd.f32 %v8024, %v650
        %v8041 = vadd.f32 %v8025, %v655
        %v8042 = vadd.f32 %v8026, %v660
        %v8043 = vadd.f32 %v8027, %v665
        %v8044 = vadd.f32 %v8028, %v670
        %v8045 = vadd.f32 %v8029, %v675
        %v8046 = vadd.f32 %v8030, %v680
        %v8047 = vadd.f32 %v8031, %v685
        %v8048 = vmax.f32 %v8032, 0.0
        %v8049 = vmax.f32 %v8033, 0.0
        %v8050 = vmax.f32 %v8034, 0.0
        %v8051 = vmax.f32 %v8035, 0.0
        %v8052 = vmax.f32 %v8036, 0.0
        %v8053 = vmax.f32 %v8037, 0.0
        %v8054 = vmax.f32 %v8038, 0.0
        %v8055 = vmax.f32 %v8039, 0.0
        %v8056 = vmax.f32 %v8040, 0.0
        %v8057 = vmax.f32 %v8041, 0.0
        %v8058 = vmax.f32 %v8042, 0.0
        %v8059 = vmax.f32 %v8043, 0.0
        %v8060 = vmax.f32 %v8044, 0.0
        %v8061 = vmax.f32 %v8045, 0.0
        %v8062 = vmax.f32 %v8046, 0.0
        %v8063 = vmax.f32 %v8047, 0.0
        %v8064 = vpack.c.bf16 %v8049, %v8048
        %v8065 = vpack.c.bf16 %v8051, %v8050
        %v8066 = vpack.c.bf16 %v8053, %v8052
        %v8067 = vpack.c.bf16 %v8055, %v8054
        %v8068 = vpack.c.bf16 %v8057, %v8056
        %v8069 = vpack.c.bf16 %v8059, %v8058
        %v8070 = vpack.c.bf16 %v8061, %v8060
        %v8071 = vpack.c.bf16 %v8063, %v8062
        %8080 = vrot.lane.b32.xlu0 %v8064, 1
        %v8081 = vpop.permute.xlu0 %8080
        %8082 = vrot.lane.b32.xlu0 %v8065, 1
        %v8083 = vpop.permute.xlu0 %8082
        %8084 = vrot.lane.b32.xlu0 %v8066, 1
        %v8085 = vpop.permute.xlu0 %8084
        %8086 = vrot.lane.b32.xlu0 %v8067, 1
        %v8087 = vpop.permute.xlu0 %8086
        %8088 = vrot.lane.b32.xlu0 %v8068, 1
        %v8089 = vpop.permute.xlu0 %8088
        %8090 = vrot.lane.b32.xlu0 %v8069, 1
        %v8091 = vpop.permute.xlu0 %8090
        %8092 = vrot.lane.b32.xlu0 %v8070, 1
        %v8093 = vpop.permute.xlu0 %8092
        %8094 = vrot.lane.b32.xlu0 %v8071, 1
        %v8095 = vpop.permute.xlu0 %8094
        %v8112 = vsel %vm974, %v8081, 0
        %v8113 = vsel %vm974, %v8083, 0
        %v8114 = vsel %vm974, %v8085, 0
        %v8115 = vsel %vm974, %v8087, 0
        %v8116 = vsel %vm974, %v8089, 0
        %v8117 = vsel %vm974, %v8091, 0
        %v8118 = vsel %vm974, %v8093, 0
        %v8119 = vsel %vm974, %v8095, 0
        %8120 = vrot.lane.b32.xlu0 %v8064, 127
        %v8121 = vpop.permute.xlu0 %8120
        %8122 = vrot.lane.b32.xlu0 %v8065, 127
        %v8123 = vpop.permute.xlu0 %8122
        %8124 = vrot.lane.b32.xlu0 %v8066, 127
        %v8125 = vpop.permute.xlu0 %8124
        %8126 = vrot.lane.b32.xlu0 %v8067, 127
        %v8127 = vpop.permute.xlu0 %8126
        %8128 = vrot.lane.b32.xlu0 %v8068, 127
        %v8129 = vpop.permute.xlu0 %8128
        %8130 = vrot.lane.b32.xlu0 %v8069, 127
        %v8131 = vpop.permute.xlu0 %8130
        %8132 = vrot.lane.b32.xlu0 %v8070, 127
        %v8133 = vpop.permute.xlu0 %8132
        %8134 = vrot.lane.b32.xlu0 %v8071, 127
        %v8135 = vpop.permute.xlu0 %8134
        %v8152 = vsel %vm1021, %v8121, 0
        %v8153 = vsel %vm1021, %v8123, 0
        %v8154 = vsel %vm1021, %v8125, 0
        %v8155 = vsel %vm1021, %v8127, 0
        %v8156 = vsel %vm1021, %v8129, 0
        %v8157 = vsel %vm1021, %v8131, 0
        %v8158 = vsel %vm1021, %v8133, 0
        %v8159 = vsel %vm1021, %v8135, 0
        %8160 = vmatprep.subr.bf16.mxu0 0
        %8161 = vmatpush1.bf16.msra.mxu0 %v8119
        %8162 = vmatprep.subr.bf16.mxu0 0
        %8163 = vmatpush1.bf16.msra.mxu0 %v8118
        %8164 = vmatprep.subr.bf16.mxu0 0
        %8165 = vmatpush1.bf16.msra.mxu0 %v8117
        %8166 = vmatprep.subr.bf16.mxu0 0
        %8167 = vmatpush1.bf16.msra.mxu0 %v8116
        %8168 = vmatprep.subr.bf16.mxu0 0
        %8169 = vmatpush1.bf16.msra.mxu0 %v8115
        %8170 = vmatprep.subr.bf16.mxu0 0
        %8171 = vmatpush1.bf16.msra.mxu0 %v8114
        %8172 = vmatprep.subr.bf16.mxu0 0
        %8173 = vmatpush1.bf16.msra.mxu0 %v8113
        %8174 = vmatprep.subr.bf16.mxu0 0
        %8175 = vmatpush1.bf16.msra.mxu0 %v8112
        %8176 = vmatprep.subr.bf16.mxu0 0
        %8177 = vmatpush2.bf16.msra.mxu0 %v8071
        %8178 = vmatprep.subr.bf16.mxu0 0
        %8179 = vmatpush2.bf16.msra.mxu0 %v8070
        %8180 = vmatprep.subr.bf16.mxu0 0
        %8181 = vmatpush2.bf16.msra.mxu0 %v8069
        %8182 = vmatprep.subr.bf16.mxu0 0
        %8183 = vmatpush2.bf16.msra.mxu0 %v8068
        %8184 = vmatprep.subr.bf16.mxu0 0
        %8185 = vmatpush2.bf16.msra.mxu0 %v8067
        %8186 = vmatprep.subr.bf16.mxu0 0
        %8187 = vmatpush2.bf16.msra.mxu0 %v8066
        %8188 = vmatprep.subr.bf16.mxu0 0
        %8189 = vmatpush2.bf16.msra.mxu0 %v8065
        %8190 = vmatprep.subr.bf16.mxu0 0
        %8191 = vmatpush2.bf16.msra.mxu0 %v8064
        %8192 = vmatprep.mubr.bf16.mxu0 %v1674
        %8193 = vmatmul.mubr.bf16.gmra.mxu0 %v1673
        %v8194 = vpop.f32.mrf.mxu0
        %v8195 = vadd.f32 %v7468, %v8194
        %v8196 = vpop.f32.mrf.mxu0
        %v8197 = vpop.f32.mrf.mxu0
        %v8198 = vadd.f32 %v7469, %v8197
        %v8199 = vpop.f32.mrf.mxu0
        %8200 = vmatprep.mubr.bf16.mxu0 %v1677
        %8201 = vmatmul.mubr.bf16.gmra.mxu0 %v1676
        %v8202 = vpop.f32.mrf.mxu0
        %v8203 = vadd.f32 %v7470, %v8202
        %v8204 = vpop.f32.mrf.mxu0
        %v8205 = vpop.f32.mrf.mxu0
        %v8206 = vadd.f32 %v7471, %v8205
        %v8207 = vpop.f32.mrf.mxu0
        %8208 = vmatprep.mubr.bf16.mxu0 %v1680
        %8209 = vmatmul.mubr.bf16.gmra.mxu0 %v1679
        %v8210 = vpop.f32.mrf.mxu0
        %v8211 = vadd.f32 %v7472, %v8210
        %v8212 = vpop.f32.mrf.mxu0
        %v8213 = vpop.f32.mrf.mxu0
        %v8214 = vadd.f32 %v7473, %v8213
        %v8215 = vpop.f32.mrf.mxu0
        %8216 = vmatprep.mubr.bf16.mxu0 %v1683
        %8217 = vmatmul.mubr.bf16.gmra.mxu0 %v1682
        %v8218 = vpop.f32.mrf.mxu0
        %v8219 = vadd.f32 %v7474, %v8218
        %v8220 = vpop.f32.mrf.mxu0
        %v8221 = vpop.f32.mrf.mxu0
        %v8222 = vadd.f32 %v7475, %v8221
        %v8223 = vpop.f32.mrf.mxu0
        %8224 = vmatprep.mubr.bf16.mxu0 %v1686
        %8225 = vmatmul.mubr.bf16.gmra.mxu0 %v1685
        %v8226 = vpop.f32.mrf.mxu0
        %v8227 = vadd.f32 %v7476, %v8226
        %v8228 = vpop.f32.mrf.mxu0
        %v8229 = vpop.f32.mrf.mxu0
        %v8230 = vadd.f32 %v7477, %v8229
        %v8231 = vpop.f32.mrf.mxu0
        %8232 = vmatprep.mubr.bf16.mxu0 %v1689
        %8233 = vmatmul.mubr.bf16.gmra.mxu0 %v1688
        %v8234 = vpop.f32.mrf.mxu0
        %v8235 = vadd.f32 %v7478, %v8234
        %v8236 = vpop.f32.mrf.mxu0
        %v8237 = vpop.f32.mrf.mxu0
        %v8238 = vadd.f32 %v7479, %v8237
        %v8239 = vpop.f32.mrf.mxu0
        %8240 = vmatprep.mubr.bf16.mxu0 %v1692
        %8241 = vmatmul.mubr.bf16.gmra.mxu0 %v1691
        %v8242 = vpop.f32.mrf.mxu0
        %v8243 = vadd.f32 %v7480, %v8242
        %v8244 = vpop.f32.mrf.mxu0
        %v8245 = vpop.f32.mrf.mxu0
        %v8246 = vadd.f32 %v7481, %v8245
        %v8247 = vpop.f32.mrf.mxu0
        %8248 = vmatprep.mubr.bf16.mxu0 %v1695
        %8249 = vmatmul.mubr.bf16.gmra.mxu0 %v1694
        %v8250 = vpop.f32.mrf.mxu0
        %v8251 = vadd.f32 %v7482, %v8250
        %v8252 = vpop.f32.mrf.mxu0
        %v8253 = vpop.f32.mrf.mxu0
        %v8254 = vadd.f32 %v7483, %v8253
        %v8255 = vpop.f32.mrf.mxu0
        %8256 = vdwg.mxu0
        %8257 = vmatprep.subr.bf16.mxu0 0
        %8258 = vmatpush1.bf16.msra.mxu0 %v8159
        %8259 = vmatprep.subr.bf16.mxu0 0
        %8260 = vmatpush1.bf16.msra.mxu0 %v8158
        %8261 = vmatprep.subr.bf16.mxu0 0
        %8262 = vmatpush1.bf16.msra.mxu0 %v8157
        %8263 = vmatprep.subr.bf16.mxu0 0
        %8264 = vmatpush1.bf16.msra.mxu0 %v8156
        %8265 = vmatprep.subr.bf16.mxu0 0
        %8266 = vmatpush1.bf16.msra.mxu0 %v8155
        %8267 = vmatprep.subr.bf16.mxu0 0
        %8268 = vmatpush1.bf16.msra.mxu0 %v8154
        %8269 = vmatprep.subr.bf16.mxu0 0
        %8270 = vmatpush1.bf16.msra.mxu0 %v8153
        %8271 = vmatprep.subr.bf16.mxu0 0
        %8272 = vmatpush1.bf16.msra.mxu0 %v8152
        %8273 = vmatprep.subr.bf16.mxu0 0
        %8274 = vmatpush2.bf16.msra.mxu0 0
        %8275 = vmatprep.subr.bf16.mxu0 0
        %8276 = vmatpush2.bf16.msra.mxu0 0
        %8277 = vmatprep.subr.bf16.mxu0 0
        %8278 = vmatpush2.bf16.msra.mxu0 0
        %8279 = vmatprep.subr.bf16.mxu0 0
        %8280 = vmatpush2.bf16.msra.mxu0 0
        %8281 = vmatprep.subr.bf16.mxu0 0
        %8282 = vmatpush2.bf16.msra.mxu0 0
        %8283 = vmatprep.subr.bf16.mxu0 0
        %8284 = vmatpush2.bf16.msra.mxu0 0
        %8285 = vmatprep.subr.bf16.mxu0 0
        %8286 = vmatpush2.bf16.msra.mxu0 0
        %8287 = vmatprep.subr.bf16.mxu0 0
        %8288 = vmatpush2.bf16.msra.mxu0 0
        %8289 = vmatprep.mubr.bf16.mxu0 0
        %8290 = vmatmul.mubr.bf16.gmra.mxu0 %v1675
        %v8291 = vpop.f32.mrf.mxu0
        %v8292 = vadd.f32 %v8195, %v8291
        %v8293 = vpop.f32.mrf.mxu0
        %v8294 = vpop.f32.mrf.mxu0
        %v8295 = vadd.f32 %v8198, %v8294
        %v8296 = vpop.f32.mrf.mxu0
        %8297 = vmatprep.mubr.bf16.mxu0 0
        %8298 = vmatmul.mubr.bf16.gmra.mxu0 %v1678
        %v8299 = vpop.f32.mrf.mxu0
        %v8300 = vadd.f32 %v8203, %v8299
        %v8301 = vpop.f32.mrf.mxu0
        %v8302 = vpop.f32.mrf.mxu0
        %v8303 = vadd.f32 %v8206, %v8302
        %v8304 = vpop.f32.mrf.mxu0
        %8305 = vmatprep.mubr.bf16.mxu0 0
        %8306 = vmatmul.mubr.bf16.gmra.mxu0 %v1681
        %v8307 = vpop.f32.mrf.mxu0
        %v8308 = vadd.f32 %v8211, %v8307
        %v8309 = vpop.f32.mrf.mxu0
        %v8310 = vpop.f32.mrf.mxu0
        %v8311 = vadd.f32 %v8214, %v8310
        %v8312 = vpop.f32.mrf.mxu0
        %8313 = vmatprep.mubr.bf16.mxu0 0
        %8314 = vmatmul.mubr.bf16.gmra.mxu0 %v1684
        %v8315 = vpop.f32.mrf.mxu0
        %v8316 = vadd.f32 %v8219, %v8315
        %v8317 = vpop.f32.mrf.mxu0
        %v8318 = vpop.f32.mrf.mxu0
        %v8319 = vadd.f32 %v8222, %v8318
        %v8320 = vpop.f32.mrf.mxu0
        %8321 = vmatprep.mubr.bf16.mxu0 0
        %8322 = vmatmul.mubr.bf16.gmra.mxu0 %v1687
        %v8323 = vpop.f32.mrf.mxu0
        %v8324 = vadd.f32 %v8227, %v8323
        %v8325 = vpop.f32.mrf.mxu0
        %v8326 = vpop.f32.mrf.mxu0
        %v8327 = vadd.f32 %v8230, %v8326
        %v8328 = vpop.f32.mrf.mxu0
        %8329 = vmatprep.mubr.bf16.mxu0 0
        %8330 = vmatmul.mubr.bf16.gmra.mxu0 %v1690
        %v8331 = vpop.f32.mrf.mxu0
        %v8332 = vadd.f32 %v8235, %v8331
        %v8333 = vpop.f32.mrf.mxu0
        %v8334 = vpop.f32.mrf.mxu0
        %v8335 = vadd.f32 %v8238, %v8334
        %v8336 = vpop.f32.mrf.mxu0
        %8337 = vmatprep.mubr.bf16.mxu0 0
        %8338 = vmatmul.mubr.bf16.gmra.mxu0 %v1693
        %v8339 = vpop.f32.mrf.mxu0
        %v8340 = vadd.f32 %v8243, %v8339
        %v8341 = vpop.f32.mrf.mxu0
        %v8342 = vpop.f32.mrf.mxu0
        %v8343 = vadd.f32 %v8246, %v8342
        %v8344 = vpop.f32.mrf.mxu0
        %8345 = vmatprep.mubr.bf16.mxu0 0
        %8346 = vmatmul.mubr.bf16.gmra.mxu0 %v1696
        %v8347 = vpop.f32.mrf.mxu0
        %v8348 = vadd.f32 %v8251, %v8347
        %v8349 = vpop.f32.mrf.mxu0
        %v8350 = vpop.f32.mrf.mxu0
        %v8351 = vadd.f32 %v8254, %v8350
        %v8352 = vpop.f32.mrf.mxu0
        %8353 = vdwg.mxu0
        %v8354 = vmax.f32 %v8292, 0.0
        %v8355 = vmax.f32 %v8295, 0.0
        %v8356 = vmax.f32 %v8300, 0.0
        %v8357 = vmax.f32 %v8303, 0.0
        %v8358 = vmax.f32 %v8308, 0.0
        %v8359 = vmax.f32 %v8311, 0.0
        %v8360 = vmax.f32 %v8316, 0.0
        %v8361 = vmax.f32 %v8319, 0.0
        %v8362 = vmax.f32 %v8324, 0.0
        %v8363 = vmax.f32 %v8327, 0.0
        %v8364 = vmax.f32 %v8332, 0.0
        %v8365 = vmax.f32 %v8335, 0.0
        %v8366 = vmax.f32 %v8340, 0.0
        %v8367 = vmax.f32 %v8343, 0.0
        %v8368 = vmax.f32 %v8348, 0.0
        %v8369 = vmax.f32 %v8351, 0.0
        %s8370 = scalar_lea.vmem %s297, 896 [#allocation5]
        %8371 = vst [vmem:[%s8370] sm:$0xff] %v8354
        %8372 = vst [vmem:[%s8370 + $0x8] sm:$0xff] %v8355
        %8373 = vst [vmem:[%s8370 + $0x10] sm:$0xff] %v8356
        %8374 = vst [vmem:[%s8370 + $0x18] sm:$0xff] %v8357
        %8375 = vst [vmem:[%s8370 + $0x20] sm:$0xff] %v8358
        %8376 = vst [vmem:[%s8370 + $0x28] sm:$0xff] %v8359
        %8377 = vst [vmem:[%s8370 + $0x30] sm:$0xff] %v8360
        %8378 = vst [vmem:[%s8370 + $0x38] sm:$0xff] %v8361
        %8379 = vst [vmem:[%s8370 + $0x40] sm:$0xff] %v8362
        %8380 = vst [vmem:[%s8370 + $0x48] sm:$0xff] %v8363
        %8381 = vst [vmem:[%s8370 + $0x50] sm:$0xff] %v8364
        %8382 = vst [vmem:[%s8370 + $0x58] sm:$0xff] %v8365
        %8383 = vst [vmem:[%s8370 + $0x60] sm:$0xff] %v8366
        %8384 = vst [vmem:[%s8370 + $0x68] sm:$0xff] %v8367
        %8385 = vst [vmem:[%s8370 + $0x70] sm:$0xff] %v8368
        %8386 = vst [vmem:[%s8370 + $0x78] sm:$0xff] %v8369
        %s8387 = sand.u32 %s184, 1
        %s8388 = scalar_lea.sflag [#allocation4], %s8387
        %s8389 = sand.u32 %s184, 1
        %s8390 = smul.addr %s8389, 1024
        %s8391 = scalar_lea.vmem [#allocation5], %s8390
        // Predicated region
        $region53: #{tpu_custom_call.1} parent=47 // pred_check
          %p8392 = pneg %p194
        $region54: #{tpu_custom_call.1} parent=47 // pred_check_branch
          %8394 = sbr.rel (%p8392) target = $region56
        $region55: #{tpu_custom_call.1} parent=47 // pred_region
          %s8395 = smul.u32 8, %s24
          %s8397 = ssub.s32 16384, 16384
          %8398 = vsyncadd %s8388, %s8397
          %s8399 = smul.addr %s8395, 16
          %s8400 = smul.addr %s8399, 128
          %s8401 = scalar_lea.hbm %s7, %s8400
          %s8402 = sshll.u32 %s8391, 4
          %s8403 = int_to_ptr.vmem [resolvable:$true] %s8402
          %8408 = dma.vmem_to_hbm [thread:$0]  %s8403, 16384, %s8401, %s8388, 128, 128, 8
        $region56: #{tpu_custom_call.1} parent=47 // pred_fallthru
          _
      $region48: #{tpu_custom_call.1} parent=5 // pred_fallthru
        _
      %p8409 = scmp.le.s32.totalorder 2, %s19
      // Predicated region
      $region57: #{tpu_custom_call.1} parent=5 // pred_check
        %p8410 = pneg %p8409
      $region58: #{tpu_custom_call.1} parent=5 // pred_check_branch
        %8412 = sbr.rel (%p8410) target = $region60
      $region59: #{tpu_custom_call.1} parent=5 // pred_region
        %s8413 = ssub.s32 %s19, 2
        // Predicated region
        $region61: #{tpu_custom_call.1} parent=59 // pred_check
          %p8414 = pneg %p200
        $region62: #{tpu_custom_call.1} parent=59 // pred_check_branch
          %8416 = sbr.rel (%p8414) target = $region64
        $region63: #{tpu_custom_call.1} parent=59 // pred_region
          %s8417 = sand.u32 %s185, 1
          %s8418 = scalar_lea.sflag [#allocation4], %s8417
          %s8419 = sand.u32 %s185, 1
          %s8420 = smul.addr %s8419, 1024
          %s8421 = scalar_lea.vmem [#allocation5], %s8420
          %8422 = dma.done %s8418, 16384
        $region64: #{tpu_custom_call.1} parent=59 // pred_fallthru
          _
      $region60: #{tpu_custom_call.1} parent=5 // pred_fallthru
        _
    $region6: #{tpu_custom_call.1} parent=1 // loop_footer
      %s23 = sadd.s32 1, %s19
    $region7: #{tpu_custom_call.1} parent=1 // loop_footer_branch
      %18 = sbr.rel target = $region3
    $region8: #{tpu_custom_call.1} parent=1 // loop_exit
      _
    %8423 = vsyncpa [#allocation3], 1
    %s8424 = scalar_lea.sflag [#allocation3], 1
    %8425 = vsyncpa %s8424, 1
    %8426 = vsyncpa [#allocation4], 1
    %s8427 = scalar_lea.sflag [#allocation4], 1
    %8428 = vsyncpa %s8427, 1

</llo_original>
